<compile_context>
chip_gen: v7x
topology: tpu7x:2x2x1
jax: 0.10.0
libtpu: 0.0.40
codegen_flags: <defaults>
</compile_context>

<pallas_src>
import jax
import jax.numpy as jnp
from jax import lax
from jax.experimental import pallas as pl
from jax.experimental.pallas import tpu as pltpu


# ---------------------------------------------------------------------------
# Fused kernel
# ---------------------------------------------------------------------------
def _make_fused_kernel(H, W, Cin, Cout, G, mm_dtype):
    HW = H * W
    Cpg = Cout // G
    eps = 1e-5
    inv_cnt = 1.0 / float(HW * Cpg)

    def conv3x3(src_ref, w_ref, cin):
        """3x3 conv over a zero-padded (H+2, W+2, cin) VMEM scratch."""
        acc = jnp.zeros((HW, Cout), jnp.float32)
        if cin % 128 == 0:
            # Fat-K: 3 MXU calls with K = 3*cin (lane-aligned channel concat).
            for kh in range(3):
                patch = jnp.concatenate(
                    [src_ref[kh:kh + H, kw:kw + W, :] for kw in range(3)],
                    axis=-1).reshape(HW, 3 * cin).astype(mm_dtype)
                acc = acc + jnp.dot(patch, w_ref[kh],
                                    preferred_element_type=jnp.float32)
        else:
            # Narrow channels: avoid an unaligned lane concat; 9 small matmuls.
            for kh in range(3):
                for kw in range(3):
                    patch = src_ref[kh:kh + H, kw:kw + W, :]
                    patch = patch.reshape(HW, cin).astype(mm_dtype)
                    wkk = w_ref[kh, kw * cin:(kw + 1) * cin, :]
                    acc = acc + jnp.dot(patch, wkk,
                                        preferred_element_type=jnp.float32)
        return acc

    def kernel(x_ref, w1_ref, w2_ref, p_ref, gmat_ref, o_ref, xp_ref, y1p_ref):
        # Zero the padded scratches (halo must be zero for 'same' padding).
        # Done every grid step so correctness does not depend on how a
        # "parallel" grid axis is split across TensorCores.
        xp_ref[...] = jnp.zeros_like(xp_ref)
        y1p_ref[...] = jnp.zeros_like(y1p_ref)

        gmat = gmat_ref[...]                      # (Cout, Cout) same-group 0/1

        def gn_relu(acc, prow):
            """relu(GroupNorm(acc + bias)) with one-pass stats, folded affine.

            acc: (HW, Cout) f32 conv output (bias not yet added).
            prow: row offset into p_ref for (bias, gamma, beta).
            """
            b = p_ref[prow:prow + 1, :]           # (1, Cout)
            gamma = p_ref[prow + 1:prow + 2, :]
            beta = p_ref[prow + 2:prow + 3, :]

            s = jnp.sum(acc, axis=0, keepdims=True)            # (1, Cout)
            ss = jnp.sum(acc * acc, axis=0, keepdims=True)     # (1, Cout)
            # Fold the conv bias into the statistics analytically.
            sb = s + float(HW) * b                             # sum(acc + b)
            ssb = ss + 2.0 * b * s + float(HW) * b * b         # sum((acc+b)^2)

            # Per-channel group aggregates via a tiny 0/1 matmul (no reshape).
            mean_c = jnp.dot(sb, gmat,
                             preferred_element_type=jnp.float32) * inv_cnt
            ex2_c = jnp.dot(ssb, gmat,
                            preferred_element_type=jnp.float32) * inv_cnt
            var_c = ex2_c - mean_c * mean_c
            rstd_c = lax.rsqrt(var_c + eps)

            # Single FMA epilogue: y = acc*scale + shift, then ReLU.
            scale = gamma * rstd_c
            shift = beta + (b - mean_c) * scale
            return jnp.maximum(acc * scale + shift, 0.0)       # (HW, Cout) f32

        # --- stage 1: y1 = relu(gn1(conv1(x))) ---
        x = x_ref[0]                                           # (HW, Cin) f32
        xp_ref[1:H + 1, 1:W + 1, :] = x.reshape(H, W, Cin)
        y1 = gn_relu(conv3x3(xp_ref, w1_ref, Cin), 0)
        y1p_ref[1:H + 1, 1:W + 1, :] = y1.reshape(H, W, Cout)

        # --- stage 2: out = relu(x + relu(gn2(conv2(y1)))) ---
        y2 = gn_relu(conv3x3(y1p_ref, w2_ref, Cout), 3)
        o_ref[0] = jnp.maximum(x + y2, 0.0)

    return kernel


# ---------------------------------------------------------------------------
# Wrappers
# ---------------------------------------------------------------------------
def _round_up(v, m):
    return (v + m - 1) // m * m


def _vmem_estimate(H, W, Cin, Cout, mm_dtype):
    """Rough VMEM residency (native (8,128) tiling) with headroom."""
    f32b = 4
    wb = 2 if mm_dtype == jnp.bfloat16 else 4

    def tb(shape, itemsize):
        s = list(shape)
        s[-1] = _round_up(s[-1], 128)
        if len(s) >= 2:
            s[-2] = _round_up(s[-2], 8)
        n = 1
        for d in s:
            n *= d
        return n * itemsize

    hw = H * W
    total = 0
    total += 2 * tb((1, hw, Cin), f32b)            # input block (double-buf)
    total += 2 * tb((1, hw, Cout), f32b)           # output block
    total += 2 * tb((3, 3 * Cin, Cout), wb)        # w1
    total += 2 * tb((3, 3 * Cout, Cout), wb)       # w2
    total += 2 * tb((6, Cout), f32b)               # packed norm params
    total += 2 * tb((Cout, Cout), f32b)            # group matrix
    total += tb((H + 2, W + 2, Cin), f32b)         # padded-input scratch
    total += tb((H + 2, W + 2, Cout), f32b)        # padded-y1 scratch
    total += tb((hw, 3 * max(Cin, Cout)), wb)      # patch slab (live value)
    total += 3 * tb((hw, Cout), f32b)              # f32 accumulator / epilogue
    total = int(total * 1.3)
    # Cap at 64 MiB so the same setting is valid on v5e/v6e/v7x.
    return max(32 * 1024 * 1024, min(total, 64 * 1024 * 1024))


def residual_block_forward_nhwc(x_nhwc, params, num_groups, use_bf16=False):
    """Fused ResidualBlock forward, NHWC in / NHWC out."""
    N, H, W, Cin = x_nhwc.shape
    Cout = params["w1"].shape[3]
    assert params["w1"].shape == (3, 3, Cin, Cout)
    assert params["w2"].shape == (3, 3, Cout, Cout)
    assert Cin == Cout, "stride=1 residual add requires in_planes == planes"
    assert Cout % num_groups == 0
    G = num_groups

    mm_dtype = jnp.bfloat16 if use_bf16 else jnp.float32
    # Weights pre-reshaped for the fat-K form: (3, 3*Cin, Cout), kw-major.
    w1k = params["w1"].reshape(3, 3 * Cin, Cout).astype(mm_dtype)
    w2k = params["w2"].reshape(3, 3 * Cout, Cout).astype(mm_dtype)
    # Pack bias/gamma/beta of both norms into one (6, Cout) array.
    pvec = jnp.stack([params["b1"], params["g1"], params["be1"],
                      params["b2"], params["g2"], params["be2"]],
                     axis=0).astype(jnp.float32)
    # Same-group indicator: gmat[c, c'] = 1 if channels c, c' share a group.
    cg = jnp.arange(Cout) // (Cout // G)
    gmat = (cg[:, None] == cg[None, :]).astype(jnp.float32)

    x2 = x_nhwc.reshape(N, H * W, Cin).astype(jnp.float32)
    kernel = _make_fused_kernel(H, W, Cin, Cout, G, mm_dtype)

    out2 = pl.pallas_call(
        kernel,
        out_shape=jax.ShapeDtypeStruct((N, H * W, Cout), jnp.float32),
        grid=(N,),
        in_specs=[
            pl.BlockSpec((1, H * W, Cin), lambda n: (n, 0, 0)),
            pl.BlockSpec((3, 3 * Cin, Cout), lambda n: (0, 0, 0)),
            pl.BlockSpec((3, 3 * Cout, Cout), lambda n: (0, 0, 0)),
            pl.BlockSpec((6, Cout), lambda n: (0, 0)),
            pl.BlockSpec((Cout, Cout), lambda n: (0, 0)),
        ],
        out_specs=pl.BlockSpec((1, H * W, Cout), lambda n: (n, 0, 0)),
        scratch_shapes=[
            pltpu.VMEM((H + 2, W + 2, Cin), jnp.float32),   # padded x
            pltpu.VMEM((H + 2, W + 2, Cout), jnp.float32),  # padded y1
        ],
        compiler_params=pltpu.CompilerParams(
            dimension_semantics=("parallel",),
            vmem_limit_bytes=_vmem_estimate(H, W, Cin, Cout, mm_dtype)),
    )(x2, w1k, w2k, pvec, gmat)

    return out2.reshape(N, H, W, Cout)


def residual_block_forward(x_nchw, params, num_groups, use_bf16=False):
    """PyTorch-semantics entry point (NCHW in / NCHW out).

    NOTE: the two transposes are extra full HBM passes done by XLA; if the
    surrounding model can run NHWC, call residual_block_forward_nhwc directly.
    """
    x = jnp.transpose(x_nchw, (0, 2, 3, 1))
    y = residual_block_forward_nhwc(x, params, num_groups, use_bf16=use_bf16)
    return jnp.transpose(y, (0, 3, 1, 2))


# ---------------------------------------------------------------------------
# Pure-JAX reference (correctness check)
# ---------------------------------------------------------------------------
def _ref_forward(x_nchw, params, num_groups):
    def conv3x3(x, w_hwio, b):
        w_oihw = jnp.transpose(w_hwio, (3, 2, 0, 1))
        y = lax.conv_general_dilated(
            x, w_oihw, window_strides=(1, 1), padding=((1, 1), (1, 1)),
            dimension_numbers=("NCHW", "OIHW", "NCHW"))
        return y + b[None, :, None, None]

    def gn(x, gamma, beta, G):
        N, C, H, W = x.shape
        xg = x.reshape(N, G, C // G, H, W)
        mean = xg.mean(axis=(2, 3, 4), keepdims=True)
        var = jnp.square(xg - mean).mean(axis=(2, 3, 4), keepdims=True)
        xg = (xg - mean) / jnp.sqrt(var + 1e-5)
        x = xg.reshape(N, C, H, W)
        return x * gamma[None, :, None, None] + beta[None, :, None, None]

    y = jax.nn.relu(gn(conv3x3(x_nchw, params["w1"], params["b1"]),
                       params["g1"], params["be1"], num_groups))
    y = jax.nn.relu(gn(conv3x3(y, params["w2"], params["b2"]),
                       params["g2"], params["be2"], num_groups))
    return jax.nn.relu(x_nchw + y)


# ---------------------------------------------------------------------------
# Demo / self-test
# ---------------------------------------------------------------------------
if __name__ == "__main__":
    def make_case(key, N, C, Hs, Ws):
        ks = jax.random.split(key, 9)
        x = jax.random.normal(ks[0], (N, C, Hs, Ws), jnp.float32)
        params = {
            # Conv weights stored HWIO (3, 3, Cin, Cout) for the NHWC kernel.
            "w1": 0.1 * jax.random.normal(ks[1], (3, 3, C, C), jnp.float32),
            "b1": 0.05 * jax.random.normal(ks[2], (C,), jnp.float32),
            "w2": 0.1 * jax.random.normal(ks[3], (3, 3, C, C), jnp.float32),
            "b2": 0.05 * jax.random.normal(ks[4], (C,), jnp.float32),
            # GroupNorm affine params (non-trivial to exercise the fold).
            "g1": 1.0 + 0.1 * jax.random.normal(ks[5], (C,), jnp.float32),
            "be1": 0.1 * jax.random.normal(ks[6], (C,), jnp.float32),
            "g2": 1.0 + 0.1 * jax.random.normal(ks[7], (C,), jnp.float32),
            "be2": 0.1 * jax.random.normal(ks[8], (C,), jnp.float32),
        }
        return x, params

    key = jax.random.PRNGKey(0)
    k1, k2, k3 = jax.random.split(key, 3)

    # Case 1: planes=8 (num_groups=1), 16x16, batch 2 -- f32 and bf16-MXU.
    x, params = make_case(k1, 2, 8, 16, 16)
    ref = _ref_forward(x, params, 1)

    out = jax.block_until_ready(residual_block_forward(x, params, 1))
    assert out.shape == ref.shape
    assert jnp.allclose(out, ref, rtol=1e-3, atol=1e-3), \
        f"f32 max abs err = {float(jnp.max(jnp.abs(out - ref)))}"

    out_bf = jax.block_until_ready(
        residual_block_forward(x, params, 1, use_bf16=True))
    assert jnp.allclose(out_bf, ref, rtol=5e-2, atol=5e-2), \
        f"bf16 max abs err = {float(jnp.max(jnp.abs(out_bf - ref)))}"

    # Case 2: planes=16 (num_groups=2), 8x8, batch 2 -- exercises G > 1.
    x2, params2 = make_case(k2, 2, 16, 8, 8)
    out2 = jax.block_until_ready(residual_block_forward(x2, params2, 2))
    ref2 = _ref_forward(x2, params2, 2)
    assert jnp.allclose(out2, ref2, rtol=1e-3, atol=1e-3), \
        f"G=2 max abs err = {float(jnp.max(jnp.abs(out2 - ref2)))}"

    # Case 3: planes=128 (num_groups=16), 8x8 -- exercises the lane-aligned
    # fat-K (K = 3*128) conv path and lane-dense I/O blocks.
    x3, params3 = make_case(k3, 2, 128, 8, 8)
    out3 = jax.block_until_ready(residual_block_forward(x3, params3, 16))
    ref3 = _ref_forward(x3, params3, 16)
    assert jnp.allclose(out3, ref3, rtol=1e-3, atol=1e-3), \
        f"C=128 max abs err = {float(jnp.max(jnp.abs(out3 - ref3)))}"

    print("KERNEL_OK")
</pallas_src>

<mosaic_0001>
module attributes {stable_mosaic.version = 11 : i64} {
  func.func @kernel(%arg0: i32, %arg1: memref<1x256x8xf32, #tpu.memory_space<vmem>>, %arg2: memref<3x24x8xf32, #tpu.memory_space<vmem>>, %arg3: memref<3x24x8xf32, #tpu.memory_space<vmem>>, %arg4: memref<6x8xf32, #tpu.memory_space<vmem>>, %arg5: memref<8x8xf32, #tpu.memory_space<vmem>>, %arg6: memref<1x256x8xf32, #tpu.memory_space<vmem>>, %arg7: memref<18x18x8xf32, #tpu.memory_space<vmem>>, %arg8: memref<18x18x8xf32, #tpu.memory_space<vmem>>) attributes {dimension_semantics = [#tpu.dimension_semantics<parallel>], iteration_bounds = array<i64: 2>, scalar_prefetch = 0 : i64, scratch_operands = 2 : i64, tpu.core_type = #tpu.core_type<tc>, window_params = [{transform_indices = @transform_0, window_bounds = array<i64: 1, 256, 8>}, {pipeline_mode = #tpu.pipeline_mode<synchronous>, transform_indices = @transform_1, window_bounds = array<i64: 3, 24, 8>}, {pipeline_mode = #tpu.pipeline_mode<synchronous>, transform_indices = @transform_2, window_bounds = array<i64: 3, 24, 8>}, {pipeline_mode = #tpu.pipeline_mode<synchronous>, transform_indices = @transform_3, window_bounds = array<i64: 6, 8>}, {pipeline_mode = #tpu.pipeline_mode<synchronous>, transform_indices = @transform_4, window_bounds = array<i64: 8, 8>}, {transform_indices = @transform_5, window_bounds = array<i64: 1, 256, 8>}]} {
    %cst = arith.constant 0.000000e+00 : f32
    %0 = vector.broadcast %cst : f32 to vector<18x18x8xf32>
    %c0 = arith.constant 0 : index
    %c0_0 = arith.constant 0 : index
    %c0_1 = arith.constant 0 : index
    %1 = vector.load %arg7[%c0, %c0_0, %c0_1] : memref<18x18x8xf32, #tpu.memory_space<vmem>>, vector<18x18x8xf32>
    tpu.vector_store %arg7[%c0, %c0_0, %c0_1], %0 {strides = array<i32>} : memref<18x18x8xf32, #tpu.memory_space<vmem>>, vector<18x18x8xf32>,
    %cst_2 = arith.constant 0.000000e+00 : f32
    %2 = vector.broadcast %cst_2 : f32 to vector<18x18x8xf32>
    %c0_3 = arith.constant 0 : index
    %c0_4 = arith.constant 0 : index
    %c0_5 = arith.constant 0 : index
    %3 = vector.load %arg8[%c0_3, %c0_4, %c0_5] : memref<18x18x8xf32, #tpu.memory_space<vmem>>, vector<18x18x8xf32>
    tpu.vector_store %arg8[%c0_3, %c0_4, %c0_5], %2 {strides = array<i32>} : memref<18x18x8xf32, #tpu.memory_space<vmem>>, vector<18x18x8xf32>,
    %c0_6 = arith.constant 0 : index
    %c0_7 = arith.constant 0 : index
    %4 = vector.load %arg5[%c0_6, %c0_7] : memref<8x8xf32, #tpu.memory_space<vmem>>, vector<8x8xf32>
    %c0_8 = arith.constant 0 : index
    %c0_9 = arith.constant 0 : index
    %c0_10 = arith.constant 0 : index
    %5 = vector.load %arg1[%c0_8, %c0_9, %c0_10] : memref<1x256x8xf32, #tpu.memory_space<vmem>>, vector<1x256x8xf32>
    %6 = vector.shape_cast %5 : vector<1x256x8xf32> to vector<256x8xf32>
    %7 = vector.shape_cast %6 : vector<256x8xf32> to vector<16x16x8xf32>
    %c1 = arith.constant 1 : index
    %c1_11 = arith.constant 1 : index
    %c0_12 = arith.constant 0 : index
    %8 = vector.load %arg7[%c1, %c1_11, %c0_12] : memref<18x18x8xf32, #tpu.memory_space<vmem>>, vector<16x16x8xf32>
    tpu.vector_store %arg7[%c1, %c1_11, %c0_12], %7 {strides = array<i32>} : memref<18x18x8xf32, #tpu.memory_space<vmem>>, vector<16x16x8xf32>,
    %cst_13 = arith.constant 0.000000e+00 : f32
    %9 = vector.broadcast %cst_13 : f32 to vector<256x8xf32>
    %c0_14 = arith.constant 0 : index
    %c0_15 = arith.constant 0 : index
    %c0_16 = arith.constant 0 : index
    %10 = vector.load %arg7[%c0_14, %c0_15, %c0_16] : memref<18x18x8xf32, #tpu.memory_space<vmem>>, vector<16x16x8xf32>
    %11 = vector.shape_cast %10 : vector<16x16x8xf32> to vector<256x8xf32>
    %c0_17 = arith.constant 0 : index
    %c0_18 = arith.constant 0 : index
    %c0_19 = arith.constant 0 : index
    %12 = vector.load %arg2[%c0_17, %c0_18, %c0_19] : memref<3x24x8xf32, #tpu.memory_space<vmem>>, vector<1x8x8xf32>
    %13 = vector.shape_cast %12 : vector<1x8x8xf32> to vector<8x8xf32>
    %cst_20 = arith.constant dense<0.000000e+00> : vector<256x8xf32>
    %14 = tpu.matmul %11, %13, %cst_20 {dimension_numbers = #tpu.dot_dimension_numbers<[1], [0], [0], [1], [0, 0, 1, 1], [], []>} : vector<256x8xf32>, vector<8x8xf32>, vector<256x8xf32> -> vector<256x8xf32>
    %15 = arith.addf %9, %14 : vector<256x8xf32>
    %c0_21 = arith.constant 0 : index
    %c1_22 = arith.constant 1 : index
    %c0_23 = arith.constant 0 : index
    %16 = vector.load %arg7[%c0_21, %c1_22, %c0_23] : memref<18x18x8xf32, #tpu.memory_space<vmem>>, vector<16x16x8xf32>
    %17 = vector.shape_cast %16 : vector<16x16x8xf32> to vector<256x8xf32>
    %c0_24 = arith.constant 0 : index
    %c8 = arith.constant 8 : index
    %c0_25 = arith.constant 0 : index
    %18 = vector.load %arg2[%c0_24, %c8, %c0_25] : memref<3x24x8xf32, #tpu.memory_space<vmem>>, vector<1x8x8xf32>
    %19 = vector.shape_cast %18 : vector<1x8x8xf32> to vector<8x8xf32>
    %cst_26 = arith.constant dense<0.000000e+00> : vector<256x8xf32>
    %20 = tpu.matmul %17, %19, %cst_26 {dimension_numbers = #tpu.dot_dimension_numbers<[1], [0], [0], [1], [0, 0, 1, 1], [], []>} : vector<256x8xf32>, vector<8x8xf32>, vector<256x8xf32> -> vector<256x8xf32>
    %21 = arith.addf %15, %20 : vector<256x8xf32>
    %c0_27 = arith.constant 0 : index
    %c2 = arith.constant 2 : index
    %c0_28 = arith.constant 0 : index
    %22 = vector.load %arg7[%c0_27, %c2, %c0_28] : memref<18x18x8xf32, #tpu.memory_space<vmem>>, vector<16x16x8xf32>
    %23 = vector.shape_cast %22 : vector<16x16x8xf32> to vector<256x8xf32>
    %c0_29 = arith.constant 0 : index
    %c16 = arith.constant 16 : index
    %c0_30 = arith.constant 0 : index
    %24 = vector.load %arg2[%c0_29, %c16, %c0_30] : memref<3x24x8xf32, #tpu.memory_space<vmem>>, vector<1x8x8xf32>
    %25 = vector.shape_cast %24 : vector<1x8x8xf32> to vector<8x8xf32>
    %cst_31 = arith.constant dense<0.000000e+00> : vector<256x8xf32>
    %26 = tpu.matmul %23, %25, %cst_31 {dimension_numbers = #tpu.dot_dimension_numbers<[1], [0], [0], [1], [0, 0, 1, 1], [], []>} : vector<256x8xf32>, vector<8x8xf32>, vector<256x8xf32> -> vector<256x8xf32>
    %27 = arith.addf %21, %26 : vector<256x8xf32>
    %c1_32 = arith.constant 1 : index
    %c0_33 = arith.constant 0 : index
    %c0_34 = arith.constant 0 : index
    %28 = vector.load %arg7[%c1_32, %c0_33, %c0_34] : memref<18x18x8xf32, #tpu.memory_space<vmem>>, vector<16x16x8xf32>
    %29 = vector.shape_cast %28 : vector<16x16x8xf32> to vector<256x8xf32>
    %c1_35 = arith.constant 1 : index
    %c0_36 = arith.constant 0 : index
    %c0_37 = arith.constant 0 : index
    %30 = vector.load %arg2[%c1_35, %c0_36, %c0_37] : memref<3x24x8xf32, #tpu.memory_space<vmem>>, vector<1x8x8xf32>
    %31 = vector.shape_cast %30 : vector<1x8x8xf32> to vector<8x8xf32>
    %cst_38 = arith.constant dense<0.000000e+00> : vector<256x8xf32>
    %32 = tpu.matmul %29, %31, %cst_38 {dimension_numbers = #tpu.dot_dimension_numbers<[1], [0], [0], [1], [0, 0, 1, 1], [], []>} : vector<256x8xf32>, vector<8x8xf32>, vector<256x8xf32> -> vector<256x8xf32>
    %33 = arith.addf %27, %32 : vector<256x8xf32>
    %c1_39 = arith.constant 1 : index
    %c1_40 = arith.constant 1 : index
    %c0_41 = arith.constant 0 : index
    %34 = vector.load %arg7[%c1_39, %c1_40, %c0_41] : memref<18x18x8xf32, #tpu.memory_space<vmem>>, vector<16x16x8xf32>
    %35 = vector.shape_cast %34 : vector<16x16x8xf32> to vector<256x8xf32>
    %c1_42 = arith.constant 1 : index
    %c8_43 = arith.constant 8 : index
    %c0_44 = arith.constant 0 : index
    %36 = vector.load %arg2[%c1_42, %c8_43, %c0_44] : memref<3x24x8xf32, #tpu.memory_space<vmem>>, vector<1x8x8xf32>
    %37 = vector.shape_cast %36 : vector<1x8x8xf32> to vector<8x8xf32>
    %cst_45 = arith.constant dense<0.000000e+00> : vector<256x8xf32>
    %38 = tpu.matmul %35, %37, %cst_45 {dimension_numbers = #tpu.dot_dimension_numbers<[1], [0], [0], [1], [0, 0, 1, 1], [], []>} : vector<256x8xf32>, vector<8x8xf32>, vector<256x8xf32> -> vector<256x8xf32>
    %39 = arith.addf %33, %38 : vector<256x8xf32>
    %c1_46 = arith.constant 1 : index
    %c2_47 = arith.constant 2 : index
    %c0_48 = arith.constant 0 : index
    %40 = vector.load %arg7[%c1_46, %c2_47, %c0_48] : memref<18x18x8xf32, #tpu.memory_space<vmem>>, vector<16x16x8xf32>
    %41 = vector.shape_cast %40 : vector<16x16x8xf32> to vector<256x8xf32>
    %c1_49 = arith.constant 1 : index
    %c16_50 = arith.constant 16 : index
    %c0_51 = arith.constant 0 : index
    %42 = vector.load %arg2[%c1_49, %c16_50, %c0_51] : memref<3x24x8xf32, #tpu.memory_space<vmem>>, vector<1x8x8xf32>
    %43 = vector.shape_cast %42 : vector<1x8x8xf32> to vector<8x8xf32>
    %cst_52 = arith.constant dense<0.000000e+00> : vector<256x8xf32>
    %44 = tpu.matmul %41, %43, %cst_52 {dimension_numbers = #tpu.dot_dimension_numbers<[1], [0], [0], [1], [0, 0, 1, 1], [], []>} : vector<256x8xf32>, vector<8x8xf32>, vector<256x8xf32> -> vector<256x8xf32>
    %45 = arith.addf %39, %44 : vector<256x8xf32>
    %c2_53 = arith.constant 2 : index
    %c0_54 = arith.constant 0 : index
    %c0_55 = arith.constant 0 : index
    %46 = vector.load %arg7[%c2_53, %c0_54, %c0_55] : memref<18x18x8xf32, #tpu.memory_space<vmem>>, vector<16x16x8xf32>
    %47 = vector.shape_cast %46 : vector<16x16x8xf32> to vector<256x8xf32>
    %c2_56 = arith.constant 2 : index
    %c0_57 = arith.constant 0 : index
    %c0_58 = arith.constant 0 : index
    %48 = vector.load %arg2[%c2_56, %c0_57, %c0_58] : memref<3x24x8xf32, #tpu.memory_space<vmem>>, vector<1x8x8xf32>
    %49 = vector.shape_cast %48 : vector<1x8x8xf32> to vector<8x8xf32>
    %cst_59 = arith.constant dense<0.000000e+00> : vector<256x8xf32>
    %50 = tpu.matmul %47, %49, %cst_59 {dimension_numbers = #tpu.dot_dimension_numbers<[1], [0], [0], [1], [0, 0, 1, 1], [], []>} : vector<256x8xf32>, vector<8x8xf32>, vector<256x8xf32> -> vector<256x8xf32>
    %51 = arith.addf %45, %50 : vector<256x8xf32>
    %c2_60 = arith.constant 2 : index
    %c1_61 = arith.constant 1 : index
    %c0_62 = arith.constant 0 : index
    %52 = vector.load %arg7[%c2_60, %c1_61, %c0_62] : memref<18x18x8xf32, #tpu.memory_space<vmem>>, vector<16x16x8xf32>
    %53 = vector.shape_cast %52 : vector<16x16x8xf32> to vector<256x8xf32>
    %c2_63 = arith.constant 2 : index
    %c8_64 = arith.constant 8 : index
    %c0_65 = arith.constant 0 : index
    %54 = vector.load %arg2[%c2_63, %c8_64, %c0_65] : memref<3x24x8xf32, #tpu.memory_space<vmem>>, vector<1x8x8xf32>
    %55 = vector.shape_cast %54 : vector<1x8x8xf32> to vector<8x8xf32>
    %cst_66 = arith.constant dense<0.000000e+00> : vector<256x8xf32>
    %56 = tpu.matmul %53, %55, %cst_66 {dimension_numbers = #tpu.dot_dimension_numbers<[1], [0], [0], [1], [0, 0, 1, 1], [], []>} : vector<256x8xf32>, vector<8x8xf32>, vector<256x8xf32> -> vector<256x8xf32>
    %57 = arith.addf %51, %56 : vector<256x8xf32>
    %c2_67 = arith.constant 2 : index
    %c2_68 = arith.constant 2 : index
    %c0_69 = arith.constant 0 : index
    %58 = vector.load %arg7[%c2_67, %c2_68, %c0_69] : memref<18x18x8xf32, #tpu.memory_space<vmem>>, vector<16x16x8xf32>
    %59 = vector.shape_cast %58 : vector<16x16x8xf32> to vector<256x8xf32>
    %c2_70 = arith.constant 2 : index
    %c16_71 = arith.constant 16 : index
    %c0_72 = arith.constant 0 : index
    %60 = vector.load %arg2[%c2_70, %c16_71, %c0_72] : memref<3x24x8xf32, #tpu.memory_space<vmem>>, vector<1x8x8xf32>
    %61 = vector.shape_cast %60 : vector<1x8x8xf32> to vector<8x8xf32>
    %cst_73 = arith.constant dense<0.000000e+00> : vector<256x8xf32>
    %62 = tpu.matmul %59, %61, %cst_73 {dimension_numbers = #tpu.dot_dimension_numbers<[1], [0], [0], [1], [0, 0, 1, 1], [], []>} : vector<256x8xf32>, vector<8x8xf32>, vector<256x8xf32> -> vector<256x8xf32>
    %63 = arith.addf %57, %62 : vector<256x8xf32>
    %c0_74 = arith.constant 0 : index
    %c0_75 = arith.constant 0 : index
    %64 = vector.load %arg4[%c0_74, %c0_75] : memref<6x8xf32, #tpu.memory_space<vmem>>, vector<1x8xf32>
    %c1_76 = arith.constant 1 : index
    %c0_77 = arith.constant 0 : index
    %65 = vector.load %arg4[%c1_76, %c0_77] : memref<6x8xf32, #tpu.memory_space<vmem>>, vector<1x8xf32>
    %c2_78 = arith.constant 2 : index
    %c0_79 = arith.constant 0 : index
    %66 = vector.load %arg4[%c2_78, %c0_79] : memref<6x8xf32, #tpu.memory_space<vmem>>, vector<1x8xf32>
    %cst_80 = arith.constant dense<0.000000e+00> : vector<8xf32>
    %67 = vector.multi_reduction <add>, %63, %cst_80 [0] : vector<256x8xf32> to vector<8xf32>
    %68 = vector.shape_cast %67 : vector<8xf32> to vector<1x8xf32>
    %69 = arith.mulf %63, %63 : vector<256x8xf32>
    %cst_81 = arith.constant dense<0.000000e+00> : vector<8xf32>
    %70 = vector.multi_reduction <add>, %69, %cst_81 [0] : vector<256x8xf32> to vector<8xf32>
    %71 = vector.shape_cast %70 : vector<8xf32> to vector<1x8xf32>
    %cst_82 = arith.constant 2.560000e+02 : f32
    %72 = vector.broadcast %cst_82 : f32 to vector<1x8xf32>
    %73 = arith.mulf %72, %64 : vector<1x8xf32>
    %74 = arith.addf %68, %73 : vector<1x8xf32>
    %cst_83 = arith.constant 2.000000e+00 : f32
    %75 = vector.broadcast %cst_83 : f32 to vector<1x8xf32>
    %76 = arith.mulf %75, %64 : vector<1x8xf32>
    %77 = arith.mulf %76, %68 : vector<1x8xf32>
    %78 = arith.addf %71, %77 : vector<1x8xf32>
    %cst_84 = arith.constant 2.560000e+02 : f32
    %79 = vector.broadcast %cst_84 : f32 to vector<1x8xf32>
    %80 = arith.mulf %79, %64 : vector<1x8xf32>
    %81 = arith.mulf %80, %64 : vector<1x8xf32>
    %82 = arith.addf %78, %81 : vector<1x8xf32>
    %cst_85 = arith.constant dense<0.000000e+00> : vector<1x8xf32>
    %83 = tpu.matmul %74, %4, %cst_85 {dimension_numbers = #tpu.dot_dimension_numbers<[1], [0], [0], [1], [0, 0, 1, 1], [], []>} : vector<1x8xf32>, vector<8x8xf32>, vector<1x8xf32> -> vector<1x8xf32>
    %cst_86 = arith.constant 4.8828125E-4 : f32
    %84 = vector.broadcast %cst_86 : f32 to vector<1x8xf32>
    %85 = arith.mulf %83, %84 : vector<1x8xf32>
    %cst_87 = arith.constant dense<0.000000e+00> : vector<1x8xf32>
    %86 = tpu.matmul %82, %4, %cst_87 {dimension_numbers = #tpu.dot_dimension_numbers<[1], [0], [0], [1], [0, 0, 1, 1], [], []>} : vector<1x8xf32>, vector<8x8xf32>, vector<1x8xf32> -> vector<1x8xf32>
    %cst_88 = arith.constant 4.8828125E-4 : f32
    %87 = vector.broadcast %cst_88 : f32 to vector<1x8xf32>
    %88 = arith.mulf %86, %87 : vector<1x8xf32>
    %89 = arith.mulf %85, %85 : vector<1x8xf32>
    %90 = arith.subf %88, %89 : vector<1x8xf32>
    %cst_89 = arith.constant 9.99999974E-6 : f32
    %91 = vector.broadcast %cst_89 : f32 to vector<1x8xf32>
    %92 = arith.addf %90, %91 : vector<1x8xf32>
    %93 = math.rsqrt %92 : vector<1x8xf32>
    %94 = arith.mulf %65, %93 : vector<1x8xf32>
    %95 = arith.subf %64, %85 : vector<1x8xf32>
    %96 = arith.mulf %95, %94 : vector<1x8xf32>
    %97 = arith.addf %66, %96 : vector<1x8xf32>
    %98 = vector.broadcast %94 : vector<1x8xf32> to vector<256x8xf32>
    %99 = arith.mulf %63, %98 : vector<256x8xf32>
    %100 = vector.broadcast %97 : vector<1x8xf32> to vector<256x8xf32>
    %101 = arith.addf %99, %100 : vector<256x8xf32>
    %cst_90 = arith.constant 0.000000e+00 : f32
    %102 = vector.broadcast %cst_90 : f32 to vector<256x8xf32>
    %103 = arith.maximumf %101, %102 : vector<256x8xf32>
    %104 = vector.shape_cast %103 : vector<256x8xf32> to vector<16x16x8xf32>
    %c1_91 = arith.constant 1 : index
    %c1_92 = arith.constant 1 : index
    %c0_93 = arith.constant 0 : index
    %105 = vector.load %arg8[%c1_91, %c1_92, %c0_93] : memref<18x18x8xf32, #tpu.memory_space<vmem>>, vector<16x16x8xf32>
    tpu.vector_store %arg8[%c1_91, %c1_92, %c0_93], %104 {strides = array<i32>} : memref<18x18x8xf32, #tpu.memory_space<vmem>>, vector<16x16x8xf32>,
    %cst_94 = arith.constant 0.000000e+00 : f32
    %106 = vector.broadcast %cst_94 : f32 to vector<256x8xf32>
    %c0_95 = arith.constant 0 : index
    %c0_96 = arith.constant 0 : index
    %c0_97 = arith.constant 0 : index
    %107 = vector.load %arg8[%c0_95, %c0_96, %c0_97] : memref<18x18x8xf32, #tpu.memory_space<vmem>>, vector<16x16x8xf32>
    %108 = vector.shape_cast %107 : vector<16x16x8xf32> to vector<256x8xf32>
    %c0_98 = arith.constant 0 : index
    %c0_99 = arith.constant 0 : index
    %c0_100 = arith.constant 0 : index
    %109 = vector.load %arg3[%c0_98, %c0_99, %c0_100] : memref<3x24x8xf32, #tpu.memory_space<vmem>>, vector<1x8x8xf32>
    %110 = vector.shape_cast %109 : vector<1x8x8xf32> to vector<8x8xf32>
    %cst_101 = arith.constant dense<0.000000e+00> : vector<256x8xf32>
    %111 = tpu.matmul %108, %110, %cst_101 {dimension_numbers = #tpu.dot_dimension_numbers<[1], [0], [0], [1], [0, 0, 1, 1], [], []>} : vector<256x8xf32>, vector<8x8xf32>, vector<256x8xf32> -> vector<256x8xf32>
    %112 = arith.addf %106, %111 : vector<256x8xf32>
    %c0_102 = arith.constant 0 : index
    %c1_103 = arith.constant 1 : index
    %c0_104 = arith.constant 0 : index
    %113 = vector.load %arg8[%c0_102, %c1_103, %c0_104] : memref<18x18x8xf32, #tpu.memory_space<vmem>>, vector<16x16x8xf32>
    %114 = vector.shape_cast %113 : vector<16x16x8xf32> to vector<256x8xf32>
    %c0_105 = arith.constant 0 : index
    %c8_106 = arith.constant 8 : index
    %c0_107 = arith.constant 0 : index
    %115 = vector.load %arg3[%c0_105, %c8_106, %c0_107] : memref<3x24x8xf32, #tpu.memory_space<vmem>>, vector<1x8x8xf32>
    %116 = vector.shape_cast %115 : vector<1x8x8xf32> to vector<8x8xf32>
    %cst_108 = arith.constant dense<0.000000e+00> : vector<256x8xf32>
    %117 = tpu.matmul %114, %116, %cst_108 {dimension_numbers = #tpu.dot_dimension_numbers<[1], [0], [0], [1], [0, 0, 1, 1], [], []>} : vector<256x8xf32>, vector<8x8xf32>, vector<256x8xf32> -> vector<256x8xf32>
    %118 = arith.addf %112, %117 : vector<256x8xf32>
    %c0_109 = arith.constant 0 : index
    %c2_110 = arith.constant 2 : index
    %c0_111 = arith.constant 0 : index
    %119 = vector.load %arg8[%c0_109, %c2_110, %c0_111] : memref<18x18x8xf32, #tpu.memory_space<vmem>>, vector<16x16x8xf32>
    %120 = vector.shape_cast %119 : vector<16x16x8xf32> to vector<256x8xf32>
    %c0_112 = arith.constant 0 : index
    %c16_113 = arith.constant 16 : index
    %c0_114 = arith.constant 0 : index
    %121 = vector.load %arg3[%c0_112, %c16_113, %c0_114] : memref<3x24x8xf32, #tpu.memory_space<vmem>>, vector<1x8x8xf32>
    %122 = vector.shape_cast %121 : vector<1x8x8xf32> to vector<8x8xf32>
    %cst_115 = arith.constant dense<0.000000e+00> : vector<256x8xf32>
    %123 = tpu.matmul %120, %122, %cst_115 {dimension_numbers = #tpu.dot_dimension_numbers<[1], [0], [0], [1], [0, 0, 1, 1], [], []>} : vector<256x8xf32>, vector<8x8xf32>, vector<256x8xf32> -> vector<256x8xf32>
    %124 = arith.addf %118, %123 : vector<256x8xf32>
    %c1_116 = arith.constant 1 : index
    %c0_117 = arith.constant 0 : index
    %c0_118 = arith.constant 0 : index
    %125 = vector.load %arg8[%c1_116, %c0_117, %c0_118] : memref<18x18x8xf32, #tpu.memory_space<vmem>>, vector<16x16x8xf32>
    %126 = vector.shape_cast %125 : vector<16x16x8xf32> to vector<256x8xf32>
    %c1_119 = arith.constant 1 : index
    %c0_120 = arith.constant 0 : index
    %c0_121 = arith.constant 0 : index
    %127 = vector.load %arg3[%c1_119, %c0_120, %c0_121] : memref<3x24x8xf32, #tpu.memory_space<vmem>>, vector<1x8x8xf32>
    %128 = vector.shape_cast %127 : vector<1x8x8xf32> to vector<8x8xf32>
    %cst_122 = arith.constant dense<0.000000e+00> : vector<256x8xf32>
    %129 = tpu.matmul %126, %128, %cst_122 {dimension_numbers = #tpu.dot_dimension_numbers<[1], [0], [0], [1], [0, 0, 1, 1], [], []>} : vector<256x8xf32>, vector<8x8xf32>, vector<256x8xf32> -> vector<256x8xf32>
    %130 = arith.addf %124, %129 : vector<256x8xf32>
    %c1_123 = arith.constant 1 : index
    %c1_124 = arith.constant 1 : index
    %c0_125 = arith.constant 0 : index
    %131 = vector.load %arg8[%c1_123, %c1_124, %c0_125] : memref<18x18x8xf32, #tpu.memory_space<vmem>>, vector<16x16x8xf32>
    %132 = vector.shape_cast %131 : vector<16x16x8xf32> to vector<256x8xf32>
    %c1_126 = arith.constant 1 : index
    %c8_127 = arith.constant 8 : index
    %c0_128 = arith.constant 0 : index
    %133 = vector.load %arg3[%c1_126, %c8_127, %c0_128] : memref<3x24x8xf32, #tpu.memory_space<vmem>>, vector<1x8x8xf32>
    %134 = vector.shape_cast %133 : vector<1x8x8xf32> to vector<8x8xf32>
    %cst_129 = arith.constant dense<0.000000e+00> : vector<256x8xf32>
    %135 = tpu.matmul %132, %134, %cst_129 {dimension_numbers = #tpu.dot_dimension_numbers<[1], [0], [0], [1], [0, 0, 1, 1], [], []>} : vector<256x8xf32>, vector<8x8xf32>, vector<256x8xf32> -> vector<256x8xf32>
    %136 = arith.addf %130, %135 : vector<256x8xf32>
    %c1_130 = arith.constant 1 : index
    %c2_131 = arith.constant 2 : index
    %c0_132 = arith.constant 0 : index
    %137 = vector.load %arg8[%c1_130, %c2_131, %c0_132] : memref<18x18x8xf32, #tpu.memory_space<vmem>>, vector<16x16x8xf32>
    %138 = vector.shape_cast %137 : vector<16x16x8xf32> to vector<256x8xf32>
    %c1_133 = arith.constant 1 : index
    %c16_134 = arith.constant 16 : index
    %c0_135 = arith.constant 0 : index
    %139 = vector.load %arg3[%c1_133, %c16_134, %c0_135] : memref<3x24x8xf32, #tpu.memory_space<vmem>>, vector<1x8x8xf32>
    %140 = vector.shape_cast %139 : vector<1x8x8xf32> to vector<8x8xf32>
    %cst_136 = arith.constant dense<0.000000e+00> : vector<256x8xf32>
    %141 = tpu.matmul %138, %140, %cst_136 {dimension_numbers = #tpu.dot_dimension_numbers<[1], [0], [0], [1], [0, 0, 1, 1], [], []>} : vector<256x8xf32>, vector<8x8xf32>, vector<256x8xf32> -> vector<256x8xf32>
    %142 = arith.addf %136, %141 : vector<256x8xf32>
    %c2_137 = arith.constant 2 : index
    %c0_138 = arith.constant 0 : index
    %c0_139 = arith.constant 0 : index
    %143 = vector.load %arg8[%c2_137, %c0_138, %c0_139] : memref<18x18x8xf32, #tpu.memory_space<vmem>>, vector<16x16x8xf32>
    %144 = vector.shape_cast %143 : vector<16x16x8xf32> to vector<256x8xf32>
    %c2_140 = arith.constant 2 : index
    %c0_141 = arith.constant 0 : index
    %c0_142 = arith.constant 0 : index
    %145 = vector.load %arg3[%c2_140, %c0_141, %c0_142] : memref<3x24x8xf32, #tpu.memory_space<vmem>>, vector<1x8x8xf32>
    %146 = vector.shape_cast %145 : vector<1x8x8xf32> to vector<8x8xf32>
    %cst_143 = arith.constant dense<0.000000e+00> : vector<256x8xf32>
    %147 = tpu.matmul %144, %146, %cst_143 {dimension_numbers = #tpu.dot_dimension_numbers<[1], [0], [0], [1], [0, 0, 1, 1], [], []>} : vector<256x8xf32>, vector<8x8xf32>, vector<256x8xf32> -> vector<256x8xf32>
    %148 = arith.addf %142, %147 : vector<256x8xf32>
    %c2_144 = arith.constant 2 : index
    %c1_145 = arith.constant 1 : index
    %c0_146 = arith.constant 0 : index
    %149 = vector.load %arg8[%c2_144, %c1_145, %c0_146] : memref<18x18x8xf32, #tpu.memory_space<vmem>>, vector<16x16x8xf32>
    %150 = vector.shape_cast %149 : vector<16x16x8xf32> to vector<256x8xf32>
    %c2_147 = arith.constant 2 : index
    %c8_148 = arith.constant 8 : index
    %c0_149 = arith.constant 0 : index
    %151 = vector.load %arg3[%c2_147, %c8_148, %c0_149] : memref<3x24x8xf32, #tpu.memory_space<vmem>>, vector<1x8x8xf32>
    %152 = vector.shape_cast %151 : vector<1x8x8xf32> to vector<8x8xf32>
    %cst_150 = arith.constant dense<0.000000e+00> : vector<256x8xf32>
    %153 = tpu.matmul %150, %152, %cst_150 {dimension_numbers = #tpu.dot_dimension_numbers<[1], [0], [0], [1], [0, 0, 1, 1], [], []>} : vector<256x8xf32>, vector<8x8xf32>, vector<256x8xf32> -> vector<256x8xf32>
    %154 = arith.addf %148, %153 : vector<256x8xf32>
    %c2_151 = arith.constant 2 : index
    %c2_152 = arith.constant 2 : index
    %c0_153 = arith.constant 0 : index
    %155 = vector.load %arg8[%c2_151, %c2_152, %c0_153] : memref<18x18x8xf32, #tpu.memory_space<vmem>>, vector<16x16x8xf32>
    %156 = vector.shape_cast %155 : vector<16x16x8xf32> to vector<256x8xf32>
    %c2_154 = arith.constant 2 : index
    %c16_155 = arith.constant 16 : index
    %c0_156 = arith.constant 0 : index
    %157 = vector.load %arg3[%c2_154, %c16_155, %c0_156] : memref<3x24x8xf32, #tpu.memory_space<vmem>>, vector<1x8x8xf32>
    %158 = vector.shape_cast %157 : vector<1x8x8xf32> to vector<8x8xf32>
    %cst_157 = arith.constant dense<0.000000e+00> : vector<256x8xf32>
    %159 = tpu.matmul %156, %158, %cst_157 {dimension_numbers = #tpu.dot_dimension_numbers<[1], [0], [0], [1], [0, 0, 1, 1], [], []>} : vector<256x8xf32>, vector<8x8xf32>, vector<256x8xf32> -> vector<256x8xf32>
    %160 = arith.addf %154, %159 : vector<256x8xf32>
    %c3 = arith.constant 3 : index
    %c0_158 = arith.constant 0 : index
    %161 = vector.load %arg4[%c3, %c0_158] : memref<6x8xf32, #tpu.memory_space<vmem>>, vector<1x8xf32>
    %c4 = arith.constant 4 : index
    %c0_159 = arith.constant 0 : index
    %162 = vector.load %arg4[%c4, %c0_159] : memref<6x8xf32, #tpu.memory_space<vmem>>, vector<1x8xf32>
    %c5 = arith.constant 5 : index
    %c0_160 = arith.constant 0 : index
    %163 = vector.load %arg4[%c5, %c0_160] : memref<6x8xf32, #tpu.memory_space<vmem>>, vector<1x8xf32>
    %cst_161 = arith.constant dense<0.000000e+00> : vector<8xf32>
    %164 = vector.multi_reduction <add>, %160, %cst_161 [0] : vector<256x8xf32> to vector<8xf32>
    %165 = vector.shape_cast %164 : vector<8xf32> to vector<1x8xf32>
    %166 = arith.mulf %160, %160 : vector<256x8xf32>
    %cst_162 = arith.constant dense<0.000000e+00> : vector<8xf32>
    %167 = vector.multi_reduction <add>, %166, %cst_162 [0] : vector<256x8xf32> to vector<8xf32>
    %168 = vector.shape_cast %167 : vector<8xf32> to vector<1x8xf32>
    %cst_163 = arith.constant 2.560000e+02 : f32
    %169 = vector.broadcast %cst_163 : f32 to vector<1x8xf32>
    %170 = arith.mulf %169, %161 : vector<1x8xf32>
    %171 = arith.addf %165, %170 : vector<1x8xf32>
    %cst_164 = arith.constant 2.000000e+00 : f32
    %172 = vector.broadcast %cst_164 : f32 to vector<1x8xf32>
    %173 = arith.mulf %172, %161 : vector<1x8xf32>
    %174 = arith.mulf %173, %165 : vector<1x8xf32>
    %175 = arith.addf %168, %174 : vector<1x8xf32>
    %cst_165 = arith.constant 2.560000e+02 : f32
    %176 = vector.broadcast %cst_165 : f32 to vector<1x8xf32>
    %177 = arith.mulf %176, %161 : vector<1x8xf32>
    %178 = arith.mulf %177, %161 : vector<1x8xf32>
    %179 = arith.addf %175, %178 : vector<1x8xf32>
    %cst_166 = arith.constant dense<0.000000e+00> : vector<1x8xf32>
    %180 = tpu.matmul %171, %4, %cst_166 {dimension_numbers = #tpu.dot_dimension_numbers<[1], [0], [0], [1], [0, 0, 1, 1], [], []>} : vector<1x8xf32>, vector<8x8xf32>, vector<1x8xf32> -> vector<1x8xf32>
    %cst_167 = arith.constant 4.8828125E-4 : f32
    %181 = vector.broadcast %cst_167 : f32 to vector<1x8xf32>
    %182 = arith.mulf %180, %181 : vector<1x8xf32>
    %cst_168 = arith.constant dense<0.000000e+00> : vector<1x8xf32>
    %183 = tpu.matmul %179, %4, %cst_168 {dimension_numbers = #tpu.dot_dimension_numbers<[1], [0], [0], [1], [0, 0, 1, 1], [], []>} : vector<1x8xf32>, vector<8x8xf32>, vector<1x8xf32> -> vector<1x8xf32>
    %cst_169 = arith.constant 4.8828125E-4 : f32
    %184 = vector.broadcast %cst_169 : f32 to vector<1x8xf32>
    %185 = arith.mulf %183, %184 : vector<1x8xf32>
    %186 = arith.mulf %182, %182 : vector<1x8xf32>
    %187 = arith.subf %185, %186 : vector<1x8xf32>
    %cst_170 = arith.constant 9.99999974E-6 : f32
    %188 = vector.broadcast %cst_170 : f32 to vector<1x8xf32>
    %189 = arith.addf %187, %188 : vector<1x8xf32>
    %190 = math.rsqrt %189 : vector<1x8xf32>
    %191 = arith.mulf %162, %190 : vector<1x8xf32>
    %192 = arith.subf %161, %182 : vector<1x8xf32>
    %193 = arith.mulf %192, %191 : vector<1x8xf32>
    %194 = arith.addf %163, %193 : vector<1x8xf32>
    %195 = vector.broadcast %191 : vector<1x8xf32> to vector<256x8xf32>
    %196 = arith.mulf %160, %195 : vector<256x8xf32>
    %197 = vector.broadcast %194 : vector<1x8xf32> to vector<256x8xf32>
    %198 = arith.addf %196, %197 : vector<256x8xf32>
    %cst_171 = arith.constant 0.000000e+00 : f32
    %199 = vector.broadcast %cst_171 : f32 to vector<256x8xf32>
    %200 = arith.maximumf %198, %199 : vector<256x8xf32>
    %201 = arith.addf %6, %200 : vector<256x8xf32>
    %cst_172 = arith.constant 0.000000e+00 : f32
    %202 = vector.broadcast %cst_172 : f32 to vector<256x8xf32>
    %203 = arith.maximumf %201, %202 : vector<256x8xf32>
    %c0_173 = arith.constant 0 : index
    %c0_174 = arith.constant 0 : index
    %c0_175 = arith.constant 0 : index
    %204 = vector.load %arg6[%c0_173, %c0_174, %c0_175] : memref<1x256x8xf32, #tpu.memory_space<vmem>>, vector<1x256x8xf32>
    %205 = vector.shape_cast %204 : vector<1x256x8xf32> to vector<256x8xf32>
    %206 = vector.shape_cast %203 : vector<256x8xf32> to vector<1x256x8xf32>
    tpu.vector_store %arg6[%c0_173, %c0_174, %c0_175], %206 {strides = array<i32>} : memref<1x256x8xf32, #tpu.memory_space<vmem>>, vector<1x256x8xf32>,
    return
  }
  func.func @transform_0(%arg0: i32) -> (i32, i32, i32) {
    %c0_i32 = arith.constant 0 : i32
    %c0_i32_0 = arith.constant 0 : i32
    %c0_i32_1 = arith.constant 0 : i32
    return %arg0, %c0_i32, %c0_i32_0 : i32, i32, i32
  }
  func.func @transform_1(%arg0: i32) -> (i32, i32, i32) {
    %c0_i32 = arith.constant 0 : i32
    %c0_i32_0 = arith.constant 0 : i32
    %c0_i32_1 = arith.constant 0 : i32
    %c0_i32_2 = arith.constant 0 : i32
    return %c0_i32, %c0_i32_0, %c0_i32_1 : i32, i32, i32
  }
  func.func @transform_2(%arg0: i32) -> (i32, i32, i32) {
    %c0_i32 = arith.constant 0 : i32
    %c0_i32_0 = arith.constant 0 : i32
    %c0_i32_1 = arith.constant 0 : i32
    %c0_i32_2 = arith.constant 0 : i32
    return %c0_i32, %c0_i32_0, %c0_i32_1 : i32, i32, i32
  }
  func.func @transform_3(%arg0: i32) -> (i32, i32) {
    %c0_i32 = arith.constant 0 : i32
    %c0_i32_0 = arith.constant 0 : i32
    %c0_i32_1 = arith.constant 0 : i32
    return %c0_i32, %c0_i32_0 : i32, i32
  }
  func.func @transform_4(%arg0: i32) -> (i32, i32) {
    %c0_i32 = arith.constant 0 : i32
    %c0_i32_0 = arith.constant 0 : i32
    %c0_i32_1 = arith.constant 0 : i32
    return %c0_i32, %c0_i32_0 : i32, i32
  }
  func.func @transform_5(%arg0: i32) -> (i32, i32, i32) {
    %c0_i32 = arith.constant 0 : i32
    %c0_i32_0 = arith.constant 0 : i32
    %c0_i32_1 = arith.constant 0 : i32
    return %arg0, %c0_i32, %c0_i32_0 : i32, i32, i32
  }
}

</mosaic_0001>

<llo_original>
// kernel: tpu_custom_call.1
$region0: #{tpu_custom_call.1}
  #allocation0 [shape = 'u32[]', space=smem, size = 0x4, offset = 0x4, fixed_abs, tag = 'smem constant byte address 0x4 - core index']
  #allocation1 [shape = 'u32[144,128]{1,0:T(1,128)}', space=vmem, size = 0x12000, scoped, tag = 'internal scratch']
  #allocation2 [shape = 'f32[18,18,8]{2,1,0:T(8,128)}', space=vmem, size = 0x36000, scoped, tag = 'scratch operand']
  #allocation3 [shape = 'f32[18,18,8]{2,1,0:T(8,128)}', space=vmem, size = 0x36000, scoped, tag = 'scratch operand']
  %s0 = inlined_call_operand.vmem [shape: f32[2,256,8], index: 0, kind: input, shape index: {}]
  %s1 = inlined_call_operand.vmem [shape: f32[3,24,8], index: 1, kind: input, shape index: {}]
  %s2 = inlined_call_operand.vmem [shape: f32[3,24,8], index: 2, kind: input, shape index: {}]
  %s3 = inlined_call_operand.vmem [shape: f32[6,8], index: 3, kind: input, shape index: {}]
  %s4 = inlined_call_operand.vmem [shape: f32[8,8], index: 4, kind: input, shape index: {}]
  %s5 = inlined_call_operand.vmem [shape: f32[2,256,8], index: 5, kind: output, shape index: {}]
  %s6 = sld [smem:[#allocation0]]
  $region53: #{tpu_custom_call.1} parent=0
    _
  %s8 = ssub.s32 1, %s6
  %s9 = scalar_select 0, %s8, %s6
  loop: start=0, step=1, limit=4
  $region2: #{tpu_custom_call.1} parent=0 // loop_pre_header
    _
  $region3: #{tpu_custom_call.1} parent=0 // loop_header
    %s11 = sphi 0, %s15
    %p12 = scmp.ge.s32.totalorder %s11, 4
    %s21 = sphi 0, %s23
    %s24 = sphi 0, %s21
    %s25 = sphi 0, %s24
    %s41 = sphi 0, %s25
    %s45 = sphi 0, %s45
    %s47 = sphi 0, %s45
    %s48 = sphi 0, %s47
    %s62 = sphi 0, %s48
    %s66 = sphi 0, %s66
    %s68 = sphi 0, %s66
    %s69 = sphi 0, %s68
    %s83 = sphi 0, %s69
    %s87 = sphi 0, %s87
    %s89 = sphi 0, %s87
    %s90 = sphi 0, %s89
    %s104 = sphi 0, %s90
    %s108 = sphi 0, %s108
    %s110 = sphi 0, %s108
    %s111 = sphi 0, %s110
    %s125 = sphi 0, %s111
    %s131 = sphi 0, %s133
    %s134 = sphi 0, %s131
    %s135 = sphi 0, %s134
    %s151 = sphi 0, %s135
  $region4: #{tpu_custom_call.1} parent=0 // loop_header_branch
    %14 = sbr.rel (%p12) target = $region8
  $region5: #{tpu_custom_call.1} parent=0 // loop_body
    %s16 = ssub.s32 %s11, 1
    %s17 = ssub.s32 %s11, 2
    %s18 = sadd.s32 %s11, 1
    %s19 = ssub.s32 %s11, %s18
    %p20 = scmp.eq.s32.totalorder %s19, 0
    %s22 = sadd.s32 %s21, 1
    %s23 = scalar_select %p20, %s21, %s22
    %p26 = pneg %p20
    %p27 = scmp.eq.s32.totalorder %s11, 1
    %p28 = por %p26, %p27
    %p29 = scmp.ne.s32.totalorder %s21, %s24
    %p30 = scmp.eq.s32.totalorder %s11, 0
    %p31 = por %p29, %p30
    %p32 = scmp.ne.s32.totalorder %s21, %s24
    %p33 = scmp.eq.s32.totalorder %s16, 1
    %p34 = por %p32, %p33
    %p35 = scmp.ne.s32.totalorder %s24, %s25
    %p36 = scmp.eq.s32.totalorder %s16, 0
    %p37 = por %p35, %p36
    %p38 = scmp.ne.s32.totalorder %s24, %s25
    %p39 = scmp.eq.s32.totalorder %s17, 1
    %p40 = por %p38, %p39
    %p42 = scmp.ne.s32.totalorder %s25, %s41
    %p43 = scmp.eq.s32.totalorder %s17, 0
    %p44 = por %p42, %p43
    %s46 = sadd.s32 %s45, 1
    %p49 = scmp.eq.s32.totalorder %s11, 1
    %p50 = scmp.ne.s32.totalorder %s45, %s47
    %p51 = scmp.eq.s32.totalorder %s11, 0
    %p52 = por %p50, %p51
    %p53 = scmp.ne.s32.totalorder %s45, %s47
    %p54 = scmp.eq.s32.totalorder %s16, 1
    %p55 = por %p53, %p54
    %p56 = scmp.ne.s32.totalorder %s47, %s48
    %p57 = scmp.eq.s32.totalorder %s16, 0
    %p58 = por %p56, %p57
    %p59 = scmp.ne.s32.totalorder %s47, %s48
    %p60 = scmp.eq.s32.totalorder %s17, 1
    %p61 = por %p59, %p60
    %p63 = scmp.ne.s32.totalorder %s48, %s62
    %p64 = scmp.eq.s32.totalorder %s17, 0
    %p65 = por %p63, %p64
    %s67 = sadd.s32 %s66, 1
    %p70 = scmp.eq.s32.totalorder %s11, 1
    %p71 = scmp.ne.s32.totalorder %s66, %s68
    %p72 = scmp.eq.s32.totalorder %s11, 0
    %p73 = por %p71, %p72
    %p74 = scmp.ne.s32.totalorder %s66, %s68
    %p75 = scmp.eq.s32.totalorder %s16, 1
    %p76 = por %p74, %p75
    %p77 = scmp.ne.s32.totalorder %s68, %s69
    %p78 = scmp.eq.s32.totalorder %s16, 0
    %p79 = por %p77, %p78
    %p80 = scmp.ne.s32.totalorder %s68, %s69
    %p81 = scmp.eq.s32.totalorder %s17, 1
    %p82 = por %p80, %p81
    %p84 = scmp.ne.s32.totalorder %s69, %s83
    %p85 = scmp.eq.s32.totalorder %s17, 0
    %p86 = por %p84, %p85
    %s88 = sadd.s32 %s87, 1
    %p91 = scmp.eq.s32.totalorder %s11, 1
    %p92 = scmp.ne.s32.totalorder %s87, %s89
    %p93 = scmp.eq.s32.totalorder %s11, 0
    %p94 = por %p92, %p93
    %p95 = scmp.ne.s32.totalorder %s87, %s89
    %p96 = scmp.eq.s32.totalorder %s16, 1
    %p97 = por %p95, %p96
    %p98 = scmp.ne.s32.totalorder %s89, %s90
    %p99 = scmp.eq.s32.totalorder %s16, 0
    %p100 = por %p98, %p99
    %p101 = scmp.ne.s32.totalorder %s89, %s90
    %p102 = scmp.eq.s32.totalorder %s17, 1
    %p103 = por %p101, %p102
    %p105 = scmp.ne.s32.totalorder %s90, %s104
    %p106 = scmp.eq.s32.totalorder %s17, 0
    %p107 = por %p105, %p106
    %s109 = sadd.s32 %s108, 1
    %p112 = scmp.eq.s32.totalorder %s11, 1
    %p113 = scmp.ne.s32.totalorder %s108, %s110
    %p114 = scmp.eq.s32.totalorder %s11, 0
    %p115 = por %p113, %p114
    %p116 = scmp.ne.s32.totalorder %s108, %s110
    %p117 = scmp.eq.s32.totalorder %s16, 1
    %p118 = por %p116, %p117
    %p119 = scmp.ne.s32.totalorder %s110, %s111
    %p120 = scmp.eq.s32.totalorder %s16, 0
    %p121 = por %p119, %p120
    %p122 = scmp.ne.s32.totalorder %s110, %s111
    %p123 = scmp.eq.s32.totalorder %s17, 1
    %p124 = por %p122, %p123
    %p126 = scmp.ne.s32.totalorder %s111, %s125
    %p127 = scmp.eq.s32.totalorder %s17, 0
    %p128 = por %p126, %p127
    %s129 = ssub.s32 %s11, %s18
    %p130 = scmp.eq.s32.totalorder %s129, 0
    %s132 = sadd.s32 %s131, 1
    %s133 = scalar_select %p130, %s131, %s132
    %p136 = pneg %p130
    %p137 = scmp.eq.s32.totalorder %s11, 1
    %p138 = por %p136, %p137
    %p139 = scmp.ne.s32.totalorder %s131, %s134
    %p140 = scmp.eq.s32.totalorder %s11, 0
    %p141 = por %p139, %p140
    %p142 = scmp.ne.s32.totalorder %s131, %s134
    %p143 = scmp.eq.s32.totalorder %s16, 1
    %p144 = por %p142, %p143
    %p145 = scmp.ne.s32.totalorder %s134, %s135
    %p146 = scmp.eq.s32.totalorder %s16, 0
    %p147 = por %p145, %p146
    %p148 = scmp.ne.s32.totalorder %s134, %s135
    %p149 = scmp.eq.s32.totalorder %s17, 1
    %p150 = por %p148, %p149
    %p152 = scmp.ne.s32.totalorder %s135, %s151
    %p153 = scmp.eq.s32.totalorder %s17, 0
    %p154 = por %p152, %p153
    %p155 = scmp.le.s32.totalorder 1, %s11
    %p156 = scmp.lt.s32.totalorder %s11, 3
    %p157 = pnand %p155, %p156
    %p158 = pneg %p157
    // Predicated region
    $region9: #{tpu_custom_call.1} parent=5 // pred_check
      _
    $region10: #{tpu_custom_call.1} parent=5 // pred_check_branch
      %160 = sbr.rel (%p157) target = $region12
    $region11: #{tpu_custom_call.1} parent=5 // pred_region
      %s161 = ssub.s32 %s11, 1
      // Predicated region
      $region13: #{tpu_custom_call.1} parent=11 // pred_check
        %p162 = pneg %p58
      $region14: #{tpu_custom_call.1} parent=11 // pred_check_branch
        %164 = sbr.rel (%p162) target = $region16
      $region15: #{tpu_custom_call.1} parent=11 // pred_region
        _
      $region16: #{tpu_custom_call.1} parent=11 // pred_fallthru
        _
      // Predicated region
      $region17: #{tpu_custom_call.1} parent=11 // pred_check
        %p165 = pneg %p79
      $region18: #{tpu_custom_call.1} parent=11 // pred_check_branch
        %167 = sbr.rel (%p165) target = $region20
      $region19: #{tpu_custom_call.1} parent=11 // pred_region
        _
      $region20: #{tpu_custom_call.1} parent=11 // pred_fallthru
        _
      // Predicated region
      $region21: #{tpu_custom_call.1} parent=11 // pred_check
        %p168 = pneg %p100
      $region22: #{tpu_custom_call.1} parent=11 // pred_check_branch
        %170 = sbr.rel (%p168) target = $region24
      $region23: #{tpu_custom_call.1} parent=11 // pred_region
        _
      $region24: #{tpu_custom_call.1} parent=11 // pred_fallthru
        _
      // Predicated region
      $region25: #{tpu_custom_call.1} parent=11 // pred_check
        %p171 = pneg %p121
      $region26: #{tpu_custom_call.1} parent=11 // pred_check_branch
        %173 = sbr.rel (%p171) target = $region28
      $region27: #{tpu_custom_call.1} parent=11 // pred_region
        _
      $region28: #{tpu_custom_call.1} parent=11 // pred_fallthru
        _
    $region12: #{tpu_custom_call.1} parent=5 // pred_fallthru
      _
    %p174 = scmp.lt.s32.totalorder %s11, 2
    // Predicated region
    $region29: #{tpu_custom_call.1} parent=5 // pred_check
      %p175 = pneg %p174
    $region30: #{tpu_custom_call.1} parent=5 // pred_check_branch
      %177 = sbr.rel (%p175) target = $region32
    $region31: #{tpu_custom_call.1} parent=5 // pred_region
      // Predicated region
      $region33: #{tpu_custom_call.1} parent=31 // pred_check
        %p178 = pneg %p31
      $region34: #{tpu_custom_call.1} parent=31 // pred_check_branch
        %180 = sbr.rel (%p178) target = $region36
      $region35: #{tpu_custom_call.1} parent=31 // pred_region
        %p181 = scmp.lt.s32.totalorder %s11, 1
        %s182 = scalar_select %p181, %s11, 1
        %s183 = smul.addr %s182, 32
        %s184 = smul.addr %s183, 8
        %s185 = scalar_lea.vmem %s0, %s184
      $region36: #{tpu_custom_call.1} parent=31 // pred_fallthru
        _
    $region32: #{tpu_custom_call.1} parent=5 // pred_fallthru
      _
    %p186 = scmp.le.s32.totalorder 1, %s11
    %p187 = scmp.lt.s32.totalorder %s11, 3
    %p188 = pnand %p186, %p187
    %p189 = pneg %p188
    // Predicated region
    $region37: #{tpu_custom_call.1} parent=5 // pred_check
      _
    $region38: #{tpu_custom_call.1} parent=5 // pred_check_branch
      %191 = sbr.rel (%p188) target = $region40
    $region39: #{tpu_custom_call.1} parent=5 // pred_region
      %s192 = ssub.s32 %s11, 1
      %p193 = scmp.lt.s32.totalorder %s16, 1
      %s194 = scalar_select %p193, %s16, 1
      %s195 = smul.addr %s194, 32
      %s196 = smul.addr %s195, 8
      %s197 = scalar_lea.vmem %s0, %s196
      %p198 = pneg %p37
      %p199 = pneg %p34
      %p200 = pneg %p58
      %p201 = pneg %p55
      %p202 = pneg %p79
      %p203 = pneg %p76
      %p204 = pneg %p100
      %p205 = pneg %p97
      %p206 = pneg %p121
      %p207 = pneg %p118
      %p208 = pneg %p147
      %p209 = pneg %p144
      %p210 = scmp.lt.s32.totalorder %s16, 1
      %s211 = scalar_select %p210, %s16, 1
      %s212 = smul.addr %s211, 32
      %s213 = smul.addr %s212, 8
      %s214 = scalar_lea.vmem %s5, %s213
      %p215 = scmp.lt.s32.totalorder %s16, 1
      %s216 = scalar_select %p215, %s16, 1
      %s217 = smul.addr %s216, 32
      %s218 = smul.addr %s217, 8
      %s219 = scalar_lea.vmem %s0, %s218
      %p220 = scmp.lt.s32.totalorder %s16, 1
      %s221 = scalar_select %p220, %s16, 1
      %s222 = smul.addr %s221, 32
      %s223 = smul.addr %s222, 8
      %s224 = scalar_lea.vmem %s5, %s223
      %vm225 = vcmask 64512
      %226 = vst.msk [vmem:[#allocation2] sm:$0xff] %vm225, 0.0
      %227 = vst.msk [vmem:[#allocation2 + $0x8] sm:$0xff] %vm225, 0.0
      %vm228 = vcmask 58368
      %229 = vst.msk [vmem:[#allocation2 + $0x10] sm:$0x3] %vm228, 0.0
      %230 = vst.msk [vmem:[#allocation2 + $0x18] sm:$0xff] %vm225, 0.0
      %231 = vst.msk [vmem:[#allocation2 + $0x20] sm:$0xff] %vm225, 0.0
      %232 = vst.msk [vmem:[#allocation2 + $0x28] sm:$0x3] %vm228, 0.0
      %233 = vst.msk [vmem:[#allocation2 + $0x30] sm:$0xff] %vm225, 0.0
      %234 = vst.msk [vmem:[#allocation2 + $0x38] sm:$0xff] %vm225, 0.0
      %235 = vst.msk [vmem:[#allocation2 + $0x40] sm:$0x3] %vm228, 0.0
      %236 = vst.msk [vmem:[#allocation2 + $0x48] sm:$0xff] %vm225, 0.0
      %237 = vst.msk [vmem:[#allocation2 + $0x50] sm:$0xff] %vm225, 0.0
      %238 = vst.msk [vmem:[#allocation2 + $0x58] sm:$0x3] %vm228, 0.0
      %239 = vst.msk [vmem:[#allocation2 + $0x60] sm:$0xff] %vm225, 0.0
      %240 = vst.msk [vmem:[#allocation2 + $0x68] sm:$0xff] %vm225, 0.0
      %241 = vst.msk [vmem:[#allocation2 + $0x70] sm:$0x3] %vm228, 0.0
      %242 = vst.msk [vmem:[#allocation2 + $0x78] sm:$0xff] %vm225, 0.0
      %243 = vst.msk [vmem:[#allocation2 + $0x80] sm:$0xff] %vm225, 0.0
      %244 = vst.msk [vmem:[#allocation2 + $0x88] sm:$0x3] %vm228, 0.0
      %245 = vst.msk [vmem:[#allocation2 + $0x90] sm:$0xff] %vm225, 0.0
      %246 = vst.msk [vmem:[#allocation2 + $0x98] sm:$0xff] %vm225, 0.0
      %247 = vst.msk [vmem:[#allocation2 + $0xa0] sm:$0x3] %vm228, 0.0
      %248 = vst.msk [vmem:[#allocation2 + $0xa8] sm:$0xff] %vm225, 0.0
      %249 = vst.msk [vmem:[#allocation2 + $0xb0] sm:$0xff] %vm225, 0.0
      %250 = vst.msk [vmem:[#allocation2 + $0xb8] sm:$0x3] %vm228, 0.0
      %251 = vst.msk [vmem:[#allocation2 + $0xc0] sm:$0xff] %vm225, 0.0
      %252 = vst.msk [vmem:[#allocation2 + $0xc8] sm:$0xff] %vm225, 0.0
      %253 = vst.msk [vmem:[#allocation2 + $0xd0] sm:$0x3] %vm228, 0.0
      %254 = vst.msk [vmem:[#allocation2 + $0xd8] sm:$0xff] %vm225, 0.0
      %255 = vst.msk [vmem:[#allocation2 + $0xe0] sm:$0xff] %vm225, 0.0
      %256 = vst.msk [vmem:[#allocation2 + $0xe8] sm:$0x3] %vm228, 0.0
      %257 = vst.msk [vmem:[#allocation2 + $0xf0] sm:$0xff] %vm225, 0.0
      %258 = vst.msk [vmem:[#allocation2 + $0xf8] sm:$0xff] %vm225, 0.0
      %259 = vst.msk [vmem:[#allocation2 + $0x100] sm:$0x3] %vm228, 0.0
      %260 = vst.msk [vmem:[#allocation2 + $0x108] sm:$0xff] %vm225, 0.0
      %261 = vst.msk [vmem:[#allocation2 + $0x110] sm:$0xff] %vm225, 0.0
      %262 = vst.msk [vmem:[#allocation2 + $0x118] sm:$0x3] %vm228, 0.0
      %263 = vst.msk [vmem:[#allocation2 + $0x120] sm:$0xff] %vm225, 0.0
      %264 = vst.msk [vmem:[#allocation2 + $0x128] sm:$0xff] %vm225, 0.0
      %265 = vst.msk [vmem:[#allocation2 + $0x130] sm:$0x3] %vm228, 0.0
      %266 = vst.msk [vmem:[#allocation2 + $0x138] sm:$0xff] %vm225, 0.0
      %267 = vst.msk [vmem:[#allocation2 + $0x140] sm:$0xff] %vm225, 0.0
      %268 = vst.msk [vmem:[#allocation2 + $0x148] sm:$0x3] %vm228, 0.0
      %269 = vst.msk [vmem:[#allocation2 + $0x150] sm:$0xff] %vm225, 0.0
      %270 = vst.msk [vmem:[#allocation2 + $0x158] sm:$0xff] %vm225, 0.0
      %271 = vst.msk [vmem:[#allocation2 + $0x160] sm:$0x3] %vm228, 0.0
      %272 = vst.msk [vmem:[#allocation2 + $0x168] sm:$0xff] %vm225, 0.0
      %273 = vst.msk [vmem:[#allocation2 + $0x170] sm:$0xff] %vm225, 0.0
      %274 = vst.msk [vmem:[#allocation2 + $0x178] sm:$0x3] %vm228, 0.0
      %275 = vst.msk [vmem:[#allocation2 + $0x180] sm:$0xff] %vm225, 0.0
      %276 = vst.msk [vmem:[#allocation2 + $0x188] sm:$0xff] %vm225, 0.0
      %277 = vst.msk [vmem:[#allocation2 + $0x190] sm:$0x3] %vm228, 0.0
      %278 = vst.msk [vmem:[#allocation2 + $0x198] sm:$0xff] %vm225, 0.0
      %279 = vst.msk [vmem:[#allocation2 + $0x1a0] sm:$0xff] %vm225, 0.0
      %280 = vst.msk [vmem:[#allocation2 + $0x1a8] sm:$0x3] %vm228, 0.0
      %281 = vst.msk [vmem:[#allocation3] sm:$0xff] %vm225, 0.0
      %282 = vst.msk [vmem:[#allocation3 + $0x8] sm:$0xff] %vm225, 0.0
      %283 = vst.msk [vmem:[#allocation3 + $0x10] sm:$0x3] %vm228, 0.0
      %284 = vst.msk [vmem:[#allocation3 + $0x18] sm:$0xff] %vm225, 0.0
      %285 = vst.msk [vmem:[#allocation3 + $0x20] sm:$0xff] %vm225, 0.0
      %286 = vst.msk [vmem:[#allocation3 + $0x28] sm:$0x3] %vm228, 0.0
      %287 = vst.msk [vmem:[#allocation3 + $0x30] sm:$0xff] %vm225, 0.0
      %288 = vst.msk [vmem:[#allocation3 + $0x38] sm:$0xff] %vm225, 0.0
      %289 = vst.msk [vmem:[#allocation3 + $0x40] sm:$0x3] %vm228, 0.0
      %290 = vst.msk [vmem:[#allocation3 + $0x48] sm:$0xff] %vm225, 0.0
      %291 = vst.msk [vmem:[#allocation3 + $0x50] sm:$0xff] %vm225, 0.0
      %292 = vst.msk [vmem:[#allocation3 + $0x58] sm:$0x3] %vm228, 0.0
      %293 = vst.msk [vmem:[#allocation3 + $0x60] sm:$0xff] %vm225, 0.0
      %294 = vst.msk [vmem:[#allocation3 + $0x68] sm:$0xff] %vm225, 0.0
      %295 = vst.msk [vmem:[#allocation3 + $0x70] sm:$0x3] %vm228, 0.0
      %296 = vst.msk [vmem:[#allocation3 + $0x78] sm:$0xff] %vm225, 0.0
      %297 = vst.msk [vmem:[#allocation3 + $0x80] sm:$0xff] %vm225, 0.0
      %298 = vst.msk [vmem:[#allocation3 + $0x88] sm:$0x3] %vm228, 0.0
      %299 = vst.msk [vmem:[#allocation3 + $0x90] sm:$0xff] %vm225, 0.0
      %300 = vst.msk [vmem:[#allocation3 + $0x98] sm:$0xff] %vm225, 0.0
      %301 = vst.msk [vmem:[#allocation3 + $0xa0] sm:$0x3] %vm228, 0.0
      %302 = vst.msk [vmem:[#allocation3 + $0xa8] sm:$0xff] %vm225, 0.0
      %303 = vst.msk [vmem:[#allocation3 + $0xb0] sm:$0xff] %vm225, 0.0
      %304 = vst.msk [vmem:[#allocation3 + $0xb8] sm:$0x3] %vm228, 0.0
      %305 = vst.msk [vmem:[#allocation3 + $0xc0] sm:$0xff] %vm225, 0.0
      %306 = vst.msk [vmem:[#allocation3 + $0xc8] sm:$0xff] %vm225, 0.0
      %307 = vst.msk [vmem:[#allocation3 + $0xd0] sm:$0x3] %vm228, 0.0
      %308 = vst.msk [vmem:[#allocation3 + $0xd8] sm:$0xff] %vm225, 0.0
      %309 = vst.msk [vmem:[#allocation3 + $0xe0] sm:$0xff] %vm225, 0.0
      %310 = vst.msk [vmem:[#allocation3 + $0xe8] sm:$0x3] %vm228, 0.0
      %311 = vst.msk [vmem:[#allocation3 + $0xf0] sm:$0xff] %vm225, 0.0
      %312 = vst.msk [vmem:[#allocation3 + $0xf8] sm:$0xff] %vm225, 0.0
      %313 = vst.msk [vmem:[#allocation3 + $0x100] sm:$0x3] %vm228, 0.0
      %314 = vst.msk [vmem:[#allocation3 + $0x108] sm:$0xff] %vm225, 0.0
      %315 = vst.msk [vmem:[#allocation3 + $0x110] sm:$0xff] %vm225, 0.0
      %316 = vst.msk [vmem:[#allocation3 + $0x118] sm:$0x3] %vm228, 0.0
      %317 = vst.msk [vmem:[#allocation3 + $0x120] sm:$0xff] %vm225, 0.0
      %318 = vst.msk [vmem:[#allocation3 + $0x128] sm:$0xff] %vm225, 0.0
      %319 = vst.msk [vmem:[#allocation3 + $0x130] sm:$0x3] %vm228, 0.0
      %320 = vst.msk [vmem:[#allocation3 + $0x138] sm:$0xff] %vm225, 0.0
      %321 = vst.msk [vmem:[#allocation3 + $0x140] sm:$0xff] %vm225, 0.0
      %322 = vst.msk [vmem:[#allocation3 + $0x148] sm:$0x3] %vm228, 0.0
      %323 = vst.msk [vmem:[#allocation3 + $0x150] sm:$0xff] %vm225, 0.0
      %324 = vst.msk [vmem:[#allocation3 + $0x158] sm:$0xff] %vm225, 0.0
      %325 = vst.msk [vmem:[#allocation3 + $0x160] sm:$0x3] %vm228, 0.0
      %326 = vst.msk [vmem:[#allocation3 + $0x168] sm:$0xff] %vm225, 0.0
      %327 = vst.msk [vmem:[#allocation3 + $0x170] sm:$0xff] %vm225, 0.0
      %328 = vst.msk [vmem:[#allocation3 + $0x178] sm:$0x3] %vm228, 0.0
      %329 = vst.msk [vmem:[#allocation3 + $0x180] sm:$0xff] %vm225, 0.0
      %330 = vst.msk [vmem:[#allocation3 + $0x188] sm:$0xff] %vm225, 0.0
      %331 = vst.msk [vmem:[#allocation3 + $0x190] sm:$0x3] %vm228, 0.0
      %332 = vst.msk [vmem:[#allocation3 + $0x198] sm:$0xff] %vm225, 0.0
      %333 = vst.msk [vmem:[#allocation3 + $0x1a0] sm:$0xff] %vm225, 0.0
      %334 = vst.msk [vmem:[#allocation3 + $0x1a8] sm:$0x3] %vm228, 0.0
      %v335 = vld [vmem:[%s4] sm:$0xff]
      %v336 = vld [vmem:[%s219] sm:$0xff]
      %v337 = vld [vmem:[%s219 + $0x8] sm:$0xff]
      %v338 = vld [vmem:[%s219 + $0x10] sm:$0xff]
      %v339 = vld [vmem:[%s219 + $0x18] sm:$0xff]
      %v340 = vld [vmem:[%s219 + $0x20] sm:$0xff]
      %v341 = vld [vmem:[%s219 + $0x28] sm:$0xff]
      %v342 = vld [vmem:[%s219 + $0x30] sm:$0xff]
      %v343 = vld [vmem:[%s219 + $0x38] sm:$0xff]
      %v344 = vld [vmem:[%s219 + $0x40] sm:$0xff]
      %v345 = vld [vmem:[%s219 + $0x48] sm:$0xff]
      %v346 = vld [vmem:[%s219 + $0x50] sm:$0xff]
      %v347 = vld [vmem:[%s219 + $0x58] sm:$0xff]
      %v348 = vld [vmem:[%s219 + $0x60] sm:$0xff]
      %v349 = vld [vmem:[%s219 + $0x68] sm:$0xff]
      %v350 = vld [vmem:[%s219 + $0x70] sm:$0xff]
      %v351 = vld [vmem:[%s219 + $0x78] sm:$0xff]
      %v352 = vld [vmem:[%s219 + $0x80] sm:$0xff]
      %v353 = vld [vmem:[%s219 + $0x88] sm:$0xff]
      %v354 = vld [vmem:[%s219 + $0x90] sm:$0xff]
      %v355 = vld [vmem:[%s219 + $0x98] sm:$0xff]
      %v356 = vld [vmem:[%s219 + $0xa0] sm:$0xff]
      %v357 = vld [vmem:[%s219 + $0xa8] sm:$0xff]
      %v358 = vld [vmem:[%s219 + $0xb0] sm:$0xff]
      %v359 = vld [vmem:[%s219 + $0xb8] sm:$0xff]
      %v360 = vld [vmem:[%s219 + $0xc0] sm:$0xff]
      %v361 = vld [vmem:[%s219 + $0xc8] sm:$0xff]
      %v362 = vld [vmem:[%s219 + $0xd0] sm:$0xff]
      %v363 = vld [vmem:[%s219 + $0xd8] sm:$0xff]
      %v364 = vld [vmem:[%s219 + $0xe0] sm:$0xff]
      %v365 = vld [vmem:[%s219 + $0xe8] sm:$0xff]
      %v366 = vld [vmem:[%s219 + $0xf0] sm:$0xff]
      %v367 = vld [vmem:[%s219 + $0xf8] sm:$0xff]
      %s368 = scalar_lea.vmem [#allocation2], 24
      %369 = vst.msk [vmem:[%s368 + $0x1] sm:$0xff] %vm225, %v336
      %370 = vst.msk [vmem:[%s368 + $0x9] sm:$0xff] %vm225, %v337
      %371 = vst.msk [vmem:[%s368 + $0x19] sm:$0xff] %vm225, %v338
      %372 = vst.msk [vmem:[%s368 + $0x21] sm:$0xff] %vm225, %v339
      %373 = vst.msk [vmem:[%s368 + $0x31] sm:$0xff] %vm225, %v340
      %374 = vst.msk [vmem:[%s368 + $0x39] sm:$0xff] %vm225, %v341
      %375 = vst.msk [vmem:[%s368 + $0x49] sm:$0xff] %vm225, %v342
      %376 = vst.msk [vmem:[%s368 + $0x51] sm:$0xff] %vm225, %v343
      %377 = vst.msk [vmem:[%s368 + $0x61] sm:$0xff] %vm225, %v344
      %378 = vst.msk [vmem:[%s368 + $0x69] sm:$0xff] %vm225, %v345
      %379 = vst.msk [vmem:[%s368 + $0x79] sm:$0xff] %vm225, %v346
      %380 = vst.msk [vmem:[%s368 + $0x81] sm:$0xff] %vm225, %v347
      %381 = vst.msk [vmem:[%s368 + $0x91] sm:$0xff] %vm225, %v348
      %382 = vst.msk [vmem:[%s368 + $0x99] sm:$0xff] %vm225, %v349
      %383 = vst.msk [vmem:[%s368 + $0xa9] sm:$0xff] %vm225, %v350
      %384 = vst.msk [vmem:[%s368 + $0xb1] sm:$0xff] %vm225, %v351
      %385 = vst.msk [vmem:[%s368 + $0xc1] sm:$0xff] %vm225, %v352
      %386 = vst.msk [vmem:[%s368 + $0xc9] sm:$0xff] %vm225, %v353
      %387 = vst.msk [vmem:[%s368 + $0xd9] sm:$0xff] %vm225, %v354
      %388 = vst.msk [vmem:[%s368 + $0xe1] sm:$0xff] %vm225, %v355
      %389 = vst.msk [vmem:[%s368 + $0xf1] sm:$0xff] %vm225, %v356
      %390 = vst.msk [vmem:[%s368 + $0xf9] sm:$0xff] %vm225, %v357
      %391 = vst.msk [vmem:[%s368 + $0x109] sm:$0xff] %vm225, %v358
      %392 = vst.msk [vmem:[%s368 + $0x111] sm:$0xff] %vm225, %v359
      %393 = vst.msk [vmem:[%s368 + $0x121] sm:$0xff] %vm225, %v360
      %394 = vst.msk [vmem:[%s368 + $0x129] sm:$0xff] %vm225, %v361
      %395 = vst.msk [vmem:[%s368 + $0x139] sm:$0xff] %vm225, %v362
      %396 = vst.msk [vmem:[%s368 + $0x141] sm:$0xff] %vm225, %v363
      %397 = vst.msk [vmem:[%s368 + $0x151] sm:$0xff] %vm225, %v364
      %398 = vst.msk [vmem:[%s368 + $0x159] sm:$0xff] %vm225, %v365
      %399 = vst.msk [vmem:[%s368 + $0x169] sm:$0xff] %vm225, %v366
      %400 = vst.msk [vmem:[%s368 + $0x171] sm:$0xff] %vm225, %v367
      %v401 = vld [vmem:[#allocation2] sm:$0xff]
      %v402 = vld [vmem:[#allocation2 + $0x8] sm:$0xff]
      %v403 = vld [vmem:[#allocation2 + $0x18] sm:$0xff]
      %v404 = vld [vmem:[#allocation2 + $0x20] sm:$0xff]
      %v405 = vld [vmem:[#allocation2 + $0x30] sm:$0xff]
      %v406 = vld [vmem:[#allocation2 + $0x38] sm:$0xff]
      %v407 = vld [vmem:[#allocation2 + $0x48] sm:$0xff]
      %v408 = vld [vmem:[#allocation2 + $0x50] sm:$0xff]
      %v409 = vld [vmem:[#allocation2 + $0x60] sm:$0xff]
      %v410 = vld [vmem:[#allocation2 + $0x68] sm:$0xff]
      %v411 = vld [vmem:[#allocation2 + $0x78] sm:$0xff]
      %v412 = vld [vmem:[#allocation2 + $0x80] sm:$0xff]
      %v413 = vld [vmem:[#allocation2 + $0x90] sm:$0xff]
      %v414 = vld [vmem:[#allocation2 + $0x98] sm:$0xff]
      %v415 = vld [vmem:[#allocation2 + $0xa8] sm:$0xff]
      %v416 = vld [vmem:[#allocation2 + $0xb0] sm:$0xff]
      %v417 = vld [vmem:[#allocation2 + $0xc0] sm:$0xff]
      %v418 = vld [vmem:[#allocation2 + $0xc8] sm:$0xff]
      %v419 = vld [vmem:[#allocation2 + $0xd8] sm:$0xff]
      %v420 = vld [vmem:[#allocation2 + $0xe0] sm:$0xff]
      %v421 = vld [vmem:[#allocation2 + $0xf0] sm:$0xff]
      %v422 = vld [vmem:[#allocation2 + $0xf8] sm:$0xff]
      %v423 = vld [vmem:[#allocation2 + $0x108] sm:$0xff]
      %v424 = vld [vmem:[#allocation2 + $0x110] sm:$0xff]
      %v425 = vld [vmem:[#allocation2 + $0x120] sm:$0xff]
      %v426 = vld [vmem:[#allocation2 + $0x128] sm:$0xff]
      %v427 = vld [vmem:[#allocation2 + $0x138] sm:$0xff]
      %v428 = vld [vmem:[#allocation2 + $0x140] sm:$0xff]
      %v429 = vld [vmem:[#allocation2 + $0x150] sm:$0xff]
      %v430 = vld [vmem:[#allocation2 + $0x158] sm:$0xff]
      %v431 = vld [vmem:[#allocation2 + $0x168] sm:$0xff]
      %v432 = vld [vmem:[#allocation2 + $0x170] sm:$0xff]
      %v433 = vld [vmem:[%s1] sm:$0xff]
      %v434 = vld [vmem:[#allocation2 + $0x1] sm:$0xff]
      %v435 = vld [vmem:[#allocation2 + $0x9] sm:$0xff]
      %v436 = vld [vmem:[#allocation2 + $0x19] sm:$0xff]
      %v437 = vld [vmem:[#allocation2 + $0x21] sm:$0xff]
      %v438 = vld [vmem:[#allocation2 + $0x31] sm:$0xff]
      %v439 = vld [vmem:[#allocation2 + $0x39] sm:$0xff]
      %v440 = vld [vmem:[#allocation2 + $0x49] sm:$0xff]
      %v441 = vld [vmem:[#allocation2 + $0x51] sm:$0xff]
      %v442 = vld [vmem:[#allocation2 + $0x61] sm:$0xff]
      %v443 = vld [vmem:[#allocation2 + $0x69] sm:$0xff]
      %v444 = vld [vmem:[#allocation2 + $0x79] sm:$0xff]
      %v445 = vld [vmem:[#allocation2 + $0x81] sm:$0xff]
      %v446 = vld [vmem:[#allocation2 + $0x91] sm:$0xff]
      %v447 = vld [vmem:[#allocation2 + $0x99] sm:$0xff]
      %v448 = vld [vmem:[#allocation2 + $0xa9] sm:$0xff]
      %v449 = vld [vmem:[#allocation2 + $0xb1] sm:$0xff]
      %v450 = vld [vmem:[#allocation2 + $0xc1] sm:$0xff]
      %v451 = vld [vmem:[#allocation2 + $0xc9] sm:$0xff]
      %v452 = vld [vmem:[#allocation2 + $0xd9] sm:$0xff]
      %v453 = vld [vmem:[#allocation2 + $0xe1] sm:$0xff]
      %v454 = vld [vmem:[#allocation2 + $0xf1] sm:$0xff]
      %v455 = vld [vmem:[#allocation2 + $0xf9] sm:$0xff]
      %v456 = vld [vmem:[#allocation2 + $0x109] sm:$0xff]
      %v457 = vld [vmem:[#allocation2 + $0x111] sm:$0xff]
      %v458 = vld [vmem:[#allocation2 + $0x121] sm:$0xff]
      %v459 = vld [vmem:[#allocation2 + $0x129] sm:$0xff]
      %v460 = vld [vmem:[#allocation2 + $0x139] sm:$0xff]
      %v461 = vld [vmem:[#allocation2 + $0x141] sm:$0xff]
      %v462 = vld [vmem:[#allocation2 + $0x151] sm:$0xff]
      %v463 = vld [vmem:[#allocation2 + $0x159] sm:$0xff]
      %v464 = vld [vmem:[#allocation2 + $0x169] sm:$0xff]
      %v465 = vld [vmem:[#allocation2 + $0x171] sm:$0xff]
      %v466 = vld [vmem:[%s1 + $0x8] sm:$0xff]
      %v468 = vsel %vm225, %v434, 0
      %v471 = vsel %vm225, %v435, 0
      %v474 = vsel %vm225, %v436, 0
      %v477 = vsel %vm225, %v437, 0
      %v480 = vsel %vm225, %v438, 0
      %v483 = vsel %vm225, %v439, 0
      %v486 = vsel %vm225, %v440, 0
      %v489 = vsel %vm225, %v441, 0
      %v492 = vsel %vm225, %v442, 0
      %v495 = vsel %vm225, %v443, 0
      %v498 = vsel %vm225, %v444, 0
      %v501 = vsel %vm225, %v445, 0
      %v504 = vsel %vm225, %v446, 0
      %v507 = vsel %vm225, %v447, 0
      %v510 = vsel %vm225, %v448, 0
      %v513 = vsel %vm225, %v449, 0
      %v516 = vsel %vm225, %v450, 0
      %v519 = vsel %vm225, %v451, 0
      %v522 = vsel %vm225, %v452, 0
      %v525 = vsel %vm225, %v453, 0
      %v528 = vsel %vm225, %v454, 0
      %v531 = vsel %vm225, %v455, 0
      %v534 = vsel %vm225, %v456, 0
      %v537 = vsel %vm225, %v457, 0
      %v540 = vsel %vm225, %v458, 0
      %v543 = vsel %vm225, %v459, 0
      %v546 = vsel %vm225, %v460, 0
      %v549 = vsel %vm225, %v461, 0
      %v552 = vsel %vm225, %v462, 0
      %v555 = vsel %vm225, %v463, 0
      %v558 = vsel %vm225, %v464, 0
      %v561 = vsel %vm225, %v465, 0
      %563 = vmatprep.subr.mxu0 0.0
      %564 = vmatpush1.msra.mxu0 %v466
      %565 = vmatprep.subr.mxu0 0.0
      %566 = vmatpush1.msra.mxu0 0.0
      %567 = vmatprep.subr.mxu0 0.0
      %568 = vmatpush1.msra.mxu0 0.0
      %569 = vmatprep.subr.mxu0 0.0
      %570 = vmatpush1.msra.mxu0 0.0
      %571 = vmatprep.subr.mxu0 0.0
      %572 = vmatpush1.msra.mxu0 0.0
      %573 = vmatprep.subr.mxu0 0.0
      %574 = vmatpush1.msra.mxu0 0.0
      %575 = vmatprep.subr.mxu0 0.0
      %576 = vmatpush1.msra.mxu0 0.0
      %577 = vmatprep.subr.mxu0 0.0
      %578 = vmatpush1.msra.mxu0 0.0
      %579 = vmatprep.subr.mxu0 0.0
      %580 = vmatpush1.msra.mxu0 0.0
      %581 = vmatprep.subr.mxu0 0.0
      %582 = vmatpush1.msra.mxu0 0.0
      %583 = vmatprep.subr.mxu0 0.0
      %584 = vmatpush1.msra.mxu0 0.0
      %585 = vmatprep.subr.mxu0 0.0
      %586 = vmatpush1.msra.mxu0 0.0
      %587 = vmatprep.subr.mxu0 0.0
      %588 = vmatpush1.msra.mxu0 0.0
      %589 = vmatprep.subr.mxu0 0.0
      %590 = vmatpush1.msra.mxu0 0.0
      %591 = vmatprep.subr.mxu0 0.0
      %592 = vmatpush1.msra.mxu0 0.0
      %593 = vmatprep.subr.mxu0 0.0
      %594 = vmatpush1.msra.mxu0 0.0
      %595 = vmatprep.subr.mxu0 0.0
      %596 = vmatpush1.msra.mxu0 0.0
      %597 = vmatprep.subr.mxu0 0.0
      %598 = vmatpush1.msra.mxu0 0.0
      %599 = vmatprep.subr.mxu0 0.0
      %600 = vmatpush1.msra.mxu0 0.0
      %601 = vmatprep.subr.mxu0 0.0
      %602 = vmatpush1.msra.mxu0 0.0
      %603 = vmatprep.subr.mxu0 0.0
      %604 = vmatpush1.msra.mxu0 0.0
      %605 = vmatprep.subr.mxu0 0.0
      %606 = vmatpush1.msra.mxu0 0.0
      %607 = vmatprep.subr.mxu0 0.0
      %608 = vmatpush1.msra.mxu0 0.0
      %609 = vmatprep.subr.mxu0 0.0
      %610 = vmatpush1.msra.mxu0 0.0
      %611 = vmatprep.subr.mxu0 0.0
      %612 = vmatpush1.msra.mxu0 0.0
      %613 = vmatprep.subr.mxu0 0.0
      %614 = vmatpush1.msra.mxu0 0.0
      %615 = vmatprep.subr.mxu0 0.0
      %616 = vmatpush1.msra.mxu0 0.0
      %617 = vmatprep.subr.mxu0 0.0
      %618 = vmatpush1.msra.mxu0 0.0
      %619 = vmatprep.subr.mxu0 0.0
      %620 = vmatpush1.msra.mxu0 0.0
      %621 = vmatprep.subr.mxu0 0.0
      %622 = vmatpush1.msra.mxu0 0.0
      %623 = vmatprep.subr.mxu0 0.0
      %624 = vmatpush1.msra.mxu0 0.0
      %625 = vmatprep.subr.mxu0 0.0
      %626 = vmatpush1.msra.mxu0 0.0
      %627 = vmatprep.mubr.f32.mxu0 0.0
      %628 = vmatmul.mubr.f32.gmra.mrb[0].mxu0 %v468
      %v629 = vpop.f32.mrb[0].mxu0
      %v630 = vadd.f32 0.0, %v629
      %v631 = vpop.f32.mrb[0].mxu0
      %632 = vmatprep.mubr.f32.mxu0 0.0
      %633 = vmatmul.mubr.f32.gmra.mrb[0].mxu0 %v471
      %v634 = vpop.f32.mrb[0].mxu0
      %v635 = vadd.f32 0.0, %v634
      %v636 = vpop.f32.mrb[0].mxu0
      %637 = vmatprep.mubr.f32.mxu0 0.0
      %638 = vmatmul.mubr.f32.gmra.mrb[0].mxu0 %v474
      %v639 = vpop.f32.mrb[0].mxu0
      %v640 = vadd.f32 0.0, %v639
      %v641 = vpop.f32.mrb[0].mxu0
      %642 = vmatprep.mubr.f32.mxu0 0.0
      %643 = vmatmul.mubr.f32.gmra.mrb[0].mxu0 %v477
      %v644 = vpop.f32.mrb[0].mxu0
      %v645 = vadd.f32 0.0, %v644
      %v646 = vpop.f32.mrb[0].mxu0
      %647 = vmatprep.mubr.f32.mxu0 0.0
      %648 = vmatmul.mubr.f32.gmra.mrb[0].mxu0 %v480
      %v649 = vpop.f32.mrb[0].mxu0
      %v650 = vadd.f32 0.0, %v649
      %v651 = vpop.f32.mrb[0].mxu0
      %652 = vmatprep.mubr.f32.mxu0 0.0
      %653 = vmatmul.mubr.f32.gmra.mrb[0].mxu0 %v483
      %v654 = vpop.f32.mrb[0].mxu0
      %v655 = vadd.f32 0.0, %v654
      %v656 = vpop.f32.mrb[0].mxu0
      %657 = vmatprep.mubr.f32.mxu0 0.0
      %658 = vmatmul.mubr.f32.gmra.mrb[0].mxu0 %v486
      %v659 = vpop.f32.mrb[0].mxu0
      %v660 = vadd.f32 0.0, %v659
      %v661 = vpop.f32.mrb[0].mxu0
      %662 = vmatprep.mubr.f32.mxu0 0.0
      %663 = vmatmul.mubr.f32.gmra.mrb[0].mxu0 %v489
      %v664 = vpop.f32.mrb[0].mxu0
      %v665 = vadd.f32 0.0, %v664
      %v666 = vpop.f32.mrb[0].mxu0
      %667 = vmatprep.mubr.f32.mxu0 0.0
      %668 = vmatmul.mubr.f32.gmra.mrb[0].mxu0 %v492
      %v669 = vpop.f32.mrb[0].mxu0
      %v670 = vadd.f32 0.0, %v669
      %v671 = vpop.f32.mrb[0].mxu0
      %672 = vmatprep.mubr.f32.mxu0 0.0
      %673 = vmatmul.mubr.f32.gmra.mrb[0].mxu0 %v495
      %v674 = vpop.f32.mrb[0].mxu0
      %v675 = vadd.f32 0.0, %v674
      %v676 = vpop.f32.mrb[0].mxu0
      %677 = vmatprep.mubr.f32.mxu0 0.0
      %678 = vmatmul.mubr.f32.gmra.mrb[0].mxu0 %v498
      %v679 = vpop.f32.mrb[0].mxu0
      %v680 = vadd.f32 0.0, %v679
      %v681 = vpop.f32.mrb[0].mxu0
      %682 = vmatprep.mubr.f32.mxu0 0.0
      %683 = vmatmul.mubr.f32.gmra.mrb[0].mxu0 %v501
      %v684 = vpop.f32.mrb[0].mxu0
      %v685 = vadd.f32 0.0, %v684
      %v686 = vpop.f32.mrb[0].mxu0
      %687 = vmatprep.mubr.f32.mxu0 0.0
      %688 = vmatmul.mubr.f32.gmra.mrb[0].mxu0 %v504
      %v689 = vpop.f32.mrb[0].mxu0
      %v690 = vadd.f32 0.0, %v689
      %v691 = vpop.f32.mrb[0].mxu0
      %692 = vmatprep.mubr.f32.mxu0 0.0
      %693 = vmatmul.mubr.f32.gmra.mrb[0].mxu0 %v507
      %v694 = vpop.f32.mrb[0].mxu0
      %v695 = vadd.f32 0.0, %v694
      %v696 = vpop.f32.mrb[0].mxu0
      %697 = vmatprep.mubr.f32.mxu0 0.0
      %698 = vmatmul.mubr.f32.gmra.mrb[0].mxu0 %v510
      %v699 = vpop.f32.mrb[0].mxu0
      %v700 = vadd.f32 0.0, %v699
      %v701 = vpop.f32.mrb[0].mxu0
      %702 = vmatprep.mubr.f32.mxu0 0.0
      %703 = vmatmul.mubr.f32.gmra.mrb[0].mxu0 %v513
      %v704 = vpop.f32.mrb[0].mxu0
      %v705 = vadd.f32 0.0, %v704
      %v706 = vpop.f32.mrb[0].mxu0
      %707 = vmatprep.mubr.f32.mxu0 0.0
      %708 = vmatmul.mubr.f32.gmra.mrb[0].mxu0 %v516
      %v709 = vpop.f32.mrb[0].mxu0
      %v710 = vadd.f32 0.0, %v709
      %v711 = vpop.f32.mrb[0].mxu0
      %712 = vmatprep.mubr.f32.mxu0 0.0
      %713 = vmatmul.mubr.f32.gmra.mrb[0].mxu0 %v519
      %v714 = vpop.f32.mrb[0].mxu0
      %v715 = vadd.f32 0.0, %v714
      %v716 = vpop.f32.mrb[0].mxu0
      %717 = vmatprep.mubr.f32.mxu0 0.0
      %718 = vmatmul.mubr.f32.gmra.mrb[0].mxu0 %v522
      %v719 = vpop.f32.mrb[0].mxu0
      %v720 = vadd.f32 0.0, %v719
      %v721 = vpop.f32.mrb[0].mxu0
      %722 = vmatprep.mubr.f32.mxu0 0.0
      %723 = vmatmul.mubr.f32.gmra.mrb[0].mxu0 %v525
      %v724 = vpop.f32.mrb[0].mxu0
      %v725 = vadd.f32 0.0, %v724
      %v726 = vpop.f32.mrb[0].mxu0
      %727 = vmatprep.mubr.f32.mxu0 0.0
      %728 = vmatmul.mubr.f32.gmra.mrb[0].mxu0 %v528
      %v729 = vpop.f32.mrb[0].mxu0
      %v730 = vadd.f32 0.0, %v729
      %v731 = vpop.f32.mrb[0].mxu0
      %732 = vmatprep.mubr.f32.mxu0 0.0
      %733 = vmatmul.mubr.f32.gmra.mrb[0].mxu0 %v531
      %v734 = vpop.f32.mrb[0].mxu0
      %v735 = vadd.f32 0.0, %v734
      %v736 = vpop.f32.mrb[0].mxu0
      %737 = vmatprep.mubr.f32.mxu0 0.0
      %738 = vmatmul.mubr.f32.gmra.mrb[0].mxu0 %v534
      %v739 = vpop.f32.mrb[0].mxu0
      %v740 = vadd.f32 0.0, %v739
      %v741 = vpop.f32.mrb[0].mxu0
      %742 = vmatprep.mubr.f32.mxu0 0.0
      %743 = vmatmul.mubr.f32.gmra.mrb[0].mxu0 %v537
      %v744 = vpop.f32.mrb[0].mxu0
      %v745 = vadd.f32 0.0, %v744
      %v746 = vpop.f32.mrb[0].mxu0
      %747 = vmatprep.mubr.f32.mxu0 0.0
      %748 = vmatmul.mubr.f32.gmra.mrb[0].mxu0 %v540
      %v749 = vpop.f32.mrb[0].mxu0
      %v750 = vadd.f32 0.0, %v749
      %v751 = vpop.f32.mrb[0].mxu0
      %752 = vmatprep.mubr.f32.mxu0 0.0
      %753 = vmatmul.mubr.f32.gmra.mrb[0].mxu0 %v543
      %v754 = vpop.f32.mrb[0].mxu0
      %v755 = vadd.f32 0.0, %v754
      %v756 = vpop.f32.mrb[0].mxu0
      %757 = vmatprep.mubr.f32.mxu0 0.0
      %758 = vmatmul.mubr.f32.gmra.mrb[0].mxu0 %v546
      %v759 = vpop.f32.mrb[0].mxu0
      %v760 = vadd.f32 0.0, %v759
      %v761 = vpop.f32.mrb[0].mxu0
      %762 = vmatprep.mubr.f32.mxu0 0.0
      %763 = vmatmul.mubr.f32.gmra.mrb[0].mxu0 %v549
      %v764 = vpop.f32.mrb[0].mxu0
      %v765 = vadd.f32 0.0, %v764
      %v766 = vpop.f32.mrb[0].mxu0
      %767 = vmatprep.mubr.f32.mxu0 0.0
      %768 = vmatmul.mubr.f32.gmra.mrb[0].mxu0 %v552
      %v769 = vpop.f32.mrb[0].mxu0
      %v770 = vadd.f32 0.0, %v769
      %v771 = vpop.f32.mrb[0].mxu0
      %772 = vmatprep.mubr.f32.mxu0 0.0
      %773 = vmatmul.mubr.f32.gmra.mrb[0].mxu0 %v555
      %v774 = vpop.f32.mrb[0].mxu0
      %v775 = vadd.f32 0.0, %v774
      %v776 = vpop.f32.mrb[0].mxu0
      %777 = vmatprep.mubr.f32.mxu0 0.0
      %778 = vmatmul.mubr.f32.gmra.mrb[0].mxu0 %v558
      %v779 = vpop.f32.mrb[0].mxu0
      %v780 = vadd.f32 0.0, %v779
      %v781 = vpop.f32.mrb[0].mxu0
      %782 = vmatprep.mubr.f32.mxu0 0.0
      %783 = vmatmul.mubr.f32.gmra.mrb[0].mxu0 %v561
      %v784 = vpop.f32.mrb[0].mxu0
      %v785 = vadd.f32 0.0, %v784
      %v786 = vpop.f32.mrb[0].mxu0
      %787 = vdwg.mxu0
      %v789 = vsel %vm225, %v401, 0
      %v792 = vsel %vm225, %v402, 0
      %v795 = vsel %vm225, %v403, 0
      %v798 = vsel %vm225, %v404, 0
      %v801 = vsel %vm225, %v405, 0
      %v804 = vsel %vm225, %v406, 0
      %v807 = vsel %vm225, %v407, 0
      %v810 = vsel %vm225, %v408, 0
      %v813 = vsel %vm225, %v409, 0
      %v816 = vsel %vm225, %v410, 0
      %v819 = vsel %vm225, %v411, 0
      %v822 = vsel %vm225, %v412, 0
      %v825 = vsel %vm225, %v413, 0
      %v828 = vsel %vm225, %v414, 0
      %v831 = vsel %vm225, %v415, 0
      %v834 = vsel %vm225, %v416, 0
      %v837 = vsel %vm225, %v417, 0
      %v840 = vsel %vm225, %v418, 0
      %v843 = vsel %vm225, %v419, 0
      %v846 = vsel %vm225, %v420, 0
      %v849 = vsel %vm225, %v421, 0
      %v852 = vsel %vm225, %v422, 0
      %v855 = vsel %vm225, %v423, 0
      %v858 = vsel %vm225, %v424, 0
      %v861 = vsel %vm225, %v425, 0
      %v864 = vsel %vm225, %v426, 0
      %v867 = vsel %vm225, %v427, 0
      %v870 = vsel %vm225, %v428, 0
      %v873 = vsel %vm225, %v429, 0
      %v876 = vsel %vm225, %v430, 0
      %v879 = vsel %vm225, %v431, 0
      %v882 = vsel %vm225, %v432, 0
      %884 = vmatprep.subr.mxu0 0.0
      %885 = vmatpush1.msra.mxu0 %v433
      %886 = vmatprep.subr.mxu0 0.0
      %887 = vmatpush1.msra.mxu0 0.0
      %888 = vmatprep.subr.mxu0 0.0
      %889 = vmatpush1.msra.mxu0 0.0
      %890 = vmatprep.subr.mxu0 0.0
      %891 = vmatpush1.msra.mxu0 0.0
      %892 = vmatprep.subr.mxu0 0.0
      %893 = vmatpush1.msra.mxu0 0.0
      %894 = vmatprep.subr.mxu0 0.0
      %895 = vmatpush1.msra.mxu0 0.0
      %896 = vmatprep.subr.mxu0 0.0
      %897 = vmatpush1.msra.mxu0 0.0
      %898 = vmatprep.subr.mxu0 0.0
      %899 = vmatpush1.msra.mxu0 0.0
      %900 = vmatprep.subr.mxu0 0.0
      %901 = vmatpush1.msra.mxu0 0.0
      %902 = vmatprep.subr.mxu0 0.0
      %903 = vmatpush1.msra.mxu0 0.0
      %904 = vmatprep.subr.mxu0 0.0
      %905 = vmatpush1.msra.mxu0 0.0
      %906 = vmatprep.subr.mxu0 0.0
      %907 = vmatpush1.msra.mxu0 0.0
      %908 = vmatprep.subr.mxu0 0.0
      %909 = vmatpush1.msra.mxu0 0.0
      %910 = vmatprep.subr.mxu0 0.0
      %911 = vmatpush1.msra.mxu0 0.0
      %912 = vmatprep.subr.mxu0 0.0
      %913 = vmatpush1.msra.mxu0 0.0
      %914 = vmatprep.subr.mxu0 0.0
      %915 = vmatpush1.msra.mxu0 0.0
      %916 = vmatprep.subr.mxu0 0.0
      %917 = vmatpush1.msra.mxu0 0.0
      %918 = vmatprep.subr.mxu0 0.0
      %919 = vmatpush1.msra.mxu0 0.0
      %920 = vmatprep.subr.mxu0 0.0
      %921 = vmatpush1.msra.mxu0 0.0
      %922 = vmatprep.subr.mxu0 0.0
      %923 = vmatpush1.msra.mxu0 0.0
      %924 = vmatprep.subr.mxu0 0.0
      %925 = vmatpush1.msra.mxu0 0.0
      %926 = vmatprep.subr.mxu0 0.0
      %927 = vmatpush1.msra.mxu0 0.0
      %928 = vmatprep.subr.mxu0 0.0
      %929 = vmatpush1.msra.mxu0 0.0
      %930 = vmatprep.subr.mxu0 0.0
      %931 = vmatpush1.msra.mxu0 0.0
      %932 = vmatprep.subr.mxu0 0.0
      %933 = vmatpush1.msra.mxu0 0.0
      %934 = vmatprep.subr.mxu0 0.0
      %935 = vmatpush1.msra.mxu0 0.0
      %936 = vmatprep.subr.mxu0 0.0
      %937 = vmatpush1.msra.mxu0 0.0
      %938 = vmatprep.subr.mxu0 0.0
      %939 = vmatpush1.msra.mxu0 0.0
      %940 = vmatprep.subr.mxu0 0.0
      %941 = vmatpush1.msra.mxu0 0.0
      %942 = vmatprep.subr.mxu0 0.0
      %943 = vmatpush1.msra.mxu0 0.0
      %944 = vmatprep.subr.mxu0 0.0
      %945 = vmatpush1.msra.mxu0 0.0
      %946 = vmatprep.subr.mxu0 0.0
      %947 = vmatpush1.msra.mxu0 0.0
      %948 = vmatprep.mubr.f32.mxu0 0.0
      %949 = vmatmul.mubr.f32.gmra.mrb[0].mxu0 %v789
      %v950 = vpop.f32.mrb[0].mxu0
      %v951 = vadd.f32 %v630, %v950
      %v952 = vpop.f32.mrb[0].mxu0
      %953 = vmatprep.mubr.f32.mxu0 0.0
      %954 = vmatmul.mubr.f32.gmra.mrb[0].mxu0 %v792
      %v955 = vpop.f32.mrb[0].mxu0
      %v956 = vadd.f32 %v635, %v955
      %v957 = vpop.f32.mrb[0].mxu0
      %958 = vmatprep.mubr.f32.mxu0 0.0
      %959 = vmatmul.mubr.f32.gmra.mrb[0].mxu0 %v795
      %v960 = vpop.f32.mrb[0].mxu0
      %v961 = vadd.f32 %v640, %v960
      %v962 = vpop.f32.mrb[0].mxu0
      %963 = vmatprep.mubr.f32.mxu0 0.0
      %964 = vmatmul.mubr.f32.gmra.mrb[0].mxu0 %v798
      %v965 = vpop.f32.mrb[0].mxu0
      %v966 = vadd.f32 %v645, %v965
      %v967 = vpop.f32.mrb[0].mxu0
      %968 = vmatprep.mubr.f32.mxu0 0.0
      %969 = vmatmul.mubr.f32.gmra.mrb[0].mxu0 %v801
      %v970 = vpop.f32.mrb[0].mxu0
      %v971 = vadd.f32 %v650, %v970
      %v972 = vpop.f32.mrb[0].mxu0
      %973 = vmatprep.mubr.f32.mxu0 0.0
      %974 = vmatmul.mubr.f32.gmra.mrb[0].mxu0 %v804
      %v975 = vpop.f32.mrb[0].mxu0
      %v976 = vadd.f32 %v655, %v975
      %v977 = vpop.f32.mrb[0].mxu0
      %978 = vmatprep.mubr.f32.mxu0 0.0
      %979 = vmatmul.mubr.f32.gmra.mrb[0].mxu0 %v807
      %v980 = vpop.f32.mrb[0].mxu0
      %v981 = vadd.f32 %v660, %v980
      %v982 = vpop.f32.mrb[0].mxu0
      %983 = vmatprep.mubr.f32.mxu0 0.0
      %984 = vmatmul.mubr.f32.gmra.mrb[0].mxu0 %v810
      %v985 = vpop.f32.mrb[0].mxu0
      %v986 = vadd.f32 %v665, %v985
      %v987 = vpop.f32.mrb[0].mxu0
      %988 = vmatprep.mubr.f32.mxu0 0.0
      %989 = vmatmul.mubr.f32.gmra.mrb[0].mxu0 %v813
      %v990 = vpop.f32.mrb[0].mxu0
      %v991 = vadd.f32 %v670, %v990
      %v992 = vpop.f32.mrb[0].mxu0
      %993 = vmatprep.mubr.f32.mxu0 0.0
      %994 = vmatmul.mubr.f32.gmra.mrb[0].mxu0 %v816
      %v995 = vpop.f32.mrb[0].mxu0
      %v996 = vadd.f32 %v675, %v995
      %v997 = vpop.f32.mrb[0].mxu0
      %998 = vmatprep.mubr.f32.mxu0 0.0
      %999 = vmatmul.mubr.f32.gmra.mrb[0].mxu0 %v819
      %v1000 = vpop.f32.mrb[0].mxu0
      %v1001 = vadd.f32 %v680, %v1000
      %v1002 = vpop.f32.mrb[0].mxu0
      %1003 = vmatprep.mubr.f32.mxu0 0.0
      %1004 = vmatmul.mubr.f32.gmra.mrb[0].mxu0 %v822
      %v1005 = vpop.f32.mrb[0].mxu0
      %v1006 = vadd.f32 %v685, %v1005
      %v1007 = vpop.f32.mrb[0].mxu0
      %1008 = vmatprep.mubr.f32.mxu0 0.0
      %1009 = vmatmul.mubr.f32.gmra.mrb[0].mxu0 %v825
      %v1010 = vpop.f32.mrb[0].mxu0
      %v1011 = vadd.f32 %v690, %v1010
      %v1012 = vpop.f32.mrb[0].mxu0
      %1013 = vmatprep.mubr.f32.mxu0 0.0
      %1014 = vmatmul.mubr.f32.gmra.mrb[0].mxu0 %v828
      %v1015 = vpop.f32.mrb[0].mxu0
      %v1016 = vadd.f32 %v695, %v1015
      %v1017 = vpop.f32.mrb[0].mxu0
      %1018 = vmatprep.mubr.f32.mxu0 0.0
      %1019 = vmatmul.mubr.f32.gmra.mrb[0].mxu0 %v831
      %v1020 = vpop.f32.mrb[0].mxu0
      %v1021 = vadd.f32 %v700, %v1020
      %v1022 = vpop.f32.mrb[0].mxu0
      %1023 = vmatprep.mubr.f32.mxu0 0.0
      %1024 = vmatmul.mubr.f32.gmra.mrb[0].mxu0 %v834
      %v1025 = vpop.f32.mrb[0].mxu0
      %v1026 = vadd.f32 %v705, %v1025
      %v1027 = vpop.f32.mrb[0].mxu0
      %1028 = vmatprep.mubr.f32.mxu0 0.0
      %1029 = vmatmul.mubr.f32.gmra.mrb[0].mxu0 %v837
      %v1030 = vpop.f32.mrb[0].mxu0
      %v1031 = vadd.f32 %v710, %v1030
      %v1032 = vpop.f32.mrb[0].mxu0
      %1033 = vmatprep.mubr.f32.mxu0 0.0
      %1034 = vmatmul.mubr.f32.gmra.mrb[0].mxu0 %v840
      %v1035 = vpop.f32.mrb[0].mxu0
      %v1036 = vadd.f32 %v715, %v1035
      %v1037 = vpop.f32.mrb[0].mxu0
      %1038 = vmatprep.mubr.f32.mxu0 0.0
      %1039 = vmatmul.mubr.f32.gmra.mrb[0].mxu0 %v843
      %v1040 = vpop.f32.mrb[0].mxu0
      %v1041 = vadd.f32 %v720, %v1040
      %v1042 = vpop.f32.mrb[0].mxu0
      %1043 = vmatprep.mubr.f32.mxu0 0.0
      %1044 = vmatmul.mubr.f32.gmra.mrb[0].mxu0 %v846
      %v1045 = vpop.f32.mrb[0].mxu0
      %v1046 = vadd.f32 %v725, %v1045
      %v1047 = vpop.f32.mrb[0].mxu0
      %1048 = vmatprep.mubr.f32.mxu0 0.0
      %1049 = vmatmul.mubr.f32.gmra.mrb[0].mxu0 %v849
      %v1050 = vpop.f32.mrb[0].mxu0
      %v1051 = vadd.f32 %v730, %v1050
      %v1052 = vpop.f32.mrb[0].mxu0
      %1053 = vmatprep.mubr.f32.mxu0 0.0
      %1054 = vmatmul.mubr.f32.gmra.mrb[0].mxu0 %v852
      %v1055 = vpop.f32.mrb[0].mxu0
      %v1056 = vadd.f32 %v735, %v1055
      %v1057 = vpop.f32.mrb[0].mxu0
      %1058 = vmatprep.mubr.f32.mxu0 0.0
      %1059 = vmatmul.mubr.f32.gmra.mrb[0].mxu0 %v855
      %v1060 = vpop.f32.mrb[0].mxu0
      %v1061 = vadd.f32 %v740, %v1060
      %v1062 = vpop.f32.mrb[0].mxu0
      %1063 = vmatprep.mubr.f32.mxu0 0.0
      %1064 = vmatmul.mubr.f32.gmra.mrb[0].mxu0 %v858
      %v1065 = vpop.f32.mrb[0].mxu0
      %v1066 = vadd.f32 %v745, %v1065
      %v1067 = vpop.f32.mrb[0].mxu0
      %1068 = vmatprep.mubr.f32.mxu0 0.0
      %1069 = vmatmul.mubr.f32.gmra.mrb[0].mxu0 %v861
      %v1070 = vpop.f32.mrb[0].mxu0
      %v1071 = vadd.f32 %v750, %v1070
      %v1072 = vpop.f32.mrb[0].mxu0
      %1073 = vmatprep.mubr.f32.mxu0 0.0
      %1074 = vmatmul.mubr.f32.gmra.mrb[0].mxu0 %v864
      %v1075 = vpop.f32.mrb[0].mxu0
      %v1076 = vadd.f32 %v755, %v1075
      %v1077 = vpop.f32.mrb[0].mxu0
      %1078 = vmatprep.mubr.f32.mxu0 0.0
      %1079 = vmatmul.mubr.f32.gmra.mrb[0].mxu0 %v867
      %v1080 = vpop.f32.mrb[0].mxu0
      %v1081 = vadd.f32 %v760, %v1080
      %v1082 = vpop.f32.mrb[0].mxu0
      %1083 = vmatprep.mubr.f32.mxu0 0.0
      %1084 = vmatmul.mubr.f32.gmra.mrb[0].mxu0 %v870
      %v1085 = vpop.f32.mrb[0].mxu0
      %v1086 = vadd.f32 %v765, %v1085
      %v1087 = vpop.f32.mrb[0].mxu0
      %1088 = vmatprep.mubr.f32.mxu0 0.0
      %1089 = vmatmul.mubr.f32.gmra.mrb[0].mxu0 %v873
      %v1090 = vpop.f32.mrb[0].mxu0
      %v1091 = vadd.f32 %v770, %v1090
      %v1092 = vpop.f32.mrb[0].mxu0
      %1093 = vmatprep.mubr.f32.mxu0 0.0
      %1094 = vmatmul.mubr.f32.gmra.mrb[0].mxu0 %v876
      %v1095 = vpop.f32.mrb[0].mxu0
      %v1096 = vadd.f32 %v775, %v1095
      %v1097 = vpop.f32.mrb[0].mxu0
      %1098 = vmatprep.mubr.f32.mxu0 0.0
      %1099 = vmatmul.mubr.f32.gmra.mrb[0].mxu0 %v879
      %v1100 = vpop.f32.mrb[0].mxu0
      %v1101 = vadd.f32 %v780, %v1100
      %v1102 = vpop.f32.mrb[0].mxu0
      %1103 = vmatprep.mubr.f32.mxu0 0.0
      %1104 = vmatmul.mubr.f32.gmra.mrb[0].mxu0 %v882
      %v1105 = vpop.f32.mrb[0].mxu0
      %v1106 = vadd.f32 %v785, %v1105
      %v1107 = vpop.f32.mrb[0].mxu0
      %1108 = vdwg.mxu0
      %v1109 = vld [vmem:[#allocation2 + $0x2] sm:$0xff]
      %v1110 = vld [vmem:[#allocation2 + $0xa] sm:$0xff]
      %v1111 = vld [vmem:[#allocation2 + $0x1a] sm:$0xff]
      %v1112 = vld [vmem:[#allocation2 + $0x22] sm:$0xff]
      %v1113 = vld [vmem:[#allocation2 + $0x32] sm:$0xff]
      %v1114 = vld [vmem:[#allocation2 + $0x3a] sm:$0xff]
      %v1115 = vld [vmem:[#allocation2 + $0x4a] sm:$0xff]
      %v1116 = vld [vmem:[#allocation2 + $0x52] sm:$0xff]
      %v1117 = vld [vmem:[#allocation2 + $0x62] sm:$0xff]
      %v1118 = vld [vmem:[#allocation2 + $0x6a] sm:$0xff]
      %v1119 = vld [vmem:[#allocation2 + $0x7a] sm:$0xff]
      %v1120 = vld [vmem:[#allocation2 + $0x82] sm:$0xff]
      %v1121 = vld [vmem:[#allocation2 + $0x92] sm:$0xff]
      %v1122 = vld [vmem:[#allocation2 + $0x9a] sm:$0xff]
      %v1123 = vld [vmem:[#allocation2 + $0xaa] sm:$0xff]
      %v1124 = vld [vmem:[#allocation2 + $0xb2] sm:$0xff]
      %v1125 = vld [vmem:[#allocation2 + $0xc2] sm:$0xff]
      %v1126 = vld [vmem:[#allocation2 + $0xca] sm:$0xff]
      %v1127 = vld [vmem:[#allocation2 + $0xda] sm:$0xff]
      %v1128 = vld [vmem:[#allocation2 + $0xe2] sm:$0xff]
      %v1129 = vld [vmem:[#allocation2 + $0xf2] sm:$0xff]
      %v1130 = vld [vmem:[#allocation2 + $0xfa] sm:$0xff]
      %v1131 = vld [vmem:[#allocation2 + $0x10a] sm:$0xff]
      %v1132 = vld [vmem:[#allocation2 + $0x112] sm:$0xff]
      %v1133 = vld [vmem:[#allocation2 + $0x122] sm:$0xff]
      %v1134 = vld [vmem:[#allocation2 + $0x12a] sm:$0xff]
      %v1135 = vld [vmem:[#allocation2 + $0x13a] sm:$0xff]
      %v1136 = vld [vmem:[#allocation2 + $0x142] sm:$0xff]
      %v1137 = vld [vmem:[#allocation2 + $0x152] sm:$0xff]
      %v1138 = vld [vmem:[#allocation2 + $0x15a] sm:$0xff]
      %v1139 = vld [vmem:[#allocation2 + $0x16a] sm:$0xff]
      %v1140 = vld [vmem:[#allocation2 + $0x172] sm:$0xff]
      %v1141 = vld [vmem:[%s1 + $0x10] sm:$0xff]
      %v1143 = vsel %vm225, %v1109, 0
      %v1146 = vsel %vm225, %v1110, 0
      %v1149 = vsel %vm225, %v1111, 0
      %v1152 = vsel %vm225, %v1112, 0
      %v1155 = vsel %vm225, %v1113, 0
      %v1158 = vsel %vm225, %v1114, 0
      %v1161 = vsel %vm225, %v1115, 0
      %v1164 = vsel %vm225, %v1116, 0
      %v1167 = vsel %vm225, %v1117, 0
      %v1170 = vsel %vm225, %v1118, 0
      %v1173 = vsel %vm225, %v1119, 0
      %v1176 = vsel %vm225, %v1120, 0
      %v1179 = vsel %vm225, %v1121, 0
      %v1182 = vsel %vm225, %v1122, 0
      %v1185 = vsel %vm225, %v1123, 0
      %v1188 = vsel %vm225, %v1124, 0
      %v1191 = vsel %vm225, %v1125, 0
      %v1194 = vsel %vm225, %v1126, 0
      %v1197 = vsel %vm225, %v1127, 0
      %v1200 = vsel %vm225, %v1128, 0
      %v1203 = vsel %vm225, %v1129, 0
      %v1206 = vsel %vm225, %v1130, 0
      %v1209 = vsel %vm225, %v1131, 0
      %v1212 = vsel %vm225, %v1132, 0
      %v1215 = vsel %vm225, %v1133, 0
      %v1218 = vsel %vm225, %v1134, 0
      %v1221 = vsel %vm225, %v1135, 0
      %v1224 = vsel %vm225, %v1136, 0
      %v1227 = vsel %vm225, %v1137, 0
      %v1230 = vsel %vm225, %v1138, 0
      %v1233 = vsel %vm225, %v1139, 0
      %v1236 = vsel %vm225, %v1140, 0
      %1238 = vmatprep.subr.mxu0 0.0
      %1239 = vmatpush1.msra.mxu0 %v1141
      %1240 = vmatprep.subr.mxu0 0.0
      %1241 = vmatpush1.msra.mxu0 0.0
      %1242 = vmatprep.subr.mxu0 0.0
      %1243 = vmatpush1.msra.mxu0 0.0
      %1244 = vmatprep.subr.mxu0 0.0
      %1245 = vmatpush1.msra.mxu0 0.0
      %1246 = vmatprep.subr.mxu0 0.0
      %1247 = vmatpush1.msra.mxu0 0.0
      %1248 = vmatprep.subr.mxu0 0.0
      %1249 = vmatpush1.msra.mxu0 0.0
      %1250 = vmatprep.subr.mxu0 0.0
      %1251 = vmatpush1.msra.mxu0 0.0
      %1252 = vmatprep.subr.mxu0 0.0
      %1253 = vmatpush1.msra.mxu0 0.0
      %1254 = vmatprep.subr.mxu0 0.0
      %1255 = vmatpush1.msra.mxu0 0.0
      %1256 = vmatprep.subr.mxu0 0.0
      %1257 = vmatpush1.msra.mxu0 0.0
      %1258 = vmatprep.subr.mxu0 0.0
      %1259 = vmatpush1.msra.mxu0 0.0
      %1260 = vmatprep.subr.mxu0 0.0
      %1261 = vmatpush1.msra.mxu0 0.0
      %1262 = vmatprep.subr.mxu0 0.0
      %1263 = vmatpush1.msra.mxu0 0.0
      %1264 = vmatprep.subr.mxu0 0.0
      %1265 = vmatpush1.msra.mxu0 0.0
      %1266 = vmatprep.subr.mxu0 0.0
      %1267 = vmatpush1.msra.mxu0 0.0
      %1268 = vmatprep.subr.mxu0 0.0
      %1269 = vmatpush1.msra.mxu0 0.0
      %1270 = vmatprep.subr.mxu0 0.0
      %1271 = vmatpush1.msra.mxu0 0.0
      %1272 = vmatprep.subr.mxu0 0.0
      %1273 = vmatpush1.msra.mxu0 0.0
      %1274 = vmatprep.subr.mxu0 0.0
      %1275 = vmatpush1.msra.mxu0 0.0
      %1276 = vmatprep.subr.mxu0 0.0
      %1277 = vmatpush1.msra.mxu0 0.0
      %1278 = vmatprep.subr.mxu0 0.0
      %1279 = vmatpush1.msra.mxu0 0.0
      %1280 = vmatprep.subr.mxu0 0.0
      %1281 = vmatpush1.msra.mxu0 0.0
      %1282 = vmatprep.subr.mxu0 0.0
      %1283 = vmatpush1.msra.mxu0 0.0
      %1284 = vmatprep.subr.mxu0 0.0
      %1285 = vmatpush1.msra.mxu0 0.0
      %1286 = vmatprep.subr.mxu0 0.0
      %1287 = vmatpush1.msra.mxu0 0.0
      %1288 = vmatprep.subr.mxu0 0.0
      %1289 = vmatpush1.msra.mxu0 0.0
      %1290 = vmatprep.subr.mxu0 0.0
      %1291 = vmatpush1.msra.mxu0 0.0
      %1292 = vmatprep.subr.mxu0 0.0
      %1293 = vmatpush1.msra.mxu0 0.0
      %1294 = vmatprep.subr.mxu0 0.0
      %1295 = vmatpush1.msra.mxu0 0.0
      %1296 = vmatprep.subr.mxu0 0.0
      %1297 = vmatpush1.msra.mxu0 0.0
      %1298 = vmatprep.subr.mxu0 0.0
      %1299 = vmatpush1.msra.mxu0 0.0
      %1300 = vmatprep.subr.mxu0 0.0
      %1301 = vmatpush1.msra.mxu0 0.0
      %1302 = vmatprep.mubr.f32.mxu0 0.0
      %1303 = vmatmul.mubr.f32.gmra.mrb[0].mxu0 %v1143
      %v1304 = vpop.f32.mrb[0].mxu0
      %v1305 = vadd.f32 0.0, %v1304
      %v1306 = vpop.f32.mrb[0].mxu0
      %1307 = vmatprep.mubr.f32.mxu0 0.0
      %1308 = vmatmul.mubr.f32.gmra.mrb[0].mxu0 %v1146
      %v1309 = vpop.f32.mrb[0].mxu0
      %v1310 = vadd.f32 0.0, %v1309
      %v1311 = vpop.f32.mrb[0].mxu0
      %1312 = vmatprep.mubr.f32.mxu0 0.0
      %1313 = vmatmul.mubr.f32.gmra.mrb[0].mxu0 %v1149
      %v1314 = vpop.f32.mrb[0].mxu0
      %v1315 = vadd.f32 0.0, %v1314
      %v1316 = vpop.f32.mrb[0].mxu0
      %1317 = vmatprep.mubr.f32.mxu0 0.0
      %1318 = vmatmul.mubr.f32.gmra.mrb[0].mxu0 %v1152
      %v1319 = vpop.f32.mrb[0].mxu0
      %v1320 = vadd.f32 0.0, %v1319
      %v1321 = vpop.f32.mrb[0].mxu0
      %1322 = vmatprep.mubr.f32.mxu0 0.0
      %1323 = vmatmul.mubr.f32.gmra.mrb[0].mxu0 %v1155
      %v1324 = vpop.f32.mrb[0].mxu0
      %v1325 = vadd.f32 0.0, %v1324
      %v1326 = vpop.f32.mrb[0].mxu0
      %1327 = vmatprep.mubr.f32.mxu0 0.0
      %1328 = vmatmul.mubr.f32.gmra.mrb[0].mxu0 %v1158
      %v1329 = vpop.f32.mrb[0].mxu0
      %v1330 = vadd.f32 0.0, %v1329
      %v1331 = vpop.f32.mrb[0].mxu0
      %1332 = vmatprep.mubr.f32.mxu0 0.0
      %1333 = vmatmul.mubr.f32.gmra.mrb[0].mxu0 %v1161
      %v1334 = vpop.f32.mrb[0].mxu0
      %v1335 = vadd.f32 0.0, %v1334
      %v1336 = vpop.f32.mrb[0].mxu0
      %1337 = vmatprep.mubr.f32.mxu0 0.0
      %1338 = vmatmul.mubr.f32.gmra.mrb[0].mxu0 %v1164
      %v1339 = vpop.f32.mrb[0].mxu0
      %v1340 = vadd.f32 0.0, %v1339
      %v1341 = vpop.f32.mrb[0].mxu0
      %1342 = vmatprep.mubr.f32.mxu0 0.0
      %1343 = vmatmul.mubr.f32.gmra.mrb[0].mxu0 %v1167
      %v1344 = vpop.f32.mrb[0].mxu0
      %v1345 = vadd.f32 0.0, %v1344
      %v1346 = vpop.f32.mrb[0].mxu0
      %1347 = vmatprep.mubr.f32.mxu0 0.0
      %1348 = vmatmul.mubr.f32.gmra.mrb[0].mxu0 %v1170
      %v1349 = vpop.f32.mrb[0].mxu0
      %v1350 = vadd.f32 0.0, %v1349
      %v1351 = vpop.f32.mrb[0].mxu0
      %1352 = vmatprep.mubr.f32.mxu0 0.0
      %1353 = vmatmul.mubr.f32.gmra.mrb[0].mxu0 %v1173
      %v1354 = vpop.f32.mrb[0].mxu0
      %v1355 = vadd.f32 0.0, %v1354
      %v1356 = vpop.f32.mrb[0].mxu0
      %1357 = vmatprep.mubr.f32.mxu0 0.0
      %1358 = vmatmul.mubr.f32.gmra.mrb[0].mxu0 %v1176
      %v1359 = vpop.f32.mrb[0].mxu0
      %v1360 = vadd.f32 0.0, %v1359
      %v1361 = vpop.f32.mrb[0].mxu0
      %1362 = vmatprep.mubr.f32.mxu0 0.0
      %1363 = vmatmul.mubr.f32.gmra.mrb[0].mxu0 %v1179
      %v1364 = vpop.f32.mrb[0].mxu0
      %v1365 = vadd.f32 0.0, %v1364
      %v1366 = vpop.f32.mrb[0].mxu0
      %1367 = vmatprep.mubr.f32.mxu0 0.0
      %1368 = vmatmul.mubr.f32.gmra.mrb[0].mxu0 %v1182
      %v1369 = vpop.f32.mrb[0].mxu0
      %v1370 = vadd.f32 0.0, %v1369
      %v1371 = vpop.f32.mrb[0].mxu0
      %1372 = vmatprep.mubr.f32.mxu0 0.0
      %1373 = vmatmul.mubr.f32.gmra.mrb[0].mxu0 %v1185
      %v1374 = vpop.f32.mrb[0].mxu0
      %v1375 = vadd.f32 0.0, %v1374
      %v1376 = vpop.f32.mrb[0].mxu0
      %1377 = vmatprep.mubr.f32.mxu0 0.0
      %1378 = vmatmul.mubr.f32.gmra.mrb[0].mxu0 %v1188
      %v1379 = vpop.f32.mrb[0].mxu0
      %v1380 = vadd.f32 0.0, %v1379
      %v1381 = vpop.f32.mrb[0].mxu0
      %1382 = vmatprep.mubr.f32.mxu0 0.0
      %1383 = vmatmul.mubr.f32.gmra.mrb[0].mxu0 %v1191
      %v1384 = vpop.f32.mrb[0].mxu0
      %v1385 = vadd.f32 0.0, %v1384
      %v1386 = vpop.f32.mrb[0].mxu0
      %1387 = vmatprep.mubr.f32.mxu0 0.0
      %1388 = vmatmul.mubr.f32.gmra.mrb[0].mxu0 %v1194
      %v1389 = vpop.f32.mrb[0].mxu0
      %v1390 = vadd.f32 0.0, %v1389
      %v1391 = vpop.f32.mrb[0].mxu0
      %1392 = vmatprep.mubr.f32.mxu0 0.0
      %1393 = vmatmul.mubr.f32.gmra.mrb[0].mxu0 %v1197
      %v1394 = vpop.f32.mrb[0].mxu0
      %v1395 = vadd.f32 0.0, %v1394
      %v1396 = vpop.f32.mrb[0].mxu0
      %1397 = vmatprep.mubr.f32.mxu0 0.0
      %1398 = vmatmul.mubr.f32.gmra.mrb[0].mxu0 %v1200
      %v1399 = vpop.f32.mrb[0].mxu0
      %v1400 = vadd.f32 0.0, %v1399
      %v1401 = vpop.f32.mrb[0].mxu0
      %1402 = vmatprep.mubr.f32.mxu0 0.0
      %1403 = vmatmul.mubr.f32.gmra.mrb[0].mxu0 %v1203
      %v1404 = vpop.f32.mrb[0].mxu0
      %v1405 = vadd.f32 0.0, %v1404
      %v1406 = vpop.f32.mrb[0].mxu0
      %1407 = vmatprep.mubr.f32.mxu0 0.0
      %1408 = vmatmul.mubr.f32.gmra.mrb[0].mxu0 %v1206
      %v1409 = vpop.f32.mrb[0].mxu0
      %v1410 = vadd.f32 0.0, %v1409
      %v1411 = vpop.f32.mrb[0].mxu0
      %1412 = vmatprep.mubr.f32.mxu0 0.0
      %1413 = vmatmul.mubr.f32.gmra.mrb[0].mxu0 %v1209
      %v1414 = vpop.f32.mrb[0].mxu0
      %v1415 = vadd.f32 0.0, %v1414
      %v1416 = vpop.f32.mrb[0].mxu0
      %1417 = vmatprep.mubr.f32.mxu0 0.0
      %1418 = vmatmul.mubr.f32.gmra.mrb[0].mxu0 %v1212
      %v1419 = vpop.f32.mrb[0].mxu0
      %v1420 = vadd.f32 0.0, %v1419
      %v1421 = vpop.f32.mrb[0].mxu0
      %1422 = vmatprep.mubr.f32.mxu0 0.0
      %1423 = vmatmul.mubr.f32.gmra.mrb[0].mxu0 %v1215
      %v1424 = vpop.f32.mrb[0].mxu0
      %v1425 = vadd.f32 0.0, %v1424
      %v1426 = vpop.f32.mrb[0].mxu0
      %1427 = vmatprep.mubr.f32.mxu0 0.0
      %1428 = vmatmul.mubr.f32.gmra.mrb[0].mxu0 %v1218
      %v1429 = vpop.f32.mrb[0].mxu0
      %v1430 = vadd.f32 0.0, %v1429
      %v1431 = vpop.f32.mrb[0].mxu0
      %1432 = vmatprep.mubr.f32.mxu0 0.0
      %1433 = vmatmul.mubr.f32.gmra.mrb[0].mxu0 %v1221
      %v1434 = vpop.f32.mrb[0].mxu0
      %v1435 = vadd.f32 0.0, %v1434
      %v1436 = vpop.f32.mrb[0].mxu0
      %1437 = vmatprep.mubr.f32.mxu0 0.0
      %1438 = vmatmul.mubr.f32.gmra.mrb[0].mxu0 %v1224
      %v1439 = vpop.f32.mrb[0].mxu0
      %v1440 = vadd.f32 0.0, %v1439
      %v1441 = vpop.f32.mrb[0].mxu0
      %1442 = vmatprep.mubr.f32.mxu0 0.0
      %1443 = vmatmul.mubr.f32.gmra.mrb[0].mxu0 %v1227
      %v1444 = vpop.f32.mrb[0].mxu0
      %v1445 = vadd.f32 0.0, %v1444
      %v1446 = vpop.f32.mrb[0].mxu0
      %1447 = vmatprep.mubr.f32.mxu0 0.0
      %1448 = vmatmul.mubr.f32.gmra.mrb[0].mxu0 %v1230
      %v1449 = vpop.f32.mrb[0].mxu0
      %v1450 = vadd.f32 0.0, %v1449
      %v1451 = vpop.f32.mrb[0].mxu0
      %1452 = vmatprep.mubr.f32.mxu0 0.0
      %1453 = vmatmul.mubr.f32.gmra.mrb[0].mxu0 %v1233
      %v1454 = vpop.f32.mrb[0].mxu0
      %v1455 = vadd.f32 0.0, %v1454
      %v1456 = vpop.f32.mrb[0].mxu0
      %1457 = vmatprep.mubr.f32.mxu0 0.0
      %1458 = vmatmul.mubr.f32.gmra.mrb[0].mxu0 %v1236
      %v1459 = vpop.f32.mrb[0].mxu0
      %v1460 = vadd.f32 0.0, %v1459
      %v1461 = vpop.f32.mrb[0].mxu0
      %1462 = vdwg.mxu0
      %v1463 = vadd.f32 %v951, %v1305
      %v1464 = vadd.f32 %v956, %v1310
      %v1465 = vadd.f32 %v961, %v1315
      %v1466 = vadd.f32 %v966, %v1320
      %v1467 = vadd.f32 %v971, %v1325
      %v1468 = vadd.f32 %v976, %v1330
      %v1469 = vadd.f32 %v981, %v1335
      %v1470 = vadd.f32 %v986, %v1340
      %v1471 = vadd.f32 %v991, %v1345
      %v1472 = vadd.f32 %v996, %v1350
      %v1473 = vadd.f32 %v1001, %v1355
      %v1474 = vadd.f32 %v1006, %v1360
      %v1475 = vadd.f32 %v1011, %v1365
      %v1476 = vadd.f32 %v1016, %v1370
      %v1477 = vadd.f32 %v1021, %v1375
      %v1478 = vadd.f32 %v1026, %v1380
      %v1479 = vadd.f32 %v1031, %v1385
      %v1480 = vadd.f32 %v1036, %v1390
      %v1481 = vadd.f32 %v1041, %v1395
      %v1482 = vadd.f32 %v1046, %v1400
      %v1483 = vadd.f32 %v1051, %v1405
      %v1484 = vadd.f32 %v1056, %v1410
      %v1485 = vadd.f32 %v1061, %v1415
      %v1486 = vadd.f32 %v1066, %v1420
      %v1487 = vadd.f32 %v1071, %v1425
      %v1488 = vadd.f32 %v1076, %v1430
      %v1489 = vadd.f32 %v1081, %v1435
      %v1490 = vadd.f32 %v1086, %v1440
      %v1491 = vadd.f32 %v1091, %v1445
      %v1492 = vadd.f32 %v1096, %v1450
      %v1493 = vadd.f32 %v1101, %v1455
      %v1494 = vadd.f32 %v1106, %v1460
      %v1495 = vld [vmem:[%s368] sm:$0xff]
      %v1496 = vld [vmem:[%s368 + $0x8] sm:$0xff]
      %v1497 = vld [vmem:[%s368 + $0x18] sm:$0xff]
      %v1498 = vld [vmem:[%s368 + $0x20] sm:$0xff]
      %v1499 = vld [vmem:[%s368 + $0x30] sm:$0xff]
      %v1500 = vld [vmem:[%s368 + $0x38] sm:$0xff]
      %v1501 = vld [vmem:[%s368 + $0x48] sm:$0xff]
      %v1502 = vld [vmem:[%s368 + $0x50] sm:$0xff]
      %v1503 = vld [vmem:[%s368 + $0x60] sm:$0xff]
      %v1504 = vld [vmem:[%s368 + $0x68] sm:$0xff]
      %v1505 = vld [vmem:[%s368 + $0x78] sm:$0xff]
      %v1506 = vld [vmem:[%s368 + $0x80] sm:$0xff]
      %v1507 = vld [vmem:[%s368 + $0x90] sm:$0xff]
      %v1508 = vld [vmem:[%s368 + $0x98] sm:$0xff]
      %v1509 = vld [vmem:[%s368 + $0xa8] sm:$0xff]
      %v1510 = vld [vmem:[%s368 + $0xb0] sm:$0xff]
      %v1511 = vld [vmem:[%s368 + $0xc0] sm:$0xff]
      %v1512 = vld [vmem:[%s368 + $0xc8] sm:$0xff]
      %v1513 = vld [vmem:[%s368 + $0xd8] sm:$0xff]
      %v1514 = vld [vmem:[%s368 + $0xe0] sm:$0xff]
      %v1515 = vld [vmem:[%s368 + $0xf0] sm:$0xff]
      %v1516 = vld [vmem:[%s368 + $0xf8] sm:$0xff]
      %v1517 = vld [vmem:[%s368 + $0x108] sm:$0xff]
      %v1518 = vld [vmem:[%s368 + $0x110] sm:$0xff]
      %v1519 = vld [vmem:[%s368 + $0x120] sm:$0xff]
      %v1520 = vld [vmem:[%s368 + $0x128] sm:$0xff]
      %v1521 = vld [vmem:[%s368 + $0x138] sm:$0xff]
      %v1522 = vld [vmem:[%s368 + $0x140] sm:$0xff]
      %v1523 = vld [vmem:[%s368 + $0x150] sm:$0xff]
      %v1524 = vld [vmem:[%s368 + $0x158] sm:$0xff]
      %v1525 = vld [vmem:[%s368 + $0x168] sm:$0xff]
      %v1526 = vld [vmem:[%s368 + $0x170] sm:$0xff]
      %s1527 = scalar_lea.vmem %s1, 24
      %v1528 = vld [vmem:[%s1527] sm:$0xff]
      %v1530 = vsel %vm225, %v1495, 0
      %v1533 = vsel %vm225, %v1496, 0
      %v1536 = vsel %vm225, %v1497, 0
      %v1539 = vsel %vm225, %v1498, 0
      %v1542 = vsel %vm225, %v1499, 0
      %v1545 = vsel %vm225, %v1500, 0
      %v1548 = vsel %vm225, %v1501, 0
      %v1551 = vsel %vm225, %v1502, 0
      %v1554 = vsel %vm225, %v1503, 0
      %v1557 = vsel %vm225, %v1504, 0
      %v1560 = vsel %vm225, %v1505, 0
      %v1563 = vsel %vm225, %v1506, 0
      %v1566 = vsel %vm225, %v1507, 0
      %v1569 = vsel %vm225, %v1508, 0
      %v1572 = vsel %vm225, %v1509, 0
      %v1575 = vsel %vm225, %v1510, 0
      %v1578 = vsel %vm225, %v1511, 0
      %v1581 = vsel %vm225, %v1512, 0
      %v1584 = vsel %vm225, %v1513, 0
      %v1587 = vsel %vm225, %v1514, 0
      %v1590 = vsel %vm225, %v1515, 0
      %v1593 = vsel %vm225, %v1516, 0
      %v1596 = vsel %vm225, %v1517, 0
      %v1599 = vsel %vm225, %v1518, 0
      %v1602 = vsel %vm225, %v1519, 0
      %v1605 = vsel %vm225, %v1520, 0
      %v1608 = vsel %vm225, %v1521, 0
      %v1611 = vsel %vm225, %v1522, 0
      %v1614 = vsel %vm225, %v1523, 0
      %v1617 = vsel %vm225, %v1524, 0
      %v1620 = vsel %vm225, %v1525, 0
      %v1623 = vsel %vm225, %v1526, 0
      %1625 = vmatprep.subr.mxu0 0.0
      %1626 = vmatpush1.msra.mxu0 %v1528
      %1627 = vmatprep.subr.mxu0 0.0
      %1628 = vmatpush1.msra.mxu0 0.0
      %1629 = vmatprep.subr.mxu0 0.0
      %1630 = vmatpush1.msra.mxu0 0.0
      %1631 = vmatprep.subr.mxu0 0.0
      %1632 = vmatpush1.msra.mxu0 0.0
      %1633 = vmatprep.subr.mxu0 0.0
      %1634 = vmatpush1.msra.mxu0 0.0
      %1635 = vmatprep.subr.mxu0 0.0
      %1636 = vmatpush1.msra.mxu0 0.0
      %1637 = vmatprep.subr.mxu0 0.0
      %1638 = vmatpush1.msra.mxu0 0.0
      %1639 = vmatprep.subr.mxu0 0.0
      %1640 = vmatpush1.msra.mxu0 0.0
      %1641 = vmatprep.subr.mxu0 0.0
      %1642 = vmatpush1.msra.mxu0 0.0
      %1643 = vmatprep.subr.mxu0 0.0
      %1644 = vmatpush1.msra.mxu0 0.0
      %1645 = vmatprep.subr.mxu0 0.0
      %1646 = vmatpush1.msra.mxu0 0.0
      %1647 = vmatprep.subr.mxu0 0.0
      %1648 = vmatpush1.msra.mxu0 0.0
      %1649 = vmatprep.subr.mxu0 0.0
      %1650 = vmatpush1.msra.mxu0 0.0
      %1651 = vmatprep.subr.mxu0 0.0
      %1652 = vmatpush1.msra.mxu0 0.0
      %1653 = vmatprep.subr.mxu0 0.0
      %1654 = vmatpush1.msra.mxu0 0.0
      %1655 = vmatprep.subr.mxu0 0.0
      %1656 = vmatpush1.msra.mxu0 0.0
      %1657 = vmatprep.subr.mxu0 0.0
      %1658 = vmatpush1.msra.mxu0 0.0
      %1659 = vmatprep.subr.mxu0 0.0
      %1660 = vmatpush1.msra.mxu0 0.0
      %1661 = vmatprep.subr.mxu0 0.0
      %1662 = vmatpush1.msra.mxu0 0.0
      %1663 = vmatprep.subr.mxu0 0.0
      %1664 = vmatpush1.msra.mxu0 0.0
      %1665 = vmatprep.subr.mxu0 0.0
      %1666 = vmatpush1.msra.mxu0 0.0
      %1667 = vmatprep.subr.mxu0 0.0
      %1668 = vmatpush1.msra.mxu0 0.0
      %1669 = vmatprep.subr.mxu0 0.0
      %1670 = vmatpush1.msra.mxu0 0.0
      %1671 = vmatprep.subr.mxu0 0.0
      %1672 = vmatpush1.msra.mxu0 0.0
      %1673 = vmatprep.subr.mxu0 0.0
      %1674 = vmatpush1.msra.mxu0 0.0
      %1675 = vmatprep.subr.mxu0 0.0
      %1676 = vmatpush1.msra.mxu0 0.0
      %1677 = vmatprep.subr.mxu0 0.0
      %1678 = vmatpush1.msra.mxu0 0.0
      %1679 = vmatprep.subr.mxu0 0.0
      %1680 = vmatpush1.msra.mxu0 0.0
      %1681 = vmatprep.subr.mxu0 0.0
      %1682 = vmatpush1.msra.mxu0 0.0
      %1683 = vmatprep.subr.mxu0 0.0
      %1684 = vmatpush1.msra.mxu0 0.0
      %1685 = vmatprep.subr.mxu0 0.0
      %1686 = vmatpush1.msra.mxu0 0.0
      %1687 = vmatprep.subr.mxu0 0.0
      %1688 = vmatpush1.msra.mxu0 0.0
      %1689 = vmatprep.mubr.f32.mxu0 0.0
      %1690 = vmatmul.mubr.f32.gmra.mrb[0].mxu0 %v1530
      %v1691 = vpop.f32.mrb[0].mxu0
      %v1692 = vadd.f32 0.0, %v1691
      %v1693 = vpop.f32.mrb[0].mxu0
      %1694 = vmatprep.mubr.f32.mxu0 0.0
      %1695 = vmatmul.mubr.f32.gmra.mrb[0].mxu0 %v1533
      %v1696 = vpop.f32.mrb[0].mxu0
      %v1697 = vadd.f32 0.0, %v1696
      %v1698 = vpop.f32.mrb[0].mxu0
      %1699 = vmatprep.mubr.f32.mxu0 0.0
      %1700 = vmatmul.mubr.f32.gmra.mrb[0].mxu0 %v1536
      %v1701 = vpop.f32.mrb[0].mxu0
      %v1702 = vadd.f32 0.0, %v1701
      %v1703 = vpop.f32.mrb[0].mxu0
      %1704 = vmatprep.mubr.f32.mxu0 0.0
      %1705 = vmatmul.mubr.f32.gmra.mrb[0].mxu0 %v1539
      %v1706 = vpop.f32.mrb[0].mxu0
      %v1707 = vadd.f32 0.0, %v1706
      %v1708 = vpop.f32.mrb[0].mxu0
      %1709 = vmatprep.mubr.f32.mxu0 0.0
      %1710 = vmatmul.mubr.f32.gmra.mrb[0].mxu0 %v1542
      %v1711 = vpop.f32.mrb[0].mxu0
      %v1712 = vadd.f32 0.0, %v1711
      %v1713 = vpop.f32.mrb[0].mxu0
      %1714 = vmatprep.mubr.f32.mxu0 0.0
      %1715 = vmatmul.mubr.f32.gmra.mrb[0].mxu0 %v1545
      %v1716 = vpop.f32.mrb[0].mxu0
      %v1717 = vadd.f32 0.0, %v1716
      %v1718 = vpop.f32.mrb[0].mxu0
      %1719 = vmatprep.mubr.f32.mxu0 0.0
      %1720 = vmatmul.mubr.f32.gmra.mrb[0].mxu0 %v1548
      %v1721 = vpop.f32.mrb[0].mxu0
      %v1722 = vadd.f32 0.0, %v1721
      %v1723 = vpop.f32.mrb[0].mxu0
      %1724 = vmatprep.mubr.f32.mxu0 0.0
      %1725 = vmatmul.mubr.f32.gmra.mrb[0].mxu0 %v1551
      %v1726 = vpop.f32.mrb[0].mxu0
      %v1727 = vadd.f32 0.0, %v1726
      %v1728 = vpop.f32.mrb[0].mxu0
      %1729 = vmatprep.mubr.f32.mxu0 0.0
      %1730 = vmatmul.mubr.f32.gmra.mrb[0].mxu0 %v1554
      %v1731 = vpop.f32.mrb[0].mxu0
      %v1732 = vadd.f32 0.0, %v1731
      %v1733 = vpop.f32.mrb[0].mxu0
      %1734 = vmatprep.mubr.f32.mxu0 0.0
      %1735 = vmatmul.mubr.f32.gmra.mrb[0].mxu0 %v1557
      %v1736 = vpop.f32.mrb[0].mxu0
      %v1737 = vadd.f32 0.0, %v1736
      %v1738 = vpop.f32.mrb[0].mxu0
      %1739 = vmatprep.mubr.f32.mxu0 0.0
      %1740 = vmatmul.mubr.f32.gmra.mrb[0].mxu0 %v1560
      %v1741 = vpop.f32.mrb[0].mxu0
      %v1742 = vadd.f32 0.0, %v1741
      %v1743 = vpop.f32.mrb[0].mxu0
      %1744 = vmatprep.mubr.f32.mxu0 0.0
      %1745 = vmatmul.mubr.f32.gmra.mrb[0].mxu0 %v1563
      %v1746 = vpop.f32.mrb[0].mxu0
      %v1747 = vadd.f32 0.0, %v1746
      %v1748 = vpop.f32.mrb[0].mxu0
      %1749 = vmatprep.mubr.f32.mxu0 0.0
      %1750 = vmatmul.mubr.f32.gmra.mrb[0].mxu0 %v1566
      %v1751 = vpop.f32.mrb[0].mxu0
      %v1752 = vadd.f32 0.0, %v1751
      %v1753 = vpop.f32.mrb[0].mxu0
      %1754 = vmatprep.mubr.f32.mxu0 0.0
      %1755 = vmatmul.mubr.f32.gmra.mrb[0].mxu0 %v1569
      %v1756 = vpop.f32.mrb[0].mxu0
      %v1757 = vadd.f32 0.0, %v1756
      %v1758 = vpop.f32.mrb[0].mxu0
      %1759 = vmatprep.mubr.f32.mxu0 0.0
      %1760 = vmatmul.mubr.f32.gmra.mrb[0].mxu0 %v1572
      %v1761 = vpop.f32.mrb[0].mxu0
      %v1762 = vadd.f32 0.0, %v1761
      %v1763 = vpop.f32.mrb[0].mxu0
      %1764 = vmatprep.mubr.f32.mxu0 0.0
      %1765 = vmatmul.mubr.f32.gmra.mrb[0].mxu0 %v1575
      %v1766 = vpop.f32.mrb[0].mxu0
      %v1767 = vadd.f32 0.0, %v1766
      %v1768 = vpop.f32.mrb[0].mxu0
      %1769 = vmatprep.mubr.f32.mxu0 0.0
      %1770 = vmatmul.mubr.f32.gmra.mrb[0].mxu0 %v1578
      %v1771 = vpop.f32.mrb[0].mxu0
      %v1772 = vadd.f32 0.0, %v1771
      %v1773 = vpop.f32.mrb[0].mxu0
      %1774 = vmatprep.mubr.f32.mxu0 0.0
      %1775 = vmatmul.mubr.f32.gmra.mrb[0].mxu0 %v1581
      %v1776 = vpop.f32.mrb[0].mxu0
      %v1777 = vadd.f32 0.0, %v1776
      %v1778 = vpop.f32.mrb[0].mxu0
      %1779 = vmatprep.mubr.f32.mxu0 0.0
      %1780 = vmatmul.mubr.f32.gmra.mrb[0].mxu0 %v1584
      %v1781 = vpop.f32.mrb[0].mxu0
      %v1782 = vadd.f32 0.0, %v1781
      %v1783 = vpop.f32.mrb[0].mxu0
      %1784 = vmatprep.mubr.f32.mxu0 0.0
      %1785 = vmatmul.mubr.f32.gmra.mrb[0].mxu0 %v1587
      %v1786 = vpop.f32.mrb[0].mxu0
      %v1787 = vadd.f32 0.0, %v1786
      %v1788 = vpop.f32.mrb[0].mxu0
      %1789 = vmatprep.mubr.f32.mxu0 0.0
      %1790 = vmatmul.mubr.f32.gmra.mrb[0].mxu0 %v1590
      %v1791 = vpop.f32.mrb[0].mxu0
      %v1792 = vadd.f32 0.0, %v1791
      %v1793 = vpop.f32.mrb[0].mxu0
      %1794 = vmatprep.mubr.f32.mxu0 0.0
      %1795 = vmatmul.mubr.f32.gmra.mrb[0].mxu0 %v1593
      %v1796 = vpop.f32.mrb[0].mxu0
      %v1797 = vadd.f32 0.0, %v1796
      %v1798 = vpop.f32.mrb[0].mxu0
      %1799 = vmatprep.mubr.f32.mxu0 0.0
      %1800 = vmatmul.mubr.f32.gmra.mrb[0].mxu0 %v1596
      %v1801 = vpop.f32.mrb[0].mxu0
      %v1802 = vadd.f32 0.0, %v1801
      %v1803 = vpop.f32.mrb[0].mxu0
      %1804 = vmatprep.mubr.f32.mxu0 0.0
      %1805 = vmatmul.mubr.f32.gmra.mrb[0].mxu0 %v1599
      %v1806 = vpop.f32.mrb[0].mxu0
      %v1807 = vadd.f32 0.0, %v1806
      %v1808 = vpop.f32.mrb[0].mxu0
      %1809 = vmatprep.mubr.f32.mxu0 0.0
      %1810 = vmatmul.mubr.f32.gmra.mrb[0].mxu0 %v1602
      %v1811 = vpop.f32.mrb[0].mxu0
      %v1812 = vadd.f32 0.0, %v1811
      %v1813 = vpop.f32.mrb[0].mxu0
      %1814 = vmatprep.mubr.f32.mxu0 0.0
      %1815 = vmatmul.mubr.f32.gmra.mrb[0].mxu0 %v1605
      %v1816 = vpop.f32.mrb[0].mxu0
      %v1817 = vadd.f32 0.0, %v1816
      %v1818 = vpop.f32.mrb[0].mxu0
      %1819 = vmatprep.mubr.f32.mxu0 0.0
      %1820 = vmatmul.mubr.f32.gmra.mrb[0].mxu0 %v1608
      %v1821 = vpop.f32.mrb[0].mxu0
      %v1822 = vadd.f32 0.0, %v1821
      %v1823 = vpop.f32.mrb[0].mxu0
      %1824 = vmatprep.mubr.f32.mxu0 0.0
      %1825 = vmatmul.mubr.f32.gmra.mrb[0].mxu0 %v1611
      %v1826 = vpop.f32.mrb[0].mxu0
      %v1827 = vadd.f32 0.0, %v1826
      %v1828 = vpop.f32.mrb[0].mxu0
      %1829 = vmatprep.mubr.f32.mxu0 0.0
      %1830 = vmatmul.mubr.f32.gmra.mrb[0].mxu0 %v1614
      %v1831 = vpop.f32.mrb[0].mxu0
      %v1832 = vadd.f32 0.0, %v1831
      %v1833 = vpop.f32.mrb[0].mxu0
      %1834 = vmatprep.mubr.f32.mxu0 0.0
      %1835 = vmatmul.mubr.f32.gmra.mrb[0].mxu0 %v1617
      %v1836 = vpop.f32.mrb[0].mxu0
      %v1837 = vadd.f32 0.0, %v1836
      %v1838 = vpop.f32.mrb[0].mxu0
      %1839 = vmatprep.mubr.f32.mxu0 0.0
      %1840 = vmatmul.mubr.f32.gmra.mrb[0].mxu0 %v1620
      %v1841 = vpop.f32.mrb[0].mxu0
      %v1842 = vadd.f32 0.0, %v1841
      %v1843 = vpop.f32.mrb[0].mxu0
      %1844 = vmatprep.mubr.f32.mxu0 0.0
      %1845 = vmatmul.mubr.f32.gmra.mrb[0].mxu0 %v1623
      %v1846 = vpop.f32.mrb[0].mxu0
      %v1847 = vadd.f32 0.0, %v1846
      %v1848 = vpop.f32.mrb[0].mxu0
      %1849 = vdwg.mxu0
      %v1850 = vadd.f32 %v1463, %v1692
      %v1851 = vadd.f32 %v1464, %v1697
      %v1852 = vadd.f32 %v1465, %v1702
      %v1853 = vadd.f32 %v1466, %v1707
      %v1854 = vadd.f32 %v1467, %v1712
      %v1855 = vadd.f32 %v1468, %v1717
      %v1856 = vadd.f32 %v1469, %v1722
      %v1857 = vadd.f32 %v1470, %v1727
      %v1858 = vadd.f32 %v1471, %v1732
      %v1859 = vadd.f32 %v1472, %v1737
      %v1860 = vadd.f32 %v1473, %v1742
      %v1861 = vadd.f32 %v1474, %v1747
      %v1862 = vadd.f32 %v1475, %v1752
      %v1863 = vadd.f32 %v1476, %v1757
      %v1864 = vadd.f32 %v1477, %v1762
      %v1865 = vadd.f32 %v1478, %v1767
      %v1866 = vadd.f32 %v1479, %v1772
      %v1867 = vadd.f32 %v1480, %v1777
      %v1868 = vadd.f32 %v1481, %v1782
      %v1869 = vadd.f32 %v1482, %v1787
      %v1870 = vadd.f32 %v1483, %v1792
      %v1871 = vadd.f32 %v1484, %v1797
      %v1872 = vadd.f32 %v1485, %v1802
      %v1873 = vadd.f32 %v1486, %v1807
      %v1874 = vadd.f32 %v1487, %v1812
      %v1875 = vadd.f32 %v1488, %v1817
      %v1876 = vadd.f32 %v1489, %v1822
      %v1877 = vadd.f32 %v1490, %v1827
      %v1878 = vadd.f32 %v1491, %v1832
      %v1879 = vadd.f32 %v1492, %v1837
      %v1880 = vadd.f32 %v1493, %v1842
      %v1881 = vadd.f32 %v1494, %v1847
      %v1882 = vld [vmem:[%s368 + $0x1] sm:$0xff]
      %v1883 = vld [vmem:[%s368 + $0x9] sm:$0xff]
      %v1884 = vld [vmem:[%s368 + $0x19] sm:$0xff]
      %v1885 = vld [vmem:[%s368 + $0x21] sm:$0xff]
      %v1886 = vld [vmem:[%s368 + $0x31] sm:$0xff]
      %v1887 = vld [vmem:[%s368 + $0x39] sm:$0xff]
      %v1888 = vld [vmem:[%s368 + $0x49] sm:$0xff]
      %v1889 = vld [vmem:[%s368 + $0x51] sm:$0xff]
      %v1890 = vld [vmem:[%s368 + $0x61] sm:$0xff]
      %v1891 = vld [vmem:[%s368 + $0x69] sm:$0xff]
      %v1892 = vld [vmem:[%s368 + $0x79] sm:$0xff]
      %v1893 = vld [vmem:[%s368 + $0x81] sm:$0xff]
      %v1894 = vld [vmem:[%s368 + $0x91] sm:$0xff]
      %v1895 = vld [vmem:[%s368 + $0x99] sm:$0xff]
      %v1896 = vld [vmem:[%s368 + $0xa9] sm:$0xff]
      %v1897 = vld [vmem:[%s368 + $0xb1] sm:$0xff]
      %v1898 = vld [vmem:[%s368 + $0xc1] sm:$0xff]
      %v1899 = vld [vmem:[%s368 + $0xc9] sm:$0xff]
      %v1900 = vld [vmem:[%s368 + $0xd9] sm:$0xff]
      %v1901 = vld [vmem:[%s368 + $0xe1] sm:$0xff]
      %v1902 = vld [vmem:[%s368 + $0xf1] sm:$0xff]
      %v1903 = vld [vmem:[%s368 + $0xf9] sm:$0xff]
      %v1904 = vld [vmem:[%s368 + $0x109] sm:$0xff]
      %v1905 = vld [vmem:[%s368 + $0x111] sm:$0xff]
      %v1906 = vld [vmem:[%s368 + $0x121] sm:$0xff]
      %v1907 = vld [vmem:[%s368 + $0x129] sm:$0xff]
      %v1908 = vld [vmem:[%s368 + $0x139] sm:$0xff]
      %v1909 = vld [vmem:[%s368 + $0x141] sm:$0xff]
      %v1910 = vld [vmem:[%s368 + $0x151] sm:$0xff]
      %v1911 = vld [vmem:[%s368 + $0x159] sm:$0xff]
      %v1912 = vld [vmem:[%s368 + $0x169] sm:$0xff]
      %v1913 = vld [vmem:[%s368 + $0x171] sm:$0xff]
      %v1914 = vld [vmem:[%s1527 + $0x8] sm:$0xff]
      %v1916 = vsel %vm225, %v1882, 0
      %v1919 = vsel %vm225, %v1883, 0
      %v1922 = vsel %vm225, %v1884, 0
      %v1925 = vsel %vm225, %v1885, 0
      %v1928 = vsel %vm225, %v1886, 0
      %v1931 = vsel %vm225, %v1887, 0
      %v1934 = vsel %vm225, %v1888, 0
      %v1937 = vsel %vm225, %v1889, 0
      %v1940 = vsel %vm225, %v1890, 0
      %v1943 = vsel %vm225, %v1891, 0
      %v1946 = vsel %vm225, %v1892, 0
      %v1949 = vsel %vm225, %v1893, 0
      %v1952 = vsel %vm225, %v1894, 0
      %v1955 = vsel %vm225, %v1895, 0
      %v1958 = vsel %vm225, %v1896, 0
      %v1961 = vsel %vm225, %v1897, 0
      %v1964 = vsel %vm225, %v1898, 0
      %v1967 = vsel %vm225, %v1899, 0
      %v1970 = vsel %vm225, %v1900, 0
      %v1973 = vsel %vm225, %v1901, 0
      %v1976 = vsel %vm225, %v1902, 0
      %v1979 = vsel %vm225, %v1903, 0
      %v1982 = vsel %vm225, %v1904, 0
      %v1985 = vsel %vm225, %v1905, 0
      %v1988 = vsel %vm225, %v1906, 0
      %v1991 = vsel %vm225, %v1907, 0
      %v1994 = vsel %vm225, %v1908, 0
      %v1997 = vsel %vm225, %v1909, 0
      %v2000 = vsel %vm225, %v1910, 0
      %v2003 = vsel %vm225, %v1911, 0
      %v2006 = vsel %vm225, %v1912, 0
      %v2009 = vsel %vm225, %v1913, 0
      %2011 = vmatprep.subr.mxu0 0.0
      %2012 = vmatpush1.msra.mxu0 %v1914
      %2013 = vmatprep.subr.mxu0 0.0
      %2014 = vmatpush1.msra.mxu0 0.0
      %2015 = vmatprep.subr.mxu0 0.0
      %2016 = vmatpush1.msra.mxu0 0.0
      %2017 = vmatprep.subr.mxu0 0.0
      %2018 = vmatpush1.msra.mxu0 0.0
      %2019 = vmatprep.subr.mxu0 0.0
      %2020 = vmatpush1.msra.mxu0 0.0
      %2021 = vmatprep.subr.mxu0 0.0
      %2022 = vmatpush1.msra.mxu0 0.0
      %2023 = vmatprep.subr.mxu0 0.0
      %2024 = vmatpush1.msra.mxu0 0.0
      %2025 = vmatprep.subr.mxu0 0.0
      %2026 = vmatpush1.msra.mxu0 0.0
      %2027 = vmatprep.subr.mxu0 0.0
      %2028 = vmatpush1.msra.mxu0 0.0
      %2029 = vmatprep.subr.mxu0 0.0
      %2030 = vmatpush1.msra.mxu0 0.0
      %2031 = vmatprep.subr.mxu0 0.0
      %2032 = vmatpush1.msra.mxu0 0.0
      %2033 = vmatprep.subr.mxu0 0.0
      %2034 = vmatpush1.msra.mxu0 0.0
      %2035 = vmatprep.subr.mxu0 0.0
      %2036 = vmatpush1.msra.mxu0 0.0
      %2037 = vmatprep.subr.mxu0 0.0
      %2038 = vmatpush1.msra.mxu0 0.0
      %2039 = vmatprep.subr.mxu0 0.0
      %2040 = vmatpush1.msra.mxu0 0.0
      %2041 = vmatprep.subr.mxu0 0.0
      %2042 = vmatpush1.msra.mxu0 0.0
      %2043 = vmatprep.subr.mxu0 0.0
      %2044 = vmatpush1.msra.mxu0 0.0
      %2045 = vmatprep.subr.mxu0 0.0
      %2046 = vmatpush1.msra.mxu0 0.0
      %2047 = vmatprep.subr.mxu0 0.0
      %2048 = vmatpush1.msra.mxu0 0.0
      %2049 = vmatprep.subr.mxu0 0.0
      %2050 = vmatpush1.msra.mxu0 0.0
      %2051 = vmatprep.subr.mxu0 0.0
      %2052 = vmatpush1.msra.mxu0 0.0
      %2053 = vmatprep.subr.mxu0 0.0
      %2054 = vmatpush1.msra.mxu0 0.0
      %2055 = vmatprep.subr.mxu0 0.0
      %2056 = vmatpush1.msra.mxu0 0.0
      %2057 = vmatprep.subr.mxu0 0.0
      %2058 = vmatpush1.msra.mxu0 0.0
      %2059 = vmatprep.subr.mxu0 0.0
      %2060 = vmatpush1.msra.mxu0 0.0
      %2061 = vmatprep.subr.mxu0 0.0
      %2062 = vmatpush1.msra.mxu0 0.0
      %2063 = vmatprep.subr.mxu0 0.0
      %2064 = vmatpush1.msra.mxu0 0.0
      %2065 = vmatprep.subr.mxu0 0.0
      %2066 = vmatpush1.msra.mxu0 0.0
      %2067 = vmatprep.subr.mxu0 0.0
      %2068 = vmatpush1.msra.mxu0 0.0
      %2069 = vmatprep.subr.mxu0 0.0
      %2070 = vmatpush1.msra.mxu0 0.0
      %2071 = vmatprep.subr.mxu0 0.0
      %2072 = vmatpush1.msra.mxu0 0.0
      %2073 = vmatprep.subr.mxu0 0.0
      %2074 = vmatpush1.msra.mxu0 0.0
      %2075 = vmatprep.mubr.f32.mxu0 0.0
      %2076 = vmatmul.mubr.f32.gmra.mrb[0].mxu0 %v1916
      %v2077 = vpop.f32.mrb[0].mxu0
      %v2078 = vadd.f32 0.0, %v2077
      %v2079 = vpop.f32.mrb[0].mxu0
      %2080 = vmatprep.mubr.f32.mxu0 0.0
      %2081 = vmatmul.mubr.f32.gmra.mrb[0].mxu0 %v1919
      %v2082 = vpop.f32.mrb[0].mxu0
      %v2083 = vadd.f32 0.0, %v2082
      %v2084 = vpop.f32.mrb[0].mxu0
      %2085 = vmatprep.mubr.f32.mxu0 0.0
      %2086 = vmatmul.mubr.f32.gmra.mrb[0].mxu0 %v1922
      %v2087 = vpop.f32.mrb[0].mxu0
      %v2088 = vadd.f32 0.0, %v2087
      %v2089 = vpop.f32.mrb[0].mxu0
      %2090 = vmatprep.mubr.f32.mxu0 0.0
      %2091 = vmatmul.mubr.f32.gmra.mrb[0].mxu0 %v1925
      %v2092 = vpop.f32.mrb[0].mxu0
      %v2093 = vadd.f32 0.0, %v2092
      %v2094 = vpop.f32.mrb[0].mxu0
      %2095 = vmatprep.mubr.f32.mxu0 0.0
      %2096 = vmatmul.mubr.f32.gmra.mrb[0].mxu0 %v1928
      %v2097 = vpop.f32.mrb[0].mxu0
      %v2098 = vadd.f32 0.0, %v2097
      %v2099 = vpop.f32.mrb[0].mxu0
      %2100 = vmatprep.mubr.f32.mxu0 0.0
      %2101 = vmatmul.mubr.f32.gmra.mrb[0].mxu0 %v1931
      %v2102 = vpop.f32.mrb[0].mxu0
      %v2103 = vadd.f32 0.0, %v2102
      %v2104 = vpop.f32.mrb[0].mxu0
      %2105 = vmatprep.mubr.f32.mxu0 0.0
      %2106 = vmatmul.mubr.f32.gmra.mrb[0].mxu0 %v1934
      %v2107 = vpop.f32.mrb[0].mxu0
      %v2108 = vadd.f32 0.0, %v2107
      %v2109 = vpop.f32.mrb[0].mxu0
      %2110 = vmatprep.mubr.f32.mxu0 0.0
      %2111 = vmatmul.mubr.f32.gmra.mrb[0].mxu0 %v1937
      %v2112 = vpop.f32.mrb[0].mxu0
      %v2113 = vadd.f32 0.0, %v2112
      %v2114 = vpop.f32.mrb[0].mxu0
      %2115 = vmatprep.mubr.f32.mxu0 0.0
      %2116 = vmatmul.mubr.f32.gmra.mrb[0].mxu0 %v1940
      %v2117 = vpop.f32.mrb[0].mxu0
      %v2118 = vadd.f32 0.0, %v2117
      %v2119 = vpop.f32.mrb[0].mxu0
      %2120 = vmatprep.mubr.f32.mxu0 0.0
      %2121 = vmatmul.mubr.f32.gmra.mrb[0].mxu0 %v1943
      %v2122 = vpop.f32.mrb[0].mxu0
      %v2123 = vadd.f32 0.0, %v2122
      %v2124 = vpop.f32.mrb[0].mxu0
      %2125 = vmatprep.mubr.f32.mxu0 0.0
      %2126 = vmatmul.mubr.f32.gmra.mrb[0].mxu0 %v1946
      %v2127 = vpop.f32.mrb[0].mxu0
      %v2128 = vadd.f32 0.0, %v2127
      %v2129 = vpop.f32.mrb[0].mxu0
      %2130 = vmatprep.mubr.f32.mxu0 0.0
      %2131 = vmatmul.mubr.f32.gmra.mrb[0].mxu0 %v1949
      %v2132 = vpop.f32.mrb[0].mxu0
      %v2133 = vadd.f32 0.0, %v2132
      %v2134 = vpop.f32.mrb[0].mxu0
      %2135 = vmatprep.mubr.f32.mxu0 0.0
      %2136 = vmatmul.mubr.f32.gmra.mrb[0].mxu0 %v1952
      %v2137 = vpop.f32.mrb[0].mxu0
      %v2138 = vadd.f32 0.0, %v2137
      %v2139 = vpop.f32.mrb[0].mxu0
      %2140 = vmatprep.mubr.f32.mxu0 0.0
      %2141 = vmatmul.mubr.f32.gmra.mrb[0].mxu0 %v1955
      %v2142 = vpop.f32.mrb[0].mxu0
      %v2143 = vadd.f32 0.0, %v2142
      %v2144 = vpop.f32.mrb[0].mxu0
      %2145 = vmatprep.mubr.f32.mxu0 0.0
      %2146 = vmatmul.mubr.f32.gmra.mrb[0].mxu0 %v1958
      %v2147 = vpop.f32.mrb[0].mxu0
      %v2148 = vadd.f32 0.0, %v2147
      %v2149 = vpop.f32.mrb[0].mxu0
      %2150 = vmatprep.mubr.f32.mxu0 0.0
      %2151 = vmatmul.mubr.f32.gmra.mrb[0].mxu0 %v1961
      %v2152 = vpop.f32.mrb[0].mxu0
      %v2153 = vadd.f32 0.0, %v2152
      %v2154 = vpop.f32.mrb[0].mxu0
      %2155 = vmatprep.mubr.f32.mxu0 0.0
      %2156 = vmatmul.mubr.f32.gmra.mrb[0].mxu0 %v1964
      %v2157 = vpop.f32.mrb[0].mxu0
      %v2158 = vadd.f32 0.0, %v2157
      %v2159 = vpop.f32.mrb[0].mxu0
      %2160 = vmatprep.mubr.f32.mxu0 0.0
      %2161 = vmatmul.mubr.f32.gmra.mrb[0].mxu0 %v1967
      %v2162 = vpop.f32.mrb[0].mxu0
      %v2163 = vadd.f32 0.0, %v2162
      %v2164 = vpop.f32.mrb[0].mxu0
      %2165 = vmatprep.mubr.f32.mxu0 0.0
      %2166 = vmatmul.mubr.f32.gmra.mrb[0].mxu0 %v1970
      %v2167 = vpop.f32.mrb[0].mxu0
      %v2168 = vadd.f32 0.0, %v2167
      %v2169 = vpop.f32.mrb[0].mxu0
      %2170 = vmatprep.mubr.f32.mxu0 0.0
      %2171 = vmatmul.mubr.f32.gmra.mrb[0].mxu0 %v1973
      %v2172 = vpop.f32.mrb[0].mxu0
      %v2173 = vadd.f32 0.0, %v2172
      %v2174 = vpop.f32.mrb[0].mxu0
      %2175 = vmatprep.mubr.f32.mxu0 0.0
      %2176 = vmatmul.mubr.f32.gmra.mrb[0].mxu0 %v1976
      %v2177 = vpop.f32.mrb[0].mxu0
      %v2178 = vadd.f32 0.0, %v2177
      %v2179 = vpop.f32.mrb[0].mxu0
      %2180 = vmatprep.mubr.f32.mxu0 0.0
      %2181 = vmatmul.mubr.f32.gmra.mrb[0].mxu0 %v1979
      %v2182 = vpop.f32.mrb[0].mxu0
      %v2183 = vadd.f32 0.0, %v2182
      %v2184 = vpop.f32.mrb[0].mxu0
      %2185 = vmatprep.mubr.f32.mxu0 0.0
      %2186 = vmatmul.mubr.f32.gmra.mrb[0].mxu0 %v1982
      %v2187 = vpop.f32.mrb[0].mxu0
      %v2188 = vadd.f32 0.0, %v2187
      %v2189 = vpop.f32.mrb[0].mxu0
      %2190 = vmatprep.mubr.f32.mxu0 0.0
      %2191 = vmatmul.mubr.f32.gmra.mrb[0].mxu0 %v1985
      %v2192 = vpop.f32.mrb[0].mxu0
      %v2193 = vadd.f32 0.0, %v2192
      %v2194 = vpop.f32.mrb[0].mxu0
      %2195 = vmatprep.mubr.f32.mxu0 0.0
      %2196 = vmatmul.mubr.f32.gmra.mrb[0].mxu0 %v1988
      %v2197 = vpop.f32.mrb[0].mxu0
      %v2198 = vadd.f32 0.0, %v2197
      %v2199 = vpop.f32.mrb[0].mxu0
      %2200 = vmatprep.mubr.f32.mxu0 0.0
      %2201 = vmatmul.mubr.f32.gmra.mrb[0].mxu0 %v1991
      %v2202 = vpop.f32.mrb[0].mxu0
      %v2203 = vadd.f32 0.0, %v2202
      %v2204 = vpop.f32.mrb[0].mxu0
      %2205 = vmatprep.mubr.f32.mxu0 0.0
      %2206 = vmatmul.mubr.f32.gmra.mrb[0].mxu0 %v1994
      %v2207 = vpop.f32.mrb[0].mxu0
      %v2208 = vadd.f32 0.0, %v2207
      %v2209 = vpop.f32.mrb[0].mxu0
      %2210 = vmatprep.mubr.f32.mxu0 0.0
      %2211 = vmatmul.mubr.f32.gmra.mrb[0].mxu0 %v1997
      %v2212 = vpop.f32.mrb[0].mxu0
      %v2213 = vadd.f32 0.0, %v2212
      %v2214 = vpop.f32.mrb[0].mxu0
      %2215 = vmatprep.mubr.f32.mxu0 0.0
      %2216 = vmatmul.mubr.f32.gmra.mrb[0].mxu0 %v2000
      %v2217 = vpop.f32.mrb[0].mxu0
      %v2218 = vadd.f32 0.0, %v2217
      %v2219 = vpop.f32.mrb[0].mxu0
      %2220 = vmatprep.mubr.f32.mxu0 0.0
      %2221 = vmatmul.mubr.f32.gmra.mrb[0].mxu0 %v2003
      %v2222 = vpop.f32.mrb[0].mxu0
      %v2223 = vadd.f32 0.0, %v2222
      %v2224 = vpop.f32.mrb[0].mxu0
      %2225 = vmatprep.mubr.f32.mxu0 0.0
      %2226 = vmatmul.mubr.f32.gmra.mrb[0].mxu0 %v2006
      %v2227 = vpop.f32.mrb[0].mxu0
      %v2228 = vadd.f32 0.0, %v2227
      %v2229 = vpop.f32.mrb[0].mxu0
      %2230 = vmatprep.mubr.f32.mxu0 0.0
      %2231 = vmatmul.mubr.f32.gmra.mrb[0].mxu0 %v2009
      %v2232 = vpop.f32.mrb[0].mxu0
      %v2233 = vadd.f32 0.0, %v2232
      %v2234 = vpop.f32.mrb[0].mxu0
      %2235 = vdwg.mxu0
      %v2236 = vadd.f32 %v1850, %v2078
      %v2237 = vadd.f32 %v1851, %v2083
      %v2238 = vadd.f32 %v1852, %v2088
      %v2239 = vadd.f32 %v1853, %v2093
      %v2240 = vadd.f32 %v1854, %v2098
      %v2241 = vadd.f32 %v1855, %v2103
      %v2242 = vadd.f32 %v1856, %v2108
      %v2243 = vadd.f32 %v1857, %v2113
      %v2244 = vadd.f32 %v1858, %v2118
      %v2245 = vadd.f32 %v1859, %v2123
      %v2246 = vadd.f32 %v1860, %v2128
      %v2247 = vadd.f32 %v1861, %v2133
      %v2248 = vadd.f32 %v1862, %v2138
      %v2249 = vadd.f32 %v1863, %v2143
      %v2250 = vadd.f32 %v1864, %v2148
      %v2251 = vadd.f32 %v1865, %v2153
      %v2252 = vadd.f32 %v1866, %v2158
      %v2253 = vadd.f32 %v1867, %v2163
      %v2254 = vadd.f32 %v1868, %v2168
      %v2255 = vadd.f32 %v1869, %v2173
      %v2256 = vadd.f32 %v1870, %v2178
      %v2257 = vadd.f32 %v1871, %v2183
      %v2258 = vadd.f32 %v1872, %v2188
      %v2259 = vadd.f32 %v1873, %v2193
      %v2260 = vadd.f32 %v1874, %v2198
      %v2261 = vadd.f32 %v1875, %v2203
      %v2262 = vadd.f32 %v1876, %v2208
      %v2263 = vadd.f32 %v1877, %v2213
      %v2264 = vadd.f32 %v1878, %v2218
      %v2265 = vadd.f32 %v1879, %v2223
      %v2266 = vadd.f32 %v1880, %v2228
      %v2267 = vadd.f32 %v1881, %v2233
      %v2268 = vld [vmem:[%s368 + $0x2] sm:$0xff]
      %v2269 = vld [vmem:[%s368 + $0xa] sm:$0xff]
      %v2270 = vld [vmem:[%s368 + $0x1a] sm:$0xff]
      %v2271 = vld [vmem:[%s368 + $0x22] sm:$0xff]
      %v2272 = vld [vmem:[%s368 + $0x32] sm:$0xff]
      %v2273 = vld [vmem:[%s368 + $0x3a] sm:$0xff]
      %v2274 = vld [vmem:[%s368 + $0x4a] sm:$0xff]
      %v2275 = vld [vmem:[%s368 + $0x52] sm:$0xff]
      %v2276 = vld [vmem:[%s368 + $0x62] sm:$0xff]
      %v2277 = vld [vmem:[%s368 + $0x6a] sm:$0xff]
      %v2278 = vld [vmem:[%s368 + $0x7a] sm:$0xff]
      %v2279 = vld [vmem:[%s368 + $0x82] sm:$0xff]
      %v2280 = vld [vmem:[%s368 + $0x92] sm:$0xff]
      %v2281 = vld [vmem:[%s368 + $0x9a] sm:$0xff]
      %v2282 = vld [vmem:[%s368 + $0xaa] sm:$0xff]
      %v2283 = vld [vmem:[%s368 + $0xb2] sm:$0xff]
      %v2284 = vld [vmem:[%s368 + $0xc2] sm:$0xff]
      %v2285 = vld [vmem:[%s368 + $0xca] sm:$0xff]
      %v2286 = vld [vmem:[%s368 + $0xda] sm:$0xff]
      %v2287 = vld [vmem:[%s368 + $0xe2] sm:$0xff]
      %v2288 = vld [vmem:[%s368 + $0xf2] sm:$0xff]
      %v2289 = vld [vmem:[%s368 + $0xfa] sm:$0xff]
      %v2290 = vld [vmem:[%s368 + $0x10a] sm:$0xff]
      %v2291 = vld [vmem:[%s368 + $0x112] sm:$0xff]
      %v2292 = vld [vmem:[%s368 + $0x122] sm:$0xff]
      %v2293 = vld [vmem:[%s368 + $0x12a] sm:$0xff]
      %v2294 = vld [vmem:[%s368 + $0x13a] sm:$0xff]
      %v2295 = vld [vmem:[%s368 + $0x142] sm:$0xff]
      %v2296 = vld [vmem:[%s368 + $0x152] sm:$0xff]
      %v2297 = vld [vmem:[%s368 + $0x15a] sm:$0xff]
      %v2298 = vld [vmem:[%s368 + $0x16a] sm:$0xff]
      %v2299 = vld [vmem:[%s368 + $0x172] sm:$0xff]
      %v2300 = vld [vmem:[%s1527 + $0x10] sm:$0xff]
      %v2302 = vsel %vm225, %v2268, 0
      %v2305 = vsel %vm225, %v2269, 0
      %v2308 = vsel %vm225, %v2270, 0
      %v2311 = vsel %vm225, %v2271, 0
      %v2314 = vsel %vm225, %v2272, 0
      %v2317 = vsel %vm225, %v2273, 0
      %v2320 = vsel %vm225, %v2274, 0
      %v2323 = vsel %vm225, %v2275, 0
      %v2326 = vsel %vm225, %v2276, 0
      %v2329 = vsel %vm225, %v2277, 0
      %v2332 = vsel %vm225, %v2278, 0
      %v2335 = vsel %vm225, %v2279, 0
      %v2338 = vsel %vm225, %v2280, 0
      %v2341 = vsel %vm225, %v2281, 0
      %v2344 = vsel %vm225, %v2282, 0
      %v2347 = vsel %vm225, %v2283, 0
      %v2350 = vsel %vm225, %v2284, 0
      %v2353 = vsel %vm225, %v2285, 0
      %v2356 = vsel %vm225, %v2286, 0
      %v2359 = vsel %vm225, %v2287, 0
      %v2362 = vsel %vm225, %v2288, 0
      %v2365 = vsel %vm225, %v2289, 0
      %v2368 = vsel %vm225, %v2290, 0
      %v2371 = vsel %vm225, %v2291, 0
      %v2374 = vsel %vm225, %v2292, 0
      %v2377 = vsel %vm225, %v2293, 0
      %v2380 = vsel %vm225, %v2294, 0
      %v2383 = vsel %vm225, %v2295, 0
      %v2386 = vsel %vm225, %v2296, 0
      %v2389 = vsel %vm225, %v2297, 0
      %v2392 = vsel %vm225, %v2298, 0
      %v2395 = vsel %vm225, %v2299, 0
      %2397 = vmatprep.subr.mxu0 0.0
      %2398 = vmatpush1.msra.mxu0 %v2300
      %2399 = vmatprep.subr.mxu0 0.0
      %2400 = vmatpush1.msra.mxu0 0.0
      %2401 = vmatprep.subr.mxu0 0.0
      %2402 = vmatpush1.msra.mxu0 0.0
      %2403 = vmatprep.subr.mxu0 0.0
      %2404 = vmatpush1.msra.mxu0 0.0
      %2405 = vmatprep.subr.mxu0 0.0
      %2406 = vmatpush1.msra.mxu0 0.0
      %2407 = vmatprep.subr.mxu0 0.0
      %2408 = vmatpush1.msra.mxu0 0.0
      %2409 = vmatprep.subr.mxu0 0.0
      %2410 = vmatpush1.msra.mxu0 0.0
      %2411 = vmatprep.subr.mxu0 0.0
      %2412 = vmatpush1.msra.mxu0 0.0
      %2413 = vmatprep.subr.mxu0 0.0
      %2414 = vmatpush1.msra.mxu0 0.0
      %2415 = vmatprep.subr.mxu0 0.0
      %2416 = vmatpush1.msra.mxu0 0.0
      %2417 = vmatprep.subr.mxu0 0.0
      %2418 = vmatpush1.msra.mxu0 0.0
      %2419 = vmatprep.subr.mxu0 0.0
      %2420 = vmatpush1.msra.mxu0 0.0
      %2421 = vmatprep.subr.mxu0 0.0
      %2422 = vmatpush1.msra.mxu0 0.0
      %2423 = vmatprep.subr.mxu0 0.0
      %2424 = vmatpush1.msra.mxu0 0.0
      %2425 = vmatprep.subr.mxu0 0.0
      %2426 = vmatpush1.msra.mxu0 0.0
      %2427 = vmatprep.subr.mxu0 0.0
      %2428 = vmatpush1.msra.mxu0 0.0
      %2429 = vmatprep.subr.mxu0 0.0
      %2430 = vmatpush1.msra.mxu0 0.0
      %2431 = vmatprep.subr.mxu0 0.0
      %2432 = vmatpush1.msra.mxu0 0.0
      %2433 = vmatprep.subr.mxu0 0.0
      %2434 = vmatpush1.msra.mxu0 0.0
      %2435 = vmatprep.subr.mxu0 0.0
      %2436 = vmatpush1.msra.mxu0 0.0
      %2437 = vmatprep.subr.mxu0 0.0
      %2438 = vmatpush1.msra.mxu0 0.0
      %2439 = vmatprep.subr.mxu0 0.0
      %2440 = vmatpush1.msra.mxu0 0.0
      %2441 = vmatprep.subr.mxu0 0.0
      %2442 = vmatpush1.msra.mxu0 0.0
      %2443 = vmatprep.subr.mxu0 0.0
      %2444 = vmatpush1.msra.mxu0 0.0
      %2445 = vmatprep.subr.mxu0 0.0
      %2446 = vmatpush1.msra.mxu0 0.0
      %2447 = vmatprep.subr.mxu0 0.0
      %2448 = vmatpush1.msra.mxu0 0.0
      %2449 = vmatprep.subr.mxu0 0.0
      %2450 = vmatpush1.msra.mxu0 0.0
      %2451 = vmatprep.subr.mxu0 0.0
      %2452 = vmatpush1.msra.mxu0 0.0
      %2453 = vmatprep.subr.mxu0 0.0
      %2454 = vmatpush1.msra.mxu0 0.0
      %2455 = vmatprep.subr.mxu0 0.0
      %2456 = vmatpush1.msra.mxu0 0.0
      %2457 = vmatprep.subr.mxu0 0.0
      %2458 = vmatpush1.msra.mxu0 0.0
      %2459 = vmatprep.subr.mxu0 0.0
      %2460 = vmatpush1.msra.mxu0 0.0
      %2461 = vmatprep.mubr.f32.mxu0 0.0
      %2462 = vmatmul.mubr.f32.gmra.mrb[0].mxu0 %v2302
      %v2463 = vpop.f32.mrb[0].mxu0
      %v2464 = vadd.f32 0.0, %v2463
      %v2465 = vpop.f32.mrb[0].mxu0
      %2466 = vmatprep.mubr.f32.mxu0 0.0
      %2467 = vmatmul.mubr.f32.gmra.mrb[0].mxu0 %v2305
      %v2468 = vpop.f32.mrb[0].mxu0
      %v2469 = vadd.f32 0.0, %v2468
      %v2470 = vpop.f32.mrb[0].mxu0
      %2471 = vmatprep.mubr.f32.mxu0 0.0
      %2472 = vmatmul.mubr.f32.gmra.mrb[0].mxu0 %v2308
      %v2473 = vpop.f32.mrb[0].mxu0
      %v2474 = vadd.f32 0.0, %v2473
      %v2475 = vpop.f32.mrb[0].mxu0
      %2476 = vmatprep.mubr.f32.mxu0 0.0
      %2477 = vmatmul.mubr.f32.gmra.mrb[0].mxu0 %v2311
      %v2478 = vpop.f32.mrb[0].mxu0
      %v2479 = vadd.f32 0.0, %v2478
      %v2480 = vpop.f32.mrb[0].mxu0
      %2481 = vmatprep.mubr.f32.mxu0 0.0
      %2482 = vmatmul.mubr.f32.gmra.mrb[0].mxu0 %v2314
      %v2483 = vpop.f32.mrb[0].mxu0
      %v2484 = vadd.f32 0.0, %v2483
      %v2485 = vpop.f32.mrb[0].mxu0
      %2486 = vmatprep.mubr.f32.mxu0 0.0
      %2487 = vmatmul.mubr.f32.gmra.mrb[0].mxu0 %v2317
      %v2488 = vpop.f32.mrb[0].mxu0
      %v2489 = vadd.f32 0.0, %v2488
      %v2490 = vpop.f32.mrb[0].mxu0
      %2491 = vmatprep.mubr.f32.mxu0 0.0
      %2492 = vmatmul.mubr.f32.gmra.mrb[0].mxu0 %v2320
      %v2493 = vpop.f32.mrb[0].mxu0
      %v2494 = vadd.f32 0.0, %v2493
      %v2495 = vpop.f32.mrb[0].mxu0
      %2496 = vmatprep.mubr.f32.mxu0 0.0
      %2497 = vmatmul.mubr.f32.gmra.mrb[0].mxu0 %v2323
      %v2498 = vpop.f32.mrb[0].mxu0
      %v2499 = vadd.f32 0.0, %v2498
      %v2500 = vpop.f32.mrb[0].mxu0
      %2501 = vmatprep.mubr.f32.mxu0 0.0
      %2502 = vmatmul.mubr.f32.gmra.mrb[0].mxu0 %v2326
      %v2503 = vpop.f32.mrb[0].mxu0
      %v2504 = vadd.f32 0.0, %v2503
      %v2505 = vpop.f32.mrb[0].mxu0
      %2506 = vmatprep.mubr.f32.mxu0 0.0
      %2507 = vmatmul.mubr.f32.gmra.mrb[0].mxu0 %v2329
      %v2508 = vpop.f32.mrb[0].mxu0
      %v2509 = vadd.f32 0.0, %v2508
      %v2510 = vpop.f32.mrb[0].mxu0
      %2511 = vmatprep.mubr.f32.mxu0 0.0
      %2512 = vmatmul.mubr.f32.gmra.mrb[0].mxu0 %v2332
      %v2513 = vpop.f32.mrb[0].mxu0
      %v2514 = vadd.f32 0.0, %v2513
      %v2515 = vpop.f32.mrb[0].mxu0
      %2516 = vmatprep.mubr.f32.mxu0 0.0
      %2517 = vmatmul.mubr.f32.gmra.mrb[0].mxu0 %v2335
      %v2518 = vpop.f32.mrb[0].mxu0
      %v2519 = vadd.f32 0.0, %v2518
      %v2520 = vpop.f32.mrb[0].mxu0
      %2521 = vmatprep.mubr.f32.mxu0 0.0
      %2522 = vmatmul.mubr.f32.gmra.mrb[0].mxu0 %v2338
      %v2523 = vpop.f32.mrb[0].mxu0
      %v2524 = vadd.f32 0.0, %v2523
      %v2525 = vpop.f32.mrb[0].mxu0
      %2526 = vmatprep.mubr.f32.mxu0 0.0
      %2527 = vmatmul.mubr.f32.gmra.mrb[0].mxu0 %v2341
      %v2528 = vpop.f32.mrb[0].mxu0
      %v2529 = vadd.f32 0.0, %v2528
      %v2530 = vpop.f32.mrb[0].mxu0
      %2531 = vmatprep.mubr.f32.mxu0 0.0
      %2532 = vmatmul.mubr.f32.gmra.mrb[0].mxu0 %v2344
      %v2533 = vpop.f32.mrb[0].mxu0
      %v2534 = vadd.f32 0.0, %v2533
      %v2535 = vpop.f32.mrb[0].mxu0
      %2536 = vmatprep.mubr.f32.mxu0 0.0
      %2537 = vmatmul.mubr.f32.gmra.mrb[0].mxu0 %v2347
      %v2538 = vpop.f32.mrb[0].mxu0
      %v2539 = vadd.f32 0.0, %v2538
      %v2540 = vpop.f32.mrb[0].mxu0
      %2541 = vmatprep.mubr.f32.mxu0 0.0
      %2542 = vmatmul.mubr.f32.gmra.mrb[0].mxu0 %v2350
      %v2543 = vpop.f32.mrb[0].mxu0
      %v2544 = vadd.f32 0.0, %v2543
      %v2545 = vpop.f32.mrb[0].mxu0
      %2546 = vmatprep.mubr.f32.mxu0 0.0
      %2547 = vmatmul.mubr.f32.gmra.mrb[0].mxu0 %v2353
      %v2548 = vpop.f32.mrb[0].mxu0
      %v2549 = vadd.f32 0.0, %v2548
      %v2550 = vpop.f32.mrb[0].mxu0
      %2551 = vmatprep.mubr.f32.mxu0 0.0
      %2552 = vmatmul.mubr.f32.gmra.mrb[0].mxu0 %v2356
      %v2553 = vpop.f32.mrb[0].mxu0
      %v2554 = vadd.f32 0.0, %v2553
      %v2555 = vpop.f32.mrb[0].mxu0
      %2556 = vmatprep.mubr.f32.mxu0 0.0
      %2557 = vmatmul.mubr.f32.gmra.mrb[0].mxu0 %v2359
      %v2558 = vpop.f32.mrb[0].mxu0
      %v2559 = vadd.f32 0.0, %v2558
      %v2560 = vpop.f32.mrb[0].mxu0
      %2561 = vmatprep.mubr.f32.mxu0 0.0
      %2562 = vmatmul.mubr.f32.gmra.mrb[0].mxu0 %v2362
      %v2563 = vpop.f32.mrb[0].mxu0
      %v2564 = vadd.f32 0.0, %v2563
      %v2565 = vpop.f32.mrb[0].mxu0
      %2566 = vmatprep.mubr.f32.mxu0 0.0
      %2567 = vmatmul.mubr.f32.gmra.mrb[0].mxu0 %v2365
      %v2568 = vpop.f32.mrb[0].mxu0
      %v2569 = vadd.f32 0.0, %v2568
      %v2570 = vpop.f32.mrb[0].mxu0
      %2571 = vmatprep.mubr.f32.mxu0 0.0
      %2572 = vmatmul.mubr.f32.gmra.mrb[0].mxu0 %v2368
      %v2573 = vpop.f32.mrb[0].mxu0
      %v2574 = vadd.f32 0.0, %v2573
      %v2575 = vpop.f32.mrb[0].mxu0
      %2576 = vmatprep.mubr.f32.mxu0 0.0
      %2577 = vmatmul.mubr.f32.gmra.mrb[0].mxu0 %v2371
      %v2578 = vpop.f32.mrb[0].mxu0
      %v2579 = vadd.f32 0.0, %v2578
      %v2580 = vpop.f32.mrb[0].mxu0
      %2581 = vmatprep.mubr.f32.mxu0 0.0
      %2582 = vmatmul.mubr.f32.gmra.mrb[0].mxu0 %v2374
      %v2583 = vpop.f32.mrb[0].mxu0
      %v2584 = vadd.f32 0.0, %v2583
      %v2585 = vpop.f32.mrb[0].mxu0
      %2586 = vmatprep.mubr.f32.mxu0 0.0
      %2587 = vmatmul.mubr.f32.gmra.mrb[0].mxu0 %v2377
      %v2588 = vpop.f32.mrb[0].mxu0
      %v2589 = vadd.f32 0.0, %v2588
      %v2590 = vpop.f32.mrb[0].mxu0
      %2591 = vmatprep.mubr.f32.mxu0 0.0
      %2592 = vmatmul.mubr.f32.gmra.mrb[0].mxu0 %v2380
      %v2593 = vpop.f32.mrb[0].mxu0
      %v2594 = vadd.f32 0.0, %v2593
      %v2595 = vpop.f32.mrb[0].mxu0
      %2596 = vmatprep.mubr.f32.mxu0 0.0
      %2597 = vmatmul.mubr.f32.gmra.mrb[0].mxu0 %v2383
      %v2598 = vpop.f32.mrb[0].mxu0
      %v2599 = vadd.f32 0.0, %v2598
      %v2600 = vpop.f32.mrb[0].mxu0
      %2601 = vmatprep.mubr.f32.mxu0 0.0
      %2602 = vmatmul.mubr.f32.gmra.mrb[0].mxu0 %v2386
      %v2603 = vpop.f32.mrb[0].mxu0
      %v2604 = vadd.f32 0.0, %v2603
      %v2605 = vpop.f32.mrb[0].mxu0
      %2606 = vmatprep.mubr.f32.mxu0 0.0
      %2607 = vmatmul.mubr.f32.gmra.mrb[0].mxu0 %v2389
      %v2608 = vpop.f32.mrb[0].mxu0
      %v2609 = vadd.f32 0.0, %v2608
      %v2610 = vpop.f32.mrb[0].mxu0
      %2611 = vmatprep.mubr.f32.mxu0 0.0
      %2612 = vmatmul.mubr.f32.gmra.mrb[0].mxu0 %v2392
      %v2613 = vpop.f32.mrb[0].mxu0
      %v2614 = vadd.f32 0.0, %v2613
      %v2615 = vpop.f32.mrb[0].mxu0
      %2616 = vmatprep.mubr.f32.mxu0 0.0
      %2617 = vmatmul.mubr.f32.gmra.mrb[0].mxu0 %v2395
      %v2618 = vpop.f32.mrb[0].mxu0
      %v2619 = vadd.f32 0.0, %v2618
      %v2620 = vpop.f32.mrb[0].mxu0
      %2621 = vdwg.mxu0
      %v2622 = vadd.f32 %v2236, %v2464
      %v2623 = vadd.f32 %v2237, %v2469
      %v2624 = vadd.f32 %v2238, %v2474
      %v2625 = vadd.f32 %v2239, %v2479
      %v2626 = vadd.f32 %v2240, %v2484
      %v2627 = vadd.f32 %v2241, %v2489
      %v2628 = vadd.f32 %v2242, %v2494
      %v2629 = vadd.f32 %v2243, %v2499
      %v2630 = vadd.f32 %v2244, %v2504
      %v2631 = vadd.f32 %v2245, %v2509
      %v2632 = vadd.f32 %v2246, %v2514
      %v2633 = vadd.f32 %v2247, %v2519
      %v2634 = vadd.f32 %v2248, %v2524
      %v2635 = vadd.f32 %v2249, %v2529
      %v2636 = vadd.f32 %v2250, %v2534
      %v2637 = vadd.f32 %v2251, %v2539
      %v2638 = vadd.f32 %v2252, %v2544
      %v2639 = vadd.f32 %v2253, %v2549
      %v2640 = vadd.f32 %v2254, %v2554
      %v2641 = vadd.f32 %v2255, %v2559
      %v2642 = vadd.f32 %v2256, %v2564
      %v2643 = vadd.f32 %v2257, %v2569
      %v2644 = vadd.f32 %v2258, %v2574
      %v2645 = vadd.f32 %v2259, %v2579
      %v2646 = vadd.f32 %v2260, %v2584
      %v2647 = vadd.f32 %v2261, %v2589
      %v2648 = vadd.f32 %v2262, %v2594
      %v2649 = vadd.f32 %v2263, %v2599
      %v2650 = vadd.f32 %v2264, %v2604
      %v2651 = vadd.f32 %v2265, %v2609
      %v2652 = vadd.f32 %v2266, %v2614
      %v2653 = vadd.f32 %v2267, %v2619
      %s2654 = scalar_lea.vmem [#allocation2], 48
      %v2655 = vld [vmem:[%s2654] sm:$0xff]
      %v2656 = vld [vmem:[%s2654 + $0x8] sm:$0xff]
      %v2657 = vld [vmem:[%s2654 + $0x18] sm:$0xff]
      %v2658 = vld [vmem:[%s2654 + $0x20] sm:$0xff]
      %v2659 = vld [vmem:[%s2654 + $0x30] sm:$0xff]
      %v2660 = vld [vmem:[%s2654 + $0x38] sm:$0xff]
      %v2661 = vld [vmem:[%s2654 + $0x48] sm:$0xff]
      %v2662 = vld [vmem:[%s2654 + $0x50] sm:$0xff]
      %v2663 = vld [vmem:[%s2654 + $0x60] sm:$0xff]
      %v2664 = vld [vmem:[%s2654 + $0x68] sm:$0xff]
      %v2665 = vld [vmem:[%s2654 + $0x78] sm:$0xff]
      %v2666 = vld [vmem:[%s2654 + $0x80] sm:$0xff]
      %v2667 = vld [vmem:[%s2654 + $0x90] sm:$0xff]
      %v2668 = vld [vmem:[%s2654 + $0x98] sm:$0xff]
      %v2669 = vld [vmem:[%s2654 + $0xa8] sm:$0xff]
      %v2670 = vld [vmem:[%s2654 + $0xb0] sm:$0xff]
      %v2671 = vld [vmem:[%s2654 + $0xc0] sm:$0xff]
      %v2672 = vld [vmem:[%s2654 + $0xc8] sm:$0xff]
      %v2673 = vld [vmem:[%s2654 + $0xd8] sm:$0xff]
      %v2674 = vld [vmem:[%s2654 + $0xe0] sm:$0xff]
      %v2675 = vld [vmem:[%s2654 + $0xf0] sm:$0xff]
      %v2676 = vld [vmem:[%s2654 + $0xf8] sm:$0xff]
      %v2677 = vld [vmem:[%s2654 + $0x108] sm:$0xff]
      %v2678 = vld [vmem:[%s2654 + $0x110] sm:$0xff]
      %v2679 = vld [vmem:[%s2654 + $0x120] sm:$0xff]
      %v2680 = vld [vmem:[%s2654 + $0x128] sm:$0xff]
      %v2681 = vld [vmem:[%s2654 + $0x138] sm:$0xff]
      %v2682 = vld [vmem:[%s2654 + $0x140] sm:$0xff]
      %v2683 = vld [vmem:[%s2654 + $0x150] sm:$0xff]
      %v2684 = vld [vmem:[%s2654 + $0x158] sm:$0xff]
      %v2685 = vld [vmem:[%s2654 + $0x168] sm:$0xff]
      %v2686 = vld [vmem:[%s2654 + $0x170] sm:$0xff]
      %s2687 = scalar_lea.vmem %s1, 48
      %v2688 = vld [vmem:[%s2687] sm:$0xff]
      %v2690 = vsel %vm225, %v2655, 0
      %v2693 = vsel %vm225, %v2656, 0
      %v2696 = vsel %vm225, %v2657, 0
      %v2699 = vsel %vm225, %v2658, 0
      %v2702 = vsel %vm225, %v2659, 0
      %v2705 = vsel %vm225, %v2660, 0
      %v2708 = vsel %vm225, %v2661, 0
      %v2711 = vsel %vm225, %v2662, 0
      %v2714 = vsel %vm225, %v2663, 0
      %v2717 = vsel %vm225, %v2664, 0
      %v2720 = vsel %vm225, %v2665, 0
      %v2723 = vsel %vm225, %v2666, 0
      %v2726 = vsel %vm225, %v2667, 0
      %v2729 = vsel %vm225, %v2668, 0
      %v2732 = vsel %vm225, %v2669, 0
      %v2735 = vsel %vm225, %v2670, 0
      %v2738 = vsel %vm225, %v2671, 0
      %v2741 = vsel %vm225, %v2672, 0
      %v2744 = vsel %vm225, %v2673, 0
      %v2747 = vsel %vm225, %v2674, 0
      %v2750 = vsel %vm225, %v2675, 0
      %v2753 = vsel %vm225, %v2676, 0
      %v2756 = vsel %vm225, %v2677, 0
      %v2759 = vsel %vm225, %v2678, 0
      %v2762 = vsel %vm225, %v2679, 0
      %v2765 = vsel %vm225, %v2680, 0
      %v2768 = vsel %vm225, %v2681, 0
      %v2771 = vsel %vm225, %v2682, 0
      %v2774 = vsel %vm225, %v2683, 0
      %v2777 = vsel %vm225, %v2684, 0
      %v2780 = vsel %vm225, %v2685, 0
      %v2783 = vsel %vm225, %v2686, 0
      %2785 = vmatprep.subr.mxu0 0.0
      %2786 = vmatpush1.msra.mxu0 %v2688
      %2787 = vmatprep.subr.mxu0 0.0
      %2788 = vmatpush1.msra.mxu0 0.0
      %2789 = vmatprep.subr.mxu0 0.0
      %2790 = vmatpush1.msra.mxu0 0.0
      %2791 = vmatprep.subr.mxu0 0.0
      %2792 = vmatpush1.msra.mxu0 0.0
      %2793 = vmatprep.subr.mxu0 0.0
      %2794 = vmatpush1.msra.mxu0 0.0
      %2795 = vmatprep.subr.mxu0 0.0
      %2796 = vmatpush1.msra.mxu0 0.0
      %2797 = vmatprep.subr.mxu0 0.0
      %2798 = vmatpush1.msra.mxu0 0.0
      %2799 = vmatprep.subr.mxu0 0.0
      %2800 = vmatpush1.msra.mxu0 0.0
      %2801 = vmatprep.subr.mxu0 0.0
      %2802 = vmatpush1.msra.mxu0 0.0
      %2803 = vmatprep.subr.mxu0 0.0
      %2804 = vmatpush1.msra.mxu0 0.0
      %2805 = vmatprep.subr.mxu0 0.0
      %2806 = vmatpush1.msra.mxu0 0.0
      %2807 = vmatprep.subr.mxu0 0.0
      %2808 = vmatpush1.msra.mxu0 0.0
      %2809 = vmatprep.subr.mxu0 0.0
      %2810 = vmatpush1.msra.mxu0 0.0
      %2811 = vmatprep.subr.mxu0 0.0
      %2812 = vmatpush1.msra.mxu0 0.0
      %2813 = vmatprep.subr.mxu0 0.0
      %2814 = vmatpush1.msra.mxu0 0.0
      %2815 = vmatprep.subr.mxu0 0.0
      %2816 = vmatpush1.msra.mxu0 0.0
      %2817 = vmatprep.subr.mxu0 0.0
      %2818 = vmatpush1.msra.mxu0 0.0
      %2819 = vmatprep.subr.mxu0 0.0
      %2820 = vmatpush1.msra.mxu0 0.0
      %2821 = vmatprep.subr.mxu0 0.0
      %2822 = vmatpush1.msra.mxu0 0.0
      %2823 = vmatprep.subr.mxu0 0.0
      %2824 = vmatpush1.msra.mxu0 0.0
      %2825 = vmatprep.subr.mxu0 0.0
      %2826 = vmatpush1.msra.mxu0 0.0
      %2827 = vmatprep.subr.mxu0 0.0
      %2828 = vmatpush1.msra.mxu0 0.0
      %2829 = vmatprep.subr.mxu0 0.0
      %2830 = vmatpush1.msra.mxu0 0.0
      %2831 = vmatprep.subr.mxu0 0.0
      %2832 = vmatpush1.msra.mxu0 0.0
      %2833 = vmatprep.subr.mxu0 0.0
      %2834 = vmatpush1.msra.mxu0 0.0
      %2835 = vmatprep.subr.mxu0 0.0
      %2836 = vmatpush1.msra.mxu0 0.0
      %2837 = vmatprep.subr.mxu0 0.0
      %2838 = vmatpush1.msra.mxu0 0.0
      %2839 = vmatprep.subr.mxu0 0.0
      %2840 = vmatpush1.msra.mxu0 0.0
      %2841 = vmatprep.subr.mxu0 0.0
      %2842 = vmatpush1.msra.mxu0 0.0
      %2843 = vmatprep.subr.mxu0 0.0
      %2844 = vmatpush1.msra.mxu0 0.0
      %2845 = vmatprep.subr.mxu0 0.0
      %2846 = vmatpush1.msra.mxu0 0.0
      %2847 = vmatprep.subr.mxu0 0.0
      %2848 = vmatpush1.msra.mxu0 0.0
      %2849 = vmatprep.mubr.f32.mxu0 0.0
      %2850 = vmatmul.mubr.f32.gmra.mrb[0].mxu0 %v2690
      %v2851 = vpop.f32.mrb[0].mxu0
      %v2852 = vadd.f32 0.0, %v2851
      %v2853 = vpop.f32.mrb[0].mxu0
      %2854 = vmatprep.mubr.f32.mxu0 0.0
      %2855 = vmatmul.mubr.f32.gmra.mrb[0].mxu0 %v2693
      %v2856 = vpop.f32.mrb[0].mxu0
      %v2857 = vadd.f32 0.0, %v2856
      %v2858 = vpop.f32.mrb[0].mxu0
      %2859 = vmatprep.mubr.f32.mxu0 0.0
      %2860 = vmatmul.mubr.f32.gmra.mrb[0].mxu0 %v2696
      %v2861 = vpop.f32.mrb[0].mxu0
      %v2862 = vadd.f32 0.0, %v2861
      %v2863 = vpop.f32.mrb[0].mxu0
      %2864 = vmatprep.mubr.f32.mxu0 0.0
      %2865 = vmatmul.mubr.f32.gmra.mrb[0].mxu0 %v2699
      %v2866 = vpop.f32.mrb[0].mxu0
      %v2867 = vadd.f32 0.0, %v2866
      %v2868 = vpop.f32.mrb[0].mxu0
      %2869 = vmatprep.mubr.f32.mxu0 0.0
      %2870 = vmatmul.mubr.f32.gmra.mrb[0].mxu0 %v2702
      %v2871 = vpop.f32.mrb[0].mxu0
      %v2872 = vadd.f32 0.0, %v2871
      %v2873 = vpop.f32.mrb[0].mxu0
      %2874 = vmatprep.mubr.f32.mxu0 0.0
      %2875 = vmatmul.mubr.f32.gmra.mrb[0].mxu0 %v2705
      %v2876 = vpop.f32.mrb[0].mxu0
      %v2877 = vadd.f32 0.0, %v2876
      %v2878 = vpop.f32.mrb[0].mxu0
      %2879 = vmatprep.mubr.f32.mxu0 0.0
      %2880 = vmatmul.mubr.f32.gmra.mrb[0].mxu0 %v2708
      %v2881 = vpop.f32.mrb[0].mxu0
      %v2882 = vadd.f32 0.0, %v2881
      %v2883 = vpop.f32.mrb[0].mxu0
      %2884 = vmatprep.mubr.f32.mxu0 0.0
      %2885 = vmatmul.mubr.f32.gmra.mrb[0].mxu0 %v2711
      %v2886 = vpop.f32.mrb[0].mxu0
      %v2887 = vadd.f32 0.0, %v2886
      %v2888 = vpop.f32.mrb[0].mxu0
      %2889 = vmatprep.mubr.f32.mxu0 0.0
      %2890 = vmatmul.mubr.f32.gmra.mrb[0].mxu0 %v2714
      %v2891 = vpop.f32.mrb[0].mxu0
      %v2892 = vadd.f32 0.0, %v2891
      %v2893 = vpop.f32.mrb[0].mxu0
      %2894 = vmatprep.mubr.f32.mxu0 0.0
      %2895 = vmatmul.mubr.f32.gmra.mrb[0].mxu0 %v2717
      %v2896 = vpop.f32.mrb[0].mxu0
      %v2897 = vadd.f32 0.0, %v2896
      %v2898 = vpop.f32.mrb[0].mxu0
      %2899 = vmatprep.mubr.f32.mxu0 0.0
      %2900 = vmatmul.mubr.f32.gmra.mrb[0].mxu0 %v2720
      %v2901 = vpop.f32.mrb[0].mxu0
      %v2902 = vadd.f32 0.0, %v2901
      %v2903 = vpop.f32.mrb[0].mxu0
      %2904 = vmatprep.mubr.f32.mxu0 0.0
      %2905 = vmatmul.mubr.f32.gmra.mrb[0].mxu0 %v2723
      %v2906 = vpop.f32.mrb[0].mxu0
      %v2907 = vadd.f32 0.0, %v2906
      %v2908 = vpop.f32.mrb[0].mxu0
      %2909 = vmatprep.mubr.f32.mxu0 0.0
      %2910 = vmatmul.mubr.f32.gmra.mrb[0].mxu0 %v2726
      %v2911 = vpop.f32.mrb[0].mxu0
      %v2912 = vadd.f32 0.0, %v2911
      %v2913 = vpop.f32.mrb[0].mxu0
      %2914 = vmatprep.mubr.f32.mxu0 0.0
      %2915 = vmatmul.mubr.f32.gmra.mrb[0].mxu0 %v2729
      %v2916 = vpop.f32.mrb[0].mxu0
      %v2917 = vadd.f32 0.0, %v2916
      %v2918 = vpop.f32.mrb[0].mxu0
      %2919 = vmatprep.mubr.f32.mxu0 0.0
      %2920 = vmatmul.mubr.f32.gmra.mrb[0].mxu0 %v2732
      %v2921 = vpop.f32.mrb[0].mxu0
      %v2922 = vadd.f32 0.0, %v2921
      %v2923 = vpop.f32.mrb[0].mxu0
      %2924 = vmatprep.mubr.f32.mxu0 0.0
      %2925 = vmatmul.mubr.f32.gmra.mrb[0].mxu0 %v2735
      %v2926 = vpop.f32.mrb[0].mxu0
      %v2927 = vadd.f32 0.0, %v2926
      %v2928 = vpop.f32.mrb[0].mxu0
      %2929 = vmatprep.mubr.f32.mxu0 0.0
      %2930 = vmatmul.mubr.f32.gmra.mrb[0].mxu0 %v2738
      %v2931 = vpop.f32.mrb[0].mxu0
      %v2932 = vadd.f32 0.0, %v2931
      %v2933 = vpop.f32.mrb[0].mxu0
      %2934 = vmatprep.mubr.f32.mxu0 0.0
      %2935 = vmatmul.mubr.f32.gmra.mrb[0].mxu0 %v2741
      %v2936 = vpop.f32.mrb[0].mxu0
      %v2937 = vadd.f32 0.0, %v2936
      %v2938 = vpop.f32.mrb[0].mxu0
      %2939 = vmatprep.mubr.f32.mxu0 0.0
      %2940 = vmatmul.mubr.f32.gmra.mrb[0].mxu0 %v2744
      %v2941 = vpop.f32.mrb[0].mxu0
      %v2942 = vadd.f32 0.0, %v2941
      %v2943 = vpop.f32.mrb[0].mxu0
      %2944 = vmatprep.mubr.f32.mxu0 0.0
      %2945 = vmatmul.mubr.f32.gmra.mrb[0].mxu0 %v2747
      %v2946 = vpop.f32.mrb[0].mxu0
      %v2947 = vadd.f32 0.0, %v2946
      %v2948 = vpop.f32.mrb[0].mxu0
      %2949 = vmatprep.mubr.f32.mxu0 0.0
      %2950 = vmatmul.mubr.f32.gmra.mrb[0].mxu0 %v2750
      %v2951 = vpop.f32.mrb[0].mxu0
      %v2952 = vadd.f32 0.0, %v2951
      %v2953 = vpop.f32.mrb[0].mxu0
      %2954 = vmatprep.mubr.f32.mxu0 0.0
      %2955 = vmatmul.mubr.f32.gmra.mrb[0].mxu0 %v2753
      %v2956 = vpop.f32.mrb[0].mxu0
      %v2957 = vadd.f32 0.0, %v2956
      %v2958 = vpop.f32.mrb[0].mxu0
      %2959 = vmatprep.mubr.f32.mxu0 0.0
      %2960 = vmatmul.mubr.f32.gmra.mrb[0].mxu0 %v2756
      %v2961 = vpop.f32.mrb[0].mxu0
      %v2962 = vadd.f32 0.0, %v2961
      %v2963 = vpop.f32.mrb[0].mxu0
      %2964 = vmatprep.mubr.f32.mxu0 0.0
      %2965 = vmatmul.mubr.f32.gmra.mrb[0].mxu0 %v2759
      %v2966 = vpop.f32.mrb[0].mxu0
      %v2967 = vadd.f32 0.0, %v2966
      %v2968 = vpop.f32.mrb[0].mxu0
      %2969 = vmatprep.mubr.f32.mxu0 0.0
      %2970 = vmatmul.mubr.f32.gmra.mrb[0].mxu0 %v2762
      %v2971 = vpop.f32.mrb[0].mxu0
      %v2972 = vadd.f32 0.0, %v2971
      %v2973 = vpop.f32.mrb[0].mxu0
      %2974 = vmatprep.mubr.f32.mxu0 0.0
      %2975 = vmatmul.mubr.f32.gmra.mrb[0].mxu0 %v2765
      %v2976 = vpop.f32.mrb[0].mxu0
      %v2977 = vadd.f32 0.0, %v2976
      %v2978 = vpop.f32.mrb[0].mxu0
      %2979 = vmatprep.mubr.f32.mxu0 0.0
      %2980 = vmatmul.mubr.f32.gmra.mrb[0].mxu0 %v2768
      %v2981 = vpop.f32.mrb[0].mxu0
      %v2982 = vadd.f32 0.0, %v2981
      %v2983 = vpop.f32.mrb[0].mxu0
      %2984 = vmatprep.mubr.f32.mxu0 0.0
      %2985 = vmatmul.mubr.f32.gmra.mrb[0].mxu0 %v2771
      %v2986 = vpop.f32.mrb[0].mxu0
      %v2987 = vadd.f32 0.0, %v2986
      %v2988 = vpop.f32.mrb[0].mxu0
      %2989 = vmatprep.mubr.f32.mxu0 0.0
      %2990 = vmatmul.mubr.f32.gmra.mrb[0].mxu0 %v2774
      %v2991 = vpop.f32.mrb[0].mxu0
      %v2992 = vadd.f32 0.0, %v2991
      %v2993 = vpop.f32.mrb[0].mxu0
      %2994 = vmatprep.mubr.f32.mxu0 0.0
      %2995 = vmatmul.mubr.f32.gmra.mrb[0].mxu0 %v2777
      %v2996 = vpop.f32.mrb[0].mxu0
      %v2997 = vadd.f32 0.0, %v2996
      %v2998 = vpop.f32.mrb[0].mxu0
      %2999 = vmatprep.mubr.f32.mxu0 0.0
      %3000 = vmatmul.mubr.f32.gmra.mrb[0].mxu0 %v2780
      %v3001 = vpop.f32.mrb[0].mxu0
      %v3002 = vadd.f32 0.0, %v3001
      %v3003 = vpop.f32.mrb[0].mxu0
      %3004 = vmatprep.mubr.f32.mxu0 0.0
      %3005 = vmatmul.mubr.f32.gmra.mrb[0].mxu0 %v2783
      %v3006 = vpop.f32.mrb[0].mxu0
      %v3007 = vadd.f32 0.0, %v3006
      %v3008 = vpop.f32.mrb[0].mxu0
      %3009 = vdwg.mxu0
      %v3010 = vadd.f32 %v2622, %v2852
      %v3011 = vadd.f32 %v2623, %v2857
      %v3012 = vadd.f32 %v2624, %v2862
      %v3013 = vadd.f32 %v2625, %v2867
      %v3014 = vadd.f32 %v2626, %v2872
      %v3015 = vadd.f32 %v2627, %v2877
      %v3016 = vadd.f32 %v2628, %v2882
      %v3017 = vadd.f32 %v2629, %v2887
      %v3018 = vadd.f32 %v2630, %v2892
      %v3019 = vadd.f32 %v2631, %v2897
      %v3020 = vadd.f32 %v2632, %v2902
      %v3021 = vadd.f32 %v2633, %v2907
      %v3022 = vadd.f32 %v2634, %v2912
      %v3023 = vadd.f32 %v2635, %v2917
      %v3024 = vadd.f32 %v2636, %v2922
      %v3025 = vadd.f32 %v2637, %v2927
      %v3026 = vadd.f32 %v2638, %v2932
      %v3027 = vadd.f32 %v2639, %v2937
      %v3028 = vadd.f32 %v2640, %v2942
      %v3029 = vadd.f32 %v2641, %v2947
      %v3030 = vadd.f32 %v2642, %v2952
      %v3031 = vadd.f32 %v2643, %v2957
      %v3032 = vadd.f32 %v2644, %v2962
      %v3033 = vadd.f32 %v2645, %v2967
      %v3034 = vadd.f32 %v2646, %v2972
      %v3035 = vadd.f32 %v2647, %v2977
      %v3036 = vadd.f32 %v2648, %v2982
      %v3037 = vadd.f32 %v2649, %v2987
      %v3038 = vadd.f32 %v2650, %v2992
      %v3039 = vadd.f32 %v2651, %v2997
      %v3040 = vadd.f32 %v2652, %v3002
      %v3041 = vadd.f32 %v2653, %v3007
      %v3042 = vld [vmem:[%s2654 + $0x1] sm:$0xff]
      %v3043 = vld [vmem:[%s2654 + $0x9] sm:$0xff]
      %v3044 = vld [vmem:[%s2654 + $0x19] sm:$0xff]
      %v3045 = vld [vmem:[%s2654 + $0x21] sm:$0xff]
      %v3046 = vld [vmem:[%s2654 + $0x31] sm:$0xff]
      %v3047 = vld [vmem:[%s2654 + $0x39] sm:$0xff]
      %v3048 = vld [vmem:[%s2654 + $0x49] sm:$0xff]
      %v3049 = vld [vmem:[%s2654 + $0x51] sm:$0xff]
      %v3050 = vld [vmem:[%s2654 + $0x61] sm:$0xff]
      %v3051 = vld [vmem:[%s2654 + $0x69] sm:$0xff]
      %v3052 = vld [vmem:[%s2654 + $0x79] sm:$0xff]
      %v3053 = vld [vmem:[%s2654 + $0x81] sm:$0xff]
      %v3054 = vld [vmem:[%s2654 + $0x91] sm:$0xff]
      %v3055 = vld [vmem:[%s2654 + $0x99] sm:$0xff]
      %v3056 = vld [vmem:[%s2654 + $0xa9] sm:$0xff]
      %v3057 = vld [vmem:[%s2654 + $0xb1] sm:$0xff]
      %v3058 = vld [vmem:[%s2654 + $0xc1] sm:$0xff]
      %v3059 = vld [vmem:[%s2654 + $0xc9] sm:$0xff]
      %v3060 = vld [vmem:[%s2654 + $0xd9] sm:$0xff]
      %v3061 = vld [vmem:[%s2654 + $0xe1] sm:$0xff]
      %v3062 = vld [vmem:[%s2654 + $0xf1] sm:$0xff]
      %v3063 = vld [vmem:[%s2654 + $0xf9] sm:$0xff]
      %v3064 = vld [vmem:[%s2654 + $0x109] sm:$0xff]
      %v3065 = vld [vmem:[%s2654 + $0x111] sm:$0xff]
      %v3066 = vld [vmem:[%s2654 + $0x121] sm:$0xff]
      %v3067 = vld [vmem:[%s2654 + $0x129] sm:$0xff]
      %v3068 = vld [vmem:[%s2654 + $0x139] sm:$0xff]
      %v3069 = vld [vmem:[%s2654 + $0x141] sm:$0xff]
      %v3070 = vld [vmem:[%s2654 + $0x151] sm:$0xff]
      %v3071 = vld [vmem:[%s2654 + $0x159] sm:$0xff]
      %v3072 = vld [vmem:[%s2654 + $0x169] sm:$0xff]
      %v3073 = vld [vmem:[%s2654 + $0x171] sm:$0xff]
      %v3074 = vld [vmem:[%s2687 + $0x8] sm:$0xff]
      %v3076 = vsel %vm225, %v3042, 0
      %v3079 = vsel %vm225, %v3043, 0
      %v3082 = vsel %vm225, %v3044, 0
      %v3085 = vsel %vm225, %v3045, 0
      %v3088 = vsel %vm225, %v3046, 0
      %v3091 = vsel %vm225, %v3047, 0
      %v3094 = vsel %vm225, %v3048, 0
      %v3097 = vsel %vm225, %v3049, 0
      %v3100 = vsel %vm225, %v3050, 0
      %v3103 = vsel %vm225, %v3051, 0
      %v3106 = vsel %vm225, %v3052, 0
      %v3109 = vsel %vm225, %v3053, 0
      %v3112 = vsel %vm225, %v3054, 0
      %v3115 = vsel %vm225, %v3055, 0
      %v3118 = vsel %vm225, %v3056, 0
      %v3121 = vsel %vm225, %v3057, 0
      %v3124 = vsel %vm225, %v3058, 0
      %v3127 = vsel %vm225, %v3059, 0
      %v3130 = vsel %vm225, %v3060, 0
      %v3133 = vsel %vm225, %v3061, 0
      %v3136 = vsel %vm225, %v3062, 0
      %v3139 = vsel %vm225, %v3063, 0
      %v3142 = vsel %vm225, %v3064, 0
      %v3145 = vsel %vm225, %v3065, 0
      %v3148 = vsel %vm225, %v3066, 0
      %v3151 = vsel %vm225, %v3067, 0
      %v3154 = vsel %vm225, %v3068, 0
      %v3157 = vsel %vm225, %v3069, 0
      %v3160 = vsel %vm225, %v3070, 0
      %v3163 = vsel %vm225, %v3071, 0
      %v3166 = vsel %vm225, %v3072, 0
      %v3169 = vsel %vm225, %v3073, 0
      %3171 = vmatprep.subr.mxu0 0.0
      %3172 = vmatpush1.msra.mxu0 %v3074
      %3173 = vmatprep.subr.mxu0 0.0
      %3174 = vmatpush1.msra.mxu0 0.0
      %3175 = vmatprep.subr.mxu0 0.0
      %3176 = vmatpush1.msra.mxu0 0.0
      %3177 = vmatprep.subr.mxu0 0.0
      %3178 = vmatpush1.msra.mxu0 0.0
      %3179 = vmatprep.subr.mxu0 0.0
      %3180 = vmatpush1.msra.mxu0 0.0
      %3181 = vmatprep.subr.mxu0 0.0
      %3182 = vmatpush1.msra.mxu0 0.0
      %3183 = vmatprep.subr.mxu0 0.0
      %3184 = vmatpush1.msra.mxu0 0.0
      %3185 = vmatprep.subr.mxu0 0.0
      %3186 = vmatpush1.msra.mxu0 0.0
      %3187 = vmatprep.subr.mxu0 0.0
      %3188 = vmatpush1.msra.mxu0 0.0
      %3189 = vmatprep.subr.mxu0 0.0
      %3190 = vmatpush1.msra.mxu0 0.0
      %3191 = vmatprep.subr.mxu0 0.0
      %3192 = vmatpush1.msra.mxu0 0.0
      %3193 = vmatprep.subr.mxu0 0.0
      %3194 = vmatpush1.msra.mxu0 0.0
      %3195 = vmatprep.subr.mxu0 0.0
      %3196 = vmatpush1.msra.mxu0 0.0
      %3197 = vmatprep.subr.mxu0 0.0
      %3198 = vmatpush1.msra.mxu0 0.0
      %3199 = vmatprep.subr.mxu0 0.0
      %3200 = vmatpush1.msra.mxu0 0.0
      %3201 = vmatprep.subr.mxu0 0.0
      %3202 = vmatpush1.msra.mxu0 0.0
      %3203 = vmatprep.subr.mxu0 0.0
      %3204 = vmatpush1.msra.mxu0 0.0
      %3205 = vmatprep.subr.mxu0 0.0
      %3206 = vmatpush1.msra.mxu0 0.0
      %3207 = vmatprep.subr.mxu0 0.0
      %3208 = vmatpush1.msra.mxu0 0.0
      %3209 = vmatprep.subr.mxu0 0.0
      %3210 = vmatpush1.msra.mxu0 0.0
      %3211 = vmatprep.subr.mxu0 0.0
      %3212 = vmatpush1.msra.mxu0 0.0
      %3213 = vmatprep.subr.mxu0 0.0
      %3214 = vmatpush1.msra.mxu0 0.0
      %3215 = vmatprep.subr.mxu0 0.0
      %3216 = vmatpush1.msra.mxu0 0.0
      %3217 = vmatprep.subr.mxu0 0.0
      %3218 = vmatpush1.msra.mxu0 0.0
      %3219 = vmatprep.subr.mxu0 0.0
      %3220 = vmatpush1.msra.mxu0 0.0
      %3221 = vmatprep.subr.mxu0 0.0
      %3222 = vmatpush1.msra.mxu0 0.0
      %3223 = vmatprep.subr.mxu0 0.0
      %3224 = vmatpush1.msra.mxu0 0.0
      %3225 = vmatprep.subr.mxu0 0.0
      %3226 = vmatpush1.msra.mxu0 0.0
      %3227 = vmatprep.subr.mxu0 0.0
      %3228 = vmatpush1.msra.mxu0 0.0
      %3229 = vmatprep.subr.mxu0 0.0
      %3230 = vmatpush1.msra.mxu0 0.0
      %3231 = vmatprep.subr.mxu0 0.0
      %3232 = vmatpush1.msra.mxu0 0.0
      %3233 = vmatprep.subr.mxu0 0.0
      %3234 = vmatpush1.msra.mxu0 0.0
      %3235 = vmatprep.mubr.f32.mxu0 0.0
      %3236 = vmatmul.mubr.f32.gmra.mrb[0].mxu0 %v3076
      %v3237 = vpop.f32.mrb[0].mxu0
      %v3238 = vadd.f32 0.0, %v3237
      %v3239 = vpop.f32.mrb[0].mxu0
      %3240 = vmatprep.mubr.f32.mxu0 0.0
      %3241 = vmatmul.mubr.f32.gmra.mrb[0].mxu0 %v3079
      %v3242 = vpop.f32.mrb[0].mxu0
      %v3243 = vadd.f32 0.0, %v3242
      %v3244 = vpop.f32.mrb[0].mxu0
      %3245 = vmatprep.mubr.f32.mxu0 0.0
      %3246 = vmatmul.mubr.f32.gmra.mrb[0].mxu0 %v3082
      %v3247 = vpop.f32.mrb[0].mxu0
      %v3248 = vadd.f32 0.0, %v3247
      %v3249 = vpop.f32.mrb[0].mxu0
      %3250 = vmatprep.mubr.f32.mxu0 0.0
      %3251 = vmatmul.mubr.f32.gmra.mrb[0].mxu0 %v3085
      %v3252 = vpop.f32.mrb[0].mxu0
      %v3253 = vadd.f32 0.0, %v3252
      %v3254 = vpop.f32.mrb[0].mxu0
      %3255 = vmatprep.mubr.f32.mxu0 0.0
      %3256 = vmatmul.mubr.f32.gmra.mrb[0].mxu0 %v3088
      %v3257 = vpop.f32.mrb[0].mxu0
      %v3258 = vadd.f32 0.0, %v3257
      %v3259 = vpop.f32.mrb[0].mxu0
      %3260 = vmatprep.mubr.f32.mxu0 0.0
      %3261 = vmatmul.mubr.f32.gmra.mrb[0].mxu0 %v3091
      %v3262 = vpop.f32.mrb[0].mxu0
      %v3263 = vadd.f32 0.0, %v3262
      %v3264 = vpop.f32.mrb[0].mxu0
      %3265 = vmatprep.mubr.f32.mxu0 0.0
      %3266 = vmatmul.mubr.f32.gmra.mrb[0].mxu0 %v3094
      %v3267 = vpop.f32.mrb[0].mxu0
      %v3268 = vadd.f32 0.0, %v3267
      %v3269 = vpop.f32.mrb[0].mxu0
      %3270 = vmatprep.mubr.f32.mxu0 0.0
      %3271 = vmatmul.mubr.f32.gmra.mrb[0].mxu0 %v3097
      %v3272 = vpop.f32.mrb[0].mxu0
      %v3273 = vadd.f32 0.0, %v3272
      %v3274 = vpop.f32.mrb[0].mxu0
      %3275 = vmatprep.mubr.f32.mxu0 0.0
      %3276 = vmatmul.mubr.f32.gmra.mrb[0].mxu0 %v3100
      %v3277 = vpop.f32.mrb[0].mxu0
      %v3278 = vadd.f32 0.0, %v3277
      %v3279 = vpop.f32.mrb[0].mxu0
      %3280 = vmatprep.mubr.f32.mxu0 0.0
      %3281 = vmatmul.mubr.f32.gmra.mrb[0].mxu0 %v3103
      %v3282 = vpop.f32.mrb[0].mxu0
      %v3283 = vadd.f32 0.0, %v3282
      %v3284 = vpop.f32.mrb[0].mxu0
      %3285 = vmatprep.mubr.f32.mxu0 0.0
      %3286 = vmatmul.mubr.f32.gmra.mrb[0].mxu0 %v3106
      %v3287 = vpop.f32.mrb[0].mxu0
      %v3288 = vadd.f32 0.0, %v3287
      %v3289 = vpop.f32.mrb[0].mxu0
      %3290 = vmatprep.mubr.f32.mxu0 0.0
      %3291 = vmatmul.mubr.f32.gmra.mrb[0].mxu0 %v3109
      %v3292 = vpop.f32.mrb[0].mxu0
      %v3293 = vadd.f32 0.0, %v3292
      %v3294 = vpop.f32.mrb[0].mxu0
      %3295 = vmatprep.mubr.f32.mxu0 0.0
      %3296 = vmatmul.mubr.f32.gmra.mrb[0].mxu0 %v3112
      %v3297 = vpop.f32.mrb[0].mxu0
      %v3298 = vadd.f32 0.0, %v3297
      %v3299 = vpop.f32.mrb[0].mxu0
      %3300 = vmatprep.mubr.f32.mxu0 0.0
      %3301 = vmatmul.mubr.f32.gmra.mrb[0].mxu0 %v3115
      %v3302 = vpop.f32.mrb[0].mxu0
      %v3303 = vadd.f32 0.0, %v3302
      %v3304 = vpop.f32.mrb[0].mxu0
      %3305 = vmatprep.mubr.f32.mxu0 0.0
      %3306 = vmatmul.mubr.f32.gmra.mrb[0].mxu0 %v3118
      %v3307 = vpop.f32.mrb[0].mxu0
      %v3308 = vadd.f32 0.0, %v3307
      %v3309 = vpop.f32.mrb[0].mxu0
      %3310 = vmatprep.mubr.f32.mxu0 0.0
      %3311 = vmatmul.mubr.f32.gmra.mrb[0].mxu0 %v3121
      %v3312 = vpop.f32.mrb[0].mxu0
      %v3313 = vadd.f32 0.0, %v3312
      %v3314 = vpop.f32.mrb[0].mxu0
      %3315 = vmatprep.mubr.f32.mxu0 0.0
      %3316 = vmatmul.mubr.f32.gmra.mrb[0].mxu0 %v3124
      %v3317 = vpop.f32.mrb[0].mxu0
      %v3318 = vadd.f32 0.0, %v3317
      %v3319 = vpop.f32.mrb[0].mxu0
      %3320 = vmatprep.mubr.f32.mxu0 0.0
      %3321 = vmatmul.mubr.f32.gmra.mrb[0].mxu0 %v3127
      %v3322 = vpop.f32.mrb[0].mxu0
      %v3323 = vadd.f32 0.0, %v3322
      %v3324 = vpop.f32.mrb[0].mxu0
      %3325 = vmatprep.mubr.f32.mxu0 0.0
      %3326 = vmatmul.mubr.f32.gmra.mrb[0].mxu0 %v3130
      %v3327 = vpop.f32.mrb[0].mxu0
      %v3328 = vadd.f32 0.0, %v3327
      %v3329 = vpop.f32.mrb[0].mxu0
      %3330 = vmatprep.mubr.f32.mxu0 0.0
      %3331 = vmatmul.mubr.f32.gmra.mrb[0].mxu0 %v3133
      %v3332 = vpop.f32.mrb[0].mxu0
      %v3333 = vadd.f32 0.0, %v3332
      %v3334 = vpop.f32.mrb[0].mxu0
      %3335 = vmatprep.mubr.f32.mxu0 0.0
      %3336 = vmatmul.mubr.f32.gmra.mrb[0].mxu0 %v3136
      %v3337 = vpop.f32.mrb[0].mxu0
      %v3338 = vadd.f32 0.0, %v3337
      %v3339 = vpop.f32.mrb[0].mxu0
      %3340 = vmatprep.mubr.f32.mxu0 0.0
      %3341 = vmatmul.mubr.f32.gmra.mrb[0].mxu0 %v3139
      %v3342 = vpop.f32.mrb[0].mxu0
      %v3343 = vadd.f32 0.0, %v3342
      %v3344 = vpop.f32.mrb[0].mxu0
      %3345 = vmatprep.mubr.f32.mxu0 0.0
      %3346 = vmatmul.mubr.f32.gmra.mrb[0].mxu0 %v3142
      %v3347 = vpop.f32.mrb[0].mxu0
      %v3348 = vadd.f32 0.0, %v3347
      %v3349 = vpop.f32.mrb[0].mxu0
      %3350 = vmatprep.mubr.f32.mxu0 0.0
      %3351 = vmatmul.mubr.f32.gmra.mrb[0].mxu0 %v3145
      %v3352 = vpop.f32.mrb[0].mxu0
      %v3353 = vadd.f32 0.0, %v3352
      %v3354 = vpop.f32.mrb[0].mxu0
      %3355 = vmatprep.mubr.f32.mxu0 0.0
      %3356 = vmatmul.mubr.f32.gmra.mrb[0].mxu0 %v3148
      %v3357 = vpop.f32.mrb[0].mxu0
      %v3358 = vadd.f32 0.0, %v3357
      %v3359 = vpop.f32.mrb[0].mxu0
      %3360 = vmatprep.mubr.f32.mxu0 0.0
      %3361 = vmatmul.mubr.f32.gmra.mrb[0].mxu0 %v3151
      %v3362 = vpop.f32.mrb[0].mxu0
      %v3363 = vadd.f32 0.0, %v3362
      %v3364 = vpop.f32.mrb[0].mxu0
      %3365 = vmatprep.mubr.f32.mxu0 0.0
      %3366 = vmatmul.mubr.f32.gmra.mrb[0].mxu0 %v3154
      %v3367 = vpop.f32.mrb[0].mxu0
      %v3368 = vadd.f32 0.0, %v3367
      %v3369 = vpop.f32.mrb[0].mxu0
      %3370 = vmatprep.mubr.f32.mxu0 0.0
      %3371 = vmatmul.mubr.f32.gmra.mrb[0].mxu0 %v3157
      %v3372 = vpop.f32.mrb[0].mxu0
      %v3373 = vadd.f32 0.0, %v3372
      %v3374 = vpop.f32.mrb[0].mxu0
      %3375 = vmatprep.mubr.f32.mxu0 0.0
      %3376 = vmatmul.mubr.f32.gmra.mrb[0].mxu0 %v3160
      %v3377 = vpop.f32.mrb[0].mxu0
      %v3378 = vadd.f32 0.0, %v3377
      %v3379 = vpop.f32.mrb[0].mxu0
      %3380 = vmatprep.mubr.f32.mxu0 0.0
      %3381 = vmatmul.mubr.f32.gmra.mrb[0].mxu0 %v3163
      %v3382 = vpop.f32.mrb[0].mxu0
      %v3383 = vadd.f32 0.0, %v3382
      %v3384 = vpop.f32.mrb[0].mxu0
      %3385 = vmatprep.mubr.f32.mxu0 0.0
      %3386 = vmatmul.mubr.f32.gmra.mrb[0].mxu0 %v3166
      %v3387 = vpop.f32.mrb[0].mxu0
      %v3388 = vadd.f32 0.0, %v3387
      %v3389 = vpop.f32.mrb[0].mxu0
      %3390 = vmatprep.mubr.f32.mxu0 0.0
      %3391 = vmatmul.mubr.f32.gmra.mrb[0].mxu0 %v3169
      %v3392 = vpop.f32.mrb[0].mxu0
      %v3393 = vadd.f32 0.0, %v3392
      %v3394 = vpop.f32.mrb[0].mxu0
      %3395 = vdwg.mxu0
      %v3396 = vadd.f32 %v3010, %v3238
      %v3397 = vadd.f32 %v3011, %v3243
      %v3398 = vadd.f32 %v3012, %v3248
      %v3399 = vadd.f32 %v3013, %v3253
      %v3400 = vadd.f32 %v3014, %v3258
      %v3401 = vadd.f32 %v3015, %v3263
      %v3402 = vadd.f32 %v3016, %v3268
      %v3403 = vadd.f32 %v3017, %v3273
      %v3404 = vadd.f32 %v3018, %v3278
      %v3405 = vadd.f32 %v3019, %v3283
      %v3406 = vadd.f32 %v3020, %v3288
      %v3407 = vadd.f32 %v3021, %v3293
      %v3408 = vadd.f32 %v3022, %v3298
      %v3409 = vadd.f32 %v3023, %v3303
      %v3410 = vadd.f32 %v3024, %v3308
      %v3411 = vadd.f32 %v3025, %v3313
      %v3412 = vadd.f32 %v3026, %v3318
      %v3413 = vadd.f32 %v3027, %v3323
      %v3414 = vadd.f32 %v3028, %v3328
      %v3415 = vadd.f32 %v3029, %v3333
      %v3416 = vadd.f32 %v3030, %v3338
      %v3417 = vadd.f32 %v3031, %v3343
      %v3418 = vadd.f32 %v3032, %v3348
      %v3419 = vadd.f32 %v3033, %v3353
      %v3420 = vadd.f32 %v3034, %v3358
      %v3421 = vadd.f32 %v3035, %v3363
      %v3422 = vadd.f32 %v3036, %v3368
      %v3423 = vadd.f32 %v3037, %v3373
      %v3424 = vadd.f32 %v3038, %v3378
      %v3425 = vadd.f32 %v3039, %v3383
      %v3426 = vadd.f32 %v3040, %v3388
      %v3427 = vadd.f32 %v3041, %v3393
      %v3428 = vld [vmem:[%s2654 + $0x2] sm:$0xff]
      %v3429 = vld [vmem:[%s2654 + $0xa] sm:$0xff]
      %v3430 = vld [vmem:[%s2654 + $0x1a] sm:$0xff]
      %v3431 = vld [vmem:[%s2654 + $0x22] sm:$0xff]
      %v3432 = vld [vmem:[%s2654 + $0x32] sm:$0xff]
      %v3433 = vld [vmem:[%s2654 + $0x3a] sm:$0xff]
      %v3434 = vld [vmem:[%s2654 + $0x4a] sm:$0xff]
      %v3435 = vld [vmem:[%s2654 + $0x52] sm:$0xff]
      %v3436 = vld [vmem:[%s2654 + $0x62] sm:$0xff]
      %v3437 = vld [vmem:[%s2654 + $0x6a] sm:$0xff]
      %v3438 = vld [vmem:[%s2654 + $0x7a] sm:$0xff]
      %v3439 = vld [vmem:[%s2654 + $0x82] sm:$0xff]
      %v3440 = vld [vmem:[%s2654 + $0x92] sm:$0xff]
      %v3441 = vld [vmem:[%s2654 + $0x9a] sm:$0xff]
      %v3442 = vld [vmem:[%s2654 + $0xaa] sm:$0xff]
      %v3443 = vld [vmem:[%s2654 + $0xb2] sm:$0xff]
      %v3444 = vld [vmem:[%s2654 + $0xc2] sm:$0xff]
      %v3445 = vld [vmem:[%s2654 + $0xca] sm:$0xff]
      %v3446 = vld [vmem:[%s2654 + $0xda] sm:$0xff]
      %v3447 = vld [vmem:[%s2654 + $0xe2] sm:$0xff]
      %v3448 = vld [vmem:[%s2654 + $0xf2] sm:$0xff]
      %v3449 = vld [vmem:[%s2654 + $0xfa] sm:$0xff]
      %v3450 = vld [vmem:[%s2654 + $0x10a] sm:$0xff]
      %v3451 = vld [vmem:[%s2654 + $0x112] sm:$0xff]
      %v3452 = vld [vmem:[%s2654 + $0x122] sm:$0xff]
      %v3453 = vld [vmem:[%s2654 + $0x12a] sm:$0xff]
      %v3454 = vld [vmem:[%s2654 + $0x13a] sm:$0xff]
      %v3455 = vld [vmem:[%s2654 + $0x142] sm:$0xff]
      %v3456 = vld [vmem:[%s2654 + $0x152] sm:$0xff]
      %v3457 = vld [vmem:[%s2654 + $0x15a] sm:$0xff]
      %v3458 = vld [vmem:[%s2654 + $0x16a] sm:$0xff]
      %v3459 = vld [vmem:[%s2654 + $0x172] sm:$0xff]
      %v3460 = vld [vmem:[%s2687 + $0x10] sm:$0xff]
      %v3462 = vsel %vm225, %v3428, 0
      %v3465 = vsel %vm225, %v3429, 0
      %v3468 = vsel %vm225, %v3430, 0
      %v3471 = vsel %vm225, %v3431, 0
      %v3474 = vsel %vm225, %v3432, 0
      %v3477 = vsel %vm225, %v3433, 0
      %v3480 = vsel %vm225, %v3434, 0
      %v3483 = vsel %vm225, %v3435, 0
      %v3486 = vsel %vm225, %v3436, 0
      %v3489 = vsel %vm225, %v3437, 0
      %v3492 = vsel %vm225, %v3438, 0
      %v3495 = vsel %vm225, %v3439, 0
      %v3498 = vsel %vm225, %v3440, 0
      %v3501 = vsel %vm225, %v3441, 0
      %v3504 = vsel %vm225, %v3442, 0
      %v3507 = vsel %vm225, %v3443, 0
      %v3510 = vsel %vm225, %v3444, 0
      %v3513 = vsel %vm225, %v3445, 0
      %v3516 = vsel %vm225, %v3446, 0
      %v3519 = vsel %vm225, %v3447, 0
      %v3522 = vsel %vm225, %v3448, 0
      %v3525 = vsel %vm225, %v3449, 0
      %v3528 = vsel %vm225, %v3450, 0
      %v3531 = vsel %vm225, %v3451, 0
      %v3534 = vsel %vm225, %v3452, 0
      %v3537 = vsel %vm225, %v3453, 0
      %v3540 = vsel %vm225, %v3454, 0
      %v3543 = vsel %vm225, %v3455, 0
      %v3546 = vsel %vm225, %v3456, 0
      %v3549 = vsel %vm225, %v3457, 0
      %v3552 = vsel %vm225, %v3458, 0
      %v3555 = vsel %vm225, %v3459, 0
      %3557 = vmatprep.subr.mxu0 0.0
      %3558 = vmatpush1.msra.mxu0 %v3460
      %3559 = vmatprep.subr.mxu0 0.0
      %3560 = vmatpush1.msra.mxu0 0.0
      %3561 = vmatprep.subr.mxu0 0.0
      %3562 = vmatpush1.msra.mxu0 0.0
      %3563 = vmatprep.subr.mxu0 0.0
      %3564 = vmatpush1.msra.mxu0 0.0
      %3565 = vmatprep.subr.mxu0 0.0
      %3566 = vmatpush1.msra.mxu0 0.0
      %3567 = vmatprep.subr.mxu0 0.0
      %3568 = vmatpush1.msra.mxu0 0.0
      %3569 = vmatprep.subr.mxu0 0.0
      %3570 = vmatpush1.msra.mxu0 0.0
      %3571 = vmatprep.subr.mxu0 0.0
      %3572 = vmatpush1.msra.mxu0 0.0
      %3573 = vmatprep.subr.mxu0 0.0
      %3574 = vmatpush1.msra.mxu0 0.0
      %3575 = vmatprep.subr.mxu0 0.0
      %3576 = vmatpush1.msra.mxu0 0.0
      %3577 = vmatprep.subr.mxu0 0.0
      %3578 = vmatpush1.msra.mxu0 0.0
      %3579 = vmatprep.subr.mxu0 0.0
      %3580 = vmatpush1.msra.mxu0 0.0
      %3581 = vmatprep.subr.mxu0 0.0
      %3582 = vmatpush1.msra.mxu0 0.0
      %3583 = vmatprep.subr.mxu0 0.0
      %3584 = vmatpush1.msra.mxu0 0.0
      %3585 = vmatprep.subr.mxu0 0.0
      %3586 = vmatpush1.msra.mxu0 0.0
      %3587 = vmatprep.subr.mxu0 0.0
      %3588 = vmatpush1.msra.mxu0 0.0
      %3589 = vmatprep.subr.mxu0 0.0
      %3590 = vmatpush1.msra.mxu0 0.0
      %3591 = vmatprep.subr.mxu0 0.0
      %3592 = vmatpush1.msra.mxu0 0.0
      %3593 = vmatprep.subr.mxu0 0.0
      %3594 = vmatpush1.msra.mxu0 0.0
      %3595 = vmatprep.subr.mxu0 0.0
      %3596 = vmatpush1.msra.mxu0 0.0
      %3597 = vmatprep.subr.mxu0 0.0
      %3598 = vmatpush1.msra.mxu0 0.0
      %3599 = vmatprep.subr.mxu0 0.0
      %3600 = vmatpush1.msra.mxu0 0.0
      %3601 = vmatprep.subr.mxu0 0.0
      %3602 = vmatpush1.msra.mxu0 0.0
      %3603 = vmatprep.subr.mxu0 0.0
      %3604 = vmatpush1.msra.mxu0 0.0
      %3605 = vmatprep.subr.mxu0 0.0
      %3606 = vmatpush1.msra.mxu0 0.0
      %3607 = vmatprep.subr.mxu0 0.0
      %3608 = vmatpush1.msra.mxu0 0.0
      %3609 = vmatprep.subr.mxu0 0.0
      %3610 = vmatpush1.msra.mxu0 0.0
      %3611 = vmatprep.subr.mxu0 0.0
      %3612 = vmatpush1.msra.mxu0 0.0
      %3613 = vmatprep.subr.mxu0 0.0
      %3614 = vmatpush1.msra.mxu0 0.0
      %3615 = vmatprep.subr.mxu0 0.0
      %3616 = vmatpush1.msra.mxu0 0.0
      %3617 = vmatprep.subr.mxu0 0.0
      %3618 = vmatpush1.msra.mxu0 0.0
      %3619 = vmatprep.subr.mxu0 0.0
      %3620 = vmatpush1.msra.mxu0 0.0
      %3621 = vmatprep.mubr.f32.mxu0 0.0
      %3622 = vmatmul.mubr.f32.gmra.mrb[0].mxu0 %v3462
      %v3623 = vpop.f32.mrb[0].mxu0
      %v3624 = vadd.f32 0.0, %v3623
      %v3625 = vpop.f32.mrb[0].mxu0
      %3626 = vmatprep.mubr.f32.mxu0 0.0
      %3627 = vmatmul.mubr.f32.gmra.mrb[0].mxu0 %v3465
      %v3628 = vpop.f32.mrb[0].mxu0
      %v3629 = vadd.f32 0.0, %v3628
      %v3630 = vpop.f32.mrb[0].mxu0
      %3631 = vmatprep.mubr.f32.mxu0 0.0
      %3632 = vmatmul.mubr.f32.gmra.mrb[0].mxu0 %v3468
      %v3633 = vpop.f32.mrb[0].mxu0
      %v3634 = vadd.f32 0.0, %v3633
      %v3635 = vpop.f32.mrb[0].mxu0
      %3636 = vmatprep.mubr.f32.mxu0 0.0
      %3637 = vmatmul.mubr.f32.gmra.mrb[0].mxu0 %v3471
      %v3638 = vpop.f32.mrb[0].mxu0
      %v3639 = vadd.f32 0.0, %v3638
      %v3640 = vpop.f32.mrb[0].mxu0
      %3641 = vmatprep.mubr.f32.mxu0 0.0
      %3642 = vmatmul.mubr.f32.gmra.mrb[0].mxu0 %v3474
      %v3643 = vpop.f32.mrb[0].mxu0
      %v3644 = vadd.f32 0.0, %v3643
      %v3645 = vpop.f32.mrb[0].mxu0
      %3646 = vmatprep.mubr.f32.mxu0 0.0
      %3647 = vmatmul.mubr.f32.gmra.mrb[0].mxu0 %v3477
      %v3648 = vpop.f32.mrb[0].mxu0
      %v3649 = vadd.f32 0.0, %v3648
      %v3650 = vpop.f32.mrb[0].mxu0
      %3651 = vmatprep.mubr.f32.mxu0 0.0
      %3652 = vmatmul.mubr.f32.gmra.mrb[0].mxu0 %v3480
      %v3653 = vpop.f32.mrb[0].mxu0
      %v3654 = vadd.f32 0.0, %v3653
      %v3655 = vpop.f32.mrb[0].mxu0
      %3656 = vmatprep.mubr.f32.mxu0 0.0
      %3657 = vmatmul.mubr.f32.gmra.mrb[0].mxu0 %v3483
      %v3658 = vpop.f32.mrb[0].mxu0
      %v3659 = vadd.f32 0.0, %v3658
      %v3660 = vpop.f32.mrb[0].mxu0
      %3661 = vmatprep.mubr.f32.mxu0 0.0
      %3662 = vmatmul.mubr.f32.gmra.mrb[0].mxu0 %v3486
      %v3663 = vpop.f32.mrb[0].mxu0
      %v3664 = vadd.f32 0.0, %v3663
      %v3665 = vpop.f32.mrb[0].mxu0
      %3666 = vmatprep.mubr.f32.mxu0 0.0
      %3667 = vmatmul.mubr.f32.gmra.mrb[0].mxu0 %v3489
      %v3668 = vpop.f32.mrb[0].mxu0
      %v3669 = vadd.f32 0.0, %v3668
      %v3670 = vpop.f32.mrb[0].mxu0
      %3671 = vmatprep.mubr.f32.mxu0 0.0
      %3672 = vmatmul.mubr.f32.gmra.mrb[0].mxu0 %v3492
      %v3673 = vpop.f32.mrb[0].mxu0
      %v3674 = vadd.f32 0.0, %v3673
      %v3675 = vpop.f32.mrb[0].mxu0
      %3676 = vmatprep.mubr.f32.mxu0 0.0
      %3677 = vmatmul.mubr.f32.gmra.mrb[0].mxu0 %v3495
      %v3678 = vpop.f32.mrb[0].mxu0
      %v3679 = vadd.f32 0.0, %v3678
      %v3680 = vpop.f32.mrb[0].mxu0
      %3681 = vmatprep.mubr.f32.mxu0 0.0
      %3682 = vmatmul.mubr.f32.gmra.mrb[0].mxu0 %v3498
      %v3683 = vpop.f32.mrb[0].mxu0
      %v3684 = vadd.f32 0.0, %v3683
      %v3685 = vpop.f32.mrb[0].mxu0
      %3686 = vmatprep.mubr.f32.mxu0 0.0
      %3687 = vmatmul.mubr.f32.gmra.mrb[0].mxu0 %v3501
      %v3688 = vpop.f32.mrb[0].mxu0
      %v3689 = vadd.f32 0.0, %v3688
      %v3690 = vpop.f32.mrb[0].mxu0
      %3691 = vmatprep.mubr.f32.mxu0 0.0
      %3692 = vmatmul.mubr.f32.gmra.mrb[0].mxu0 %v3504
      %v3693 = vpop.f32.mrb[0].mxu0
      %v3694 = vadd.f32 0.0, %v3693
      %v3695 = vpop.f32.mrb[0].mxu0
      %3696 = vmatprep.mubr.f32.mxu0 0.0
      %3697 = vmatmul.mubr.f32.gmra.mrb[0].mxu0 %v3507
      %v3698 = vpop.f32.mrb[0].mxu0
      %v3699 = vadd.f32 0.0, %v3698
      %v3700 = vpop.f32.mrb[0].mxu0
      %3701 = vmatprep.mubr.f32.mxu0 0.0
      %3702 = vmatmul.mubr.f32.gmra.mrb[0].mxu0 %v3510
      %v3703 = vpop.f32.mrb[0].mxu0
      %v3704 = vadd.f32 0.0, %v3703
      %v3705 = vpop.f32.mrb[0].mxu0
      %3706 = vmatprep.mubr.f32.mxu0 0.0
      %3707 = vmatmul.mubr.f32.gmra.mrb[0].mxu0 %v3513
      %v3708 = vpop.f32.mrb[0].mxu0
      %v3709 = vadd.f32 0.0, %v3708
      %v3710 = vpop.f32.mrb[0].mxu0
      %3711 = vmatprep.mubr.f32.mxu0 0.0
      %3712 = vmatmul.mubr.f32.gmra.mrb[0].mxu0 %v3516
      %v3713 = vpop.f32.mrb[0].mxu0
      %v3714 = vadd.f32 0.0, %v3713
      %v3715 = vpop.f32.mrb[0].mxu0
      %3716 = vmatprep.mubr.f32.mxu0 0.0
      %3717 = vmatmul.mubr.f32.gmra.mrb[0].mxu0 %v3519
      %v3718 = vpop.f32.mrb[0].mxu0
      %v3719 = vadd.f32 0.0, %v3718
      %v3720 = vpop.f32.mrb[0].mxu0
      %3721 = vmatprep.mubr.f32.mxu0 0.0
      %3722 = vmatmul.mubr.f32.gmra.mrb[0].mxu0 %v3522
      %v3723 = vpop.f32.mrb[0].mxu0
      %v3724 = vadd.f32 0.0, %v3723
      %v3725 = vpop.f32.mrb[0].mxu0
      %3726 = vmatprep.mubr.f32.mxu0 0.0
      %3727 = vmatmul.mubr.f32.gmra.mrb[0].mxu0 %v3525
      %v3728 = vpop.f32.mrb[0].mxu0
      %v3729 = vadd.f32 0.0, %v3728
      %v3730 = vpop.f32.mrb[0].mxu0
      %3731 = vmatprep.mubr.f32.mxu0 0.0
      %3732 = vmatmul.mubr.f32.gmra.mrb[0].mxu0 %v3528
      %v3733 = vpop.f32.mrb[0].mxu0
      %v3734 = vadd.f32 0.0, %v3733
      %v3735 = vpop.f32.mrb[0].mxu0
      %3736 = vmatprep.mubr.f32.mxu0 0.0
      %3737 = vmatmul.mubr.f32.gmra.mrb[0].mxu0 %v3531
      %v3738 = vpop.f32.mrb[0].mxu0
      %v3739 = vadd.f32 0.0, %v3738
      %v3740 = vpop.f32.mrb[0].mxu0
      %3741 = vmatprep.mubr.f32.mxu0 0.0
      %3742 = vmatmul.mubr.f32.gmra.mrb[0].mxu0 %v3534
      %v3743 = vpop.f32.mrb[0].mxu0
      %v3744 = vadd.f32 0.0, %v3743
      %v3745 = vpop.f32.mrb[0].mxu0
      %3746 = vmatprep.mubr.f32.mxu0 0.0
      %3747 = vmatmul.mubr.f32.gmra.mrb[0].mxu0 %v3537
      %v3748 = vpop.f32.mrb[0].mxu0
      %v3749 = vadd.f32 0.0, %v3748
      %v3750 = vpop.f32.mrb[0].mxu0
      %3751 = vmatprep.mubr.f32.mxu0 0.0
      %3752 = vmatmul.mubr.f32.gmra.mrb[0].mxu0 %v3540
      %v3753 = vpop.f32.mrb[0].mxu0
      %v3754 = vadd.f32 0.0, %v3753
      %v3755 = vpop.f32.mrb[0].mxu0
      %3756 = vmatprep.mubr.f32.mxu0 0.0
      %3757 = vmatmul.mubr.f32.gmra.mrb[0].mxu0 %v3543
      %v3758 = vpop.f32.mrb[0].mxu0
      %v3759 = vadd.f32 0.0, %v3758
      %v3760 = vpop.f32.mrb[0].mxu0
      %3761 = vmatprep.mubr.f32.mxu0 0.0
      %3762 = vmatmul.mubr.f32.gmra.mrb[0].mxu0 %v3546
      %v3763 = vpop.f32.mrb[0].mxu0
      %v3764 = vadd.f32 0.0, %v3763
      %v3765 = vpop.f32.mrb[0].mxu0
      %3766 = vmatprep.mubr.f32.mxu0 0.0
      %3767 = vmatmul.mubr.f32.gmra.mrb[0].mxu0 %v3549
      %v3768 = vpop.f32.mrb[0].mxu0
      %v3769 = vadd.f32 0.0, %v3768
      %v3770 = vpop.f32.mrb[0].mxu0
      %3771 = vmatprep.mubr.f32.mxu0 0.0
      %3772 = vmatmul.mubr.f32.gmra.mrb[0].mxu0 %v3552
      %v3773 = vpop.f32.mrb[0].mxu0
      %v3774 = vadd.f32 0.0, %v3773
      %v3775 = vpop.f32.mrb[0].mxu0
      %3776 = vmatprep.mubr.f32.mxu0 0.0
      %3777 = vmatmul.mubr.f32.gmra.mrb[0].mxu0 %v3555
      %v3778 = vpop.f32.mrb[0].mxu0
      %v3779 = vadd.f32 0.0, %v3778
      %v3780 = vpop.f32.mrb[0].mxu0
      %3781 = vdwg.mxu0
      %v3782 = vadd.f32 %v3396, %v3624
      %v3783 = vadd.f32 %v3397, %v3629
      %v3784 = vadd.f32 %v3398, %v3634
      %v3785 = vadd.f32 %v3399, %v3639
      %v3786 = vadd.f32 %v3400, %v3644
      %v3787 = vadd.f32 %v3401, %v3649
      %v3788 = vadd.f32 %v3402, %v3654
      %v3789 = vadd.f32 %v3403, %v3659
      %v3790 = vadd.f32 %v3404, %v3664
      %v3791 = vadd.f32 %v3405, %v3669
      %v3792 = vadd.f32 %v3406, %v3674
      %v3793 = vadd.f32 %v3407, %v3679
      %v3794 = vadd.f32 %v3408, %v3684
      %v3795 = vadd.f32 %v3409, %v3689
      %v3796 = vadd.f32 %v3410, %v3694
      %v3797 = vadd.f32 %v3411, %v3699
      %v3798 = vadd.f32 %v3412, %v3704
      %v3799 = vadd.f32 %v3413, %v3709
      %v3800 = vadd.f32 %v3414, %v3714
      %v3801 = vadd.f32 %v3415, %v3719
      %v3802 = vadd.f32 %v3416, %v3724
      %v3803 = vadd.f32 %v3417, %v3729
      %v3804 = vadd.f32 %v3418, %v3734
      %v3805 = vadd.f32 %v3419, %v3739
      %v3806 = vadd.f32 %v3420, %v3744
      %v3807 = vadd.f32 %v3421, %v3749
      %v3808 = vadd.f32 %v3422, %v3754
      %v3809 = vadd.f32 %v3423, %v3759
      %v3810 = vadd.f32 %v3424, %v3764
      %v3811 = vadd.f32 %v3425, %v3769
      %v3812 = vadd.f32 %v3426, %v3774
      %v3813 = vadd.f32 %v3427, %v3779
      %v3814 = vld [vmem:[%s3] sm:$0x1]
      %v3815 = vld [vmem:[%s3 + $0x1] sm:$0x1]
      %v3816 = vld [vmem:[%s3 + $0x2] sm:$0x1]
      %v3817 = vsel %vm225, %v3782, 0.0
      %v3818 = vsel %vm225, %v3783, 0.0
      %v3819 = vadd.f32 %v3817, %v3818
      %v3820 = vsel %vm225, %v3784, 0.0
      %v3821 = vadd.f32 %v3819, %v3820
      %v3822 = vsel %vm225, %v3785, 0.0
      %v3823 = vadd.f32 %v3821, %v3822
      %v3824 = vsel %vm225, %v3786, 0.0
      %v3825 = vadd.f32 %v3823, %v3824
      %v3826 = vsel %vm225, %v3787, 0.0
      %v3827 = vadd.f32 %v3825, %v3826
      %v3828 = vsel %vm225, %v3788, 0.0
      %v3829 = vadd.f32 %v3827, %v3828
      %v3830 = vsel %vm225, %v3789, 0.0
      %v3831 = vadd.f32 %v3829, %v3830
      %v3832 = vsel %vm225, %v3790, 0.0
      %v3833 = vadd.f32 %v3831, %v3832
      %v3834 = vsel %vm225, %v3791, 0.0
      %v3835 = vadd.f32 %v3833, %v3834
      %v3836 = vsel %vm225, %v3792, 0.0
      %v3837 = vadd.f32 %v3835, %v3836
      %v3838 = vsel %vm225, %v3793, 0.0
      %v3839 = vadd.f32 %v3837, %v3838
      %v3840 = vsel %vm225, %v3794, 0.0
      %v3841 = vadd.f32 %v3839, %v3840
      %v3842 = vsel %vm225, %v3795, 0.0
      %v3843 = vadd.f32 %v3841, %v3842
      %v3844 = vsel %vm225, %v3796, 0.0
      %v3845 = vadd.f32 %v3843, %v3844
      %v3846 = vsel %vm225, %v3797, 0.0
      %v3847 = vadd.f32 %v3845, %v3846
      %v3848 = vsel %vm225, %v3798, 0.0
      %v3849 = vadd.f32 %v3847, %v3848
      %v3850 = vsel %vm225, %v3799, 0.0
      %v3851 = vadd.f32 %v3849, %v3850
      %v3852 = vsel %vm225, %v3800, 0.0
      %v3853 = vadd.f32 %v3851, %v3852
      %v3854 = vsel %vm225, %v3801, 0.0
      %v3855 = vadd.f32 %v3853, %v3854
      %v3856 = vsel %vm225, %v3802, 0.0
      %v3857 = vadd.f32 %v3855, %v3856
      %v3858 = vsel %vm225, %v3803, 0.0
      %v3859 = vadd.f32 %v3857, %v3858
      %v3860 = vsel %vm225, %v3804, 0.0
      %v3861 = vadd.f32 %v3859, %v3860
      %v3862 = vsel %vm225, %v3805, 0.0
      %v3863 = vadd.f32 %v3861, %v3862
      %v3864 = vsel %vm225, %v3806, 0.0
      %v3865 = vadd.f32 %v3863, %v3864
      %v3866 = vsel %vm225, %v3807, 0.0
      %v3867 = vadd.f32 %v3865, %v3866
      %v3868 = vsel %vm225, %v3808, 0.0
      %v3869 = vadd.f32 %v3867, %v3868
      %v3870 = vsel %vm225, %v3809, 0.0
      %v3871 = vadd.f32 %v3869, %v3870
      %v3872 = vsel %vm225, %v3810, 0.0
      %v3873 = vadd.f32 %v3871, %v3872
      %v3874 = vsel %vm225, %v3811, 0.0
      %v3875 = vadd.f32 %v3873, %v3874
      %v3876 = vsel %vm225, %v3812, 0.0
      %v3877 = vadd.f32 %v3875, %v3876
      %v3878 = vsel %vm225, %v3813, 0.0
      %v3879 = vadd.f32 %v3877, %v3878
      %v3880 = vrot.slane %v3879, 4
      %v3881 = vadd.f32 %v3879, %v3880
      %v3882 = vrot.slane %v3881, 2
      %v3883 = vadd.f32 %v3881, %v3882
      %v3884 = vrot.slane %v3883, 1
      %v3885 = vadd.f32 %v3883, %v3884
      %v3886 = vmul.f32 %v3782, %v3782
      %v3887 = vmul.f32 %v3783, %v3783
      %v3888 = vmul.f32 %v3784, %v3784
      %v3889 = vmul.f32 %v3785, %v3785
      %v3890 = vmul.f32 %v3786, %v3786
      %v3891 = vmul.f32 %v3787, %v3787
      %v3892 = vmul.f32 %v3788, %v3788
      %v3893 = vmul.f32 %v3789, %v3789
      %v3894 = vmul.f32 %v3790, %v3790
      %v3895 = vmul.f32 %v3791, %v3791
      %v3896 = vmul.f32 %v3792, %v3792
      %v3897 = vmul.f32 %v3793, %v3793
      %v3898 = vmul.f32 %v3794, %v3794
      %v3899 = vmul.f32 %v3795, %v3795
      %v3900 = vmul.f32 %v3796, %v3796
      %v3901 = vmul.f32 %v3797, %v3797
      %v3902 = vmul.f32 %v3798, %v3798
      %v3903 = vmul.f32 %v3799, %v3799
      %v3904 = vmul.f32 %v3800, %v3800
      %v3905 = vmul.f32 %v3801, %v3801
      %v3906 = vmul.f32 %v3802, %v3802
      %v3907 = vmul.f32 %v3803, %v3803
      %v3908 = vmul.f32 %v3804, %v3804
      %v3909 = vmul.f32 %v3805, %v3805
      %v3910 = vmul.f32 %v3806, %v3806
      %v3911 = vmul.f32 %v3807, %v3807
      %v3912 = vmul.f32 %v3808, %v3808
      %v3913 = vmul.f32 %v3809, %v3809
      %v3914 = vmul.f32 %v3810, %v3810
      %v3915 = vmul.f32 %v3811, %v3811
      %v3916 = vmul.f32 %v3812, %v3812
      %v3917 = vmul.f32 %v3813, %v3813
      %v3918 = vsel %vm225, %v3886, 0.0
      %v3919 = vsel %vm225, %v3887, 0.0
      %v3920 = vadd.f32 %v3918, %v3919
      %v3921 = vsel %vm225, %v3888, 0.0
      %v3922 = vadd.f32 %v3920, %v3921
      %v3923 = vsel %vm225, %v3889, 0.0
      %v3924 = vadd.f32 %v3922, %v3923
      %v3925 = vsel %vm225, %v3890, 0.0
      %v3926 = vadd.f32 %v3924, %v3925
      %v3927 = vsel %vm225, %v3891, 0.0
      %v3928 = vadd.f32 %v3926, %v3927
      %v3929 = vsel %vm225, %v3892, 0.0
      %v3930 = vadd.f32 %v3928, %v3929
      %v3931 = vsel %vm225, %v3893, 0.0
      %v3932 = vadd.f32 %v3930, %v3931
      %v3933 = vsel %vm225, %v3894, 0.0
      %v3934 = vadd.f32 %v3932, %v3933
      %v3935 = vsel %vm225, %v3895, 0.0
      %v3936 = vadd.f32 %v3934, %v3935
      %v3937 = vsel %vm225, %v3896, 0.0
      %v3938 = vadd.f32 %v3936, %v3937
      %v3939 = vsel %vm225, %v3897, 0.0
      %v3940 = vadd.f32 %v3938, %v3939
      %v3941 = vsel %vm225, %v3898, 0.0
      %v3942 = vadd.f32 %v3940, %v3941
      %v3943 = vsel %vm225, %v3899, 0.0
      %v3944 = vadd.f32 %v3942, %v3943
      %v3945 = vsel %vm225, %v3900, 0.0
      %v3946 = vadd.f32 %v3944, %v3945
      %v3947 = vsel %vm225, %v3901, 0.0
      %v3948 = vadd.f32 %v3946, %v3947
      %v3949 = vsel %vm225, %v3902, 0.0
      %v3950 = vadd.f32 %v3948, %v3949
      %v3951 = vsel %vm225, %v3903, 0.0
      %v3952 = vadd.f32 %v3950, %v3951
      %v3953 = vsel %vm225, %v3904, 0.0
      %v3954 = vadd.f32 %v3952, %v3953
      %v3955 = vsel %vm225, %v3905, 0.0
      %v3956 = vadd.f32 %v3954, %v3955
      %v3957 = vsel %vm225, %v3906, 0.0
      %v3958 = vadd.f32 %v3956, %v3957
      %v3959 = vsel %vm225, %v3907, 0.0
      %v3960 = vadd.f32 %v3958, %v3959
      %v3961 = vsel %vm225, %v3908, 0.0
      %v3962 = vadd.f32 %v3960, %v3961
      %v3963 = vsel %vm225, %v3909, 0.0
      %v3964 = vadd.f32 %v3962, %v3963
      %v3965 = vsel %vm225, %v3910, 0.0
      %v3966 = vadd.f32 %v3964, %v3965
      %v3967 = vsel %vm225, %v3911, 0.0
      %v3968 = vadd.f32 %v3966, %v3967
      %v3969 = vsel %vm225, %v3912, 0.0
      %v3970 = vadd.f32 %v3968, %v3969
      %v3971 = vsel %vm225, %v3913, 0.0
      %v3972 = vadd.f32 %v3970, %v3971
      %v3973 = vsel %vm225, %v3914, 0.0
      %v3974 = vadd.f32 %v3972, %v3973
      %v3975 = vsel %vm225, %v3915, 0.0
      %v3976 = vadd.f32 %v3974, %v3975
      %v3977 = vsel %vm225, %v3916, 0.0
      %v3978 = vadd.f32 %v3976, %v3977
      %v3979 = vsel %vm225, %v3917, 0.0
      %v3980 = vadd.f32 %v3978, %v3979
      %v3981 = vrot.slane %v3980, 4
      %v3982 = vadd.f32 %v3980, %v3981
      %v3983 = vrot.slane %v3982, 2
      %v3984 = vadd.f32 %v3982, %v3983
      %v3985 = vrot.slane %v3984, 1
      %v3986 = vadd.f32 %v3984, %v3985
      %v3987 = vmul.f32 %v3814, 256.0
      %v3988 = vadd.f32 %v3885, %v3987
      %v3989 = vmul.f32 %v3814, 2.0
      %v3990 = vmul.f32 %v3989, %v3885
      %v3991 = vadd.f32 %v3986, %v3990
      %v3992 = vmul.f32 %v3987, %v3814
      %v3993 = vadd.f32 %v3991, %v3992
      %v3995 = vsel %vm225, %v3988, 0
      %3997 = vmatprep.subr.mxu0 0.0
      %3998 = vmatpush1.msra.mxu0 %v335
      %3999 = vmatprep.subr.mxu0 0.0
      %4000 = vmatpush1.msra.mxu0 0.0
      %4001 = vmatprep.subr.mxu0 0.0
      %4002 = vmatpush1.msra.mxu0 0.0
      %4003 = vmatprep.subr.mxu0 0.0
      %4004 = vmatpush1.msra.mxu0 0.0
      %4005 = vmatprep.subr.mxu0 0.0
      %4006 = vmatpush1.msra.mxu0 0.0
      %4007 = vmatprep.subr.mxu0 0.0
      %4008 = vmatpush1.msra.mxu0 0.0
      %4009 = vmatprep.subr.mxu0 0.0
      %4010 = vmatpush1.msra.mxu0 0.0
      %4011 = vmatprep.subr.mxu0 0.0
      %4012 = vmatpush1.msra.mxu0 0.0
      %4013 = vmatprep.subr.mxu0 0.0
      %4014 = vmatpush1.msra.mxu0 0.0
      %4015 = vmatprep.subr.mxu0 0.0
      %4016 = vmatpush1.msra.mxu0 0.0
      %4017 = vmatprep.subr.mxu0 0.0
      %4018 = vmatpush1.msra.mxu0 0.0
      %4019 = vmatprep.subr.mxu0 0.0
      %4020 = vmatpush1.msra.mxu0 0.0
      %4021 = vmatprep.subr.mxu0 0.0
      %4022 = vmatpush1.msra.mxu0 0.0
      %4023 = vmatprep.subr.mxu0 0.0
      %4024 = vmatpush1.msra.mxu0 0.0
      %4025 = vmatprep.subr.mxu0 0.0
      %4026 = vmatpush1.msra.mxu0 0.0
      %4027 = vmatprep.subr.mxu0 0.0
      %4028 = vmatpush1.msra.mxu0 0.0
      %4029 = vmatprep.subr.mxu0 0.0
      %4030 = vmatpush1.msra.mxu0 0.0
      %4031 = vmatprep.subr.mxu0 0.0
      %4032 = vmatpush1.msra.mxu0 0.0
      %4033 = vmatprep.subr.mxu0 0.0
      %4034 = vmatpush1.msra.mxu0 0.0
      %4035 = vmatprep.subr.mxu0 0.0
      %4036 = vmatpush1.msra.mxu0 0.0
      %4037 = vmatprep.subr.mxu0 0.0
      %4038 = vmatpush1.msra.mxu0 0.0
      %4039 = vmatprep.subr.mxu0 0.0
      %4040 = vmatpush1.msra.mxu0 0.0
      %4041 = vmatprep.subr.mxu0 0.0
      %4042 = vmatpush1.msra.mxu0 0.0
      %4043 = vmatprep.subr.mxu0 0.0
      %4044 = vmatpush1.msra.mxu0 0.0
      %4045 = vmatprep.subr.mxu0 0.0
      %4046 = vmatpush1.msra.mxu0 0.0
      %4047 = vmatprep.subr.mxu0 0.0
      %4048 = vmatpush1.msra.mxu0 0.0
      %4049 = vmatprep.subr.mxu0 0.0
      %4050 = vmatpush1.msra.mxu0 0.0
      %4051 = vmatprep.subr.mxu0 0.0
      %4052 = vmatpush1.msra.mxu0 0.0
      %4053 = vmatprep.subr.mxu0 0.0
      %4054 = vmatpush1.msra.mxu0 0.0
      %4055 = vmatprep.subr.mxu0 0.0
      %4056 = vmatpush1.msra.mxu0 0.0
      %4057 = vmatprep.subr.mxu0 0.0
      %4058 = vmatpush1.msra.mxu0 0.0
      %4059 = vmatprep.subr.mxu0 0.0
      %4060 = vmatpush1.msra.mxu0 0.0
      %4061 = vmatprep.mubr.f32.mxu0 0.0
      %4062 = vmatmul.mubr.f32.gmra.mrb[0].mxu0 %v3995
      %v4063 = vpop.f32.mrb[0].mxu0
      %v4064 = vadd.f32 0.0, %v4063
      %v4065 = vpop.f32.mrb[0].mxu0
      %4066 = vdwg.mxu0
      %v4067 = vmul.f32 %v4064, 0.00048828125
      %v4069 = vsel %vm225, %v3993, 0
      %4071 = vmatprep.subr.mxu0 0.0
      %4072 = vmatpush1.msra.mxu0 %v335
      %4073 = vmatprep.subr.mxu0 0.0
      %4074 = vmatpush1.msra.mxu0 0.0
      %4075 = vmatprep.subr.mxu0 0.0
      %4076 = vmatpush1.msra.mxu0 0.0
      %4077 = vmatprep.subr.mxu0 0.0
      %4078 = vmatpush1.msra.mxu0 0.0
      %4079 = vmatprep.subr.mxu0 0.0
      %4080 = vmatpush1.msra.mxu0 0.0
      %4081 = vmatprep.subr.mxu0 0.0
      %4082 = vmatpush1.msra.mxu0 0.0
      %4083 = vmatprep.subr.mxu0 0.0
      %4084 = vmatpush1.msra.mxu0 0.0
      %4085 = vmatprep.subr.mxu0 0.0
      %4086 = vmatpush1.msra.mxu0 0.0
      %4087 = vmatprep.subr.mxu0 0.0
      %4088 = vmatpush1.msra.mxu0 0.0
      %4089 = vmatprep.subr.mxu0 0.0
      %4090 = vmatpush1.msra.mxu0 0.0
      %4091 = vmatprep.subr.mxu0 0.0
      %4092 = vmatpush1.msra.mxu0 0.0
      %4093 = vmatprep.subr.mxu0 0.0
      %4094 = vmatpush1.msra.mxu0 0.0
      %4095 = vmatprep.subr.mxu0 0.0
      %4096 = vmatpush1.msra.mxu0 0.0
      %4097 = vmatprep.subr.mxu0 0.0
      %4098 = vmatpush1.msra.mxu0 0.0
      %4099 = vmatprep.subr.mxu0 0.0
      %4100 = vmatpush1.msra.mxu0 0.0
      %4101 = vmatprep.subr.mxu0 0.0
      %4102 = vmatpush1.msra.mxu0 0.0
      %4103 = vmatprep.subr.mxu0 0.0
      %4104 = vmatpush1.msra.mxu0 0.0
      %4105 = vmatprep.subr.mxu0 0.0
      %4106 = vmatpush1.msra.mxu0 0.0
      %4107 = vmatprep.subr.mxu0 0.0
      %4108 = vmatpush1.msra.mxu0 0.0
      %4109 = vmatprep.subr.mxu0 0.0
      %4110 = vmatpush1.msra.mxu0 0.0
      %4111 = vmatprep.subr.mxu0 0.0
      %4112 = vmatpush1.msra.mxu0 0.0
      %4113 = vmatprep.subr.mxu0 0.0
      %4114 = vmatpush1.msra.mxu0 0.0
      %4115 = vmatprep.subr.mxu0 0.0
      %4116 = vmatpush1.msra.mxu0 0.0
      %4117 = vmatprep.subr.mxu0 0.0
      %4118 = vmatpush1.msra.mxu0 0.0
      %4119 = vmatprep.subr.mxu0 0.0
      %4120 = vmatpush1.msra.mxu0 0.0
      %4121 = vmatprep.subr.mxu0 0.0
      %4122 = vmatpush1.msra.mxu0 0.0
      %4123 = vmatprep.subr.mxu0 0.0
      %4124 = vmatpush1.msra.mxu0 0.0
      %4125 = vmatprep.subr.mxu0 0.0
      %4126 = vmatpush1.msra.mxu0 0.0
      %4127 = vmatprep.subr.mxu0 0.0
      %4128 = vmatpush1.msra.mxu0 0.0
      %4129 = vmatprep.subr.mxu0 0.0
      %4130 = vmatpush1.msra.mxu0 0.0
      %4131 = vmatprep.subr.mxu0 0.0
      %4132 = vmatpush1.msra.mxu0 0.0
      %4133 = vmatprep.subr.mxu0 0.0
      %4134 = vmatpush1.msra.mxu0 0.0
      %4135 = vmatprep.mubr.f32.mxu0 0.0
      %4136 = vmatmul.mubr.f32.gmra.mrb[0].mxu0 %v4069
      %v4137 = vpop.f32.mrb[0].mxu0
      %v4138 = vadd.f32 0.0, %v4137
      %v4139 = vpop.f32.mrb[0].mxu0
      %4140 = vdwg.mxu0
      %v4141 = vmul.f32 %v4138, 0.00048828125
      %v4142 = vmul.f32 %v4067, %v4067
      %v4143 = vsub.f32 %v4141, %v4142
      %v4144 = vadd.f32 %v4143, 1e-05
      %v4145 = vrsqrt.pop %v4144
      %v4146 = vmul.f32 %v3815, %v4145
      %v4147 = vsub.f32 %v3814, %v4067
      %v4148 = vmul.f32 %v4147, %v4146
      %v4149 = vadd.f32 %v3816, %v4148
      %v4150 = vlaneseq
      %v4151 = vshrl.u32 %v4150, 7
      %v4152 = vsub.s32 0, %v4151
      %v4153 = vrot.slane %v4146, %v4152
      %v4154 = vmul.f32 %v3782, %v4153
      %v4155 = vmul.f32 %v3783, %v4153
      %v4156 = vmul.f32 %v3784, %v4153
      %v4157 = vmul.f32 %v3785, %v4153
      %v4158 = vmul.f32 %v3786, %v4153
      %v4159 = vmul.f32 %v3787, %v4153
      %v4160 = vmul.f32 %v3788, %v4153
      %v4161 = vmul.f32 %v3789, %v4153
      %v4162 = vmul.f32 %v3790, %v4153
      %v4163 = vmul.f32 %v3791, %v4153
      %v4164 = vmul.f32 %v3792, %v4153
      %v4165 = vmul.f32 %v3793, %v4153
      %v4166 = vmul.f32 %v3794, %v4153
      %v4167 = vmul.f32 %v3795, %v4153
      %v4168 = vmul.f32 %v3796, %v4153
      %v4169 = vmul.f32 %v3797, %v4153
      %v4170 = vmul.f32 %v3798, %v4153
      %v4171 = vmul.f32 %v3799, %v4153
      %v4172 = vmul.f32 %v3800, %v4153
      %v4173 = vmul.f32 %v3801, %v4153
      %v4174 = vmul.f32 %v3802, %v4153
      %v4175 = vmul.f32 %v3803, %v4153
      %v4176 = vmul.f32 %v3804, %v4153
      %v4177 = vmul.f32 %v3805, %v4153
      %v4178 = vmul.f32 %v3806, %v4153
      %v4179 = vmul.f32 %v3807, %v4153
      %v4180 = vmul.f32 %v3808, %v4153
      %v4181 = vmul.f32 %v3809, %v4153
      %v4182 = vmul.f32 %v3810, %v4153
      %v4183 = vmul.f32 %v3811, %v4153
      %v4184 = vmul.f32 %v3812, %v4153
      %v4185 = vmul.f32 %v3813, %v4153
      %v4186 = vlaneseq
      %v4187 = vshrl.u32 %v4186, 7
      %v4188 = vsub.s32 0, %v4187
      %v4189 = vrot.slane %v4149, %v4188
      %v4190 = vadd.f32 %v4154, %v4189
      %v4191 = vadd.f32 %v4155, %v4189
      %v4192 = vadd.f32 %v4156, %v4189
      %v4193 = vadd.f32 %v4157, %v4189
      %v4194 = vadd.f32 %v4158, %v4189
      %v4195 = vadd.f32 %v4159, %v4189
      %v4196 = vadd.f32 %v4160, %v4189
      %v4197 = vadd.f32 %v4161, %v4189
      %v4198 = vadd.f32 %v4162, %v4189
      %v4199 = vadd.f32 %v4163, %v4189
      %v4200 = vadd.f32 %v4164, %v4189
      %v4201 = vadd.f32 %v4165, %v4189
      %v4202 = vadd.f32 %v4166, %v4189
      %v4203 = vadd.f32 %v4167, %v4189
      %v4204 = vadd.f32 %v4168, %v4189
      %v4205 = vadd.f32 %v4169, %v4189
      %v4206 = vadd.f32 %v4170, %v4189
      %v4207 = vadd.f32 %v4171, %v4189
      %v4208 = vadd.f32 %v4172, %v4189
      %v4209 = vadd.f32 %v4173, %v4189
      %v4210 = vadd.f32 %v4174, %v4189
      %v4211 = vadd.f32 %v4175, %v4189
      %v4212 = vadd.f32 %v4176, %v4189
      %v4213 = vadd.f32 %v4177, %v4189
      %v4214 = vadd.f32 %v4178, %v4189
      %v4215 = vadd.f32 %v4179, %v4189
      %v4216 = vadd.f32 %v4180, %v4189
      %v4217 = vadd.f32 %v4181, %v4189
      %v4218 = vadd.f32 %v4182, %v4189
      %v4219 = vadd.f32 %v4183, %v4189
      %v4220 = vadd.f32 %v4184, %v4189
      %v4221 = vadd.f32 %v4185, %v4189
      %v4222 = vmax.f32 %v4190, 0.0
      %v4223 = vmax.f32 %v4191, 0.0
      %v4224 = vmax.f32 %v4192, 0.0
      %v4225 = vmax.f32 %v4193, 0.0
      %v4226 = vmax.f32 %v4194, 0.0
      %v4227 = vmax.f32 %v4195, 0.0
      %v4228 = vmax.f32 %v4196, 0.0
      %v4229 = vmax.f32 %v4197, 0.0
      %v4230 = vmax.f32 %v4198, 0.0
      %v4231 = vmax.f32 %v4199, 0.0
      %v4232 = vmax.f32 %v4200, 0.0
      %v4233 = vmax.f32 %v4201, 0.0
      %v4234 = vmax.f32 %v4202, 0.0
      %v4235 = vmax.f32 %v4203, 0.0
      %v4236 = vmax.f32 %v4204, 0.0
      %v4237 = vmax.f32 %v4205, 0.0
      %v4238 = vmax.f32 %v4206, 0.0
      %v4239 = vmax.f32 %v4207, 0.0
      %v4240 = vmax.f32 %v4208, 0.0
      %v4241 = vmax.f32 %v4209, 0.0
      %v4242 = vmax.f32 %v4210, 0.0
      %v4243 = vmax.f32 %v4211, 0.0
      %v4244 = vmax.f32 %v4212, 0.0
      %v4245 = vmax.f32 %v4213, 0.0
      %v4246 = vmax.f32 %v4214, 0.0
      %v4247 = vmax.f32 %v4215, 0.0
      %v4248 = vmax.f32 %v4216, 0.0
      %v4249 = vmax.f32 %v4217, 0.0
      %v4250 = vmax.f32 %v4218, 0.0
      %v4251 = vmax.f32 %v4219, 0.0
      %v4252 = vmax.f32 %v4220, 0.0
      %v4253 = vmax.f32 %v4221, 0.0
      %s4254 = scalar_lea.vmem [#allocation3], 24
      %4255 = vst.msk [vmem:[%s4254 + $0x1] sm:$0xff] %vm225, %v4222
      %4256 = vst.msk [vmem:[%s4254 + $0x9] sm:$0xff] %vm225, %v4223
      %4257 = vst.msk [vmem:[%s4254 + $0x19] sm:$0xff] %vm225, %v4224
      %4258 = vst.msk [vmem:[%s4254 + $0x21] sm:$0xff] %vm225, %v4225
      %4259 = vst.msk [vmem:[%s4254 + $0x31] sm:$0xff] %vm225, %v4226
      %4260 = vst.msk [vmem:[%s4254 + $0x39] sm:$0xff] %vm225, %v4227
      %4261 = vst.msk [vmem:[%s4254 + $0x49] sm:$0xff] %vm225, %v4228
      %4262 = vst.msk [vmem:[%s4254 + $0x51] sm:$0xff] %vm225, %v4229
      %4263 = vst.msk [vmem:[%s4254 + $0x61] sm:$0xff] %vm225, %v4230
      %4264 = vst.msk [vmem:[%s4254 + $0x69] sm:$0xff] %vm225, %v4231
      %4265 = vst.msk [vmem:[%s4254 + $0x79] sm:$0xff] %vm225, %v4232
      %4266 = vst.msk [vmem:[%s4254 + $0x81] sm:$0xff] %vm225, %v4233
      %4267 = vst.msk [vmem:[%s4254 + $0x91] sm:$0xff] %vm225, %v4234
      %4268 = vst.msk [vmem:[%s4254 + $0x99] sm:$0xff] %vm225, %v4235
      %4269 = vst.msk [vmem:[%s4254 + $0xa9] sm:$0xff] %vm225, %v4236
      %4270 = vst.msk [vmem:[%s4254 + $0xb1] sm:$0xff] %vm225, %v4237
      %4271 = vst.msk [vmem:[%s4254 + $0xc1] sm:$0xff] %vm225, %v4238
      %4272 = vst.msk [vmem:[%s4254 + $0xc9] sm:$0xff] %vm225, %v4239
      %4273 = vst.msk [vmem:[%s4254 + $0xd9] sm:$0xff] %vm225, %v4240
      %4274 = vst.msk [vmem:[%s4254 + $0xe1] sm:$0xff] %vm225, %v4241
      %4275 = vst.msk [vmem:[%s4254 + $0xf1] sm:$0xff] %vm225, %v4242
      %4276 = vst.msk [vmem:[%s4254 + $0xf9] sm:$0xff] %vm225, %v4243
      %4277 = vst.msk [vmem:[%s4254 + $0x109] sm:$0xff] %vm225, %v4244
      %4278 = vst.msk [vmem:[%s4254 + $0x111] sm:$0xff] %vm225, %v4245
      %4279 = vst.msk [vmem:[%s4254 + $0x121] sm:$0xff] %vm225, %v4246
      %4280 = vst.msk [vmem:[%s4254 + $0x129] sm:$0xff] %vm225, %v4247
      %4281 = vst.msk [vmem:[%s4254 + $0x139] sm:$0xff] %vm225, %v4248
      %4282 = vst.msk [vmem:[%s4254 + $0x141] sm:$0xff] %vm225, %v4249
      %4283 = vst.msk [vmem:[%s4254 + $0x151] sm:$0xff] %vm225, %v4250
      %4284 = vst.msk [vmem:[%s4254 + $0x159] sm:$0xff] %vm225, %v4251
      %4285 = vst.msk [vmem:[%s4254 + $0x169] sm:$0xff] %vm225, %v4252
      %4286 = vst.msk [vmem:[%s4254 + $0x171] sm:$0xff] %vm225, %v4253
      %v4287 = vld [vmem:[#allocation3] sm:$0xff]
      %v4288 = vld [vmem:[#allocation3 + $0x8] sm:$0xff]
      %v4289 = vld [vmem:[#allocation3 + $0x18] sm:$0xff]
      %v4290 = vld [vmem:[#allocation3 + $0x20] sm:$0xff]
      %v4291 = vld [vmem:[#allocation3 + $0x30] sm:$0xff]
      %v4292 = vld [vmem:[#allocation3 + $0x38] sm:$0xff]
      %v4293 = vld [vmem:[#allocation3 + $0x48] sm:$0xff]
      %v4294 = vld [vmem:[#allocation3 + $0x50] sm:$0xff]
      %v4295 = vld [vmem:[#allocation3 + $0x60] sm:$0xff]
      %v4296 = vld [vmem:[#allocation3 + $0x68] sm:$0xff]
      %v4297 = vld [vmem:[#allocation3 + $0x78] sm:$0xff]
      %v4298 = vld [vmem:[#allocation3 + $0x80] sm:$0xff]
      %v4299 = vld [vmem:[#allocation3 + $0x90] sm:$0xff]
      %v4300 = vld [vmem:[#allocation3 + $0x98] sm:$0xff]
      %v4301 = vld [vmem:[#allocation3 + $0xa8] sm:$0xff]
      %v4302 = vld [vmem:[#allocation3 + $0xb0] sm:$0xff]
      %v4303 = vld [vmem:[#allocation3 + $0xc0] sm:$0xff]
      %v4304 = vld [vmem:[#allocation3 + $0xc8] sm:$0xff]
      %v4305 = vld [vmem:[#allocation3 + $0xd8] sm:$0xff]
      %v4306 = vld [vmem:[#allocation3 + $0xe0] sm:$0xff]
      %v4307 = vld [vmem:[#allocation3 + $0xf0] sm:$0xff]
      %v4308 = vld [vmem:[#allocation3 + $0xf8] sm:$0xff]
      %v4309 = vld [vmem:[#allocation3 + $0x108] sm:$0xff]
      %v4310 = vld [vmem:[#allocation3 + $0x110] sm:$0xff]
      %v4311 = vld [vmem:[#allocation3 + $0x120] sm:$0xff]
      %v4312 = vld [vmem:[#allocation3 + $0x128] sm:$0xff]
      %v4313 = vld [vmem:[#allocation3 + $0x138] sm:$0xff]
      %v4314 = vld [vmem:[#allocation3 + $0x140] sm:$0xff]
      %v4315 = vld [vmem:[#allocation3 + $0x150] sm:$0xff]
      %v4316 = vld [vmem:[#allocation3 + $0x158] sm:$0xff]
      %v4317 = vld [vmem:[#allocation3 + $0x168] sm:$0xff]
      %v4318 = vld [vmem:[#allocation3 + $0x170] sm:$0xff]
      %v4319 = vld [vmem:[%s2] sm:$0xff]
      %v4320 = vld [vmem:[#allocation3 + $0x1] sm:$0xff]
      %v4321 = vld [vmem:[#allocation3 + $0x9] sm:$0xff]
      %v4322 = vld [vmem:[#allocation3 + $0x19] sm:$0xff]
      %v4323 = vld [vmem:[#allocation3 + $0x21] sm:$0xff]
      %v4324 = vld [vmem:[#allocation3 + $0x31] sm:$0xff]
      %v4325 = vld [vmem:[#allocation3 + $0x39] sm:$0xff]
      %v4326 = vld [vmem:[#allocation3 + $0x49] sm:$0xff]
      %v4327 = vld [vmem:[#allocation3 + $0x51] sm:$0xff]
      %v4328 = vld [vmem:[#allocation3 + $0x61] sm:$0xff]
      %v4329 = vld [vmem:[#allocation3 + $0x69] sm:$0xff]
      %v4330 = vld [vmem:[#allocation3 + $0x79] sm:$0xff]
      %v4331 = vld [vmem:[#allocation3 + $0x81] sm:$0xff]
      %v4332 = vld [vmem:[#allocation3 + $0x91] sm:$0xff]
      %v4333 = vld [vmem:[#allocation3 + $0x99] sm:$0xff]
      %v4334 = vld [vmem:[#allocation3 + $0xa9] sm:$0xff]
      %v4335 = vld [vmem:[#allocation3 + $0xb1] sm:$0xff]
      %v4336 = vld [vmem:[#allocation3 + $0xc1] sm:$0xff]
      %v4337 = vld [vmem:[#allocation3 + $0xc9] sm:$0xff]
      %v4338 = vld [vmem:[#allocation3 + $0xd9] sm:$0xff]
      %v4339 = vld [vmem:[#allocation3 + $0xe1] sm:$0xff]
      %v4340 = vld [vmem:[#allocation3 + $0xf1] sm:$0xff]
      %v4341 = vld [vmem:[#allocation3 + $0xf9] sm:$0xff]
      %v4342 = vld [vmem:[#allocation3 + $0x109] sm:$0xff]
      %v4343 = vld [vmem:[#allocation3 + $0x111] sm:$0xff]
      %v4344 = vld [vmem:[#allocation3 + $0x121] sm:$0xff]
      %v4345 = vld [vmem:[#allocation3 + $0x129] sm:$0xff]
      %v4346 = vld [vmem:[#allocation3 + $0x139] sm:$0xff]
      %v4347 = vld [vmem:[#allocation3 + $0x141] sm:$0xff]
      %v4348 = vld [vmem:[#allocation3 + $0x151] sm:$0xff]
      %v4349 = vld [vmem:[#allocation3 + $0x159] sm:$0xff]
      %v4350 = vld [vmem:[#allocation3 + $0x169] sm:$0xff]
      %v4351 = vld [vmem:[#allocation3 + $0x171] sm:$0xff]
      %v4352 = vld [vmem:[%s2 + $0x8] sm:$0xff]
      %v4354 = vsel %vm225, %v4320, 0
      %v4357 = vsel %vm225, %v4321, 0
      %v4360 = vsel %vm225, %v4322, 0
      %v4363 = vsel %vm225, %v4323, 0
      %v4366 = vsel %vm225, %v4324, 0
      %v4369 = vsel %vm225, %v4325, 0
      %v4372 = vsel %vm225, %v4326, 0
      %v4375 = vsel %vm225, %v4327, 0
      %v4378 = vsel %vm225, %v4328, 0
      %v4381 = vsel %vm225, %v4329, 0
      %v4384 = vsel %vm225, %v4330, 0
      %v4387 = vsel %vm225, %v4331, 0
      %v4390 = vsel %vm225, %v4332, 0
      %v4393 = vsel %vm225, %v4333, 0
      %v4396 = vsel %vm225, %v4334, 0
      %v4399 = vsel %vm225, %v4335, 0
      %v4402 = vsel %vm225, %v4336, 0
      %v4405 = vsel %vm225, %v4337, 0
      %v4408 = vsel %vm225, %v4338, 0
      %v4411 = vsel %vm225, %v4339, 0
      %v4414 = vsel %vm225, %v4340, 0
      %v4417 = vsel %vm225, %v4341, 0
      %v4420 = vsel %vm225, %v4342, 0
      %v4423 = vsel %vm225, %v4343, 0
      %v4426 = vsel %vm225, %v4344, 0
      %v4429 = vsel %vm225, %v4345, 0
      %v4432 = vsel %vm225, %v4346, 0
      %v4435 = vsel %vm225, %v4347, 0
      %v4438 = vsel %vm225, %v4348, 0
      %v4441 = vsel %vm225, %v4349, 0
      %v4444 = vsel %vm225, %v4350, 0
      %v4447 = vsel %vm225, %v4351, 0
      %4449 = vmatprep.subr.mxu0 0.0
      %4450 = vmatpush1.msra.mxu0 %v4352
      %4451 = vmatprep.subr.mxu0 0.0
      %4452 = vmatpush1.msra.mxu0 0.0
      %4453 = vmatprep.subr.mxu0 0.0
      %4454 = vmatpush1.msra.mxu0 0.0
      %4455 = vmatprep.subr.mxu0 0.0
      %4456 = vmatpush1.msra.mxu0 0.0
      %4457 = vmatprep.subr.mxu0 0.0
      %4458 = vmatpush1.msra.mxu0 0.0
      %4459 = vmatprep.subr.mxu0 0.0
      %4460 = vmatpush1.msra.mxu0 0.0
      %4461 = vmatprep.subr.mxu0 0.0
      %4462 = vmatpush1.msra.mxu0 0.0
      %4463 = vmatprep.subr.mxu0 0.0
      %4464 = vmatpush1.msra.mxu0 0.0
      %4465 = vmatprep.subr.mxu0 0.0
      %4466 = vmatpush1.msra.mxu0 0.0
      %4467 = vmatprep.subr.mxu0 0.0
      %4468 = vmatpush1.msra.mxu0 0.0
      %4469 = vmatprep.subr.mxu0 0.0
      %4470 = vmatpush1.msra.mxu0 0.0
      %4471 = vmatprep.subr.mxu0 0.0
      %4472 = vmatpush1.msra.mxu0 0.0
      %4473 = vmatprep.subr.mxu0 0.0
      %4474 = vmatpush1.msra.mxu0 0.0
      %4475 = vmatprep.subr.mxu0 0.0
      %4476 = vmatpush1.msra.mxu0 0.0
      %4477 = vmatprep.subr.mxu0 0.0
      %4478 = vmatpush1.msra.mxu0 0.0
      %4479 = vmatprep.subr.mxu0 0.0
      %4480 = vmatpush1.msra.mxu0 0.0
      %4481 = vmatprep.subr.mxu0 0.0
      %4482 = vmatpush1.msra.mxu0 0.0
      %4483 = vmatprep.subr.mxu0 0.0
      %4484 = vmatpush1.msra.mxu0 0.0
      %4485 = vmatprep.subr.mxu0 0.0
      %4486 = vmatpush1.msra.mxu0 0.0
      %4487 = vmatprep.subr.mxu0 0.0
      %4488 = vmatpush1.msra.mxu0 0.0
      %4489 = vmatprep.subr.mxu0 0.0
      %4490 = vmatpush1.msra.mxu0 0.0
      %4491 = vmatprep.subr.mxu0 0.0
      %4492 = vmatpush1.msra.mxu0 0.0
      %4493 = vmatprep.subr.mxu0 0.0
      %4494 = vmatpush1.msra.mxu0 0.0
      %4495 = vmatprep.subr.mxu0 0.0
      %4496 = vmatpush1.msra.mxu0 0.0
      %4497 = vmatprep.subr.mxu0 0.0
      %4498 = vmatpush1.msra.mxu0 0.0
      %4499 = vmatprep.subr.mxu0 0.0
      %4500 = vmatpush1.msra.mxu0 0.0
      %4501 = vmatprep.subr.mxu0 0.0
      %4502 = vmatpush1.msra.mxu0 0.0
      %4503 = vmatprep.subr.mxu0 0.0
      %4504 = vmatpush1.msra.mxu0 0.0
      %4505 = vmatprep.subr.mxu0 0.0
      %4506 = vmatpush1.msra.mxu0 0.0
      %4507 = vmatprep.subr.mxu0 0.0
      %4508 = vmatpush1.msra.mxu0 0.0
      %4509 = vmatprep.subr.mxu0 0.0
      %4510 = vmatpush1.msra.mxu0 0.0
      %4511 = vmatprep.subr.mxu0 0.0
      %4512 = vmatpush1.msra.mxu0 0.0
      %4513 = vmatprep.mubr.f32.mxu0 0.0
      %4514 = vmatmul.mubr.f32.gmra.mrb[0].mxu0 %v4354
      %v4515 = vpop.f32.mrb[0].mxu0
      %v4516 = vadd.f32 0.0, %v4515
      %v4517 = vpop.f32.mrb[0].mxu0
      %4518 = vmatprep.mubr.f32.mxu0 0.0
      %4519 = vmatmul.mubr.f32.gmra.mrb[0].mxu0 %v4357
      %v4520 = vpop.f32.mrb[0].mxu0
      %v4521 = vadd.f32 0.0, %v4520
      %v4522 = vpop.f32.mrb[0].mxu0
      %4523 = vmatprep.mubr.f32.mxu0 0.0
      %4524 = vmatmul.mubr.f32.gmra.mrb[0].mxu0 %v4360
      %v4525 = vpop.f32.mrb[0].mxu0
      %v4526 = vadd.f32 0.0, %v4525
      %v4527 = vpop.f32.mrb[0].mxu0
      %4528 = vmatprep.mubr.f32.mxu0 0.0
      %4529 = vmatmul.mubr.f32.gmra.mrb[0].mxu0 %v4363
      %v4530 = vpop.f32.mrb[0].mxu0
      %v4531 = vadd.f32 0.0, %v4530
      %v4532 = vpop.f32.mrb[0].mxu0
      %4533 = vmatprep.mubr.f32.mxu0 0.0
      %4534 = vmatmul.mubr.f32.gmra.mrb[0].mxu0 %v4366
      %v4535 = vpop.f32.mrb[0].mxu0
      %v4536 = vadd.f32 0.0, %v4535
      %v4537 = vpop.f32.mrb[0].mxu0
      %4538 = vmatprep.mubr.f32.mxu0 0.0
      %4539 = vmatmul.mubr.f32.gmra.mrb[0].mxu0 %v4369
      %v4540 = vpop.f32.mrb[0].mxu0
      %v4541 = vadd.f32 0.0, %v4540
      %v4542 = vpop.f32.mrb[0].mxu0
      %4543 = vmatprep.mubr.f32.mxu0 0.0
      %4544 = vmatmul.mubr.f32.gmra.mrb[0].mxu0 %v4372
      %v4545 = vpop.f32.mrb[0].mxu0
      %v4546 = vadd.f32 0.0, %v4545
      %v4547 = vpop.f32.mrb[0].mxu0
      %4548 = vmatprep.mubr.f32.mxu0 0.0
      %4549 = vmatmul.mubr.f32.gmra.mrb[0].mxu0 %v4375
      %v4550 = vpop.f32.mrb[0].mxu0
      %v4551 = vadd.f32 0.0, %v4550
      %v4552 = vpop.f32.mrb[0].mxu0
      %4553 = vmatprep.mubr.f32.mxu0 0.0
      %4554 = vmatmul.mubr.f32.gmra.mrb[0].mxu0 %v4378
      %v4555 = vpop.f32.mrb[0].mxu0
      %v4556 = vadd.f32 0.0, %v4555
      %v4557 = vpop.f32.mrb[0].mxu0
      %4558 = vmatprep.mubr.f32.mxu0 0.0
      %4559 = vmatmul.mubr.f32.gmra.mrb[0].mxu0 %v4381
      %v4560 = vpop.f32.mrb[0].mxu0
      %v4561 = vadd.f32 0.0, %v4560
      %v4562 = vpop.f32.mrb[0].mxu0
      %4563 = vmatprep.mubr.f32.mxu0 0.0
      %4564 = vmatmul.mubr.f32.gmra.mrb[0].mxu0 %v4384
      %v4565 = vpop.f32.mrb[0].mxu0
      %v4566 = vadd.f32 0.0, %v4565
      %v4567 = vpop.f32.mrb[0].mxu0
      %4568 = vmatprep.mubr.f32.mxu0 0.0
      %4569 = vmatmul.mubr.f32.gmra.mrb[0].mxu0 %v4387
      %v4570 = vpop.f32.mrb[0].mxu0
      %v4571 = vadd.f32 0.0, %v4570
      %v4572 = vpop.f32.mrb[0].mxu0
      %4573 = vmatprep.mubr.f32.mxu0 0.0
      %4574 = vmatmul.mubr.f32.gmra.mrb[0].mxu0 %v4390
      %v4575 = vpop.f32.mrb[0].mxu0
      %v4576 = vadd.f32 0.0, %v4575
      %v4577 = vpop.f32.mrb[0].mxu0
      %4578 = vmatprep.mubr.f32.mxu0 0.0
      %4579 = vmatmul.mubr.f32.gmra.mrb[0].mxu0 %v4393
      %v4580 = vpop.f32.mrb[0].mxu0
      %v4581 = vadd.f32 0.0, %v4580
      %v4582 = vpop.f32.mrb[0].mxu0
      %4583 = vmatprep.mubr.f32.mxu0 0.0
      %4584 = vmatmul.mubr.f32.gmra.mrb[0].mxu0 %v4396
      %v4585 = vpop.f32.mrb[0].mxu0
      %v4586 = vadd.f32 0.0, %v4585
      %v4587 = vpop.f32.mrb[0].mxu0
      %4588 = vmatprep.mubr.f32.mxu0 0.0
      %4589 = vmatmul.mubr.f32.gmra.mrb[0].mxu0 %v4399
      %v4590 = vpop.f32.mrb[0].mxu0
      %v4591 = vadd.f32 0.0, %v4590
      %v4592 = vpop.f32.mrb[0].mxu0
      %4593 = vmatprep.mubr.f32.mxu0 0.0
      %4594 = vmatmul.mubr.f32.gmra.mrb[0].mxu0 %v4402
      %v4595 = vpop.f32.mrb[0].mxu0
      %v4596 = vadd.f32 0.0, %v4595
      %v4597 = vpop.f32.mrb[0].mxu0
      %4598 = vmatprep.mubr.f32.mxu0 0.0
      %4599 = vmatmul.mubr.f32.gmra.mrb[0].mxu0 %v4405
      %v4600 = vpop.f32.mrb[0].mxu0
      %v4601 = vadd.f32 0.0, %v4600
      %v4602 = vpop.f32.mrb[0].mxu0
      %4603 = vmatprep.mubr.f32.mxu0 0.0
      %4604 = vmatmul.mubr.f32.gmra.mrb[0].mxu0 %v4408
      %v4605 = vpop.f32.mrb[0].mxu0
      %v4606 = vadd.f32 0.0, %v4605
      %v4607 = vpop.f32.mrb[0].mxu0
      %4608 = vmatprep.mubr.f32.mxu0 0.0
      %4609 = vmatmul.mubr.f32.gmra.mrb[0].mxu0 %v4411
      %v4610 = vpop.f32.mrb[0].mxu0
      %v4611 = vadd.f32 0.0, %v4610
      %v4612 = vpop.f32.mrb[0].mxu0
      %4613 = vmatprep.mubr.f32.mxu0 0.0
      %4614 = vmatmul.mubr.f32.gmra.mrb[0].mxu0 %v4414
      %v4615 = vpop.f32.mrb[0].mxu0
      %v4616 = vadd.f32 0.0, %v4615
      %v4617 = vpop.f32.mrb[0].mxu0
      %4618 = vmatprep.mubr.f32.mxu0 0.0
      %4619 = vmatmul.mubr.f32.gmra.mrb[0].mxu0 %v4417
      %v4620 = vpop.f32.mrb[0].mxu0
      %v4621 = vadd.f32 0.0, %v4620
      %v4622 = vpop.f32.mrb[0].mxu0
      %4623 = vmatprep.mubr.f32.mxu0 0.0
      %4624 = vmatmul.mubr.f32.gmra.mrb[0].mxu0 %v4420
      %v4625 = vpop.f32.mrb[0].mxu0
      %v4626 = vadd.f32 0.0, %v4625
      %v4627 = vpop.f32.mrb[0].mxu0
      %4628 = vmatprep.mubr.f32.mxu0 0.0
      %4629 = vmatmul.mubr.f32.gmra.mrb[0].mxu0 %v4423
      %v4630 = vpop.f32.mrb[0].mxu0
      %v4631 = vadd.f32 0.0, %v4630
      %v4632 = vpop.f32.mrb[0].mxu0
      %4633 = vmatprep.mubr.f32.mxu0 0.0
      %4634 = vmatmul.mubr.f32.gmra.mrb[0].mxu0 %v4426
      %v4635 = vpop.f32.mrb[0].mxu0
      %v4636 = vadd.f32 0.0, %v4635
      %v4637 = vpop.f32.mrb[0].mxu0
      %4638 = vmatprep.mubr.f32.mxu0 0.0
      %4639 = vmatmul.mubr.f32.gmra.mrb[0].mxu0 %v4429
      %v4640 = vpop.f32.mrb[0].mxu0
      %v4641 = vadd.f32 0.0, %v4640
      %v4642 = vpop.f32.mrb[0].mxu0
      %4643 = vmatprep.mubr.f32.mxu0 0.0
      %4644 = vmatmul.mubr.f32.gmra.mrb[0].mxu0 %v4432
      %v4645 = vpop.f32.mrb[0].mxu0
      %v4646 = vadd.f32 0.0, %v4645
      %v4647 = vpop.f32.mrb[0].mxu0
      %4648 = vmatprep.mubr.f32.mxu0 0.0
      %4649 = vmatmul.mubr.f32.gmra.mrb[0].mxu0 %v4435
      %v4650 = vpop.f32.mrb[0].mxu0
      %v4651 = vadd.f32 0.0, %v4650
      %v4652 = vpop.f32.mrb[0].mxu0
      %4653 = vmatprep.mubr.f32.mxu0 0.0
      %4654 = vmatmul.mubr.f32.gmra.mrb[0].mxu0 %v4438
      %v4655 = vpop.f32.mrb[0].mxu0
      %v4656 = vadd.f32 0.0, %v4655
      %v4657 = vpop.f32.mrb[0].mxu0
      %4658 = vmatprep.mubr.f32.mxu0 0.0
      %4659 = vmatmul.mubr.f32.gmra.mrb[0].mxu0 %v4441
      %v4660 = vpop.f32.mrb[0].mxu0
      %v4661 = vadd.f32 0.0, %v4660
      %v4662 = vpop.f32.mrb[0].mxu0
      %4663 = vmatprep.mubr.f32.mxu0 0.0
      %4664 = vmatmul.mubr.f32.gmra.mrb[0].mxu0 %v4444
      %v4665 = vpop.f32.mrb[0].mxu0
      %v4666 = vadd.f32 0.0, %v4665
      %v4667 = vpop.f32.mrb[0].mxu0
      %4668 = vmatprep.mubr.f32.mxu0 0.0
      %4669 = vmatmul.mubr.f32.gmra.mrb[0].mxu0 %v4447
      %v4670 = vpop.f32.mrb[0].mxu0
      %v4671 = vadd.f32 0.0, %v4670
      %v4672 = vpop.f32.mrb[0].mxu0
      %4673 = vdwg.mxu0
      %v4675 = vsel %vm225, %v4287, 0
      %v4678 = vsel %vm225, %v4288, 0
      %v4681 = vsel %vm225, %v4289, 0
      %v4684 = vsel %vm225, %v4290, 0
      %v4687 = vsel %vm225, %v4291, 0
      %v4690 = vsel %vm225, %v4292, 0
      %v4693 = vsel %vm225, %v4293, 0
      %v4696 = vsel %vm225, %v4294, 0
      %v4699 = vsel %vm225, %v4295, 0
      %v4702 = vsel %vm225, %v4296, 0
      %v4705 = vsel %vm225, %v4297, 0
      %v4708 = vsel %vm225, %v4298, 0
      %v4711 = vsel %vm225, %v4299, 0
      %v4714 = vsel %vm225, %v4300, 0
      %v4717 = vsel %vm225, %v4301, 0
      %v4720 = vsel %vm225, %v4302, 0
      %v4723 = vsel %vm225, %v4303, 0
      %v4726 = vsel %vm225, %v4304, 0
      %v4729 = vsel %vm225, %v4305, 0
      %v4732 = vsel %vm225, %v4306, 0
      %v4735 = vsel %vm225, %v4307, 0
      %v4738 = vsel %vm225, %v4308, 0
      %v4741 = vsel %vm225, %v4309, 0
      %v4744 = vsel %vm225, %v4310, 0
      %v4747 = vsel %vm225, %v4311, 0
      %v4750 = vsel %vm225, %v4312, 0
      %v4753 = vsel %vm225, %v4313, 0
      %v4756 = vsel %vm225, %v4314, 0
      %v4759 = vsel %vm225, %v4315, 0
      %v4762 = vsel %vm225, %v4316, 0
      %v4765 = vsel %vm225, %v4317, 0
      %v4768 = vsel %vm225, %v4318, 0
      %4770 = vmatprep.subr.mxu0 0.0
      %4771 = vmatpush1.msra.mxu0 %v4319
      %4772 = vmatprep.subr.mxu0 0.0
      %4773 = vmatpush1.msra.mxu0 0.0
      %4774 = vmatprep.subr.mxu0 0.0
      %4775 = vmatpush1.msra.mxu0 0.0
      %4776 = vmatprep.subr.mxu0 0.0
      %4777 = vmatpush1.msra.mxu0 0.0
      %4778 = vmatprep.subr.mxu0 0.0
      %4779 = vmatpush1.msra.mxu0 0.0
      %4780 = vmatprep.subr.mxu0 0.0
      %4781 = vmatpush1.msra.mxu0 0.0
      %4782 = vmatprep.subr.mxu0 0.0
      %4783 = vmatpush1.msra.mxu0 0.0
      %4784 = vmatprep.subr.mxu0 0.0
      %4785 = vmatpush1.msra.mxu0 0.0
      %4786 = vmatprep.subr.mxu0 0.0
      %4787 = vmatpush1.msra.mxu0 0.0
      %4788 = vmatprep.subr.mxu0 0.0
      %4789 = vmatpush1.msra.mxu0 0.0
      %4790 = vmatprep.subr.mxu0 0.0
      %4791 = vmatpush1.msra.mxu0 0.0
      %4792 = vmatprep.subr.mxu0 0.0
      %4793 = vmatpush1.msra.mxu0 0.0
      %4794 = vmatprep.subr.mxu0 0.0
      %4795 = vmatpush1.msra.mxu0 0.0
      %4796 = vmatprep.subr.mxu0 0.0
      %4797 = vmatpush1.msra.mxu0 0.0
      %4798 = vmatprep.subr.mxu0 0.0
      %4799 = vmatpush1.msra.mxu0 0.0
      %4800 = vmatprep.subr.mxu0 0.0
      %4801 = vmatpush1.msra.mxu0 0.0
      %4802 = vmatprep.subr.mxu0 0.0
      %4803 = vmatpush1.msra.mxu0 0.0
      %4804 = vmatprep.subr.mxu0 0.0
      %4805 = vmatpush1.msra.mxu0 0.0
      %4806 = vmatprep.subr.mxu0 0.0
      %4807 = vmatpush1.msra.mxu0 0.0
      %4808 = vmatprep.subr.mxu0 0.0
      %4809 = vmatpush1.msra.mxu0 0.0
      %4810 = vmatprep.subr.mxu0 0.0
      %4811 = vmatpush1.msra.mxu0 0.0
      %4812 = vmatprep.subr.mxu0 0.0
      %4813 = vmatpush1.msra.mxu0 0.0
      %4814 = vmatprep.subr.mxu0 0.0
      %4815 = vmatpush1.msra.mxu0 0.0
      %4816 = vmatprep.subr.mxu0 0.0
      %4817 = vmatpush1.msra.mxu0 0.0
      %4818 = vmatprep.subr.mxu0 0.0
      %4819 = vmatpush1.msra.mxu0 0.0
      %4820 = vmatprep.subr.mxu0 0.0
      %4821 = vmatpush1.msra.mxu0 0.0
      %4822 = vmatprep.subr.mxu0 0.0
      %4823 = vmatpush1.msra.mxu0 0.0
      %4824 = vmatprep.subr.mxu0 0.0
      %4825 = vmatpush1.msra.mxu0 0.0
      %4826 = vmatprep.subr.mxu0 0.0
      %4827 = vmatpush1.msra.mxu0 0.0
      %4828 = vmatprep.subr.mxu0 0.0
      %4829 = vmatpush1.msra.mxu0 0.0
      %4830 = vmatprep.subr.mxu0 0.0
      %4831 = vmatpush1.msra.mxu0 0.0
      %4832 = vmatprep.subr.mxu0 0.0
      %4833 = vmatpush1.msra.mxu0 0.0
      %4834 = vmatprep.mubr.f32.mxu0 0.0
      %4835 = vmatmul.mubr.f32.gmra.mrb[0].mxu0 %v4675
      %v4836 = vpop.f32.mrb[0].mxu0
      %v4837 = vadd.f32 %v4516, %v4836
      %v4838 = vpop.f32.mrb[0].mxu0
      %4839 = vmatprep.mubr.f32.mxu0 0.0
      %4840 = vmatmul.mubr.f32.gmra.mrb[0].mxu0 %v4678
      %v4841 = vpop.f32.mrb[0].mxu0
      %v4842 = vadd.f32 %v4521, %v4841
      %v4843 = vpop.f32.mrb[0].mxu0
      %4844 = vmatprep.mubr.f32.mxu0 0.0
      %4845 = vmatmul.mubr.f32.gmra.mrb[0].mxu0 %v4681
      %v4846 = vpop.f32.mrb[0].mxu0
      %v4847 = vadd.f32 %v4526, %v4846
      %v4848 = vpop.f32.mrb[0].mxu0
      %4849 = vmatprep.mubr.f32.mxu0 0.0
      %4850 = vmatmul.mubr.f32.gmra.mrb[0].mxu0 %v4684
      %v4851 = vpop.f32.mrb[0].mxu0
      %v4852 = vadd.f32 %v4531, %v4851
      %v4853 = vpop.f32.mrb[0].mxu0
      %4854 = vmatprep.mubr.f32.mxu0 0.0
      %4855 = vmatmul.mubr.f32.gmra.mrb[0].mxu0 %v4687
      %v4856 = vpop.f32.mrb[0].mxu0
      %v4857 = vadd.f32 %v4536, %v4856
      %v4858 = vpop.f32.mrb[0].mxu0
      %4859 = vmatprep.mubr.f32.mxu0 0.0
      %4860 = vmatmul.mubr.f32.gmra.mrb[0].mxu0 %v4690
      %v4861 = vpop.f32.mrb[0].mxu0
      %v4862 = vadd.f32 %v4541, %v4861
      %v4863 = vpop.f32.mrb[0].mxu0
      %4864 = vmatprep.mubr.f32.mxu0 0.0
      %4865 = vmatmul.mubr.f32.gmra.mrb[0].mxu0 %v4693
      %v4866 = vpop.f32.mrb[0].mxu0
      %v4867 = vadd.f32 %v4546, %v4866
      %v4868 = vpop.f32.mrb[0].mxu0
      %4869 = vmatprep.mubr.f32.mxu0 0.0
      %4870 = vmatmul.mubr.f32.gmra.mrb[0].mxu0 %v4696
      %v4871 = vpop.f32.mrb[0].mxu0
      %v4872 = vadd.f32 %v4551, %v4871
      %v4873 = vpop.f32.mrb[0].mxu0
      %4874 = vmatprep.mubr.f32.mxu0 0.0
      %4875 = vmatmul.mubr.f32.gmra.mrb[0].mxu0 %v4699
      %v4876 = vpop.f32.mrb[0].mxu0
      %v4877 = vadd.f32 %v4556, %v4876
      %v4878 = vpop.f32.mrb[0].mxu0
      %4879 = vmatprep.mubr.f32.mxu0 0.0
      %4880 = vmatmul.mubr.f32.gmra.mrb[0].mxu0 %v4702
      %v4881 = vpop.f32.mrb[0].mxu0
      %v4882 = vadd.f32 %v4561, %v4881
      %v4883 = vpop.f32.mrb[0].mxu0
      %4884 = vmatprep.mubr.f32.mxu0 0.0
      %4885 = vmatmul.mubr.f32.gmra.mrb[0].mxu0 %v4705
      %v4886 = vpop.f32.mrb[0].mxu0
      %v4887 = vadd.f32 %v4566, %v4886
      %v4888 = vpop.f32.mrb[0].mxu0
      %4889 = vmatprep.mubr.f32.mxu0 0.0
      %4890 = vmatmul.mubr.f32.gmra.mrb[0].mxu0 %v4708
      %v4891 = vpop.f32.mrb[0].mxu0
      %v4892 = vadd.f32 %v4571, %v4891
      %v4893 = vpop.f32.mrb[0].mxu0
      %4894 = vmatprep.mubr.f32.mxu0 0.0
      %4895 = vmatmul.mubr.f32.gmra.mrb[0].mxu0 %v4711
      %v4896 = vpop.f32.mrb[0].mxu0
      %v4897 = vadd.f32 %v4576, %v4896
      %v4898 = vpop.f32.mrb[0].mxu0
      %4899 = vmatprep.mubr.f32.mxu0 0.0
      %4900 = vmatmul.mubr.f32.gmra.mrb[0].mxu0 %v4714
      %v4901 = vpop.f32.mrb[0].mxu0
      %v4902 = vadd.f32 %v4581, %v4901
      %v4903 = vpop.f32.mrb[0].mxu0
      %4904 = vmatprep.mubr.f32.mxu0 0.0
      %4905 = vmatmul.mubr.f32.gmra.mrb[0].mxu0 %v4717
      %v4906 = vpop.f32.mrb[0].mxu0
      %v4907 = vadd.f32 %v4586, %v4906
      %v4908 = vpop.f32.mrb[0].mxu0
      %4909 = vmatprep.mubr.f32.mxu0 0.0
      %4910 = vmatmul.mubr.f32.gmra.mrb[0].mxu0 %v4720
      %v4911 = vpop.f32.mrb[0].mxu0
      %v4912 = vadd.f32 %v4591, %v4911
      %v4913 = vpop.f32.mrb[0].mxu0
      %4914 = vmatprep.mubr.f32.mxu0 0.0
      %4915 = vmatmul.mubr.f32.gmra.mrb[0].mxu0 %v4723
      %v4916 = vpop.f32.mrb[0].mxu0
      %v4917 = vadd.f32 %v4596, %v4916
      %v4918 = vpop.f32.mrb[0].mxu0
      %4919 = vmatprep.mubr.f32.mxu0 0.0
      %4920 = vmatmul.mubr.f32.gmra.mrb[0].mxu0 %v4726
      %v4921 = vpop.f32.mrb[0].mxu0
      %v4922 = vadd.f32 %v4601, %v4921
      %v4923 = vpop.f32.mrb[0].mxu0
      %4924 = vmatprep.mubr.f32.mxu0 0.0
      %4925 = vmatmul.mubr.f32.gmra.mrb[0].mxu0 %v4729
      %v4926 = vpop.f32.mrb[0].mxu0
      %v4927 = vadd.f32 %v4606, %v4926
      %v4928 = vpop.f32.mrb[0].mxu0
      %4929 = vmatprep.mubr.f32.mxu0 0.0
      %4930 = vmatmul.mubr.f32.gmra.mrb[0].mxu0 %v4732
      %v4931 = vpop.f32.mrb[0].mxu0
      %v4932 = vadd.f32 %v4611, %v4931
      %v4933 = vpop.f32.mrb[0].mxu0
      %4934 = vmatprep.mubr.f32.mxu0 0.0
      %4935 = vmatmul.mubr.f32.gmra.mrb[0].mxu0 %v4735
      %v4936 = vpop.f32.mrb[0].mxu0
      %v4937 = vadd.f32 %v4616, %v4936
      %v4938 = vpop.f32.mrb[0].mxu0
      %4939 = vmatprep.mubr.f32.mxu0 0.0
      %4940 = vmatmul.mubr.f32.gmra.mrb[0].mxu0 %v4738
      %v4941 = vpop.f32.mrb[0].mxu0
      %v4942 = vadd.f32 %v4621, %v4941
      %v4943 = vpop.f32.mrb[0].mxu0
      %4944 = vmatprep.mubr.f32.mxu0 0.0
      %4945 = vmatmul.mubr.f32.gmra.mrb[0].mxu0 %v4741
      %v4946 = vpop.f32.mrb[0].mxu0
      %v4947 = vadd.f32 %v4626, %v4946
      %v4948 = vpop.f32.mrb[0].mxu0
      %4949 = vmatprep.mubr.f32.mxu0 0.0
      %4950 = vmatmul.mubr.f32.gmra.mrb[0].mxu0 %v4744
      %v4951 = vpop.f32.mrb[0].mxu0
      %v4952 = vadd.f32 %v4631, %v4951
      %v4953 = vpop.f32.mrb[0].mxu0
      %4954 = vmatprep.mubr.f32.mxu0 0.0
      %4955 = vmatmul.mubr.f32.gmra.mrb[0].mxu0 %v4747
      %v4956 = vpop.f32.mrb[0].mxu0
      %v4957 = vadd.f32 %v4636, %v4956
      %v4958 = vpop.f32.mrb[0].mxu0
      %4959 = vmatprep.mubr.f32.mxu0 0.0
      %4960 = vmatmul.mubr.f32.gmra.mrb[0].mxu0 %v4750
      %v4961 = vpop.f32.mrb[0].mxu0
      %v4962 = vadd.f32 %v4641, %v4961
      %v4963 = vpop.f32.mrb[0].mxu0
      %4964 = vmatprep.mubr.f32.mxu0 0.0
      %4965 = vmatmul.mubr.f32.gmra.mrb[0].mxu0 %v4753
      %v4966 = vpop.f32.mrb[0].mxu0
      %v4967 = vadd.f32 %v4646, %v4966
      %v4968 = vpop.f32.mrb[0].mxu0
      %4969 = vmatprep.mubr.f32.mxu0 0.0
      %4970 = vmatmul.mubr.f32.gmra.mrb[0].mxu0 %v4756
      %v4971 = vpop.f32.mrb[0].mxu0
      %v4972 = vadd.f32 %v4651, %v4971
      %v4973 = vpop.f32.mrb[0].mxu0
      %4974 = vmatprep.mubr.f32.mxu0 0.0
      %4975 = vmatmul.mubr.f32.gmra.mrb[0].mxu0 %v4759
      %v4976 = vpop.f32.mrb[0].mxu0
      %v4977 = vadd.f32 %v4656, %v4976
      %v4978 = vpop.f32.mrb[0].mxu0
      %4979 = vmatprep.mubr.f32.mxu0 0.0
      %4980 = vmatmul.mubr.f32.gmra.mrb[0].mxu0 %v4762
      %v4981 = vpop.f32.mrb[0].mxu0
      %v4982 = vadd.f32 %v4661, %v4981
      %v4983 = vpop.f32.mrb[0].mxu0
      %4984 = vmatprep.mubr.f32.mxu0 0.0
      %4985 = vmatmul.mubr.f32.gmra.mrb[0].mxu0 %v4765
      %v4986 = vpop.f32.mrb[0].mxu0
      %v4987 = vadd.f32 %v4666, %v4986
      %v4988 = vpop.f32.mrb[0].mxu0
      %4989 = vmatprep.mubr.f32.mxu0 0.0
      %4990 = vmatmul.mubr.f32.gmra.mrb[0].mxu0 %v4768
      %v4991 = vpop.f32.mrb[0].mxu0
      %v4992 = vadd.f32 %v4671, %v4991
      %v4993 = vpop.f32.mrb[0].mxu0
      %4994 = vdwg.mxu0
      %v4995 = vld [vmem:[#allocation3 + $0x2] sm:$0xff]
      %v4996 = vld [vmem:[#allocation3 + $0xa] sm:$0xff]
      %v4997 = vld [vmem:[#allocation3 + $0x1a] sm:$0xff]
      %v4998 = vld [vmem:[#allocation3 + $0x22] sm:$0xff]
      %v4999 = vld [vmem:[#allocation3 + $0x32] sm:$0xff]
      %v5000 = vld [vmem:[#allocation3 + $0x3a] sm:$0xff]
      %v5001 = vld [vmem:[#allocation3 + $0x4a] sm:$0xff]
      %v5002 = vld [vmem:[#allocation3 + $0x52] sm:$0xff]
      %v5003 = vld [vmem:[#allocation3 + $0x62] sm:$0xff]
      %v5004 = vld [vmem:[#allocation3 + $0x6a] sm:$0xff]
      %v5005 = vld [vmem:[#allocation3 + $0x7a] sm:$0xff]
      %v5006 = vld [vmem:[#allocation3 + $0x82] sm:$0xff]
      %v5007 = vld [vmem:[#allocation3 + $0x92] sm:$0xff]
      %v5008 = vld [vmem:[#allocation3 + $0x9a] sm:$0xff]
      %v5009 = vld [vmem:[#allocation3 + $0xaa] sm:$0xff]
      %v5010 = vld [vmem:[#allocation3 + $0xb2] sm:$0xff]
      %v5011 = vld [vmem:[#allocation3 + $0xc2] sm:$0xff]
      %v5012 = vld [vmem:[#allocation3 + $0xca] sm:$0xff]
      %v5013 = vld [vmem:[#allocation3 + $0xda] sm:$0xff]
      %v5014 = vld [vmem:[#allocation3 + $0xe2] sm:$0xff]
      %v5015 = vld [vmem:[#allocation3 + $0xf2] sm:$0xff]
      %v5016 = vld [vmem:[#allocation3 + $0xfa] sm:$0xff]
      %v5017 = vld [vmem:[#allocation3 + $0x10a] sm:$0xff]
      %v5018 = vld [vmem:[#allocation3 + $0x112] sm:$0xff]
      %v5019 = vld [vmem:[#allocation3 + $0x122] sm:$0xff]
      %v5020 = vld [vmem:[#allocation3 + $0x12a] sm:$0xff]
      %v5021 = vld [vmem:[#allocation3 + $0x13a] sm:$0xff]
      %v5022 = vld [vmem:[#allocation3 + $0x142] sm:$0xff]
      %v5023 = vld [vmem:[#allocation3 + $0x152] sm:$0xff]
      %v5024 = vld [vmem:[#allocation3 + $0x15a] sm:$0xff]
      %v5025 = vld [vmem:[#allocation3 + $0x16a] sm:$0xff]
      %v5026 = vld [vmem:[#allocation3 + $0x172] sm:$0xff]
      %v5027 = vld [vmem:[%s2 + $0x10] sm:$0xff]
      %v5029 = vsel %vm225, %v4995, 0
      %v5032 = vsel %vm225, %v4996, 0
      %v5035 = vsel %vm225, %v4997, 0
      %v5038 = vsel %vm225, %v4998, 0
      %v5041 = vsel %vm225, %v4999, 0
      %v5044 = vsel %vm225, %v5000, 0
      %v5047 = vsel %vm225, %v5001, 0
      %v5050 = vsel %vm225, %v5002, 0
      %v5053 = vsel %vm225, %v5003, 0
      %v5056 = vsel %vm225, %v5004, 0
      %v5059 = vsel %vm225, %v5005, 0
      %v5062 = vsel %vm225, %v5006, 0
      %v5065 = vsel %vm225, %v5007, 0
      %v5068 = vsel %vm225, %v5008, 0
      %v5071 = vsel %vm225, %v5009, 0
      %v5074 = vsel %vm225, %v5010, 0
      %v5077 = vsel %vm225, %v5011, 0
      %v5080 = vsel %vm225, %v5012, 0
      %v5083 = vsel %vm225, %v5013, 0
      %v5086 = vsel %vm225, %v5014, 0
      %v5089 = vsel %vm225, %v5015, 0
      %v5092 = vsel %vm225, %v5016, 0
      %v5095 = vsel %vm225, %v5017, 0
      %v5098 = vsel %vm225, %v5018, 0
      %v5101 = vsel %vm225, %v5019, 0
      %v5104 = vsel %vm225, %v5020, 0
      %v5107 = vsel %vm225, %v5021, 0
      %v5110 = vsel %vm225, %v5022, 0
      %v5113 = vsel %vm225, %v5023, 0
      %v5116 = vsel %vm225, %v5024, 0
      %v5119 = vsel %vm225, %v5025, 0
      %v5122 = vsel %vm225, %v5026, 0
      %5124 = vmatprep.subr.mxu0 0.0
      %5125 = vmatpush1.msra.mxu0 %v5027
      %5126 = vmatprep.subr.mxu0 0.0
      %5127 = vmatpush1.msra.mxu0 0.0
      %5128 = vmatprep.subr.mxu0 0.0
      %5129 = vmatpush1.msra.mxu0 0.0
      %5130 = vmatprep.subr.mxu0 0.0
      %5131 = vmatpush1.msra.mxu0 0.0
      %5132 = vmatprep.subr.mxu0 0.0
      %5133 = vmatpush1.msra.mxu0 0.0
      %5134 = vmatprep.subr.mxu0 0.0
      %5135 = vmatpush1.msra.mxu0 0.0
      %5136 = vmatprep.subr.mxu0 0.0
      %5137 = vmatpush1.msra.mxu0 0.0
      %5138 = vmatprep.subr.mxu0 0.0
      %5139 = vmatpush1.msra.mxu0 0.0
      %5140 = vmatprep.subr.mxu0 0.0
      %5141 = vmatpush1.msra.mxu0 0.0
      %5142 = vmatprep.subr.mxu0 0.0
      %5143 = vmatpush1.msra.mxu0 0.0
      %5144 = vmatprep.subr.mxu0 0.0
      %5145 = vmatpush1.msra.mxu0 0.0
      %5146 = vmatprep.subr.mxu0 0.0
      %5147 = vmatpush1.msra.mxu0 0.0
      %5148 = vmatprep.subr.mxu0 0.0
      %5149 = vmatpush1.msra.mxu0 0.0
      %5150 = vmatprep.subr.mxu0 0.0
      %5151 = vmatpush1.msra.mxu0 0.0
      %5152 = vmatprep.subr.mxu0 0.0
      %5153 = vmatpush1.msra.mxu0 0.0
      %5154 = vmatprep.subr.mxu0 0.0
      %5155 = vmatpush1.msra.mxu0 0.0
      %5156 = vmatprep.subr.mxu0 0.0
      %5157 = vmatpush1.msra.mxu0 0.0
      %5158 = vmatprep.subr.mxu0 0.0
      %5159 = vmatpush1.msra.mxu0 0.0
      %5160 = vmatprep.subr.mxu0 0.0
      %5161 = vmatpush1.msra.mxu0 0.0
      %5162 = vmatprep.subr.mxu0 0.0
      %5163 = vmatpush1.msra.mxu0 0.0
      %5164 = vmatprep.subr.mxu0 0.0
      %5165 = vmatpush1.msra.mxu0 0.0
      %5166 = vmatprep.subr.mxu0 0.0
      %5167 = vmatpush1.msra.mxu0 0.0
      %5168 = vmatprep.subr.mxu0 0.0
      %5169 = vmatpush1.msra.mxu0 0.0
      %5170 = vmatprep.subr.mxu0 0.0
      %5171 = vmatpush1.msra.mxu0 0.0
      %5172 = vmatprep.subr.mxu0 0.0
      %5173 = vmatpush1.msra.mxu0 0.0
      %5174 = vmatprep.subr.mxu0 0.0
      %5175 = vmatpush1.msra.mxu0 0.0
      %5176 = vmatprep.subr.mxu0 0.0
      %5177 = vmatpush1.msra.mxu0 0.0
      %5178 = vmatprep.subr.mxu0 0.0
      %5179 = vmatpush1.msra.mxu0 0.0
      %5180 = vmatprep.subr.mxu0 0.0
      %5181 = vmatpush1.msra.mxu0 0.0
      %5182 = vmatprep.subr.mxu0 0.0
      %5183 = vmatpush1.msra.mxu0 0.0
      %5184 = vmatprep.subr.mxu0 0.0
      %5185 = vmatpush1.msra.mxu0 0.0
      %5186 = vmatprep.subr.mxu0 0.0
      %5187 = vmatpush1.msra.mxu0 0.0
      %5188 = vmatprep.mubr.f32.mxu0 0.0
      %5189 = vmatmul.mubr.f32.gmra.mrb[0].mxu0 %v5029
      %v5190 = vpop.f32.mrb[0].mxu0
      %v5191 = vadd.f32 0.0, %v5190
      %v5192 = vpop.f32.mrb[0].mxu0
      %5193 = vmatprep.mubr.f32.mxu0 0.0
      %5194 = vmatmul.mubr.f32.gmra.mrb[0].mxu0 %v5032
      %v5195 = vpop.f32.mrb[0].mxu0
      %v5196 = vadd.f32 0.0, %v5195
      %v5197 = vpop.f32.mrb[0].mxu0
      %5198 = vmatprep.mubr.f32.mxu0 0.0
      %5199 = vmatmul.mubr.f32.gmra.mrb[0].mxu0 %v5035
      %v5200 = vpop.f32.mrb[0].mxu0
      %v5201 = vadd.f32 0.0, %v5200
      %v5202 = vpop.f32.mrb[0].mxu0
      %5203 = vmatprep.mubr.f32.mxu0 0.0
      %5204 = vmatmul.mubr.f32.gmra.mrb[0].mxu0 %v5038
      %v5205 = vpop.f32.mrb[0].mxu0
      %v5206 = vadd.f32 0.0, %v5205
      %v5207 = vpop.f32.mrb[0].mxu0
      %5208 = vmatprep.mubr.f32.mxu0 0.0
      %5209 = vmatmul.mubr.f32.gmra.mrb[0].mxu0 %v5041
      %v5210 = vpop.f32.mrb[0].mxu0
      %v5211 = vadd.f32 0.0, %v5210
      %v5212 = vpop.f32.mrb[0].mxu0
      %5213 = vmatprep.mubr.f32.mxu0 0.0
      %5214 = vmatmul.mubr.f32.gmra.mrb[0].mxu0 %v5044
      %v5215 = vpop.f32.mrb[0].mxu0
      %v5216 = vadd.f32 0.0, %v5215
      %v5217 = vpop.f32.mrb[0].mxu0
      %5218 = vmatprep.mubr.f32.mxu0 0.0
      %5219 = vmatmul.mubr.f32.gmra.mrb[0].mxu0 %v5047
      %v5220 = vpop.f32.mrb[0].mxu0
      %v5221 = vadd.f32 0.0, %v5220
      %v5222 = vpop.f32.mrb[0].mxu0
      %5223 = vmatprep.mubr.f32.mxu0 0.0
      %5224 = vmatmul.mubr.f32.gmra.mrb[0].mxu0 %v5050
      %v5225 = vpop.f32.mrb[0].mxu0
      %v5226 = vadd.f32 0.0, %v5225
      %v5227 = vpop.f32.mrb[0].mxu0
      %5228 = vmatprep.mubr.f32.mxu0 0.0
      %5229 = vmatmul.mubr.f32.gmra.mrb[0].mxu0 %v5053
      %v5230 = vpop.f32.mrb[0].mxu0
      %v5231 = vadd.f32 0.0, %v5230
      %v5232 = vpop.f32.mrb[0].mxu0
      %5233 = vmatprep.mubr.f32.mxu0 0.0
      %5234 = vmatmul.mubr.f32.gmra.mrb[0].mxu0 %v5056
      %v5235 = vpop.f32.mrb[0].mxu0
      %v5236 = vadd.f32 0.0, %v5235
      %v5237 = vpop.f32.mrb[0].mxu0
      %5238 = vmatprep.mubr.f32.mxu0 0.0
      %5239 = vmatmul.mubr.f32.gmra.mrb[0].mxu0 %v5059
      %v5240 = vpop.f32.mrb[0].mxu0
      %v5241 = vadd.f32 0.0, %v5240
      %v5242 = vpop.f32.mrb[0].mxu0
      %5243 = vmatprep.mubr.f32.mxu0 0.0
      %5244 = vmatmul.mubr.f32.gmra.mrb[0].mxu0 %v5062
      %v5245 = vpop.f32.mrb[0].mxu0
      %v5246 = vadd.f32 0.0, %v5245
      %v5247 = vpop.f32.mrb[0].mxu0
      %5248 = vmatprep.mubr.f32.mxu0 0.0
      %5249 = vmatmul.mubr.f32.gmra.mrb[0].mxu0 %v5065
      %v5250 = vpop.f32.mrb[0].mxu0
      %v5251 = vadd.f32 0.0, %v5250
      %v5252 = vpop.f32.mrb[0].mxu0
      %5253 = vmatprep.mubr.f32.mxu0 0.0
      %5254 = vmatmul.mubr.f32.gmra.mrb[0].mxu0 %v5068
      %v5255 = vpop.f32.mrb[0].mxu0
      %v5256 = vadd.f32 0.0, %v5255
      %v5257 = vpop.f32.mrb[0].mxu0
      %5258 = vmatprep.mubr.f32.mxu0 0.0
      %5259 = vmatmul.mubr.f32.gmra.mrb[0].mxu0 %v5071
      %v5260 = vpop.f32.mrb[0].mxu0
      %v5261 = vadd.f32 0.0, %v5260
      %v5262 = vpop.f32.mrb[0].mxu0
      %5263 = vmatprep.mubr.f32.mxu0 0.0
      %5264 = vmatmul.mubr.f32.gmra.mrb[0].mxu0 %v5074
      %v5265 = vpop.f32.mrb[0].mxu0
      %v5266 = vadd.f32 0.0, %v5265
      %v5267 = vpop.f32.mrb[0].mxu0
      %5268 = vmatprep.mubr.f32.mxu0 0.0
      %5269 = vmatmul.mubr.f32.gmra.mrb[0].mxu0 %v5077
      %v5270 = vpop.f32.mrb[0].mxu0
      %v5271 = vadd.f32 0.0, %v5270
      %v5272 = vpop.f32.mrb[0].mxu0
      %5273 = vmatprep.mubr.f32.mxu0 0.0
      %5274 = vmatmul.mubr.f32.gmra.mrb[0].mxu0 %v5080
      %v5275 = vpop.f32.mrb[0].mxu0
      %v5276 = vadd.f32 0.0, %v5275
      %v5277 = vpop.f32.mrb[0].mxu0
      %5278 = vmatprep.mubr.f32.mxu0 0.0
      %5279 = vmatmul.mubr.f32.gmra.mrb[0].mxu0 %v5083
      %v5280 = vpop.f32.mrb[0].mxu0
      %v5281 = vadd.f32 0.0, %v5280
      %v5282 = vpop.f32.mrb[0].mxu0
      %5283 = vmatprep.mubr.f32.mxu0 0.0
      %5284 = vmatmul.mubr.f32.gmra.mrb[0].mxu0 %v5086
      %v5285 = vpop.f32.mrb[0].mxu0
      %v5286 = vadd.f32 0.0, %v5285
      %v5287 = vpop.f32.mrb[0].mxu0
      %5288 = vmatprep.mubr.f32.mxu0 0.0
      %5289 = vmatmul.mubr.f32.gmra.mrb[0].mxu0 %v5089
      %v5290 = vpop.f32.mrb[0].mxu0
      %v5291 = vadd.f32 0.0, %v5290
      %v5292 = vpop.f32.mrb[0].mxu0
      %5293 = vmatprep.mubr.f32.mxu0 0.0
      %5294 = vmatmul.mubr.f32.gmra.mrb[0].mxu0 %v5092
      %v5295 = vpop.f32.mrb[0].mxu0
      %v5296 = vadd.f32 0.0, %v5295
      %v5297 = vpop.f32.mrb[0].mxu0
      %5298 = vmatprep.mubr.f32.mxu0 0.0
      %5299 = vmatmul.mubr.f32.gmra.mrb[0].mxu0 %v5095
      %v5300 = vpop.f32.mrb[0].mxu0
      %v5301 = vadd.f32 0.0, %v5300
      %v5302 = vpop.f32.mrb[0].mxu0
      %5303 = vmatprep.mubr.f32.mxu0 0.0
      %5304 = vmatmul.mubr.f32.gmra.mrb[0].mxu0 %v5098
      %v5305 = vpop.f32.mrb[0].mxu0
      %v5306 = vadd.f32 0.0, %v5305
      %v5307 = vpop.f32.mrb[0].mxu0
      %5308 = vmatprep.mubr.f32.mxu0 0.0
      %5309 = vmatmul.mubr.f32.gmra.mrb[0].mxu0 %v5101
      %v5310 = vpop.f32.mrb[0].mxu0
      %v5311 = vadd.f32 0.0, %v5310
      %v5312 = vpop.f32.mrb[0].mxu0
      %5313 = vmatprep.mubr.f32.mxu0 0.0
      %5314 = vmatmul.mubr.f32.gmra.mrb[0].mxu0 %v5104
      %v5315 = vpop.f32.mrb[0].mxu0
      %v5316 = vadd.f32 0.0, %v5315
      %v5317 = vpop.f32.mrb[0].mxu0
      %5318 = vmatprep.mubr.f32.mxu0 0.0
      %5319 = vmatmul.mubr.f32.gmra.mrb[0].mxu0 %v5107
      %v5320 = vpop.f32.mrb[0].mxu0
      %v5321 = vadd.f32 0.0, %v5320
      %v5322 = vpop.f32.mrb[0].mxu0
      %5323 = vmatprep.mubr.f32.mxu0 0.0
      %5324 = vmatmul.mubr.f32.gmra.mrb[0].mxu0 %v5110
      %v5325 = vpop.f32.mrb[0].mxu0
      %v5326 = vadd.f32 0.0, %v5325
      %v5327 = vpop.f32.mrb[0].mxu0
      %5328 = vmatprep.mubr.f32.mxu0 0.0
      %5329 = vmatmul.mubr.f32.gmra.mrb[0].mxu0 %v5113
      %v5330 = vpop.f32.mrb[0].mxu0
      %v5331 = vadd.f32 0.0, %v5330
      %v5332 = vpop.f32.mrb[0].mxu0
      %5333 = vmatprep.mubr.f32.mxu0 0.0
      %5334 = vmatmul.mubr.f32.gmra.mrb[0].mxu0 %v5116
      %v5335 = vpop.f32.mrb[0].mxu0
      %v5336 = vadd.f32 0.0, %v5335
      %v5337 = vpop.f32.mrb[0].mxu0
      %5338 = vmatprep.mubr.f32.mxu0 0.0
      %5339 = vmatmul.mubr.f32.gmra.mrb[0].mxu0 %v5119
      %v5340 = vpop.f32.mrb[0].mxu0
      %v5341 = vadd.f32 0.0, %v5340
      %v5342 = vpop.f32.mrb[0].mxu0
      %5343 = vmatprep.mubr.f32.mxu0 0.0
      %5344 = vmatmul.mubr.f32.gmra.mrb[0].mxu0 %v5122
      %v5345 = vpop.f32.mrb[0].mxu0
      %v5346 = vadd.f32 0.0, %v5345
      %v5347 = vpop.f32.mrb[0].mxu0
      %5348 = vdwg.mxu0
      %v5349 = vadd.f32 %v4837, %v5191
      %v5350 = vadd.f32 %v4842, %v5196
      %v5351 = vadd.f32 %v4847, %v5201
      %v5352 = vadd.f32 %v4852, %v5206
      %v5353 = vadd.f32 %v4857, %v5211
      %v5354 = vadd.f32 %v4862, %v5216
      %v5355 = vadd.f32 %v4867, %v5221
      %v5356 = vadd.f32 %v4872, %v5226
      %v5357 = vadd.f32 %v4877, %v5231
      %v5358 = vadd.f32 %v4882, %v5236
      %v5359 = vadd.f32 %v4887, %v5241
      %v5360 = vadd.f32 %v4892, %v5246
      %v5361 = vadd.f32 %v4897, %v5251
      %v5362 = vadd.f32 %v4902, %v5256
      %v5363 = vadd.f32 %v4907, %v5261
      %v5364 = vadd.f32 %v4912, %v5266
      %v5365 = vadd.f32 %v4917, %v5271
      %v5366 = vadd.f32 %v4922, %v5276
      %v5367 = vadd.f32 %v4927, %v5281
      %v5368 = vadd.f32 %v4932, %v5286
      %v5369 = vadd.f32 %v4937, %v5291
      %v5370 = vadd.f32 %v4942, %v5296
      %v5371 = vadd.f32 %v4947, %v5301
      %v5372 = vadd.f32 %v4952, %v5306
      %v5373 = vadd.f32 %v4957, %v5311
      %v5374 = vadd.f32 %v4962, %v5316
      %v5375 = vadd.f32 %v4967, %v5321
      %v5376 = vadd.f32 %v4972, %v5326
      %v5377 = vadd.f32 %v4977, %v5331
      %v5378 = vadd.f32 %v4982, %v5336
      %v5379 = vadd.f32 %v4987, %v5341
      %v5380 = vadd.f32 %v4992, %v5346
      %v5381 = vld [vmem:[%s4254] sm:$0xff]
      %v5382 = vld [vmem:[%s4254 + $0x8] sm:$0xff]
      %v5383 = vld [vmem:[%s4254 + $0x18] sm:$0xff]
      %v5384 = vld [vmem:[%s4254 + $0x20] sm:$0xff]
      %v5385 = vld [vmem:[%s4254 + $0x30] sm:$0xff]
      %v5386 = vld [vmem:[%s4254 + $0x38] sm:$0xff]
      %v5387 = vld [vmem:[%s4254 + $0x48] sm:$0xff]
      %v5388 = vld [vmem:[%s4254 + $0x50] sm:$0xff]
      %v5389 = vld [vmem:[%s4254 + $0x60] sm:$0xff]
      %v5390 = vld [vmem:[%s4254 + $0x68] sm:$0xff]
      %v5391 = vld [vmem:[%s4254 + $0x78] sm:$0xff]
      %v5392 = vld [vmem:[%s4254 + $0x80] sm:$0xff]
      %v5393 = vld [vmem:[%s4254 + $0x90] sm:$0xff]
      %v5394 = vld [vmem:[%s4254 + $0x98] sm:$0xff]
      %v5395 = vld [vmem:[%s4254 + $0xa8] sm:$0xff]
      %v5396 = vld [vmem:[%s4254 + $0xb0] sm:$0xff]
      %v5397 = vld [vmem:[%s4254 + $0xc0] sm:$0xff]
      %v5398 = vld [vmem:[%s4254 + $0xc8] sm:$0xff]
      %v5399 = vld [vmem:[%s4254 + $0xd8] sm:$0xff]
      %v5400 = vld [vmem:[%s4254 + $0xe0] sm:$0xff]
      %v5401 = vld [vmem:[%s4254 + $0xf0] sm:$0xff]
      %v5402 = vld [vmem:[%s4254 + $0xf8] sm:$0xff]
      %v5403 = vld [vmem:[%s4254 + $0x108] sm:$0xff]
      %v5404 = vld [vmem:[%s4254 + $0x110] sm:$0xff]
      %v5405 = vld [vmem:[%s4254 + $0x120] sm:$0xff]
      %v5406 = vld [vmem:[%s4254 + $0x128] sm:$0xff]
      %v5407 = vld [vmem:[%s4254 + $0x138] sm:$0xff]
      %v5408 = vld [vmem:[%s4254 + $0x140] sm:$0xff]
      %v5409 = vld [vmem:[%s4254 + $0x150] sm:$0xff]
      %v5410 = vld [vmem:[%s4254 + $0x158] sm:$0xff]
      %v5411 = vld [vmem:[%s4254 + $0x168] sm:$0xff]
      %v5412 = vld [vmem:[%s4254 + $0x170] sm:$0xff]
      %s5413 = scalar_lea.vmem %s2, 24
      %v5414 = vld [vmem:[%s5413] sm:$0xff]
      %v5416 = vsel %vm225, %v5381, 0
      %v5419 = vsel %vm225, %v5382, 0
      %v5422 = vsel %vm225, %v5383, 0
      %v5425 = vsel %vm225, %v5384, 0
      %v5428 = vsel %vm225, %v5385, 0
      %v5431 = vsel %vm225, %v5386, 0
      %v5434 = vsel %vm225, %v5387, 0
      %v5437 = vsel %vm225, %v5388, 0
      %v5440 = vsel %vm225, %v5389, 0
      %v5443 = vsel %vm225, %v5390, 0
      %v5446 = vsel %vm225, %v5391, 0
      %v5449 = vsel %vm225, %v5392, 0
      %v5452 = vsel %vm225, %v5393, 0
      %v5455 = vsel %vm225, %v5394, 0
      %v5458 = vsel %vm225, %v5395, 0
      %v5461 = vsel %vm225, %v5396, 0
      %v5464 = vsel %vm225, %v5397, 0
      %v5467 = vsel %vm225, %v5398, 0
      %v5470 = vsel %vm225, %v5399, 0
      %v5473 = vsel %vm225, %v5400, 0
      %v5476 = vsel %vm225, %v5401, 0
      %v5479 = vsel %vm225, %v5402, 0
      %v5482 = vsel %vm225, %v5403, 0
      %v5485 = vsel %vm225, %v5404, 0
      %v5488 = vsel %vm225, %v5405, 0
      %v5491 = vsel %vm225, %v5406, 0
      %v5494 = vsel %vm225, %v5407, 0
      %v5497 = vsel %vm225, %v5408, 0
      %v5500 = vsel %vm225, %v5409, 0
      %v5503 = vsel %vm225, %v5410, 0
      %v5506 = vsel %vm225, %v5411, 0
      %v5509 = vsel %vm225, %v5412, 0
      %5511 = vmatprep.subr.mxu0 0.0
      %5512 = vmatpush1.msra.mxu0 %v5414
      %5513 = vmatprep.subr.mxu0 0.0
      %5514 = vmatpush1.msra.mxu0 0.0
      %5515 = vmatprep.subr.mxu0 0.0
      %5516 = vmatpush1.msra.mxu0 0.0
      %5517 = vmatprep.subr.mxu0 0.0
      %5518 = vmatpush1.msra.mxu0 0.0
      %5519 = vmatprep.subr.mxu0 0.0
      %5520 = vmatpush1.msra.mxu0 0.0
      %5521 = vmatprep.subr.mxu0 0.0
      %5522 = vmatpush1.msra.mxu0 0.0
      %5523 = vmatprep.subr.mxu0 0.0
      %5524 = vmatpush1.msra.mxu0 0.0
      %5525 = vmatprep.subr.mxu0 0.0
      %5526 = vmatpush1.msra.mxu0 0.0
      %5527 = vmatprep.subr.mxu0 0.0
      %5528 = vmatpush1.msra.mxu0 0.0
      %5529 = vmatprep.subr.mxu0 0.0
      %5530 = vmatpush1.msra.mxu0 0.0
      %5531 = vmatprep.subr.mxu0 0.0
      %5532 = vmatpush1.msra.mxu0 0.0
      %5533 = vmatprep.subr.mxu0 0.0
      %5534 = vmatpush1.msra.mxu0 0.0
      %5535 = vmatprep.subr.mxu0 0.0
      %5536 = vmatpush1.msra.mxu0 0.0
      %5537 = vmatprep.subr.mxu0 0.0
      %5538 = vmatpush1.msra.mxu0 0.0
      %5539 = vmatprep.subr.mxu0 0.0
      %5540 = vmatpush1.msra.mxu0 0.0
      %5541 = vmatprep.subr.mxu0 0.0
      %5542 = vmatpush1.msra.mxu0 0.0
      %5543 = vmatprep.subr.mxu0 0.0
      %5544 = vmatpush1.msra.mxu0 0.0
      %5545 = vmatprep.subr.mxu0 0.0
      %5546 = vmatpush1.msra.mxu0 0.0
      %5547 = vmatprep.subr.mxu0 0.0
      %5548 = vmatpush1.msra.mxu0 0.0
      %5549 = vmatprep.subr.mxu0 0.0
      %5550 = vmatpush1.msra.mxu0 0.0
      %5551 = vmatprep.subr.mxu0 0.0
      %5552 = vmatpush1.msra.mxu0 0.0
      %5553 = vmatprep.subr.mxu0 0.0
      %5554 = vmatpush1.msra.mxu0 0.0
      %5555 = vmatprep.subr.mxu0 0.0
      %5556 = vmatpush1.msra.mxu0 0.0
      %5557 = vmatprep.subr.mxu0 0.0
      %5558 = vmatpush1.msra.mxu0 0.0
      %5559 = vmatprep.subr.mxu0 0.0
      %5560 = vmatpush1.msra.mxu0 0.0
      %5561 = vmatprep.subr.mxu0 0.0
      %5562 = vmatpush1.msra.mxu0 0.0
      %5563 = vmatprep.subr.mxu0 0.0
      %5564 = vmatpush1.msra.mxu0 0.0
      %5565 = vmatprep.subr.mxu0 0.0
      %5566 = vmatpush1.msra.mxu0 0.0
      %5567 = vmatprep.subr.mxu0 0.0
      %5568 = vmatpush1.msra.mxu0 0.0
      %5569 = vmatprep.subr.mxu0 0.0
      %5570 = vmatpush1.msra.mxu0 0.0
      %5571 = vmatprep.subr.mxu0 0.0
      %5572 = vmatpush1.msra.mxu0 0.0
      %5573 = vmatprep.subr.mxu0 0.0
      %5574 = vmatpush1.msra.mxu0 0.0
      %5575 = vmatprep.mubr.f32.mxu0 0.0
      %5576 = vmatmul.mubr.f32.gmra.mrb[0].mxu0 %v5416
      %v5577 = vpop.f32.mrb[0].mxu0
      %v5578 = vadd.f32 0.0, %v5577
      %v5579 = vpop.f32.mrb[0].mxu0
      %5580 = vmatprep.mubr.f32.mxu0 0.0
      %5581 = vmatmul.mubr.f32.gmra.mrb[0].mxu0 %v5419
      %v5582 = vpop.f32.mrb[0].mxu0
      %v5583 = vadd.f32 0.0, %v5582
      %v5584 = vpop.f32.mrb[0].mxu0
      %5585 = vmatprep.mubr.f32.mxu0 0.0
      %5586 = vmatmul.mubr.f32.gmra.mrb[0].mxu0 %v5422
      %v5587 = vpop.f32.mrb[0].mxu0
      %v5588 = vadd.f32 0.0, %v5587
      %v5589 = vpop.f32.mrb[0].mxu0
      %5590 = vmatprep.mubr.f32.mxu0 0.0
      %5591 = vmatmul.mubr.f32.gmra.mrb[0].mxu0 %v5425
      %v5592 = vpop.f32.mrb[0].mxu0
      %v5593 = vadd.f32 0.0, %v5592
      %v5594 = vpop.f32.mrb[0].mxu0
      %5595 = vmatprep.mubr.f32.mxu0 0.0
      %5596 = vmatmul.mubr.f32.gmra.mrb[0].mxu0 %v5428
      %v5597 = vpop.f32.mrb[0].mxu0
      %v5598 = vadd.f32 0.0, %v5597
      %v5599 = vpop.f32.mrb[0].mxu0
      %5600 = vmatprep.mubr.f32.mxu0 0.0
      %5601 = vmatmul.mubr.f32.gmra.mrb[0].mxu0 %v5431
      %v5602 = vpop.f32.mrb[0].mxu0
      %v5603 = vadd.f32 0.0, %v5602
      %v5604 = vpop.f32.mrb[0].mxu0
      %5605 = vmatprep.mubr.f32.mxu0 0.0
      %5606 = vmatmul.mubr.f32.gmra.mrb[0].mxu0 %v5434
      %v5607 = vpop.f32.mrb[0].mxu0
      %v5608 = vadd.f32 0.0, %v5607
      %v5609 = vpop.f32.mrb[0].mxu0
      %5610 = vmatprep.mubr.f32.mxu0 0.0
      %5611 = vmatmul.mubr.f32.gmra.mrb[0].mxu0 %v5437
      %v5612 = vpop.f32.mrb[0].mxu0
      %v5613 = vadd.f32 0.0, %v5612
      %v5614 = vpop.f32.mrb[0].mxu0
      %5615 = vmatprep.mubr.f32.mxu0 0.0
      %5616 = vmatmul.mubr.f32.gmra.mrb[0].mxu0 %v5440
      %v5617 = vpop.f32.mrb[0].mxu0
      %v5618 = vadd.f32 0.0, %v5617
      %v5619 = vpop.f32.mrb[0].mxu0
      %5620 = vmatprep.mubr.f32.mxu0 0.0
      %5621 = vmatmul.mubr.f32.gmra.mrb[0].mxu0 %v5443
      %v5622 = vpop.f32.mrb[0].mxu0
      %v5623 = vadd.f32 0.0, %v5622
      %v5624 = vpop.f32.mrb[0].mxu0
      %5625 = vmatprep.mubr.f32.mxu0 0.0
      %5626 = vmatmul.mubr.f32.gmra.mrb[0].mxu0 %v5446
      %v5627 = vpop.f32.mrb[0].mxu0
      %v5628 = vadd.f32 0.0, %v5627
      %v5629 = vpop.f32.mrb[0].mxu0
      %5630 = vmatprep.mubr.f32.mxu0 0.0
      %5631 = vmatmul.mubr.f32.gmra.mrb[0].mxu0 %v5449
      %v5632 = vpop.f32.mrb[0].mxu0
      %v5633 = vadd.f32 0.0, %v5632
      %v5634 = vpop.f32.mrb[0].mxu0
      %5635 = vmatprep.mubr.f32.mxu0 0.0
      %5636 = vmatmul.mubr.f32.gmra.mrb[0].mxu0 %v5452
      %v5637 = vpop.f32.mrb[0].mxu0
      %v5638 = vadd.f32 0.0, %v5637
      %v5639 = vpop.f32.mrb[0].mxu0
      %5640 = vmatprep.mubr.f32.mxu0 0.0
      %5641 = vmatmul.mubr.f32.gmra.mrb[0].mxu0 %v5455
      %v5642 = vpop.f32.mrb[0].mxu0
      %v5643 = vadd.f32 0.0, %v5642
      %v5644 = vpop.f32.mrb[0].mxu0
      %5645 = vmatprep.mubr.f32.mxu0 0.0
      %5646 = vmatmul.mubr.f32.gmra.mrb[0].mxu0 %v5458
      %v5647 = vpop.f32.mrb[0].mxu0
      %v5648 = vadd.f32 0.0, %v5647
      %v5649 = vpop.f32.mrb[0].mxu0
      %5650 = vmatprep.mubr.f32.mxu0 0.0
      %5651 = vmatmul.mubr.f32.gmra.mrb[0].mxu0 %v5461
      %v5652 = vpop.f32.mrb[0].mxu0
      %v5653 = vadd.f32 0.0, %v5652
      %v5654 = vpop.f32.mrb[0].mxu0
      %5655 = vmatprep.mubr.f32.mxu0 0.0
      %5656 = vmatmul.mubr.f32.gmra.mrb[0].mxu0 %v5464
      %v5657 = vpop.f32.mrb[0].mxu0
      %v5658 = vadd.f32 0.0, %v5657
      %v5659 = vpop.f32.mrb[0].mxu0
      %5660 = vmatprep.mubr.f32.mxu0 0.0
      %5661 = vmatmul.mubr.f32.gmra.mrb[0].mxu0 %v5467
      %v5662 = vpop.f32.mrb[0].mxu0
      %v5663 = vadd.f32 0.0, %v5662
      %v5664 = vpop.f32.mrb[0].mxu0
      %5665 = vmatprep.mubr.f32.mxu0 0.0
      %5666 = vmatmul.mubr.f32.gmra.mrb[0].mxu0 %v5470
      %v5667 = vpop.f32.mrb[0].mxu0
      %v5668 = vadd.f32 0.0, %v5667
      %v5669 = vpop.f32.mrb[0].mxu0
      %5670 = vmatprep.mubr.f32.mxu0 0.0
      %5671 = vmatmul.mubr.f32.gmra.mrb[0].mxu0 %v5473
      %v5672 = vpop.f32.mrb[0].mxu0
      %v5673 = vadd.f32 0.0, %v5672
      %v5674 = vpop.f32.mrb[0].mxu0
      %5675 = vmatprep.mubr.f32.mxu0 0.0
      %5676 = vmatmul.mubr.f32.gmra.mrb[0].mxu0 %v5476
      %v5677 = vpop.f32.mrb[0].mxu0
      %v5678 = vadd.f32 0.0, %v5677
      %v5679 = vpop.f32.mrb[0].mxu0
      %5680 = vmatprep.mubr.f32.mxu0 0.0
      %5681 = vmatmul.mubr.f32.gmra.mrb[0].mxu0 %v5479
      %v5682 = vpop.f32.mrb[0].mxu0
      %v5683 = vadd.f32 0.0, %v5682
      %v5684 = vpop.f32.mrb[0].mxu0
      %5685 = vmatprep.mubr.f32.mxu0 0.0
      %5686 = vmatmul.mubr.f32.gmra.mrb[0].mxu0 %v5482
      %v5687 = vpop.f32.mrb[0].mxu0
      %v5688 = vadd.f32 0.0, %v5687
      %v5689 = vpop.f32.mrb[0].mxu0
      %5690 = vmatprep.mubr.f32.mxu0 0.0
      %5691 = vmatmul.mubr.f32.gmra.mrb[0].mxu0 %v5485
      %v5692 = vpop.f32.mrb[0].mxu0
      %v5693 = vadd.f32 0.0, %v5692
      %v5694 = vpop.f32.mrb[0].mxu0
      %5695 = vmatprep.mubr.f32.mxu0 0.0
      %5696 = vmatmul.mubr.f32.gmra.mrb[0].mxu0 %v5488
      %v5697 = vpop.f32.mrb[0].mxu0
      %v5698 = vadd.f32 0.0, %v5697
      %v5699 = vpop.f32.mrb[0].mxu0
      %5700 = vmatprep.mubr.f32.mxu0 0.0
      %5701 = vmatmul.mubr.f32.gmra.mrb[0].mxu0 %v5491
      %v5702 = vpop.f32.mrb[0].mxu0
      %v5703 = vadd.f32 0.0, %v5702
      %v5704 = vpop.f32.mrb[0].mxu0
      %5705 = vmatprep.mubr.f32.mxu0 0.0
      %5706 = vmatmul.mubr.f32.gmra.mrb[0].mxu0 %v5494
      %v5707 = vpop.f32.mrb[0].mxu0
      %v5708 = vadd.f32 0.0, %v5707
      %v5709 = vpop.f32.mrb[0].mxu0
      %5710 = vmatprep.mubr.f32.mxu0 0.0
      %5711 = vmatmul.mubr.f32.gmra.mrb[0].mxu0 %v5497
      %v5712 = vpop.f32.mrb[0].mxu0
      %v5713 = vadd.f32 0.0, %v5712
      %v5714 = vpop.f32.mrb[0].mxu0
      %5715 = vmatprep.mubr.f32.mxu0 0.0
      %5716 = vmatmul.mubr.f32.gmra.mrb[0].mxu0 %v5500
      %v5717 = vpop.f32.mrb[0].mxu0
      %v5718 = vadd.f32 0.0, %v5717
      %v5719 = vpop.f32.mrb[0].mxu0
      %5720 = vmatprep.mubr.f32.mxu0 0.0
      %5721 = vmatmul.mubr.f32.gmra.mrb[0].mxu0 %v5503
      %v5722 = vpop.f32.mrb[0].mxu0
      %v5723 = vadd.f32 0.0, %v5722
      %v5724 = vpop.f32.mrb[0].mxu0
      %5725 = vmatprep.mubr.f32.mxu0 0.0
      %5726 = vmatmul.mubr.f32.gmra.mrb[0].mxu0 %v5506
      %v5727 = vpop.f32.mrb[0].mxu0
      %v5728 = vadd.f32 0.0, %v5727
      %v5729 = vpop.f32.mrb[0].mxu0
      %5730 = vmatprep.mubr.f32.mxu0 0.0
      %5731 = vmatmul.mubr.f32.gmra.mrb[0].mxu0 %v5509
      %v5732 = vpop.f32.mrb[0].mxu0
      %v5733 = vadd.f32 0.0, %v5732
      %v5734 = vpop.f32.mrb[0].mxu0
      %5735 = vdwg.mxu0
      %v5736 = vadd.f32 %v5349, %v5578
      %v5737 = vadd.f32 %v5350, %v5583
      %v5738 = vadd.f32 %v5351, %v5588
      %v5739 = vadd.f32 %v5352, %v5593
      %v5740 = vadd.f32 %v5353, %v5598
      %v5741 = vadd.f32 %v5354, %v5603
      %v5742 = vadd.f32 %v5355, %v5608
      %v5743 = vadd.f32 %v5356, %v5613
      %v5744 = vadd.f32 %v5357, %v5618
      %v5745 = vadd.f32 %v5358, %v5623
      %v5746 = vadd.f32 %v5359, %v5628
      %v5747 = vadd.f32 %v5360, %v5633
      %v5748 = vadd.f32 %v5361, %v5638
      %v5749 = vadd.f32 %v5362, %v5643
      %v5750 = vadd.f32 %v5363, %v5648
      %v5751 = vadd.f32 %v5364, %v5653
      %v5752 = vadd.f32 %v5365, %v5658
      %v5753 = vadd.f32 %v5366, %v5663
      %v5754 = vadd.f32 %v5367, %v5668
      %v5755 = vadd.f32 %v5368, %v5673
      %v5756 = vadd.f32 %v5369, %v5678
      %v5757 = vadd.f32 %v5370, %v5683
      %v5758 = vadd.f32 %v5371, %v5688
      %v5759 = vadd.f32 %v5372, %v5693
      %v5760 = vadd.f32 %v5373, %v5698
      %v5761 = vadd.f32 %v5374, %v5703
      %v5762 = vadd.f32 %v5375, %v5708
      %v5763 = vadd.f32 %v5376, %v5713
      %v5764 = vadd.f32 %v5377, %v5718
      %v5765 = vadd.f32 %v5378, %v5723
      %v5766 = vadd.f32 %v5379, %v5728
      %v5767 = vadd.f32 %v5380, %v5733
      %v5768 = vld [vmem:[%s4254 + $0x1] sm:$0xff]
      %v5769 = vld [vmem:[%s4254 + $0x9] sm:$0xff]
      %v5770 = vld [vmem:[%s4254 + $0x19] sm:$0xff]
      %v5771 = vld [vmem:[%s4254 + $0x21] sm:$0xff]
      %v5772 = vld [vmem:[%s4254 + $0x31] sm:$0xff]
      %v5773 = vld [vmem:[%s4254 + $0x39] sm:$0xff]
      %v5774 = vld [vmem:[%s4254 + $0x49] sm:$0xff]
      %v5775 = vld [vmem:[%s4254 + $0x51] sm:$0xff]
      %v5776 = vld [vmem:[%s4254 + $0x61] sm:$0xff]
      %v5777 = vld [vmem:[%s4254 + $0x69] sm:$0xff]
      %v5778 = vld [vmem:[%s4254 + $0x79] sm:$0xff]
      %v5779 = vld [vmem:[%s4254 + $0x81] sm:$0xff]
      %v5780 = vld [vmem:[%s4254 + $0x91] sm:$0xff]
      %v5781 = vld [vmem:[%s4254 + $0x99] sm:$0xff]
      %v5782 = vld [vmem:[%s4254 + $0xa9] sm:$0xff]
      %v5783 = vld [vmem:[%s4254 + $0xb1] sm:$0xff]
      %v5784 = vld [vmem:[%s4254 + $0xc1] sm:$0xff]
      %v5785 = vld [vmem:[%s4254 + $0xc9] sm:$0xff]
      %v5786 = vld [vmem:[%s4254 + $0xd9] sm:$0xff]
      %v5787 = vld [vmem:[%s4254 + $0xe1] sm:$0xff]
      %v5788 = vld [vmem:[%s4254 + $0xf1] sm:$0xff]
      %v5789 = vld [vmem:[%s4254 + $0xf9] sm:$0xff]
      %v5790 = vld [vmem:[%s4254 + $0x109] sm:$0xff]
      %v5791 = vld [vmem:[%s4254 + $0x111] sm:$0xff]
      %v5792 = vld [vmem:[%s4254 + $0x121] sm:$0xff]
      %v5793 = vld [vmem:[%s4254 + $0x129] sm:$0xff]
      %v5794 = vld [vmem:[%s4254 + $0x139] sm:$0xff]
      %v5795 = vld [vmem:[%s4254 + $0x141] sm:$0xff]
      %v5796 = vld [vmem:[%s4254 + $0x151] sm:$0xff]
      %v5797 = vld [vmem:[%s4254 + $0x159] sm:$0xff]
      %v5798 = vld [vmem:[%s4254 + $0x169] sm:$0xff]
      %v5799 = vld [vmem:[%s4254 + $0x171] sm:$0xff]
      %v5800 = vld [vmem:[%s5413 + $0x8] sm:$0xff]
      %v5802 = vsel %vm225, %v5768, 0
      %v5805 = vsel %vm225, %v5769, 0
      %v5808 = vsel %vm225, %v5770, 0
      %v5811 = vsel %vm225, %v5771, 0
      %v5814 = vsel %vm225, %v5772, 0
      %v5817 = vsel %vm225, %v5773, 0
      %v5820 = vsel %vm225, %v5774, 0
      %v5823 = vsel %vm225, %v5775, 0
      %v5826 = vsel %vm225, %v5776, 0
      %v5829 = vsel %vm225, %v5777, 0
      %v5832 = vsel %vm225, %v5778, 0
      %v5835 = vsel %vm225, %v5779, 0
      %v5838 = vsel %vm225, %v5780, 0
      %v5841 = vsel %vm225, %v5781, 0
      %v5844 = vsel %vm225, %v5782, 0
      %v5847 = vsel %vm225, %v5783, 0
      %v5850 = vsel %vm225, %v5784, 0
      %v5853 = vsel %vm225, %v5785, 0
      %v5856 = vsel %vm225, %v5786, 0
      %v5859 = vsel %vm225, %v5787, 0
      %v5862 = vsel %vm225, %v5788, 0
      %v5865 = vsel %vm225, %v5789, 0
      %v5868 = vsel %vm225, %v5790, 0
      %v5871 = vsel %vm225, %v5791, 0
      %v5874 = vsel %vm225, %v5792, 0
      %v5877 = vsel %vm225, %v5793, 0
      %v5880 = vsel %vm225, %v5794, 0
      %v5883 = vsel %vm225, %v5795, 0
      %v5886 = vsel %vm225, %v5796, 0
      %v5889 = vsel %vm225, %v5797, 0
      %v5892 = vsel %vm225, %v5798, 0
      %v5895 = vsel %vm225, %v5799, 0
      %5897 = vmatprep.subr.mxu0 0.0
      %5898 = vmatpush1.msra.mxu0 %v5800
      %5899 = vmatprep.subr.mxu0 0.0
      %5900 = vmatpush1.msra.mxu0 0.0
      %5901 = vmatprep.subr.mxu0 0.0
      %5902 = vmatpush1.msra.mxu0 0.0
      %5903 = vmatprep.subr.mxu0 0.0
      %5904 = vmatpush1.msra.mxu0 0.0
      %5905 = vmatprep.subr.mxu0 0.0
      %5906 = vmatpush1.msra.mxu0 0.0
      %5907 = vmatprep.subr.mxu0 0.0
      %5908 = vmatpush1.msra.mxu0 0.0
      %5909 = vmatprep.subr.mxu0 0.0
      %5910 = vmatpush1.msra.mxu0 0.0
      %5911 = vmatprep.subr.mxu0 0.0
      %5912 = vmatpush1.msra.mxu0 0.0
      %5913 = vmatprep.subr.mxu0 0.0
      %5914 = vmatpush1.msra.mxu0 0.0
      %5915 = vmatprep.subr.mxu0 0.0
      %5916 = vmatpush1.msra.mxu0 0.0
      %5917 = vmatprep.subr.mxu0 0.0
      %5918 = vmatpush1.msra.mxu0 0.0
      %5919 = vmatprep.subr.mxu0 0.0
      %5920 = vmatpush1.msra.mxu0 0.0
      %5921 = vmatprep.subr.mxu0 0.0
      %5922 = vmatpush1.msra.mxu0 0.0
      %5923 = vmatprep.subr.mxu0 0.0
      %5924 = vmatpush1.msra.mxu0 0.0
      %5925 = vmatprep.subr.mxu0 0.0
      %5926 = vmatpush1.msra.mxu0 0.0
      %5927 = vmatprep.subr.mxu0 0.0
      %5928 = vmatpush1.msra.mxu0 0.0
      %5929 = vmatprep.subr.mxu0 0.0
      %5930 = vmatpush1.msra.mxu0 0.0
      %5931 = vmatprep.subr.mxu0 0.0
      %5932 = vmatpush1.msra.mxu0 0.0
      %5933 = vmatprep.subr.mxu0 0.0
      %5934 = vmatpush1.msra.mxu0 0.0
      %5935 = vmatprep.subr.mxu0 0.0
      %5936 = vmatpush1.msra.mxu0 0.0
      %5937 = vmatprep.subr.mxu0 0.0
      %5938 = vmatpush1.msra.mxu0 0.0
      %5939 = vmatprep.subr.mxu0 0.0
      %5940 = vmatpush1.msra.mxu0 0.0
      %5941 = vmatprep.subr.mxu0 0.0
      %5942 = vmatpush1.msra.mxu0 0.0
      %5943 = vmatprep.subr.mxu0 0.0
      %5944 = vmatpush1.msra.mxu0 0.0
      %5945 = vmatprep.subr.mxu0 0.0
      %5946 = vmatpush1.msra.mxu0 0.0
      %5947 = vmatprep.subr.mxu0 0.0
      %5948 = vmatpush1.msra.mxu0 0.0
      %5949 = vmatprep.subr.mxu0 0.0
      %5950 = vmatpush1.msra.mxu0 0.0
      %5951 = vmatprep.subr.mxu0 0.0
      %5952 = vmatpush1.msra.mxu0 0.0
      %5953 = vmatprep.subr.mxu0 0.0
      %5954 = vmatpush1.msra.mxu0 0.0
      %5955 = vmatprep.subr.mxu0 0.0
      %5956 = vmatpush1.msra.mxu0 0.0
      %5957 = vmatprep.subr.mxu0 0.0
      %5958 = vmatpush1.msra.mxu0 0.0
      %5959 = vmatprep.subr.mxu0 0.0
      %5960 = vmatpush1.msra.mxu0 0.0
      %5961 = vmatprep.mubr.f32.mxu0 0.0
      %5962 = vmatmul.mubr.f32.gmra.mrb[0].mxu0 %v5802
      %v5963 = vpop.f32.mrb[0].mxu0
      %v5964 = vadd.f32 0.0, %v5963
      %v5965 = vpop.f32.mrb[0].mxu0
      %5966 = vmatprep.mubr.f32.mxu0 0.0
      %5967 = vmatmul.mubr.f32.gmra.mrb[0].mxu0 %v5805
      %v5968 = vpop.f32.mrb[0].mxu0
      %v5969 = vadd.f32 0.0, %v5968
      %v5970 = vpop.f32.mrb[0].mxu0
      %5971 = vmatprep.mubr.f32.mxu0 0.0
      %5972 = vmatmul.mubr.f32.gmra.mrb[0].mxu0 %v5808
      %v5973 = vpop.f32.mrb[0].mxu0
      %v5974 = vadd.f32 0.0, %v5973
      %v5975 = vpop.f32.mrb[0].mxu0
      %5976 = vmatprep.mubr.f32.mxu0 0.0
      %5977 = vmatmul.mubr.f32.gmra.mrb[0].mxu0 %v5811
      %v5978 = vpop.f32.mrb[0].mxu0
      %v5979 = vadd.f32 0.0, %v5978
      %v5980 = vpop.f32.mrb[0].mxu0
      %5981 = vmatprep.mubr.f32.mxu0 0.0
      %5982 = vmatmul.mubr.f32.gmra.mrb[0].mxu0 %v5814
      %v5983 = vpop.f32.mrb[0].mxu0
      %v5984 = vadd.f32 0.0, %v5983
      %v5985 = vpop.f32.mrb[0].mxu0
      %5986 = vmatprep.mubr.f32.mxu0 0.0
      %5987 = vmatmul.mubr.f32.gmra.mrb[0].mxu0 %v5817
      %v5988 = vpop.f32.mrb[0].mxu0
      %v5989 = vadd.f32 0.0, %v5988
      %v5990 = vpop.f32.mrb[0].mxu0
      %5991 = vmatprep.mubr.f32.mxu0 0.0
      %5992 = vmatmul.mubr.f32.gmra.mrb[0].mxu0 %v5820
      %v5993 = vpop.f32.mrb[0].mxu0
      %v5994 = vadd.f32 0.0, %v5993
      %v5995 = vpop.f32.mrb[0].mxu0
      %5996 = vmatprep.mubr.f32.mxu0 0.0
      %5997 = vmatmul.mubr.f32.gmra.mrb[0].mxu0 %v5823
      %v5998 = vpop.f32.mrb[0].mxu0
      %v5999 = vadd.f32 0.0, %v5998
      %v6000 = vpop.f32.mrb[0].mxu0
      %6001 = vmatprep.mubr.f32.mxu0 0.0
      %6002 = vmatmul.mubr.f32.gmra.mrb[0].mxu0 %v5826
      %v6003 = vpop.f32.mrb[0].mxu0
      %v6004 = vadd.f32 0.0, %v6003
      %v6005 = vpop.f32.mrb[0].mxu0
      %6006 = vmatprep.mubr.f32.mxu0 0.0
      %6007 = vmatmul.mubr.f32.gmra.mrb[0].mxu0 %v5829
      %v6008 = vpop.f32.mrb[0].mxu0
      %v6009 = vadd.f32 0.0, %v6008
      %v6010 = vpop.f32.mrb[0].mxu0
      %6011 = vmatprep.mubr.f32.mxu0 0.0
      %6012 = vmatmul.mubr.f32.gmra.mrb[0].mxu0 %v5832
      %v6013 = vpop.f32.mrb[0].mxu0
      %v6014 = vadd.f32 0.0, %v6013
      %v6015 = vpop.f32.mrb[0].mxu0
      %6016 = vmatprep.mubr.f32.mxu0 0.0
      %6017 = vmatmul.mubr.f32.gmra.mrb[0].mxu0 %v5835
      %v6018 = vpop.f32.mrb[0].mxu0
      %v6019 = vadd.f32 0.0, %v6018
      %v6020 = vpop.f32.mrb[0].mxu0
      %6021 = vmatprep.mubr.f32.mxu0 0.0
      %6022 = vmatmul.mubr.f32.gmra.mrb[0].mxu0 %v5838
      %v6023 = vpop.f32.mrb[0].mxu0
      %v6024 = vadd.f32 0.0, %v6023
      %v6025 = vpop.f32.mrb[0].mxu0
      %6026 = vmatprep.mubr.f32.mxu0 0.0
      %6027 = vmatmul.mubr.f32.gmra.mrb[0].mxu0 %v5841
      %v6028 = vpop.f32.mrb[0].mxu0
      %v6029 = vadd.f32 0.0, %v6028
      %v6030 = vpop.f32.mrb[0].mxu0
      %6031 = vmatprep.mubr.f32.mxu0 0.0
      %6032 = vmatmul.mubr.f32.gmra.mrb[0].mxu0 %v5844
      %v6033 = vpop.f32.mrb[0].mxu0
      %v6034 = vadd.f32 0.0, %v6033
      %v6035 = vpop.f32.mrb[0].mxu0
      %6036 = vmatprep.mubr.f32.mxu0 0.0
      %6037 = vmatmul.mubr.f32.gmra.mrb[0].mxu0 %v5847
      %v6038 = vpop.f32.mrb[0].mxu0
      %v6039 = vadd.f32 0.0, %v6038
      %v6040 = vpop.f32.mrb[0].mxu0
      %6041 = vmatprep.mubr.f32.mxu0 0.0
      %6042 = vmatmul.mubr.f32.gmra.mrb[0].mxu0 %v5850
      %v6043 = vpop.f32.mrb[0].mxu0
      %v6044 = vadd.f32 0.0, %v6043
      %v6045 = vpop.f32.mrb[0].mxu0
      %6046 = vmatprep.mubr.f32.mxu0 0.0
      %6047 = vmatmul.mubr.f32.gmra.mrb[0].mxu0 %v5853
      %v6048 = vpop.f32.mrb[0].mxu0
      %v6049 = vadd.f32 0.0, %v6048
      %v6050 = vpop.f32.mrb[0].mxu0
      %6051 = vmatprep.mubr.f32.mxu0 0.0
      %6052 = vmatmul.mubr.f32.gmra.mrb[0].mxu0 %v5856
      %v6053 = vpop.f32.mrb[0].mxu0
      %v6054 = vadd.f32 0.0, %v6053
      %v6055 = vpop.f32.mrb[0].mxu0
      %6056 = vmatprep.mubr.f32.mxu0 0.0
      %6057 = vmatmul.mubr.f32.gmra.mrb[0].mxu0 %v5859
      %v6058 = vpop.f32.mrb[0].mxu0
      %v6059 = vadd.f32 0.0, %v6058
      %v6060 = vpop.f32.mrb[0].mxu0
      %6061 = vmatprep.mubr.f32.mxu0 0.0
      %6062 = vmatmul.mubr.f32.gmra.mrb[0].mxu0 %v5862
      %v6063 = vpop.f32.mrb[0].mxu0
      %v6064 = vadd.f32 0.0, %v6063
      %v6065 = vpop.f32.mrb[0].mxu0
      %6066 = vmatprep.mubr.f32.mxu0 0.0
      %6067 = vmatmul.mubr.f32.gmra.mrb[0].mxu0 %v5865
      %v6068 = vpop.f32.mrb[0].mxu0
      %v6069 = vadd.f32 0.0, %v6068
      %v6070 = vpop.f32.mrb[0].mxu0
      %6071 = vmatprep.mubr.f32.mxu0 0.0
      %6072 = vmatmul.mubr.f32.gmra.mrb[0].mxu0 %v5868
      %v6073 = vpop.f32.mrb[0].mxu0
      %v6074 = vadd.f32 0.0, %v6073
      %v6075 = vpop.f32.mrb[0].mxu0
      %6076 = vmatprep.mubr.f32.mxu0 0.0
      %6077 = vmatmul.mubr.f32.gmra.mrb[0].mxu0 %v5871
      %v6078 = vpop.f32.mrb[0].mxu0
      %v6079 = vadd.f32 0.0, %v6078
      %v6080 = vpop.f32.mrb[0].mxu0
      %6081 = vmatprep.mubr.f32.mxu0 0.0
      %6082 = vmatmul.mubr.f32.gmra.mrb[0].mxu0 %v5874
      %v6083 = vpop.f32.mrb[0].mxu0
      %v6084 = vadd.f32 0.0, %v6083
      %v6085 = vpop.f32.mrb[0].mxu0
      %6086 = vmatprep.mubr.f32.mxu0 0.0
      %6087 = vmatmul.mubr.f32.gmra.mrb[0].mxu0 %v5877
      %v6088 = vpop.f32.mrb[0].mxu0
      %v6089 = vadd.f32 0.0, %v6088
      %v6090 = vpop.f32.mrb[0].mxu0
      %6091 = vmatprep.mubr.f32.mxu0 0.0
      %6092 = vmatmul.mubr.f32.gmra.mrb[0].mxu0 %v5880
      %v6093 = vpop.f32.mrb[0].mxu0
      %v6094 = vadd.f32 0.0, %v6093
      %v6095 = vpop.f32.mrb[0].mxu0
      %6096 = vmatprep.mubr.f32.mxu0 0.0
      %6097 = vmatmul.mubr.f32.gmra.mrb[0].mxu0 %v5883
      %v6098 = vpop.f32.mrb[0].mxu0
      %v6099 = vadd.f32 0.0, %v6098
      %v6100 = vpop.f32.mrb[0].mxu0
      %6101 = vmatprep.mubr.f32.mxu0 0.0
      %6102 = vmatmul.mubr.f32.gmra.mrb[0].mxu0 %v5886
      %v6103 = vpop.f32.mrb[0].mxu0
      %v6104 = vadd.f32 0.0, %v6103
      %v6105 = vpop.f32.mrb[0].mxu0
      %6106 = vmatprep.mubr.f32.mxu0 0.0
      %6107 = vmatmul.mubr.f32.gmra.mrb[0].mxu0 %v5889
      %v6108 = vpop.f32.mrb[0].mxu0
      %v6109 = vadd.f32 0.0, %v6108
      %v6110 = vpop.f32.mrb[0].mxu0
      %6111 = vmatprep.mubr.f32.mxu0 0.0
      %6112 = vmatmul.mubr.f32.gmra.mrb[0].mxu0 %v5892
      %v6113 = vpop.f32.mrb[0].mxu0
      %v6114 = vadd.f32 0.0, %v6113
      %v6115 = vpop.f32.mrb[0].mxu0
      %6116 = vmatprep.mubr.f32.mxu0 0.0
      %6117 = vmatmul.mubr.f32.gmra.mrb[0].mxu0 %v5895
      %v6118 = vpop.f32.mrb[0].mxu0
      %v6119 = vadd.f32 0.0, %v6118
      %v6120 = vpop.f32.mrb[0].mxu0
      %6121 = vdwg.mxu0
      %v6122 = vadd.f32 %v5736, %v5964
      %v6123 = vadd.f32 %v5737, %v5969
      %v6124 = vadd.f32 %v5738, %v5974
      %v6125 = vadd.f32 %v5739, %v5979
      %v6126 = vadd.f32 %v5740, %v5984
      %v6127 = vadd.f32 %v5741, %v5989
      %v6128 = vadd.f32 %v5742, %v5994
      %v6129 = vadd.f32 %v5743, %v5999
      %v6130 = vadd.f32 %v5744, %v6004
      %v6131 = vadd.f32 %v5745, %v6009
      %v6132 = vadd.f32 %v5746, %v6014
      %v6133 = vadd.f32 %v5747, %v6019
      %v6134 = vadd.f32 %v5748, %v6024
      %v6135 = vadd.f32 %v5749, %v6029
      %v6136 = vadd.f32 %v5750, %v6034
      %v6137 = vadd.f32 %v5751, %v6039
      %v6138 = vadd.f32 %v5752, %v6044
      %v6139 = vadd.f32 %v5753, %v6049
      %v6140 = vadd.f32 %v5754, %v6054
      %v6141 = vadd.f32 %v5755, %v6059
      %v6142 = vadd.f32 %v5756, %v6064
      %v6143 = vadd.f32 %v5757, %v6069
      %v6144 = vadd.f32 %v5758, %v6074
      %v6145 = vadd.f32 %v5759, %v6079
      %v6146 = vadd.f32 %v5760, %v6084
      %v6147 = vadd.f32 %v5761, %v6089
      %v6148 = vadd.f32 %v5762, %v6094
      %v6149 = vadd.f32 %v5763, %v6099
      %v6150 = vadd.f32 %v5764, %v6104
      %v6151 = vadd.f32 %v5765, %v6109
      %v6152 = vadd.f32 %v5766, %v6114
      %v6153 = vadd.f32 %v5767, %v6119
      %v6154 = vld [vmem:[%s4254 + $0x2] sm:$0xff]
      %v6155 = vld [vmem:[%s4254 + $0xa] sm:$0xff]
      %v6156 = vld [vmem:[%s4254 + $0x1a] sm:$0xff]
      %v6157 = vld [vmem:[%s4254 + $0x22] sm:$0xff]
      %v6158 = vld [vmem:[%s4254 + $0x32] sm:$0xff]
      %v6159 = vld [vmem:[%s4254 + $0x3a] sm:$0xff]
      %v6160 = vld [vmem:[%s4254 + $0x4a] sm:$0xff]
      %v6161 = vld [vmem:[%s4254 + $0x52] sm:$0xff]
      %v6162 = vld [vmem:[%s4254 + $0x62] sm:$0xff]
      %v6163 = vld [vmem:[%s4254 + $0x6a] sm:$0xff]
      %v6164 = vld [vmem:[%s4254 + $0x7a] sm:$0xff]
      %v6165 = vld [vmem:[%s4254 + $0x82] sm:$0xff]
      %v6166 = vld [vmem:[%s4254 + $0x92] sm:$0xff]
      %v6167 = vld [vmem:[%s4254 + $0x9a] sm:$0xff]
      %v6168 = vld [vmem:[%s4254 + $0xaa] sm:$0xff]
      %v6169 = vld [vmem:[%s4254 + $0xb2] sm:$0xff]
      %v6170 = vld [vmem:[%s4254 + $0xc2] sm:$0xff]
      %v6171 = vld [vmem:[%s4254 + $0xca] sm:$0xff]
      %v6172 = vld [vmem:[%s4254 + $0xda] sm:$0xff]
      %v6173 = vld [vmem:[%s4254 + $0xe2] sm:$0xff]
      %v6174 = vld [vmem:[%s4254 + $0xf2] sm:$0xff]
      %v6175 = vld [vmem:[%s4254 + $0xfa] sm:$0xff]
      %v6176 = vld [vmem:[%s4254 + $0x10a] sm:$0xff]
      %v6177 = vld [vmem:[%s4254 + $0x112] sm:$0xff]
      %v6178 = vld [vmem:[%s4254 + $0x122] sm:$0xff]
      %v6179 = vld [vmem:[%s4254 + $0x12a] sm:$0xff]
      %v6180 = vld [vmem:[%s4254 + $0x13a] sm:$0xff]
      %v6181 = vld [vmem:[%s4254 + $0x142] sm:$0xff]
      %v6182 = vld [vmem:[%s4254 + $0x152] sm:$0xff]
      %v6183 = vld [vmem:[%s4254 + $0x15a] sm:$0xff]
      %v6184 = vld [vmem:[%s4254 + $0x16a] sm:$0xff]
      %v6185 = vld [vmem:[%s4254 + $0x172] sm:$0xff]
      %v6186 = vld [vmem:[%s5413 + $0x10] sm:$0xff]
      %v6188 = vsel %vm225, %v6154, 0
      %v6191 = vsel %vm225, %v6155, 0
      %v6194 = vsel %vm225, %v6156, 0
      %v6197 = vsel %vm225, %v6157, 0
      %v6200 = vsel %vm225, %v6158, 0
      %v6203 = vsel %vm225, %v6159, 0
      %v6206 = vsel %vm225, %v6160, 0
      %v6209 = vsel %vm225, %v6161, 0
      %v6212 = vsel %vm225, %v6162, 0
      %v6215 = vsel %vm225, %v6163, 0
      %v6218 = vsel %vm225, %v6164, 0
      %v6221 = vsel %vm225, %v6165, 0
      %v6224 = vsel %vm225, %v6166, 0
      %v6227 = vsel %vm225, %v6167, 0
      %v6230 = vsel %vm225, %v6168, 0
      %v6233 = vsel %vm225, %v6169, 0
      %v6236 = vsel %vm225, %v6170, 0
      %v6239 = vsel %vm225, %v6171, 0
      %v6242 = vsel %vm225, %v6172, 0
      %v6245 = vsel %vm225, %v6173, 0
      %v6248 = vsel %vm225, %v6174, 0
      %v6251 = vsel %vm225, %v6175, 0
      %v6254 = vsel %vm225, %v6176, 0
      %v6257 = vsel %vm225, %v6177, 0
      %v6260 = vsel %vm225, %v6178, 0
      %v6263 = vsel %vm225, %v6179, 0
      %v6266 = vsel %vm225, %v6180, 0
      %v6269 = vsel %vm225, %v6181, 0
      %v6272 = vsel %vm225, %v6182, 0
      %v6275 = vsel %vm225, %v6183, 0
      %v6278 = vsel %vm225, %v6184, 0
      %v6281 = vsel %vm225, %v6185, 0
      %6283 = vmatprep.subr.mxu0 0.0
      %6284 = vmatpush1.msra.mxu0 %v6186
      %6285 = vmatprep.subr.mxu0 0.0
      %6286 = vmatpush1.msra.mxu0 0.0
      %6287 = vmatprep.subr.mxu0 0.0
      %6288 = vmatpush1.msra.mxu0 0.0
      %6289 = vmatprep.subr.mxu0 0.0
      %6290 = vmatpush1.msra.mxu0 0.0
      %6291 = vmatprep.subr.mxu0 0.0
      %6292 = vmatpush1.msra.mxu0 0.0
      %6293 = vmatprep.subr.mxu0 0.0
      %6294 = vmatpush1.msra.mxu0 0.0
      %6295 = vmatprep.subr.mxu0 0.0
      %6296 = vmatpush1.msra.mxu0 0.0
      %6297 = vmatprep.subr.mxu0 0.0
      %6298 = vmatpush1.msra.mxu0 0.0
      %6299 = vmatprep.subr.mxu0 0.0
      %6300 = vmatpush1.msra.mxu0 0.0
      %6301 = vmatprep.subr.mxu0 0.0
      %6302 = vmatpush1.msra.mxu0 0.0
      %6303 = vmatprep.subr.mxu0 0.0
      %6304 = vmatpush1.msra.mxu0 0.0
      %6305 = vmatprep.subr.mxu0 0.0
      %6306 = vmatpush1.msra.mxu0 0.0
      %6307 = vmatprep.subr.mxu0 0.0
      %6308 = vmatpush1.msra.mxu0 0.0
      %6309 = vmatprep.subr.mxu0 0.0
      %6310 = vmatpush1.msra.mxu0 0.0
      %6311 = vmatprep.subr.mxu0 0.0
      %6312 = vmatpush1.msra.mxu0 0.0
      %6313 = vmatprep.subr.mxu0 0.0
      %6314 = vmatpush1.msra.mxu0 0.0
      %6315 = vmatprep.subr.mxu0 0.0
      %6316 = vmatpush1.msra.mxu0 0.0
      %6317 = vmatprep.subr.mxu0 0.0
      %6318 = vmatpush1.msra.mxu0 0.0
      %6319 = vmatprep.subr.mxu0 0.0
      %6320 = vmatpush1.msra.mxu0 0.0
      %6321 = vmatprep.subr.mxu0 0.0
      %6322 = vmatpush1.msra.mxu0 0.0
      %6323 = vmatprep.subr.mxu0 0.0
      %6324 = vmatpush1.msra.mxu0 0.0
      %6325 = vmatprep.subr.mxu0 0.0
      %6326 = vmatpush1.msra.mxu0 0.0
      %6327 = vmatprep.subr.mxu0 0.0
      %6328 = vmatpush1.msra.mxu0 0.0
      %6329 = vmatprep.subr.mxu0 0.0
      %6330 = vmatpush1.msra.mxu0 0.0
      %6331 = vmatprep.subr.mxu0 0.0
      %6332 = vmatpush1.msra.mxu0 0.0
      %6333 = vmatprep.subr.mxu0 0.0
      %6334 = vmatpush1.msra.mxu0 0.0
      %6335 = vmatprep.subr.mxu0 0.0
      %6336 = vmatpush1.msra.mxu0 0.0
      %6337 = vmatprep.subr.mxu0 0.0
      %6338 = vmatpush1.msra.mxu0 0.0
      %6339 = vmatprep.subr.mxu0 0.0
      %6340 = vmatpush1.msra.mxu0 0.0
      %6341 = vmatprep.subr.mxu0 0.0
      %6342 = vmatpush1.msra.mxu0 0.0
      %6343 = vmatprep.subr.mxu0 0.0
      %6344 = vmatpush1.msra.mxu0 0.0
      %6345 = vmatprep.subr.mxu0 0.0
      %6346 = vmatpush1.msra.mxu0 0.0
      %6347 = vmatprep.mubr.f32.mxu0 0.0
      %6348 = vmatmul.mubr.f32.gmra.mrb[0].mxu0 %v6188
      %v6349 = vpop.f32.mrb[0].mxu0
      %v6350 = vadd.f32 0.0, %v6349
      %v6351 = vpop.f32.mrb[0].mxu0
      %6352 = vmatprep.mubr.f32.mxu0 0.0
      %6353 = vmatmul.mubr.f32.gmra.mrb[0].mxu0 %v6191
      %v6354 = vpop.f32.mrb[0].mxu0
      %v6355 = vadd.f32 0.0, %v6354
      %v6356 = vpop.f32.mrb[0].mxu0
      %6357 = vmatprep.mubr.f32.mxu0 0.0
      %6358 = vmatmul.mubr.f32.gmra.mrb[0].mxu0 %v6194
      %v6359 = vpop.f32.mrb[0].mxu0
      %v6360 = vadd.f32 0.0, %v6359
      %v6361 = vpop.f32.mrb[0].mxu0
      %6362 = vmatprep.mubr.f32.mxu0 0.0
      %6363 = vmatmul.mubr.f32.gmra.mrb[0].mxu0 %v6197
      %v6364 = vpop.f32.mrb[0].mxu0
      %v6365 = vadd.f32 0.0, %v6364
      %v6366 = vpop.f32.mrb[0].mxu0
      %6367 = vmatprep.mubr.f32.mxu0 0.0
      %6368 = vmatmul.mubr.f32.gmra.mrb[0].mxu0 %v6200
      %v6369 = vpop.f32.mrb[0].mxu0
      %v6370 = vadd.f32 0.0, %v6369
      %v6371 = vpop.f32.mrb[0].mxu0
      %6372 = vmatprep.mubr.f32.mxu0 0.0
      %6373 = vmatmul.mubr.f32.gmra.mrb[0].mxu0 %v6203
      %v6374 = vpop.f32.mrb[0].mxu0
      %v6375 = vadd.f32 0.0, %v6374
      %v6376 = vpop.f32.mrb[0].mxu0
      %6377 = vmatprep.mubr.f32.mxu0 0.0
      %6378 = vmatmul.mubr.f32.gmra.mrb[0].mxu0 %v6206
      %v6379 = vpop.f32.mrb[0].mxu0
      %v6380 = vadd.f32 0.0, %v6379
      %v6381 = vpop.f32.mrb[0].mxu0
      %6382 = vmatprep.mubr.f32.mxu0 0.0
      %6383 = vmatmul.mubr.f32.gmra.mrb[0].mxu0 %v6209
      %v6384 = vpop.f32.mrb[0].mxu0
      %v6385 = vadd.f32 0.0, %v6384
      %v6386 = vpop.f32.mrb[0].mxu0
      %6387 = vmatprep.mubr.f32.mxu0 0.0
      %6388 = vmatmul.mubr.f32.gmra.mrb[0].mxu0 %v6212
      %v6389 = vpop.f32.mrb[0].mxu0
      %v6390 = vadd.f32 0.0, %v6389
      %v6391 = vpop.f32.mrb[0].mxu0
      %6392 = vmatprep.mubr.f32.mxu0 0.0
      %6393 = vmatmul.mubr.f32.gmra.mrb[0].mxu0 %v6215
      %v6394 = vpop.f32.mrb[0].mxu0
      %v6395 = vadd.f32 0.0, %v6394
      %v6396 = vpop.f32.mrb[0].mxu0
      %6397 = vmatprep.mubr.f32.mxu0 0.0
      %6398 = vmatmul.mubr.f32.gmra.mrb[0].mxu0 %v6218
      %v6399 = vpop.f32.mrb[0].mxu0
      %v6400 = vadd.f32 0.0, %v6399
      %v6401 = vpop.f32.mrb[0].mxu0
      %6402 = vmatprep.mubr.f32.mxu0 0.0
      %6403 = vmatmul.mubr.f32.gmra.mrb[0].mxu0 %v6221
      %v6404 = vpop.f32.mrb[0].mxu0
      %v6405 = vadd.f32 0.0, %v6404
      %v6406 = vpop.f32.mrb[0].mxu0
      %6407 = vmatprep.mubr.f32.mxu0 0.0
      %6408 = vmatmul.mubr.f32.gmra.mrb[0].mxu0 %v6224
      %v6409 = vpop.f32.mrb[0].mxu0
      %v6410 = vadd.f32 0.0, %v6409
      %v6411 = vpop.f32.mrb[0].mxu0
      %6412 = vmatprep.mubr.f32.mxu0 0.0
      %6413 = vmatmul.mubr.f32.gmra.mrb[0].mxu0 %v6227
      %v6414 = vpop.f32.mrb[0].mxu0
      %v6415 = vadd.f32 0.0, %v6414
      %v6416 = vpop.f32.mrb[0].mxu0
      %6417 = vmatprep.mubr.f32.mxu0 0.0
      %6418 = vmatmul.mubr.f32.gmra.mrb[0].mxu0 %v6230
      %v6419 = vpop.f32.mrb[0].mxu0
      %v6420 = vadd.f32 0.0, %v6419
      %v6421 = vpop.f32.mrb[0].mxu0
      %6422 = vmatprep.mubr.f32.mxu0 0.0
      %6423 = vmatmul.mubr.f32.gmra.mrb[0].mxu0 %v6233
      %v6424 = vpop.f32.mrb[0].mxu0
      %v6425 = vadd.f32 0.0, %v6424
      %v6426 = vpop.f32.mrb[0].mxu0
      %6427 = vmatprep.mubr.f32.mxu0 0.0
      %6428 = vmatmul.mubr.f32.gmra.mrb[0].mxu0 %v6236
      %v6429 = vpop.f32.mrb[0].mxu0
      %v6430 = vadd.f32 0.0, %v6429
      %v6431 = vpop.f32.mrb[0].mxu0
      %6432 = vmatprep.mubr.f32.mxu0 0.0
      %6433 = vmatmul.mubr.f32.gmra.mrb[0].mxu0 %v6239
      %v6434 = vpop.f32.mrb[0].mxu0
      %v6435 = vadd.f32 0.0, %v6434
      %v6436 = vpop.f32.mrb[0].mxu0
      %6437 = vmatprep.mubr.f32.mxu0 0.0
      %6438 = vmatmul.mubr.f32.gmra.mrb[0].mxu0 %v6242
      %v6439 = vpop.f32.mrb[0].mxu0
      %v6440 = vadd.f32 0.0, %v6439
      %v6441 = vpop.f32.mrb[0].mxu0
      %6442 = vmatprep.mubr.f32.mxu0 0.0
      %6443 = vmatmul.mubr.f32.gmra.mrb[0].mxu0 %v6245
      %v6444 = vpop.f32.mrb[0].mxu0
      %v6445 = vadd.f32 0.0, %v6444
      %v6446 = vpop.f32.mrb[0].mxu0
      %6447 = vmatprep.mubr.f32.mxu0 0.0
      %6448 = vmatmul.mubr.f32.gmra.mrb[0].mxu0 %v6248
      %v6449 = vpop.f32.mrb[0].mxu0
      %v6450 = vadd.f32 0.0, %v6449
      %v6451 = vpop.f32.mrb[0].mxu0
      %6452 = vmatprep.mubr.f32.mxu0 0.0
      %6453 = vmatmul.mubr.f32.gmra.mrb[0].mxu0 %v6251
      %v6454 = vpop.f32.mrb[0].mxu0
      %v6455 = vadd.f32 0.0, %v6454
      %v6456 = vpop.f32.mrb[0].mxu0
      %6457 = vmatprep.mubr.f32.mxu0 0.0
      %6458 = vmatmul.mubr.f32.gmra.mrb[0].mxu0 %v6254
      %v6459 = vpop.f32.mrb[0].mxu0
      %v6460 = vadd.f32 0.0, %v6459
      %v6461 = vpop.f32.mrb[0].mxu0
      %6462 = vmatprep.mubr.f32.mxu0 0.0
      %6463 = vmatmul.mubr.f32.gmra.mrb[0].mxu0 %v6257
      %v6464 = vpop.f32.mrb[0].mxu0
      %v6465 = vadd.f32 0.0, %v6464
      %v6466 = vpop.f32.mrb[0].mxu0
      %6467 = vmatprep.mubr.f32.mxu0 0.0
      %6468 = vmatmul.mubr.f32.gmra.mrb[0].mxu0 %v6260
      %v6469 = vpop.f32.mrb[0].mxu0
      %v6470 = vadd.f32 0.0, %v6469
      %v6471 = vpop.f32.mrb[0].mxu0
      %6472 = vmatprep.mubr.f32.mxu0 0.0
      %6473 = vmatmul.mubr.f32.gmra.mrb[0].mxu0 %v6263
      %v6474 = vpop.f32.mrb[0].mxu0
      %v6475 = vadd.f32 0.0, %v6474
      %v6476 = vpop.f32.mrb[0].mxu0
      %6477 = vmatprep.mubr.f32.mxu0 0.0
      %6478 = vmatmul.mubr.f32.gmra.mrb[0].mxu0 %v6266
      %v6479 = vpop.f32.mrb[0].mxu0
      %v6480 = vadd.f32 0.0, %v6479
      %v6481 = vpop.f32.mrb[0].mxu0
      %6482 = vmatprep.mubr.f32.mxu0 0.0
      %6483 = vmatmul.mubr.f32.gmra.mrb[0].mxu0 %v6269
      %v6484 = vpop.f32.mrb[0].mxu0
      %v6485 = vadd.f32 0.0, %v6484
      %v6486 = vpop.f32.mrb[0].mxu0
      %6487 = vmatprep.mubr.f32.mxu0 0.0
      %6488 = vmatmul.mubr.f32.gmra.mrb[0].mxu0 %v6272
      %v6489 = vpop.f32.mrb[0].mxu0
      %v6490 = vadd.f32 0.0, %v6489
      %v6491 = vpop.f32.mrb[0].mxu0
      %6492 = vmatprep.mubr.f32.mxu0 0.0
      %6493 = vmatmul.mubr.f32.gmra.mrb[0].mxu0 %v6275
      %v6494 = vpop.f32.mrb[0].mxu0
      %v6495 = vadd.f32 0.0, %v6494
      %v6496 = vpop.f32.mrb[0].mxu0
      %6497 = vmatprep.mubr.f32.mxu0 0.0
      %6498 = vmatmul.mubr.f32.gmra.mrb[0].mxu0 %v6278
      %v6499 = vpop.f32.mrb[0].mxu0
      %v6500 = vadd.f32 0.0, %v6499
      %v6501 = vpop.f32.mrb[0].mxu0
      %6502 = vmatprep.mubr.f32.mxu0 0.0
      %6503 = vmatmul.mubr.f32.gmra.mrb[0].mxu0 %v6281
      %v6504 = vpop.f32.mrb[0].mxu0
      %v6505 = vadd.f32 0.0, %v6504
      %v6506 = vpop.f32.mrb[0].mxu0
      %6507 = vdwg.mxu0
      %v6508 = vadd.f32 %v6122, %v6350
      %v6509 = vadd.f32 %v6123, %v6355
      %v6510 = vadd.f32 %v6124, %v6360
      %v6511 = vadd.f32 %v6125, %v6365
      %v6512 = vadd.f32 %v6126, %v6370
      %v6513 = vadd.f32 %v6127, %v6375
      %v6514 = vadd.f32 %v6128, %v6380
      %v6515 = vadd.f32 %v6129, %v6385
      %v6516 = vadd.f32 %v6130, %v6390
      %v6517 = vadd.f32 %v6131, %v6395
      %v6518 = vadd.f32 %v6132, %v6400
      %v6519 = vadd.f32 %v6133, %v6405
      %v6520 = vadd.f32 %v6134, %v6410
      %v6521 = vadd.f32 %v6135, %v6415
      %v6522 = vadd.f32 %v6136, %v6420
      %v6523 = vadd.f32 %v6137, %v6425
      %v6524 = vadd.f32 %v6138, %v6430
      %v6525 = vadd.f32 %v6139, %v6435
      %v6526 = vadd.f32 %v6140, %v6440
      %v6527 = vadd.f32 %v6141, %v6445
      %v6528 = vadd.f32 %v6142, %v6450
      %v6529 = vadd.f32 %v6143, %v6455
      %v6530 = vadd.f32 %v6144, %v6460
      %v6531 = vadd.f32 %v6145, %v6465
      %v6532 = vadd.f32 %v6146, %v6470
      %v6533 = vadd.f32 %v6147, %v6475
      %v6534 = vadd.f32 %v6148, %v6480
      %v6535 = vadd.f32 %v6149, %v6485
      %v6536 = vadd.f32 %v6150, %v6490
      %v6537 = vadd.f32 %v6151, %v6495
      %v6538 = vadd.f32 %v6152, %v6500
      %v6539 = vadd.f32 %v6153, %v6505
      %s6540 = scalar_lea.vmem [#allocation3], 48
      %v6541 = vld [vmem:[%s6540] sm:$0xff]
      %v6542 = vld [vmem:[%s6540 + $0x8] sm:$0xff]
      %v6543 = vld [vmem:[%s6540 + $0x18] sm:$0xff]
      %v6544 = vld [vmem:[%s6540 + $0x20] sm:$0xff]
      %v6545 = vld [vmem:[%s6540 + $0x30] sm:$0xff]
      %v6546 = vld [vmem:[%s6540 + $0x38] sm:$0xff]
      %v6547 = vld [vmem:[%s6540 + $0x48] sm:$0xff]
      %v6548 = vld [vmem:[%s6540 + $0x50] sm:$0xff]
      %v6549 = vld [vmem:[%s6540 + $0x60] sm:$0xff]
      %v6550 = vld [vmem:[%s6540 + $0x68] sm:$0xff]
      %v6551 = vld [vmem:[%s6540 + $0x78] sm:$0xff]
      %v6552 = vld [vmem:[%s6540 + $0x80] sm:$0xff]
      %v6553 = vld [vmem:[%s6540 + $0x90] sm:$0xff]
      %v6554 = vld [vmem:[%s6540 + $0x98] sm:$0xff]
      %v6555 = vld [vmem:[%s6540 + $0xa8] sm:$0xff]
      %v6556 = vld [vmem:[%s6540 + $0xb0] sm:$0xff]
      %v6557 = vld [vmem:[%s6540 + $0xc0] sm:$0xff]
      %v6558 = vld [vmem:[%s6540 + $0xc8] sm:$0xff]
      %v6559 = vld [vmem:[%s6540 + $0xd8] sm:$0xff]
      %v6560 = vld [vmem:[%s6540 + $0xe0] sm:$0xff]
      %v6561 = vld [vmem:[%s6540 + $0xf0] sm:$0xff]
      %v6562 = vld [vmem:[%s6540 + $0xf8] sm:$0xff]
      %v6563 = vld [vmem:[%s6540 + $0x108] sm:$0xff]
      %v6564 = vld [vmem:[%s6540 + $0x110] sm:$0xff]
      %v6565 = vld [vmem:[%s6540 + $0x120] sm:$0xff]
      %v6566 = vld [vmem:[%s6540 + $0x128] sm:$0xff]
      %v6567 = vld [vmem:[%s6540 + $0x138] sm:$0xff]
      %v6568 = vld [vmem:[%s6540 + $0x140] sm:$0xff]
      %v6569 = vld [vmem:[%s6540 + $0x150] sm:$0xff]
      %v6570 = vld [vmem:[%s6540 + $0x158] sm:$0xff]
      %v6571 = vld [vmem:[%s6540 + $0x168] sm:$0xff]
      %v6572 = vld [vmem:[%s6540 + $0x170] sm:$0xff]
      %s6573 = scalar_lea.vmem %s2, 48
      %v6574 = vld [vmem:[%s6573] sm:$0xff]
      %v6576 = vsel %vm225, %v6541, 0
      %v6579 = vsel %vm225, %v6542, 0
      %v6582 = vsel %vm225, %v6543, 0
      %v6585 = vsel %vm225, %v6544, 0
      %v6588 = vsel %vm225, %v6545, 0
      %v6591 = vsel %vm225, %v6546, 0
      %v6594 = vsel %vm225, %v6547, 0
      %v6597 = vsel %vm225, %v6548, 0
      %v6600 = vsel %vm225, %v6549, 0
      %v6603 = vsel %vm225, %v6550, 0
      %v6606 = vsel %vm225, %v6551, 0
      %v6609 = vsel %vm225, %v6552, 0
      %v6612 = vsel %vm225, %v6553, 0
      %v6615 = vsel %vm225, %v6554, 0
      %v6618 = vsel %vm225, %v6555, 0
      %v6621 = vsel %vm225, %v6556, 0
      %v6624 = vsel %vm225, %v6557, 0
      %v6627 = vsel %vm225, %v6558, 0
      %v6630 = vsel %vm225, %v6559, 0
      %v6633 = vsel %vm225, %v6560, 0
      %v6636 = vsel %vm225, %v6561, 0
      %v6639 = vsel %vm225, %v6562, 0
      %v6642 = vsel %vm225, %v6563, 0
      %v6645 = vsel %vm225, %v6564, 0
      %v6648 = vsel %vm225, %v6565, 0
      %v6651 = vsel %vm225, %v6566, 0
      %v6654 = vsel %vm225, %v6567, 0
      %v6657 = vsel %vm225, %v6568, 0
      %v6660 = vsel %vm225, %v6569, 0
      %v6663 = vsel %vm225, %v6570, 0
      %v6666 = vsel %vm225, %v6571, 0
      %v6669 = vsel %vm225, %v6572, 0
      %6671 = vmatprep.subr.mxu0 0.0
      %6672 = vmatpush1.msra.mxu0 %v6574
      %6673 = vmatprep.subr.mxu0 0.0
      %6674 = vmatpush1.msra.mxu0 0.0
      %6675 = vmatprep.subr.mxu0 0.0
      %6676 = vmatpush1.msra.mxu0 0.0
      %6677 = vmatprep.subr.mxu0 0.0
      %6678 = vmatpush1.msra.mxu0 0.0
      %6679 = vmatprep.subr.mxu0 0.0
      %6680 = vmatpush1.msra.mxu0 0.0
      %6681 = vmatprep.subr.mxu0 0.0
      %6682 = vmatpush1.msra.mxu0 0.0
      %6683 = vmatprep.subr.mxu0 0.0
      %6684 = vmatpush1.msra.mxu0 0.0
      %6685 = vmatprep.subr.mxu0 0.0
      %6686 = vmatpush1.msra.mxu0 0.0
      %6687 = vmatprep.subr.mxu0 0.0
      %6688 = vmatpush1.msra.mxu0 0.0
      %6689 = vmatprep.subr.mxu0 0.0
      %6690 = vmatpush1.msra.mxu0 0.0
      %6691 = vmatprep.subr.mxu0 0.0
      %6692 = vmatpush1.msra.mxu0 0.0
      %6693 = vmatprep.subr.mxu0 0.0
      %6694 = vmatpush1.msra.mxu0 0.0
      %6695 = vmatprep.subr.mxu0 0.0
      %6696 = vmatpush1.msra.mxu0 0.0
      %6697 = vmatprep.subr.mxu0 0.0
      %6698 = vmatpush1.msra.mxu0 0.0
      %6699 = vmatprep.subr.mxu0 0.0
      %6700 = vmatpush1.msra.mxu0 0.0
      %6701 = vmatprep.subr.mxu0 0.0
      %6702 = vmatpush1.msra.mxu0 0.0
      %6703 = vmatprep.subr.mxu0 0.0
      %6704 = vmatpush1.msra.mxu0 0.0
      %6705 = vmatprep.subr.mxu0 0.0
      %6706 = vmatpush1.msra.mxu0 0.0
      %6707 = vmatprep.subr.mxu0 0.0
      %6708 = vmatpush1.msra.mxu0 0.0
      %6709 = vmatprep.subr.mxu0 0.0
      %6710 = vmatpush1.msra.mxu0 0.0
      %6711 = vmatprep.subr.mxu0 0.0
      %6712 = vmatpush1.msra.mxu0 0.0
      %6713 = vmatprep.subr.mxu0 0.0
      %6714 = vmatpush1.msra.mxu0 0.0
      %6715 = vmatprep.subr.mxu0 0.0
      %6716 = vmatpush1.msra.mxu0 0.0
      %6717 = vmatprep.subr.mxu0 0.0
      %6718 = vmatpush1.msra.mxu0 0.0
      %6719 = vmatprep.subr.mxu0 0.0
      %6720 = vmatpush1.msra.mxu0 0.0
      %6721 = vmatprep.subr.mxu0 0.0
      %6722 = vmatpush1.msra.mxu0 0.0
      %6723 = vmatprep.subr.mxu0 0.0
      %6724 = vmatpush1.msra.mxu0 0.0
      %6725 = vmatprep.subr.mxu0 0.0
      %6726 = vmatpush1.msra.mxu0 0.0
      %6727 = vmatprep.subr.mxu0 0.0
      %6728 = vmatpush1.msra.mxu0 0.0
      %6729 = vmatprep.subr.mxu0 0.0
      %6730 = vmatpush1.msra.mxu0 0.0
      %6731 = vmatprep.subr.mxu0 0.0
      %6732 = vmatpush1.msra.mxu0 0.0
      %6733 = vmatprep.subr.mxu0 0.0
      %6734 = vmatpush1.msra.mxu0 0.0
      %6735 = vmatprep.mubr.f32.mxu0 0.0
      %6736 = vmatmul.mubr.f32.gmra.mrb[0].mxu0 %v6576
      %v6737 = vpop.f32.mrb[0].mxu0
      %v6738 = vadd.f32 0.0, %v6737
      %v6739 = vpop.f32.mrb[0].mxu0
      %6740 = vmatprep.mubr.f32.mxu0 0.0
      %6741 = vmatmul.mubr.f32.gmra.mrb[0].mxu0 %v6579
      %v6742 = vpop.f32.mrb[0].mxu0
      %v6743 = vadd.f32 0.0, %v6742
      %v6744 = vpop.f32.mrb[0].mxu0
      %6745 = vmatprep.mubr.f32.mxu0 0.0
      %6746 = vmatmul.mubr.f32.gmra.mrb[0].mxu0 %v6582
      %v6747 = vpop.f32.mrb[0].mxu0
      %v6748 = vadd.f32 0.0, %v6747
      %v6749 = vpop.f32.mrb[0].mxu0
      %6750 = vmatprep.mubr.f32.mxu0 0.0
      %6751 = vmatmul.mubr.f32.gmra.mrb[0].mxu0 %v6585
      %v6752 = vpop.f32.mrb[0].mxu0
      %v6753 = vadd.f32 0.0, %v6752
      %v6754 = vpop.f32.mrb[0].mxu0
      %6755 = vmatprep.mubr.f32.mxu0 0.0
      %6756 = vmatmul.mubr.f32.gmra.mrb[0].mxu0 %v6588
      %v6757 = vpop.f32.mrb[0].mxu0
      %v6758 = vadd.f32 0.0, %v6757
      %v6759 = vpop.f32.mrb[0].mxu0
      %6760 = vmatprep.mubr.f32.mxu0 0.0
      %6761 = vmatmul.mubr.f32.gmra.mrb[0].mxu0 %v6591
      %v6762 = vpop.f32.mrb[0].mxu0
      %v6763 = vadd.f32 0.0, %v6762
      %v6764 = vpop.f32.mrb[0].mxu0
      %6765 = vmatprep.mubr.f32.mxu0 0.0
      %6766 = vmatmul.mubr.f32.gmra.mrb[0].mxu0 %v6594
      %v6767 = vpop.f32.mrb[0].mxu0
      %v6768 = vadd.f32 0.0, %v6767
      %v6769 = vpop.f32.mrb[0].mxu0
      %6770 = vmatprep.mubr.f32.mxu0 0.0
      %6771 = vmatmul.mubr.f32.gmra.mrb[0].mxu0 %v6597
      %v6772 = vpop.f32.mrb[0].mxu0
      %v6773 = vadd.f32 0.0, %v6772
      %v6774 = vpop.f32.mrb[0].mxu0
      %6775 = vmatprep.mubr.f32.mxu0 0.0
      %6776 = vmatmul.mubr.f32.gmra.mrb[0].mxu0 %v6600
      %v6777 = vpop.f32.mrb[0].mxu0
      %v6778 = vadd.f32 0.0, %v6777
      %v6779 = vpop.f32.mrb[0].mxu0
      %6780 = vmatprep.mubr.f32.mxu0 0.0
      %6781 = vmatmul.mubr.f32.gmra.mrb[0].mxu0 %v6603
      %v6782 = vpop.f32.mrb[0].mxu0
      %v6783 = vadd.f32 0.0, %v6782
      %v6784 = vpop.f32.mrb[0].mxu0
      %6785 = vmatprep.mubr.f32.mxu0 0.0
      %6786 = vmatmul.mubr.f32.gmra.mrb[0].mxu0 %v6606
      %v6787 = vpop.f32.mrb[0].mxu0
      %v6788 = vadd.f32 0.0, %v6787
      %v6789 = vpop.f32.mrb[0].mxu0
      %6790 = vmatprep.mubr.f32.mxu0 0.0
      %6791 = vmatmul.mubr.f32.gmra.mrb[0].mxu0 %v6609
      %v6792 = vpop.f32.mrb[0].mxu0
      %v6793 = vadd.f32 0.0, %v6792
      %v6794 = vpop.f32.mrb[0].mxu0
      %6795 = vmatprep.mubr.f32.mxu0 0.0
      %6796 = vmatmul.mubr.f32.gmra.mrb[0].mxu0 %v6612
      %v6797 = vpop.f32.mrb[0].mxu0
      %v6798 = vadd.f32 0.0, %v6797
      %v6799 = vpop.f32.mrb[0].mxu0
      %6800 = vmatprep.mubr.f32.mxu0 0.0
      %6801 = vmatmul.mubr.f32.gmra.mrb[0].mxu0 %v6615
      %v6802 = vpop.f32.mrb[0].mxu0
      %v6803 = vadd.f32 0.0, %v6802
      %v6804 = vpop.f32.mrb[0].mxu0
      %6805 = vmatprep.mubr.f32.mxu0 0.0
      %6806 = vmatmul.mubr.f32.gmra.mrb[0].mxu0 %v6618
      %v6807 = vpop.f32.mrb[0].mxu0
      %v6808 = vadd.f32 0.0, %v6807
      %v6809 = vpop.f32.mrb[0].mxu0
      %6810 = vmatprep.mubr.f32.mxu0 0.0
      %6811 = vmatmul.mubr.f32.gmra.mrb[0].mxu0 %v6621
      %v6812 = vpop.f32.mrb[0].mxu0
      %v6813 = vadd.f32 0.0, %v6812
      %v6814 = vpop.f32.mrb[0].mxu0
      %6815 = vmatprep.mubr.f32.mxu0 0.0
      %6816 = vmatmul.mubr.f32.gmra.mrb[0].mxu0 %v6624
      %v6817 = vpop.f32.mrb[0].mxu0
      %v6818 = vadd.f32 0.0, %v6817
      %v6819 = vpop.f32.mrb[0].mxu0
      %6820 = vmatprep.mubr.f32.mxu0 0.0
      %6821 = vmatmul.mubr.f32.gmra.mrb[0].mxu0 %v6627
      %v6822 = vpop.f32.mrb[0].mxu0
      %v6823 = vadd.f32 0.0, %v6822
      %v6824 = vpop.f32.mrb[0].mxu0
      %6825 = vmatprep.mubr.f32.mxu0 0.0
      %6826 = vmatmul.mubr.f32.gmra.mrb[0].mxu0 %v6630
      %v6827 = vpop.f32.mrb[0].mxu0
      %v6828 = vadd.f32 0.0, %v6827
      %v6829 = vpop.f32.mrb[0].mxu0
      %6830 = vmatprep.mubr.f32.mxu0 0.0
      %6831 = vmatmul.mubr.f32.gmra.mrb[0].mxu0 %v6633
      %v6832 = vpop.f32.mrb[0].mxu0
      %v6833 = vadd.f32 0.0, %v6832
      %v6834 = vpop.f32.mrb[0].mxu0
      %6835 = vmatprep.mubr.f32.mxu0 0.0
      %6836 = vmatmul.mubr.f32.gmra.mrb[0].mxu0 %v6636
      %v6837 = vpop.f32.mrb[0].mxu0
      %v6838 = vadd.f32 0.0, %v6837
      %v6839 = vpop.f32.mrb[0].mxu0
      %6840 = vmatprep.mubr.f32.mxu0 0.0
      %6841 = vmatmul.mubr.f32.gmra.mrb[0].mxu0 %v6639
      %v6842 = vpop.f32.mrb[0].mxu0
      %v6843 = vadd.f32 0.0, %v6842
      %v6844 = vpop.f32.mrb[0].mxu0
      %6845 = vmatprep.mubr.f32.mxu0 0.0
      %6846 = vmatmul.mubr.f32.gmra.mrb[0].mxu0 %v6642
      %v6847 = vpop.f32.mrb[0].mxu0
      %v6848 = vadd.f32 0.0, %v6847
      %v6849 = vpop.f32.mrb[0].mxu0
      %6850 = vmatprep.mubr.f32.mxu0 0.0
      %6851 = vmatmul.mubr.f32.gmra.mrb[0].mxu0 %v6645
      %v6852 = vpop.f32.mrb[0].mxu0
      %v6853 = vadd.f32 0.0, %v6852
      %v6854 = vpop.f32.mrb[0].mxu0
      %6855 = vmatprep.mubr.f32.mxu0 0.0
      %6856 = vmatmul.mubr.f32.gmra.mrb[0].mxu0 %v6648
      %v6857 = vpop.f32.mrb[0].mxu0
      %v6858 = vadd.f32 0.0, %v6857
      %v6859 = vpop.f32.mrb[0].mxu0
      %6860 = vmatprep.mubr.f32.mxu0 0.0
      %6861 = vmatmul.mubr.f32.gmra.mrb[0].mxu0 %v6651
      %v6862 = vpop.f32.mrb[0].mxu0
      %v6863 = vadd.f32 0.0, %v6862
      %v6864 = vpop.f32.mrb[0].mxu0
      %6865 = vmatprep.mubr.f32.mxu0 0.0
      %6866 = vmatmul.mubr.f32.gmra.mrb[0].mxu0 %v6654
      %v6867 = vpop.f32.mrb[0].mxu0
      %v6868 = vadd.f32 0.0, %v6867
      %v6869 = vpop.f32.mrb[0].mxu0
      %6870 = vmatprep.mubr.f32.mxu0 0.0
      %6871 = vmatmul.mubr.f32.gmra.mrb[0].mxu0 %v6657
      %v6872 = vpop.f32.mrb[0].mxu0
      %v6873 = vadd.f32 0.0, %v6872
      %v6874 = vpop.f32.mrb[0].mxu0
      %6875 = vmatprep.mubr.f32.mxu0 0.0
      %6876 = vmatmul.mubr.f32.gmra.mrb[0].mxu0 %v6660
      %v6877 = vpop.f32.mrb[0].mxu0
      %v6878 = vadd.f32 0.0, %v6877
      %v6879 = vpop.f32.mrb[0].mxu0
      %6880 = vmatprep.mubr.f32.mxu0 0.0
      %6881 = vmatmul.mubr.f32.gmra.mrb[0].mxu0 %v6663
      %v6882 = vpop.f32.mrb[0].mxu0
      %v6883 = vadd.f32 0.0, %v6882
      %v6884 = vpop.f32.mrb[0].mxu0
      %6885 = vmatprep.mubr.f32.mxu0 0.0
      %6886 = vmatmul.mubr.f32.gmra.mrb[0].mxu0 %v6666
      %v6887 = vpop.f32.mrb[0].mxu0
      %v6888 = vadd.f32 0.0, %v6887
      %v6889 = vpop.f32.mrb[0].mxu0
      %6890 = vmatprep.mubr.f32.mxu0 0.0
      %6891 = vmatmul.mubr.f32.gmra.mrb[0].mxu0 %v6669
      %v6892 = vpop.f32.mrb[0].mxu0
      %v6893 = vadd.f32 0.0, %v6892
      %v6894 = vpop.f32.mrb[0].mxu0
      %6895 = vdwg.mxu0
      %v6896 = vadd.f32 %v6508, %v6738
      %v6897 = vadd.f32 %v6509, %v6743
      %v6898 = vadd.f32 %v6510, %v6748
      %v6899 = vadd.f32 %v6511, %v6753
      %v6900 = vadd.f32 %v6512, %v6758
      %v6901 = vadd.f32 %v6513, %v6763
      %v6902 = vadd.f32 %v6514, %v6768
      %v6903 = vadd.f32 %v6515, %v6773
      %v6904 = vadd.f32 %v6516, %v6778
      %v6905 = vadd.f32 %v6517, %v6783
      %v6906 = vadd.f32 %v6518, %v6788
      %v6907 = vadd.f32 %v6519, %v6793
      %v6908 = vadd.f32 %v6520, %v6798
      %v6909 = vadd.f32 %v6521, %v6803
      %v6910 = vadd.f32 %v6522, %v6808
      %v6911 = vadd.f32 %v6523, %v6813
      %v6912 = vadd.f32 %v6524, %v6818
      %v6913 = vadd.f32 %v6525, %v6823
      %v6914 = vadd.f32 %v6526, %v6828
      %v6915 = vadd.f32 %v6527, %v6833
      %v6916 = vadd.f32 %v6528, %v6838
      %v6917 = vadd.f32 %v6529, %v6843
      %v6918 = vadd.f32 %v6530, %v6848
      %v6919 = vadd.f32 %v6531, %v6853
      %v6920 = vadd.f32 %v6532, %v6858
      %v6921 = vadd.f32 %v6533, %v6863
      %v6922 = vadd.f32 %v6534, %v6868
      %v6923 = vadd.f32 %v6535, %v6873
      %v6924 = vadd.f32 %v6536, %v6878
      %v6925 = vadd.f32 %v6537, %v6883
      %v6926 = vadd.f32 %v6538, %v6888
      %v6927 = vadd.f32 %v6539, %v6893
      %v6928 = vld [vmem:[%s6540 + $0x1] sm:$0xff]
      %v6929 = vld [vmem:[%s6540 + $0x9] sm:$0xff]
      %v6930 = vld [vmem:[%s6540 + $0x19] sm:$0xff]
      %v6931 = vld [vmem:[%s6540 + $0x21] sm:$0xff]
      %v6932 = vld [vmem:[%s6540 + $0x31] sm:$0xff]
      %v6933 = vld [vmem:[%s6540 + $0x39] sm:$0xff]
      %v6934 = vld [vmem:[%s6540 + $0x49] sm:$0xff]
      %v6935 = vld [vmem:[%s6540 + $0x51] sm:$0xff]
      %v6936 = vld [vmem:[%s6540 + $0x61] sm:$0xff]
      %v6937 = vld [vmem:[%s6540 + $0x69] sm:$0xff]
      %v6938 = vld [vmem:[%s6540 + $0x79] sm:$0xff]
      %v6939 = vld [vmem:[%s6540 + $0x81] sm:$0xff]
      %v6940 = vld [vmem:[%s6540 + $0x91] sm:$0xff]
      %v6941 = vld [vmem:[%s6540 + $0x99] sm:$0xff]
      %v6942 = vld [vmem:[%s6540 + $0xa9] sm:$0xff]
      %v6943 = vld [vmem:[%s6540 + $0xb1] sm:$0xff]
      %v6944 = vld [vmem:[%s6540 + $0xc1] sm:$0xff]
      %v6945 = vld [vmem:[%s6540 + $0xc9] sm:$0xff]
      %v6946 = vld [vmem:[%s6540 + $0xd9] sm:$0xff]
      %v6947 = vld [vmem:[%s6540 + $0xe1] sm:$0xff]
      %v6948 = vld [vmem:[%s6540 + $0xf1] sm:$0xff]
      %v6949 = vld [vmem:[%s6540 + $0xf9] sm:$0xff]
      %v6950 = vld [vmem:[%s6540 + $0x109] sm:$0xff]
      %v6951 = vld [vmem:[%s6540 + $0x111] sm:$0xff]
      %v6952 = vld [vmem:[%s6540 + $0x121] sm:$0xff]
      %v6953 = vld [vmem:[%s6540 + $0x129] sm:$0xff]
      %v6954 = vld [vmem:[%s6540 + $0x139] sm:$0xff]
      %v6955 = vld [vmem:[%s6540 + $0x141] sm:$0xff]
      %v6956 = vld [vmem:[%s6540 + $0x151] sm:$0xff]
      %v6957 = vld [vmem:[%s6540 + $0x159] sm:$0xff]
      %v6958 = vld [vmem:[%s6540 + $0x169] sm:$0xff]
      %v6959 = vld [vmem:[%s6540 + $0x171] sm:$0xff]
      %v6960 = vld [vmem:[%s6573 + $0x8] sm:$0xff]
      %v6962 = vsel %vm225, %v6928, 0
      %v6965 = vsel %vm225, %v6929, 0
      %v6968 = vsel %vm225, %v6930, 0
      %v6971 = vsel %vm225, %v6931, 0
      %v6974 = vsel %vm225, %v6932, 0
      %v6977 = vsel %vm225, %v6933, 0
      %v6980 = vsel %vm225, %v6934, 0
      %v6983 = vsel %vm225, %v6935, 0
      %v6986 = vsel %vm225, %v6936, 0
      %v6989 = vsel %vm225, %v6937, 0
      %v6992 = vsel %vm225, %v6938, 0
      %v6995 = vsel %vm225, %v6939, 0
      %v6998 = vsel %vm225, %v6940, 0
      %v7001 = vsel %vm225, %v6941, 0
      %v7004 = vsel %vm225, %v6942, 0
      %v7007 = vsel %vm225, %v6943, 0
      %v7010 = vsel %vm225, %v6944, 0
      %v7013 = vsel %vm225, %v6945, 0
      %v7016 = vsel %vm225, %v6946, 0
      %v7019 = vsel %vm225, %v6947, 0
      %v7022 = vsel %vm225, %v6948, 0
      %v7025 = vsel %vm225, %v6949, 0
      %v7028 = vsel %vm225, %v6950, 0
      %v7031 = vsel %vm225, %v6951, 0
      %v7034 = vsel %vm225, %v6952, 0
      %v7037 = vsel %vm225, %v6953, 0
      %v7040 = vsel %vm225, %v6954, 0
      %v7043 = vsel %vm225, %v6955, 0
      %v7046 = vsel %vm225, %v6956, 0
      %v7049 = vsel %vm225, %v6957, 0
      %v7052 = vsel %vm225, %v6958, 0
      %v7055 = vsel %vm225, %v6959, 0
      %7057 = vmatprep.subr.mxu0 0.0
      %7058 = vmatpush1.msra.mxu0 %v6960
      %7059 = vmatprep.subr.mxu0 0.0
      %7060 = vmatpush1.msra.mxu0 0.0
      %7061 = vmatprep.subr.mxu0 0.0
      %7062 = vmatpush1.msra.mxu0 0.0
      %7063 = vmatprep.subr.mxu0 0.0
      %7064 = vmatpush1.msra.mxu0 0.0
      %7065 = vmatprep.subr.mxu0 0.0
      %7066 = vmatpush1.msra.mxu0 0.0
      %7067 = vmatprep.subr.mxu0 0.0
      %7068 = vmatpush1.msra.mxu0 0.0
      %7069 = vmatprep.subr.mxu0 0.0
      %7070 = vmatpush1.msra.mxu0 0.0
      %7071 = vmatprep.subr.mxu0 0.0
      %7072 = vmatpush1.msra.mxu0 0.0
      %7073 = vmatprep.subr.mxu0 0.0
      %7074 = vmatpush1.msra.mxu0 0.0
      %7075 = vmatprep.subr.mxu0 0.0
      %7076 = vmatpush1.msra.mxu0 0.0
      %7077 = vmatprep.subr.mxu0 0.0
      %7078 = vmatpush1.msra.mxu0 0.0
      %7079 = vmatprep.subr.mxu0 0.0
      %7080 = vmatpush1.msra.mxu0 0.0
      %7081 = vmatprep.subr.mxu0 0.0
      %7082 = vmatpush1.msra.mxu0 0.0
      %7083 = vmatprep.subr.mxu0 0.0
      %7084 = vmatpush1.msra.mxu0 0.0
      %7085 = vmatprep.subr.mxu0 0.0
      %7086 = vmatpush1.msra.mxu0 0.0
      %7087 = vmatprep.subr.mxu0 0.0
      %7088 = vmatpush1.msra.mxu0 0.0
      %7089 = vmatprep.subr.mxu0 0.0
      %7090 = vmatpush1.msra.mxu0 0.0
      %7091 = vmatprep.subr.mxu0 0.0
      %7092 = vmatpush1.msra.mxu0 0.0
      %7093 = vmatprep.subr.mxu0 0.0
      %7094 = vmatpush1.msra.mxu0 0.0
      %7095 = vmatprep.subr.mxu0 0.0
      %7096 = vmatpush1.msra.mxu0 0.0
      %7097 = vmatprep.subr.mxu0 0.0
      %7098 = vmatpush1.msra.mxu0 0.0
      %7099 = vmatprep.subr.mxu0 0.0
      %7100 = vmatpush1.msra.mxu0 0.0
      %7101 = vmatprep.subr.mxu0 0.0
      %7102 = vmatpush1.msra.mxu0 0.0
      %7103 = vmatprep.subr.mxu0 0.0
      %7104 = vmatpush1.msra.mxu0 0.0
      %7105 = vmatprep.subr.mxu0 0.0
      %7106 = vmatpush1.msra.mxu0 0.0
      %7107 = vmatprep.subr.mxu0 0.0
      %7108 = vmatpush1.msra.mxu0 0.0
      %7109 = vmatprep.subr.mxu0 0.0
      %7110 = vmatpush1.msra.mxu0 0.0
      %7111 = vmatprep.subr.mxu0 0.0
      %7112 = vmatpush1.msra.mxu0 0.0
      %7113 = vmatprep.subr.mxu0 0.0
      %7114 = vmatpush1.msra.mxu0 0.0
      %7115 = vmatprep.subr.mxu0 0.0
      %7116 = vmatpush1.msra.mxu0 0.0
      %7117 = vmatprep.subr.mxu0 0.0
      %7118 = vmatpush1.msra.mxu0 0.0
      %7119 = vmatprep.subr.mxu0 0.0
      %7120 = vmatpush1.msra.mxu0 0.0
      %7121 = vmatprep.mubr.f32.mxu0 0.0
      %7122 = vmatmul.mubr.f32.gmra.mrb[0].mxu0 %v6962
      %v7123 = vpop.f32.mrb[0].mxu0
      %v7124 = vadd.f32 0.0, %v7123
      %v7125 = vpop.f32.mrb[0].mxu0
      %7126 = vmatprep.mubr.f32.mxu0 0.0
      %7127 = vmatmul.mubr.f32.gmra.mrb[0].mxu0 %v6965
      %v7128 = vpop.f32.mrb[0].mxu0
      %v7129 = vadd.f32 0.0, %v7128
      %v7130 = vpop.f32.mrb[0].mxu0
      %7131 = vmatprep.mubr.f32.mxu0 0.0
      %7132 = vmatmul.mubr.f32.gmra.mrb[0].mxu0 %v6968
      %v7133 = vpop.f32.mrb[0].mxu0
      %v7134 = vadd.f32 0.0, %v7133
      %v7135 = vpop.f32.mrb[0].mxu0
      %7136 = vmatprep.mubr.f32.mxu0 0.0
      %7137 = vmatmul.mubr.f32.gmra.mrb[0].mxu0 %v6971
      %v7138 = vpop.f32.mrb[0].mxu0
      %v7139 = vadd.f32 0.0, %v7138
      %v7140 = vpop.f32.mrb[0].mxu0
      %7141 = vmatprep.mubr.f32.mxu0 0.0
      %7142 = vmatmul.mubr.f32.gmra.mrb[0].mxu0 %v6974
      %v7143 = vpop.f32.mrb[0].mxu0
      %v7144 = vadd.f32 0.0, %v7143
      %v7145 = vpop.f32.mrb[0].mxu0
      %7146 = vmatprep.mubr.f32.mxu0 0.0
      %7147 = vmatmul.mubr.f32.gmra.mrb[0].mxu0 %v6977
      %v7148 = vpop.f32.mrb[0].mxu0
      %v7149 = vadd.f32 0.0, %v7148
      %v7150 = vpop.f32.mrb[0].mxu0
      %7151 = vmatprep.mubr.f32.mxu0 0.0
      %7152 = vmatmul.mubr.f32.gmra.mrb[0].mxu0 %v6980
      %v7153 = vpop.f32.mrb[0].mxu0
      %v7154 = vadd.f32 0.0, %v7153
      %v7155 = vpop.f32.mrb[0].mxu0
      %7156 = vmatprep.mubr.f32.mxu0 0.0
      %7157 = vmatmul.mubr.f32.gmra.mrb[0].mxu0 %v6983
      %v7158 = vpop.f32.mrb[0].mxu0
      %v7159 = vadd.f32 0.0, %v7158
      %v7160 = vpop.f32.mrb[0].mxu0
      %7161 = vmatprep.mubr.f32.mxu0 0.0
      %7162 = vmatmul.mubr.f32.gmra.mrb[0].mxu0 %v6986
      %v7163 = vpop.f32.mrb[0].mxu0
      %v7164 = vadd.f32 0.0, %v7163
      %v7165 = vpop.f32.mrb[0].mxu0
      %7166 = vmatprep.mubr.f32.mxu0 0.0
      %7167 = vmatmul.mubr.f32.gmra.mrb[0].mxu0 %v6989
      %v7168 = vpop.f32.mrb[0].mxu0
      %v7169 = vadd.f32 0.0, %v7168
      %v7170 = vpop.f32.mrb[0].mxu0
      %7171 = vmatprep.mubr.f32.mxu0 0.0
      %7172 = vmatmul.mubr.f32.gmra.mrb[0].mxu0 %v6992
      %v7173 = vpop.f32.mrb[0].mxu0
      %v7174 = vadd.f32 0.0, %v7173
      %v7175 = vpop.f32.mrb[0].mxu0
      %7176 = vmatprep.mubr.f32.mxu0 0.0
      %7177 = vmatmul.mubr.f32.gmra.mrb[0].mxu0 %v6995
      %v7178 = vpop.f32.mrb[0].mxu0
      %v7179 = vadd.f32 0.0, %v7178
      %v7180 = vpop.f32.mrb[0].mxu0
      %7181 = vmatprep.mubr.f32.mxu0 0.0
      %7182 = vmatmul.mubr.f32.gmra.mrb[0].mxu0 %v6998
      %v7183 = vpop.f32.mrb[0].mxu0
      %v7184 = vadd.f32 0.0, %v7183
      %v7185 = vpop.f32.mrb[0].mxu0
      %7186 = vmatprep.mubr.f32.mxu0 0.0
      %7187 = vmatmul.mubr.f32.gmra.mrb[0].mxu0 %v7001
      %v7188 = vpop.f32.mrb[0].mxu0
      %v7189 = vadd.f32 0.0, %v7188
      %v7190 = vpop.f32.mrb[0].mxu0
      %7191 = vmatprep.mubr.f32.mxu0 0.0
      %7192 = vmatmul.mubr.f32.gmra.mrb[0].mxu0 %v7004
      %v7193 = vpop.f32.mrb[0].mxu0
      %v7194 = vadd.f32 0.0, %v7193
      %v7195 = vpop.f32.mrb[0].mxu0
      %7196 = vmatprep.mubr.f32.mxu0 0.0
      %7197 = vmatmul.mubr.f32.gmra.mrb[0].mxu0 %v7007
      %v7198 = vpop.f32.mrb[0].mxu0
      %v7199 = vadd.f32 0.0, %v7198
      %v7200 = vpop.f32.mrb[0].mxu0
      %7201 = vmatprep.mubr.f32.mxu0 0.0
      %7202 = vmatmul.mubr.f32.gmra.mrb[0].mxu0 %v7010
      %v7203 = vpop.f32.mrb[0].mxu0
      %v7204 = vadd.f32 0.0, %v7203
      %v7205 = vpop.f32.mrb[0].mxu0
      %7206 = vmatprep.mubr.f32.mxu0 0.0
      %7207 = vmatmul.mubr.f32.gmra.mrb[0].mxu0 %v7013
      %v7208 = vpop.f32.mrb[0].mxu0
      %v7209 = vadd.f32 0.0, %v7208
      %v7210 = vpop.f32.mrb[0].mxu0
      %7211 = vmatprep.mubr.f32.mxu0 0.0
      %7212 = vmatmul.mubr.f32.gmra.mrb[0].mxu0 %v7016
      %v7213 = vpop.f32.mrb[0].mxu0
      %v7214 = vadd.f32 0.0, %v7213
      %v7215 = vpop.f32.mrb[0].mxu0
      %7216 = vmatprep.mubr.f32.mxu0 0.0
      %7217 = vmatmul.mubr.f32.gmra.mrb[0].mxu0 %v7019
      %v7218 = vpop.f32.mrb[0].mxu0
      %v7219 = vadd.f32 0.0, %v7218
      %v7220 = vpop.f32.mrb[0].mxu0
      %7221 = vmatprep.mubr.f32.mxu0 0.0
      %7222 = vmatmul.mubr.f32.gmra.mrb[0].mxu0 %v7022
      %v7223 = vpop.f32.mrb[0].mxu0
      %v7224 = vadd.f32 0.0, %v7223
      %v7225 = vpop.f32.mrb[0].mxu0
      %7226 = vmatprep.mubr.f32.mxu0 0.0
      %7227 = vmatmul.mubr.f32.gmra.mrb[0].mxu0 %v7025
      %v7228 = vpop.f32.mrb[0].mxu0
      %v7229 = vadd.f32 0.0, %v7228
      %v7230 = vpop.f32.mrb[0].mxu0
      %7231 = vmatprep.mubr.f32.mxu0 0.0
      %7232 = vmatmul.mubr.f32.gmra.mrb[0].mxu0 %v7028
      %v7233 = vpop.f32.mrb[0].mxu0
      %v7234 = vadd.f32 0.0, %v7233
      %v7235 = vpop.f32.mrb[0].mxu0
      %7236 = vmatprep.mubr.f32.mxu0 0.0
      %7237 = vmatmul.mubr.f32.gmra.mrb[0].mxu0 %v7031
      %v7238 = vpop.f32.mrb[0].mxu0
      %v7239 = vadd.f32 0.0, %v7238
      %v7240 = vpop.f32.mrb[0].mxu0
      %7241 = vmatprep.mubr.f32.mxu0 0.0
      %7242 = vmatmul.mubr.f32.gmra.mrb[0].mxu0 %v7034
      %v7243 = vpop.f32.mrb[0].mxu0
      %v7244 = vadd.f32 0.0, %v7243
      %v7245 = vpop.f32.mrb[0].mxu0
      %7246 = vmatprep.mubr.f32.mxu0 0.0
      %7247 = vmatmul.mubr.f32.gmra.mrb[0].mxu0 %v7037
      %v7248 = vpop.f32.mrb[0].mxu0
      %v7249 = vadd.f32 0.0, %v7248
      %v7250 = vpop.f32.mrb[0].mxu0
      %7251 = vmatprep.mubr.f32.mxu0 0.0
      %7252 = vmatmul.mubr.f32.gmra.mrb[0].mxu0 %v7040
      %v7253 = vpop.f32.mrb[0].mxu0
      %v7254 = vadd.f32 0.0, %v7253
      %v7255 = vpop.f32.mrb[0].mxu0
      %7256 = vmatprep.mubr.f32.mxu0 0.0
      %7257 = vmatmul.mubr.f32.gmra.mrb[0].mxu0 %v7043
      %v7258 = vpop.f32.mrb[0].mxu0
      %v7259 = vadd.f32 0.0, %v7258
      %v7260 = vpop.f32.mrb[0].mxu0
      %7261 = vmatprep.mubr.f32.mxu0 0.0
      %7262 = vmatmul.mubr.f32.gmra.mrb[0].mxu0 %v7046
      %v7263 = vpop.f32.mrb[0].mxu0
      %v7264 = vadd.f32 0.0, %v7263
      %v7265 = vpop.f32.mrb[0].mxu0
      %7266 = vmatprep.mubr.f32.mxu0 0.0
      %7267 = vmatmul.mubr.f32.gmra.mrb[0].mxu0 %v7049
      %v7268 = vpop.f32.mrb[0].mxu0
      %v7269 = vadd.f32 0.0, %v7268
      %v7270 = vpop.f32.mrb[0].mxu0
      %7271 = vmatprep.mubr.f32.mxu0 0.0
      %7272 = vmatmul.mubr.f32.gmra.mrb[0].mxu0 %v7052
      %v7273 = vpop.f32.mrb[0].mxu0
      %v7274 = vadd.f32 0.0, %v7273
      %v7275 = vpop.f32.mrb[0].mxu0
      %7276 = vmatprep.mubr.f32.mxu0 0.0
      %7277 = vmatmul.mubr.f32.gmra.mrb[0].mxu0 %v7055
      %v7278 = vpop.f32.mrb[0].mxu0
      %v7279 = vadd.f32 0.0, %v7278
      %v7280 = vpop.f32.mrb[0].mxu0
      %7281 = vdwg.mxu0
      %v7282 = vadd.f32 %v6896, %v7124
      %v7283 = vadd.f32 %v6897, %v7129
      %v7284 = vadd.f32 %v6898, %v7134
      %v7285 = vadd.f32 %v6899, %v7139
      %v7286 = vadd.f32 %v6900, %v7144
      %v7287 = vadd.f32 %v6901, %v7149
      %v7288 = vadd.f32 %v6902, %v7154
      %v7289 = vadd.f32 %v6903, %v7159
      %v7290 = vadd.f32 %v6904, %v7164
      %v7291 = vadd.f32 %v6905, %v7169
      %v7292 = vadd.f32 %v6906, %v7174
      %v7293 = vadd.f32 %v6907, %v7179
      %v7294 = vadd.f32 %v6908, %v7184
      %v7295 = vadd.f32 %v6909, %v7189
      %v7296 = vadd.f32 %v6910, %v7194
      %v7297 = vadd.f32 %v6911, %v7199
      %v7298 = vadd.f32 %v6912, %v7204
      %v7299 = vadd.f32 %v6913, %v7209
      %v7300 = vadd.f32 %v6914, %v7214
      %v7301 = vadd.f32 %v6915, %v7219
      %v7302 = vadd.f32 %v6916, %v7224
      %v7303 = vadd.f32 %v6917, %v7229
      %v7304 = vadd.f32 %v6918, %v7234
      %v7305 = vadd.f32 %v6919, %v7239
      %v7306 = vadd.f32 %v6920, %v7244
      %v7307 = vadd.f32 %v6921, %v7249
      %v7308 = vadd.f32 %v6922, %v7254
      %v7309 = vadd.f32 %v6923, %v7259
      %v7310 = vadd.f32 %v6924, %v7264
      %v7311 = vadd.f32 %v6925, %v7269
      %v7312 = vadd.f32 %v6926, %v7274
      %v7313 = vadd.f32 %v6927, %v7279
      %v7314 = vld [vmem:[%s6540 + $0x2] sm:$0xff]
      %v7315 = vld [vmem:[%s6540 + $0xa] sm:$0xff]
      %v7316 = vld [vmem:[%s6540 + $0x1a] sm:$0xff]
      %v7317 = vld [vmem:[%s6540 + $0x22] sm:$0xff]
      %v7318 = vld [vmem:[%s6540 + $0x32] sm:$0xff]
      %v7319 = vld [vmem:[%s6540 + $0x3a] sm:$0xff]
      %v7320 = vld [vmem:[%s6540 + $0x4a] sm:$0xff]
      %v7321 = vld [vmem:[%s6540 + $0x52] sm:$0xff]
      %v7322 = vld [vmem:[%s6540 + $0x62] sm:$0xff]
      %v7323 = vld [vmem:[%s6540 + $0x6a] sm:$0xff]
      %v7324 = vld [vmem:[%s6540 + $0x7a] sm:$0xff]
      %v7325 = vld [vmem:[%s6540 + $0x82] sm:$0xff]
      %v7326 = vld [vmem:[%s6540 + $0x92] sm:$0xff]
      %v7327 = vld [vmem:[%s6540 + $0x9a] sm:$0xff]
      %v7328 = vld [vmem:[%s6540 + $0xaa] sm:$0xff]
      %v7329 = vld [vmem:[%s6540 + $0xb2] sm:$0xff]
      %v7330 = vld [vmem:[%s6540 + $0xc2] sm:$0xff]
      %v7331 = vld [vmem:[%s6540 + $0xca] sm:$0xff]
      %v7332 = vld [vmem:[%s6540 + $0xda] sm:$0xff]
      %v7333 = vld [vmem:[%s6540 + $0xe2] sm:$0xff]
      %v7334 = vld [vmem:[%s6540 + $0xf2] sm:$0xff]
      %v7335 = vld [vmem:[%s6540 + $0xfa] sm:$0xff]
      %v7336 = vld [vmem:[%s6540 + $0x10a] sm:$0xff]
      %v7337 = vld [vmem:[%s6540 + $0x112] sm:$0xff]
      %v7338 = vld [vmem:[%s6540 + $0x122] sm:$0xff]
      %v7339 = vld [vmem:[%s6540 + $0x12a] sm:$0xff]
      %v7340 = vld [vmem:[%s6540 + $0x13a] sm:$0xff]
      %v7341 = vld [vmem:[%s6540 + $0x142] sm:$0xff]
      %v7342 = vld [vmem:[%s6540 + $0x152] sm:$0xff]
      %v7343 = vld [vmem:[%s6540 + $0x15a] sm:$0xff]
      %v7344 = vld [vmem:[%s6540 + $0x16a] sm:$0xff]
      %v7345 = vld [vmem:[%s6540 + $0x172] sm:$0xff]
      %v7346 = vld [vmem:[%s6573 + $0x10] sm:$0xff]
      %v7348 = vsel %vm225, %v7314, 0
      %v7351 = vsel %vm225, %v7315, 0
      %v7354 = vsel %vm225, %v7316, 0
      %v7357 = vsel %vm225, %v7317, 0
      %v7360 = vsel %vm225, %v7318, 0
      %v7363 = vsel %vm225, %v7319, 0
      %v7366 = vsel %vm225, %v7320, 0
      %v7369 = vsel %vm225, %v7321, 0
      %v7372 = vsel %vm225, %v7322, 0
      %v7375 = vsel %vm225, %v7323, 0
      %v7378 = vsel %vm225, %v7324, 0
      %v7381 = vsel %vm225, %v7325, 0
      %v7384 = vsel %vm225, %v7326, 0
      %v7387 = vsel %vm225, %v7327, 0
      %v7390 = vsel %vm225, %v7328, 0
      %v7393 = vsel %vm225, %v7329, 0
      %v7396 = vsel %vm225, %v7330, 0
      %v7399 = vsel %vm225, %v7331, 0
      %v7402 = vsel %vm225, %v7332, 0
      %v7405 = vsel %vm225, %v7333, 0
      %v7408 = vsel %vm225, %v7334, 0
      %v7411 = vsel %vm225, %v7335, 0
      %v7414 = vsel %vm225, %v7336, 0
      %v7417 = vsel %vm225, %v7337, 0
      %v7420 = vsel %vm225, %v7338, 0
      %v7423 = vsel %vm225, %v7339, 0
      %v7426 = vsel %vm225, %v7340, 0
      %v7429 = vsel %vm225, %v7341, 0
      %v7432 = vsel %vm225, %v7342, 0
      %v7435 = vsel %vm225, %v7343, 0
      %v7438 = vsel %vm225, %v7344, 0
      %v7441 = vsel %vm225, %v7345, 0
      %7443 = vmatprep.subr.mxu0 0.0
      %7444 = vmatpush1.msra.mxu0 %v7346
      %7445 = vmatprep.subr.mxu0 0.0
      %7446 = vmatpush1.msra.mxu0 0.0
      %7447 = vmatprep.subr.mxu0 0.0
      %7448 = vmatpush1.msra.mxu0 0.0
      %7449 = vmatprep.subr.mxu0 0.0
      %7450 = vmatpush1.msra.mxu0 0.0
      %7451 = vmatprep.subr.mxu0 0.0
      %7452 = vmatpush1.msra.mxu0 0.0
      %7453 = vmatprep.subr.mxu0 0.0
      %7454 = vmatpush1.msra.mxu0 0.0
      %7455 = vmatprep.subr.mxu0 0.0
      %7456 = vmatpush1.msra.mxu0 0.0
      %7457 = vmatprep.subr.mxu0 0.0
      %7458 = vmatpush1.msra.mxu0 0.0
      %7459 = vmatprep.subr.mxu0 0.0
      %7460 = vmatpush1.msra.mxu0 0.0
      %7461 = vmatprep.subr.mxu0 0.0
      %7462 = vmatpush1.msra.mxu0 0.0
      %7463 = vmatprep.subr.mxu0 0.0
      %7464 = vmatpush1.msra.mxu0 0.0
      %7465 = vmatprep.subr.mxu0 0.0
      %7466 = vmatpush1.msra.mxu0 0.0
      %7467 = vmatprep.subr.mxu0 0.0
      %7468 = vmatpush1.msra.mxu0 0.0
      %7469 = vmatprep.subr.mxu0 0.0
      %7470 = vmatpush1.msra.mxu0 0.0
      %7471 = vmatprep.subr.mxu0 0.0
      %7472 = vmatpush1.msra.mxu0 0.0
      %7473 = vmatprep.subr.mxu0 0.0
      %7474 = vmatpush1.msra.mxu0 0.0
      %7475 = vmatprep.subr.mxu0 0.0
      %7476 = vmatpush1.msra.mxu0 0.0
      %7477 = vmatprep.subr.mxu0 0.0
      %7478 = vmatpush1.msra.mxu0 0.0
      %7479 = vmatprep.subr.mxu0 0.0
      %7480 = vmatpush1.msra.mxu0 0.0
      %7481 = vmatprep.subr.mxu0 0.0
      %7482 = vmatpush1.msra.mxu0 0.0
      %7483 = vmatprep.subr.mxu0 0.0
      %7484 = vmatpush1.msra.mxu0 0.0
      %7485 = vmatprep.subr.mxu0 0.0
      %7486 = vmatpush1.msra.mxu0 0.0
      %7487 = vmatprep.subr.mxu0 0.0
      %7488 = vmatpush1.msra.mxu0 0.0
      %7489 = vmatprep.subr.mxu0 0.0
      %7490 = vmatpush1.msra.mxu0 0.0
      %7491 = vmatprep.subr.mxu0 0.0
      %7492 = vmatpush1.msra.mxu0 0.0
      %7493 = vmatprep.subr.mxu0 0.0
      %7494 = vmatpush1.msra.mxu0 0.0
      %7495 = vmatprep.subr.mxu0 0.0
      %7496 = vmatpush1.msra.mxu0 0.0
      %7497 = vmatprep.subr.mxu0 0.0
      %7498 = vmatpush1.msra.mxu0 0.0
      %7499 = vmatprep.subr.mxu0 0.0
      %7500 = vmatpush1.msra.mxu0 0.0
      %7501 = vmatprep.subr.mxu0 0.0
      %7502 = vmatpush1.msra.mxu0 0.0
      %7503 = vmatprep.subr.mxu0 0.0
      %7504 = vmatpush1.msra.mxu0 0.0
      %7505 = vmatprep.subr.mxu0 0.0
      %7506 = vmatpush1.msra.mxu0 0.0
      %7507 = vmatprep.mubr.f32.mxu0 0.0
      %7508 = vmatmul.mubr.f32.gmra.mrb[0].mxu0 %v7348
      %v7509 = vpop.f32.mrb[0].mxu0
      %v7510 = vadd.f32 0.0, %v7509
      %v7511 = vpop.f32.mrb[0].mxu0
      %7512 = vmatprep.mubr.f32.mxu0 0.0
      %7513 = vmatmul.mubr.f32.gmra.mrb[0].mxu0 %v7351
      %v7514 = vpop.f32.mrb[0].mxu0
      %v7515 = vadd.f32 0.0, %v7514
      %v7516 = vpop.f32.mrb[0].mxu0
      %7517 = vmatprep.mubr.f32.mxu0 0.0
      %7518 = vmatmul.mubr.f32.gmra.mrb[0].mxu0 %v7354
      %v7519 = vpop.f32.mrb[0].mxu0
      %v7520 = vadd.f32 0.0, %v7519
      %v7521 = vpop.f32.mrb[0].mxu0
      %7522 = vmatprep.mubr.f32.mxu0 0.0
      %7523 = vmatmul.mubr.f32.gmra.mrb[0].mxu0 %v7357
      %v7524 = vpop.f32.mrb[0].mxu0
      %v7525 = vadd.f32 0.0, %v7524
      %v7526 = vpop.f32.mrb[0].mxu0
      %7527 = vmatprep.mubr.f32.mxu0 0.0
      %7528 = vmatmul.mubr.f32.gmra.mrb[0].mxu0 %v7360
      %v7529 = vpop.f32.mrb[0].mxu0
      %v7530 = vadd.f32 0.0, %v7529
      %v7531 = vpop.f32.mrb[0].mxu0
      %7532 = vmatprep.mubr.f32.mxu0 0.0
      %7533 = vmatmul.mubr.f32.gmra.mrb[0].mxu0 %v7363
      %v7534 = vpop.f32.mrb[0].mxu0
      %v7535 = vadd.f32 0.0, %v7534
      %v7536 = vpop.f32.mrb[0].mxu0
      %7537 = vmatprep.mubr.f32.mxu0 0.0
      %7538 = vmatmul.mubr.f32.gmra.mrb[0].mxu0 %v7366
      %v7539 = vpop.f32.mrb[0].mxu0
      %v7540 = vadd.f32 0.0, %v7539
      %v7541 = vpop.f32.mrb[0].mxu0
      %7542 = vmatprep.mubr.f32.mxu0 0.0
      %7543 = vmatmul.mubr.f32.gmra.mrb[0].mxu0 %v7369
      %v7544 = vpop.f32.mrb[0].mxu0
      %v7545 = vadd.f32 0.0, %v7544
      %v7546 = vpop.f32.mrb[0].mxu0
      %7547 = vmatprep.mubr.f32.mxu0 0.0
      %7548 = vmatmul.mubr.f32.gmra.mrb[0].mxu0 %v7372
      %v7549 = vpop.f32.mrb[0].mxu0
      %v7550 = vadd.f32 0.0, %v7549
      %v7551 = vpop.f32.mrb[0].mxu0
      %7552 = vmatprep.mubr.f32.mxu0 0.0
      %7553 = vmatmul.mubr.f32.gmra.mrb[0].mxu0 %v7375
      %v7554 = vpop.f32.mrb[0].mxu0
      %v7555 = vadd.f32 0.0, %v7554
      %v7556 = vpop.f32.mrb[0].mxu0
      %7557 = vmatprep.mubr.f32.mxu0 0.0
      %7558 = vmatmul.mubr.f32.gmra.mrb[0].mxu0 %v7378
      %v7559 = vpop.f32.mrb[0].mxu0
      %v7560 = vadd.f32 0.0, %v7559
      %v7561 = vpop.f32.mrb[0].mxu0
      %7562 = vmatprep.mubr.f32.mxu0 0.0
      %7563 = vmatmul.mubr.f32.gmra.mrb[0].mxu0 %v7381
      %v7564 = vpop.f32.mrb[0].mxu0
      %v7565 = vadd.f32 0.0, %v7564
      %v7566 = vpop.f32.mrb[0].mxu0
      %7567 = vmatprep.mubr.f32.mxu0 0.0
      %7568 = vmatmul.mubr.f32.gmra.mrb[0].mxu0 %v7384
      %v7569 = vpop.f32.mrb[0].mxu0
      %v7570 = vadd.f32 0.0, %v7569
      %v7571 = vpop.f32.mrb[0].mxu0
      %7572 = vmatprep.mubr.f32.mxu0 0.0
      %7573 = vmatmul.mubr.f32.gmra.mrb[0].mxu0 %v7387
      %v7574 = vpop.f32.mrb[0].mxu0
      %v7575 = vadd.f32 0.0, %v7574
      %v7576 = vpop.f32.mrb[0].mxu0
      %7577 = vmatprep.mubr.f32.mxu0 0.0
      %7578 = vmatmul.mubr.f32.gmra.mrb[0].mxu0 %v7390
      %v7579 = vpop.f32.mrb[0].mxu0
      %v7580 = vadd.f32 0.0, %v7579
      %v7581 = vpop.f32.mrb[0].mxu0
      %7582 = vmatprep.mubr.f32.mxu0 0.0
      %7583 = vmatmul.mubr.f32.gmra.mrb[0].mxu0 %v7393
      %v7584 = vpop.f32.mrb[0].mxu0
      %v7585 = vadd.f32 0.0, %v7584
      %v7586 = vpop.f32.mrb[0].mxu0
      %7587 = vmatprep.mubr.f32.mxu0 0.0
      %7588 = vmatmul.mubr.f32.gmra.mrb[0].mxu0 %v7396
      %v7589 = vpop.f32.mrb[0].mxu0
      %v7590 = vadd.f32 0.0, %v7589
      %v7591 = vpop.f32.mrb[0].mxu0
      %7592 = vmatprep.mubr.f32.mxu0 0.0
      %7593 = vmatmul.mubr.f32.gmra.mrb[0].mxu0 %v7399
      %v7594 = vpop.f32.mrb[0].mxu0
      %v7595 = vadd.f32 0.0, %v7594
      %v7596 = vpop.f32.mrb[0].mxu0
      %7597 = vmatprep.mubr.f32.mxu0 0.0
      %7598 = vmatmul.mubr.f32.gmra.mrb[0].mxu0 %v7402
      %v7599 = vpop.f32.mrb[0].mxu0
      %v7600 = vadd.f32 0.0, %v7599
      %v7601 = vpop.f32.mrb[0].mxu0
      %7602 = vmatprep.mubr.f32.mxu0 0.0
      %7603 = vmatmul.mubr.f32.gmra.mrb[0].mxu0 %v7405
      %v7604 = vpop.f32.mrb[0].mxu0
      %v7605 = vadd.f32 0.0, %v7604
      %v7606 = vpop.f32.mrb[0].mxu0
      %7607 = vmatprep.mubr.f32.mxu0 0.0
      %7608 = vmatmul.mubr.f32.gmra.mrb[0].mxu0 %v7408
      %v7609 = vpop.f32.mrb[0].mxu0
      %v7610 = vadd.f32 0.0, %v7609
      %v7611 = vpop.f32.mrb[0].mxu0
      %7612 = vmatprep.mubr.f32.mxu0 0.0
      %7613 = vmatmul.mubr.f32.gmra.mrb[0].mxu0 %v7411
      %v7614 = vpop.f32.mrb[0].mxu0
      %v7615 = vadd.f32 0.0, %v7614
      %v7616 = vpop.f32.mrb[0].mxu0
      %7617 = vmatprep.mubr.f32.mxu0 0.0
      %7618 = vmatmul.mubr.f32.gmra.mrb[0].mxu0 %v7414
      %v7619 = vpop.f32.mrb[0].mxu0
      %v7620 = vadd.f32 0.0, %v7619
      %v7621 = vpop.f32.mrb[0].mxu0
      %7622 = vmatprep.mubr.f32.mxu0 0.0
      %7623 = vmatmul.mubr.f32.gmra.mrb[0].mxu0 %v7417
      %v7624 = vpop.f32.mrb[0].mxu0
      %v7625 = vadd.f32 0.0, %v7624
      %v7626 = vpop.f32.mrb[0].mxu0
      %7627 = vmatprep.mubr.f32.mxu0 0.0
      %7628 = vmatmul.mubr.f32.gmra.mrb[0].mxu0 %v7420
      %v7629 = vpop.f32.mrb[0].mxu0
      %v7630 = vadd.f32 0.0, %v7629
      %v7631 = vpop.f32.mrb[0].mxu0
      %7632 = vmatprep.mubr.f32.mxu0 0.0
      %7633 = vmatmul.mubr.f32.gmra.mrb[0].mxu0 %v7423
      %v7634 = vpop.f32.mrb[0].mxu0
      %v7635 = vadd.f32 0.0, %v7634
      %v7636 = vpop.f32.mrb[0].mxu0
      %7637 = vmatprep.mubr.f32.mxu0 0.0
      %7638 = vmatmul.mubr.f32.gmra.mrb[0].mxu0 %v7426
      %v7639 = vpop.f32.mrb[0].mxu0
      %v7640 = vadd.f32 0.0, %v7639
      %v7641 = vpop.f32.mrb[0].mxu0
      %7642 = vmatprep.mubr.f32.mxu0 0.0
      %7643 = vmatmul.mubr.f32.gmra.mrb[0].mxu0 %v7429
      %v7644 = vpop.f32.mrb[0].mxu0
      %v7645 = vadd.f32 0.0, %v7644
      %v7646 = vpop.f32.mrb[0].mxu0
      %7647 = vmatprep.mubr.f32.mxu0 0.0
      %7648 = vmatmul.mubr.f32.gmra.mrb[0].mxu0 %v7432
      %v7649 = vpop.f32.mrb[0].mxu0
      %v7650 = vadd.f32 0.0, %v7649
      %v7651 = vpop.f32.mrb[0].mxu0
      %7652 = vmatprep.mubr.f32.mxu0 0.0
      %7653 = vmatmul.mubr.f32.gmra.mrb[0].mxu0 %v7435
      %v7654 = vpop.f32.mrb[0].mxu0
      %v7655 = vadd.f32 0.0, %v7654
      %v7656 = vpop.f32.mrb[0].mxu0
      %7657 = vmatprep.mubr.f32.mxu0 0.0
      %7658 = vmatmul.mubr.f32.gmra.mrb[0].mxu0 %v7438
      %v7659 = vpop.f32.mrb[0].mxu0
      %v7660 = vadd.f32 0.0, %v7659
      %v7661 = vpop.f32.mrb[0].mxu0
      %7662 = vmatprep.mubr.f32.mxu0 0.0
      %7663 = vmatmul.mubr.f32.gmra.mrb[0].mxu0 %v7441
      %v7664 = vpop.f32.mrb[0].mxu0
      %v7665 = vadd.f32 0.0, %v7664
      %v7666 = vpop.f32.mrb[0].mxu0
      %7667 = vdwg.mxu0
      %v7668 = vadd.f32 %v7282, %v7510
      %v7669 = vadd.f32 %v7283, %v7515
      %v7670 = vadd.f32 %v7284, %v7520
      %v7671 = vadd.f32 %v7285, %v7525
      %v7672 = vadd.f32 %v7286, %v7530
      %v7673 = vadd.f32 %v7287, %v7535
      %v7674 = vadd.f32 %v7288, %v7540
      %v7675 = vadd.f32 %v7289, %v7545
      %v7676 = vadd.f32 %v7290, %v7550
      %v7677 = vadd.f32 %v7291, %v7555
      %v7678 = vadd.f32 %v7292, %v7560
      %v7679 = vadd.f32 %v7293, %v7565
      %v7680 = vadd.f32 %v7294, %v7570
      %v7681 = vadd.f32 %v7295, %v7575
      %v7682 = vadd.f32 %v7296, %v7580
      %v7683 = vadd.f32 %v7297, %v7585
      %v7684 = vadd.f32 %v7298, %v7590
      %v7685 = vadd.f32 %v7299, %v7595
      %v7686 = vadd.f32 %v7300, %v7600
      %v7687 = vadd.f32 %v7301, %v7605
      %v7688 = vadd.f32 %v7302, %v7610
      %v7689 = vadd.f32 %v7303, %v7615
      %v7690 = vadd.f32 %v7304, %v7620
      %v7691 = vadd.f32 %v7305, %v7625
      %v7692 = vadd.f32 %v7306, %v7630
      %v7693 = vadd.f32 %v7307, %v7635
      %v7694 = vadd.f32 %v7308, %v7640
      %v7695 = vadd.f32 %v7309, %v7645
      %v7696 = vadd.f32 %v7310, %v7650
      %v7697 = vadd.f32 %v7311, %v7655
      %v7698 = vadd.f32 %v7312, %v7660
      %v7699 = vadd.f32 %v7313, %v7665
      %v7700 = vld [vmem:[%s3 + $0x3] sm:$0x1]
      %v7701 = vld [vmem:[%s3 + $0x4] sm:$0x1]
      %v7702 = vld [vmem:[%s3 + $0x5] sm:$0x1]
      %v7703 = vsel %vm225, %v7668, 0.0
      %v7704 = vsel %vm225, %v7669, 0.0
      %v7705 = vadd.f32 %v7703, %v7704
      %v7706 = vsel %vm225, %v7670, 0.0
      %v7707 = vadd.f32 %v7705, %v7706
      %v7708 = vsel %vm225, %v7671, 0.0
      %v7709 = vadd.f32 %v7707, %v7708
      %v7710 = vsel %vm225, %v7672, 0.0
      %v7711 = vadd.f32 %v7709, %v7710
      %v7712 = vsel %vm225, %v7673, 0.0
      %v7713 = vadd.f32 %v7711, %v7712
      %v7714 = vsel %vm225, %v7674, 0.0
      %v7715 = vadd.f32 %v7713, %v7714
      %v7716 = vsel %vm225, %v7675, 0.0
      %v7717 = vadd.f32 %v7715, %v7716
      %v7718 = vsel %vm225, %v7676, 0.0
      %v7719 = vadd.f32 %v7717, %v7718
      %v7720 = vsel %vm225, %v7677, 0.0
      %v7721 = vadd.f32 %v7719, %v7720
      %v7722 = vsel %vm225, %v7678, 0.0
      %v7723 = vadd.f32 %v7721, %v7722
      %v7724 = vsel %vm225, %v7679, 0.0
      %v7725 = vadd.f32 %v7723, %v7724
      %v7726 = vsel %vm225, %v7680, 0.0
      %v7727 = vadd.f32 %v7725, %v7726
      %v7728 = vsel %vm225, %v7681, 0.0
      %v7729 = vadd.f32 %v7727, %v7728
      %v7730 = vsel %vm225, %v7682, 0.0
      %v7731 = vadd.f32 %v7729, %v7730
      %v7732 = vsel %vm225, %v7683, 0.0
      %v7733 = vadd.f32 %v7731, %v7732
      %v7734 = vsel %vm225, %v7684, 0.0
      %v7735 = vadd.f32 %v7733, %v7734
      %v7736 = vsel %vm225, %v7685, 0.0
      %v7737 = vadd.f32 %v7735, %v7736
      %v7738 = vsel %vm225, %v7686, 0.0
      %v7739 = vadd.f32 %v7737, %v7738
      %v7740 = vsel %vm225, %v7687, 0.0
      %v7741 = vadd.f32 %v7739, %v7740
      %v7742 = vsel %vm225, %v7688, 0.0
      %v7743 = vadd.f32 %v7741, %v7742
      %v7744 = vsel %vm225, %v7689, 0.0
      %v7745 = vadd.f32 %v7743, %v7744
      %v7746 = vsel %vm225, %v7690, 0.0
      %v7747 = vadd.f32 %v7745, %v7746
      %v7748 = vsel %vm225, %v7691, 0.0
      %v7749 = vadd.f32 %v7747, %v7748
      %v7750 = vsel %vm225, %v7692, 0.0
      %v7751 = vadd.f32 %v7749, %v7750
      %v7752 = vsel %vm225, %v7693, 0.0
      %v7753 = vadd.f32 %v7751, %v7752
      %v7754 = vsel %vm225, %v7694, 0.0
      %v7755 = vadd.f32 %v7753, %v7754
      %v7756 = vsel %vm225, %v7695, 0.0
      %v7757 = vadd.f32 %v7755, %v7756
      %v7758 = vsel %vm225, %v7696, 0.0
      %v7759 = vadd.f32 %v7757, %v7758
      %v7760 = vsel %vm225, %v7697, 0.0
      %v7761 = vadd.f32 %v7759, %v7760
      %v7762 = vsel %vm225, %v7698, 0.0
      %v7763 = vadd.f32 %v7761, %v7762
      %v7764 = vsel %vm225, %v7699, 0.0
      %v7765 = vadd.f32 %v7763, %v7764
      %v7766 = vrot.slane %v7765, 4
      %v7767 = vadd.f32 %v7765, %v7766
      %v7768 = vrot.slane %v7767, 2
      %v7769 = vadd.f32 %v7767, %v7768
      %v7770 = vrot.slane %v7769, 1
      %v7771 = vadd.f32 %v7769, %v7770
      %v7772 = vmul.f32 %v7668, %v7668
      %v7773 = vmul.f32 %v7669, %v7669
      %v7774 = vmul.f32 %v7670, %v7670
      %v7775 = vmul.f32 %v7671, %v7671
      %v7776 = vmul.f32 %v7672, %v7672
      %v7777 = vmul.f32 %v7673, %v7673
      %v7778 = vmul.f32 %v7674, %v7674
      %v7779 = vmul.f32 %v7675, %v7675
      %v7780 = vmul.f32 %v7676, %v7676
      %v7781 = vmul.f32 %v7677, %v7677
      %v7782 = vmul.f32 %v7678, %v7678
      %v7783 = vmul.f32 %v7679, %v7679
      %v7784 = vmul.f32 %v7680, %v7680
      %v7785 = vmul.f32 %v7681, %v7681
      %v7786 = vmul.f32 %v7682, %v7682
      %v7787 = vmul.f32 %v7683, %v7683
      %v7788 = vmul.f32 %v7684, %v7684
      %v7789 = vmul.f32 %v7685, %v7685
      %v7790 = vmul.f32 %v7686, %v7686
      %v7791 = vmul.f32 %v7687, %v7687
      %v7792 = vmul.f32 %v7688, %v7688
      %v7793 = vmul.f32 %v7689, %v7689
      %v7794 = vmul.f32 %v7690, %v7690
      %v7795 = vmul.f32 %v7691, %v7691
      %v7796 = vmul.f32 %v7692, %v7692
      %v7797 = vmul.f32 %v7693, %v7693
      %v7798 = vmul.f32 %v7694, %v7694
      %v7799 = vmul.f32 %v7695, %v7695
      %v7800 = vmul.f32 %v7696, %v7696
      %v7801 = vmul.f32 %v7697, %v7697
      %v7802 = vmul.f32 %v7698, %v7698
      %v7803 = vmul.f32 %v7699, %v7699
      %v7804 = vsel %vm225, %v7772, 0.0
      %v7805 = vsel %vm225, %v7773, 0.0
      %v7806 = vadd.f32 %v7804, %v7805
      %v7807 = vsel %vm225, %v7774, 0.0
      %v7808 = vadd.f32 %v7806, %v7807
      %v7809 = vsel %vm225, %v7775, 0.0
      %v7810 = vadd.f32 %v7808, %v7809
      %v7811 = vsel %vm225, %v7776, 0.0
      %v7812 = vadd.f32 %v7810, %v7811
      %v7813 = vsel %vm225, %v7777, 0.0
      %v7814 = vadd.f32 %v7812, %v7813
      %v7815 = vsel %vm225, %v7778, 0.0
      %v7816 = vadd.f32 %v7814, %v7815
      %v7817 = vsel %vm225, %v7779, 0.0
      %v7818 = vadd.f32 %v7816, %v7817
      %v7819 = vsel %vm225, %v7780, 0.0
      %v7820 = vadd.f32 %v7818, %v7819
      %v7821 = vsel %vm225, %v7781, 0.0
      %v7822 = vadd.f32 %v7820, %v7821
      %v7823 = vsel %vm225, %v7782, 0.0
      %v7824 = vadd.f32 %v7822, %v7823
      %v7825 = vsel %vm225, %v7783, 0.0
      %v7826 = vadd.f32 %v7824, %v7825
      %v7827 = vsel %vm225, %v7784, 0.0
      %v7828 = vadd.f32 %v7826, %v7827
      %v7829 = vsel %vm225, %v7785, 0.0
      %v7830 = vadd.f32 %v7828, %v7829
      %v7831 = vsel %vm225, %v7786, 0.0
      %v7832 = vadd.f32 %v7830, %v7831
      %v7833 = vsel %vm225, %v7787, 0.0
      %v7834 = vadd.f32 %v7832, %v7833
      %v7835 = vsel %vm225, %v7788, 0.0
      %v7836 = vadd.f32 %v7834, %v7835
      %v7837 = vsel %vm225, %v7789, 0.0
      %v7838 = vadd.f32 %v7836, %v7837
      %v7839 = vsel %vm225, %v7790, 0.0
      %v7840 = vadd.f32 %v7838, %v7839
      %v7841 = vsel %vm225, %v7791, 0.0
      %v7842 = vadd.f32 %v7840, %v7841
      %v7843 = vsel %vm225, %v7792, 0.0
      %v7844 = vadd.f32 %v7842, %v7843
      %v7845 = vsel %vm225, %v7793, 0.0
      %v7846 = vadd.f32 %v7844, %v7845
      %v7847 = vsel %vm225, %v7794, 0.0
      %v7848 = vadd.f32 %v7846, %v7847
      %v7849 = vsel %vm225, %v7795, 0.0
      %v7850 = vadd.f32 %v7848, %v7849
      %v7851 = vsel %vm225, %v7796, 0.0
      %v7852 = vadd.f32 %v7850, %v7851
      %v7853 = vsel %vm225, %v7797, 0.0
      %v7854 = vadd.f32 %v7852, %v7853
      %v7855 = vsel %vm225, %v7798, 0.0
      %v7856 = vadd.f32 %v7854, %v7855
      %v7857 = vsel %vm225, %v7799, 0.0
      %v7858 = vadd.f32 %v7856, %v7857
      %v7859 = vsel %vm225, %v7800, 0.0
      %v7860 = vadd.f32 %v7858, %v7859
      %v7861 = vsel %vm225, %v7801, 0.0
      %v7862 = vadd.f32 %v7860, %v7861
      %v7863 = vsel %vm225, %v7802, 0.0
      %v7864 = vadd.f32 %v7862, %v7863
      %v7865 = vsel %vm225, %v7803, 0.0
      %v7866 = vadd.f32 %v7864, %v7865
      %v7867 = vrot.slane %v7866, 4
      %v7868 = vadd.f32 %v7866, %v7867
      %v7869 = vrot.slane %v7868, 2
      %v7870 = vadd.f32 %v7868, %v7869
      %v7871 = vrot.slane %v7870, 1
      %v7872 = vadd.f32 %v7870, %v7871
      %v7873 = vmul.f32 %v7700, 256.0
      %v7874 = vadd.f32 %v7771, %v7873
      %v7875 = vmul.f32 %v7700, 2.0
      %v7876 = vmul.f32 %v7875, %v7771
      %v7877 = vadd.f32 %v7872, %v7876
      %v7878 = vmul.f32 %v7873, %v7700
      %v7879 = vadd.f32 %v7877, %v7878
      %v7881 = vsel %vm225, %v7874, 0
      %7883 = vmatprep.subr.mxu0 0.0
      %7884 = vmatpush1.msra.mxu0 %v335
      %7885 = vmatprep.subr.mxu0 0.0
      %7886 = vmatpush1.msra.mxu0 0.0
      %7887 = vmatprep.subr.mxu0 0.0
      %7888 = vmatpush1.msra.mxu0 0.0
      %7889 = vmatprep.subr.mxu0 0.0
      %7890 = vmatpush1.msra.mxu0 0.0
      %7891 = vmatprep.subr.mxu0 0.0
      %7892 = vmatpush1.msra.mxu0 0.0
      %7893 = vmatprep.subr.mxu0 0.0
      %7894 = vmatpush1.msra.mxu0 0.0
      %7895 = vmatprep.subr.mxu0 0.0
      %7896 = vmatpush1.msra.mxu0 0.0
      %7897 = vmatprep.subr.mxu0 0.0
      %7898 = vmatpush1.msra.mxu0 0.0
      %7899 = vmatprep.subr.mxu0 0.0
      %7900 = vmatpush1.msra.mxu0 0.0
      %7901 = vmatprep.subr.mxu0 0.0
      %7902 = vmatpush1.msra.mxu0 0.0
      %7903 = vmatprep.subr.mxu0 0.0
      %7904 = vmatpush1.msra.mxu0 0.0
      %7905 = vmatprep.subr.mxu0 0.0
      %7906 = vmatpush1.msra.mxu0 0.0
      %7907 = vmatprep.subr.mxu0 0.0
      %7908 = vmatpush1.msra.mxu0 0.0
      %7909 = vmatprep.subr.mxu0 0.0
      %7910 = vmatpush1.msra.mxu0 0.0
      %7911 = vmatprep.subr.mxu0 0.0
      %7912 = vmatpush1.msra.mxu0 0.0
      %7913 = vmatprep.subr.mxu0 0.0
      %7914 = vmatpush1.msra.mxu0 0.0
      %7915 = vmatprep.subr.mxu0 0.0
      %7916 = vmatpush1.msra.mxu0 0.0
      %7917 = vmatprep.subr.mxu0 0.0
      %7918 = vmatpush1.msra.mxu0 0.0
      %7919 = vmatprep.subr.mxu0 0.0
      %7920 = vmatpush1.msra.mxu0 0.0
      %7921 = vmatprep.subr.mxu0 0.0
      %7922 = vmatpush1.msra.mxu0 0.0
      %7923 = vmatprep.subr.mxu0 0.0
      %7924 = vmatpush1.msra.mxu0 0.0
      %7925 = vmatprep.subr.mxu0 0.0
      %7926 = vmatpush1.msra.mxu0 0.0
      %7927 = vmatprep.subr.mxu0 0.0
      %7928 = vmatpush1.msra.mxu0 0.0
      %7929 = vmatprep.subr.mxu0 0.0
      %7930 = vmatpush1.msra.mxu0 0.0
      %7931 = vmatprep.subr.mxu0 0.0
      %7932 = vmatpush1.msra.mxu0 0.0
      %7933 = vmatprep.subr.mxu0 0.0
      %7934 = vmatpush1.msra.mxu0 0.0
      %7935 = vmatprep.subr.mxu0 0.0
      %7936 = vmatpush1.msra.mxu0 0.0
      %7937 = vmatprep.subr.mxu0 0.0
      %7938 = vmatpush1.msra.mxu0 0.0
      %7939 = vmatprep.subr.mxu0 0.0
      %7940 = vmatpush1.msra.mxu0 0.0
      %7941 = vmatprep.subr.mxu0 0.0
      %7942 = vmatpush1.msra.mxu0 0.0
      %7943 = vmatprep.subr.mxu0 0.0
      %7944 = vmatpush1.msra.mxu0 0.0
      %7945 = vmatprep.subr.mxu0 0.0
      %7946 = vmatpush1.msra.mxu0 0.0
      %7947 = vmatprep.mubr.f32.mxu0 0.0
      %7948 = vmatmul.mubr.f32.gmra.mrb[0].mxu0 %v7881
      %v7949 = vpop.f32.mrb[0].mxu0
      %v7950 = vadd.f32 0.0, %v7949
      %v7951 = vpop.f32.mrb[0].mxu0
      %7952 = vdwg.mxu0
      %v7953 = vmul.f32 %v7950, 0.00048828125
      %v7955 = vsel %vm225, %v7879, 0
      %7957 = vmatprep.subr.mxu0 0.0
      %7958 = vmatpush1.msra.mxu0 %v335
      %7959 = vmatprep.subr.mxu0 0.0
      %7960 = vmatpush1.msra.mxu0 0.0
      %7961 = vmatprep.subr.mxu0 0.0
      %7962 = vmatpush1.msra.mxu0 0.0
      %7963 = vmatprep.subr.mxu0 0.0
      %7964 = vmatpush1.msra.mxu0 0.0
      %7965 = vmatprep.subr.mxu0 0.0
      %7966 = vmatpush1.msra.mxu0 0.0
      %7967 = vmatprep.subr.mxu0 0.0
      %7968 = vmatpush1.msra.mxu0 0.0
      %7969 = vmatprep.subr.mxu0 0.0
      %7970 = vmatpush1.msra.mxu0 0.0
      %7971 = vmatprep.subr.mxu0 0.0
      %7972 = vmatpush1.msra.mxu0 0.0
      %7973 = vmatprep.subr.mxu0 0.0
      %7974 = vmatpush1.msra.mxu0 0.0
      %7975 = vmatprep.subr.mxu0 0.0
      %7976 = vmatpush1.msra.mxu0 0.0
      %7977 = vmatprep.subr.mxu0 0.0
      %7978 = vmatpush1.msra.mxu0 0.0
      %7979 = vmatprep.subr.mxu0 0.0
      %7980 = vmatpush1.msra.mxu0 0.0
      %7981 = vmatprep.subr.mxu0 0.0
      %7982 = vmatpush1.msra.mxu0 0.0
      %7983 = vmatprep.subr.mxu0 0.0
      %7984 = vmatpush1.msra.mxu0 0.0
      %7985 = vmatprep.subr.mxu0 0.0
      %7986 = vmatpush1.msra.mxu0 0.0
      %7987 = vmatprep.subr.mxu0 0.0
      %7988 = vmatpush1.msra.mxu0 0.0
      %7989 = vmatprep.subr.mxu0 0.0
      %7990 = vmatpush1.msra.mxu0 0.0
      %7991 = vmatprep.subr.mxu0 0.0
      %7992 = vmatpush1.msra.mxu0 0.0
      %7993 = vmatprep.subr.mxu0 0.0
      %7994 = vmatpush1.msra.mxu0 0.0
      %7995 = vmatprep.subr.mxu0 0.0
      %7996 = vmatpush1.msra.mxu0 0.0
      %7997 = vmatprep.subr.mxu0 0.0
      %7998 = vmatpush1.msra.mxu0 0.0
      %7999 = vmatprep.subr.mxu0 0.0
      %8000 = vmatpush1.msra.mxu0 0.0
      %8001 = vmatprep.subr.mxu0 0.0
      %8002 = vmatpush1.msra.mxu0 0.0
      %8003 = vmatprep.subr.mxu0 0.0
      %8004 = vmatpush1.msra.mxu0 0.0
      %8005 = vmatprep.subr.mxu0 0.0
      %8006 = vmatpush1.msra.mxu0 0.0
      %8007 = vmatprep.subr.mxu0 0.0
      %8008 = vmatpush1.msra.mxu0 0.0
      %8009 = vmatprep.subr.mxu0 0.0
      %8010 = vmatpush1.msra.mxu0 0.0
      %8011 = vmatprep.subr.mxu0 0.0
      %8012 = vmatpush1.msra.mxu0 0.0
      %8013 = vmatprep.subr.mxu0 0.0
      %8014 = vmatpush1.msra.mxu0 0.0
      %8015 = vmatprep.subr.mxu0 0.0
      %8016 = vmatpush1.msra.mxu0 0.0
      %8017 = vmatprep.subr.mxu0 0.0
      %8018 = vmatpush1.msra.mxu0 0.0
      %8019 = vmatprep.subr.mxu0 0.0
      %8020 = vmatpush1.msra.mxu0 0.0
      %8021 = vmatprep.mubr.f32.mxu0 0.0
      %8022 = vmatmul.mubr.f32.gmra.mrb[0].mxu0 %v7955
      %v8023 = vpop.f32.mrb[0].mxu0
      %v8024 = vadd.f32 0.0, %v8023
      %v8025 = vpop.f32.mrb[0].mxu0
      %8026 = vdwg.mxu0
      %v8027 = vmul.f32 %v8024, 0.00048828125
      %v8028 = vmul.f32 %v7953, %v7953
      %v8029 = vsub.f32 %v8027, %v8028
      %v8030 = vadd.f32 %v8029, 1e-05
      %v8031 = vrsqrt.pop %v8030
      %v8032 = vmul.f32 %v7701, %v8031
      %v8033 = vsub.f32 %v7700, %v7953
      %v8034 = vmul.f32 %v8033, %v8032
      %v8035 = vadd.f32 %v7702, %v8034
      %v8036 = vlaneseq
      %v8037 = vshrl.u32 %v8036, 7
      %v8038 = vsub.s32 0, %v8037
      %v8039 = vrot.slane %v8032, %v8038
      %v8040 = vmul.f32 %v7668, %v8039
      %v8041 = vmul.f32 %v7669, %v8039
      %v8042 = vmul.f32 %v7670, %v8039
      %v8043 = vmul.f32 %v7671, %v8039
      %v8044 = vmul.f32 %v7672, %v8039
      %v8045 = vmul.f32 %v7673, %v8039
      %v8046 = vmul.f32 %v7674, %v8039
      %v8047 = vmul.f32 %v7675, %v8039
      %v8048 = vmul.f32 %v7676, %v8039
      %v8049 = vmul.f32 %v7677, %v8039
      %v8050 = vmul.f32 %v7678, %v8039
      %v8051 = vmul.f32 %v7679, %v8039
      %v8052 = vmul.f32 %v7680, %v8039
      %v8053 = vmul.f32 %v7681, %v8039
      %v8054 = vmul.f32 %v7682, %v8039
      %v8055 = vmul.f32 %v7683, %v8039
      %v8056 = vmul.f32 %v7684, %v8039
      %v8057 = vmul.f32 %v7685, %v8039
      %v8058 = vmul.f32 %v7686, %v8039
      %v8059 = vmul.f32 %v7687, %v8039
      %v8060 = vmul.f32 %v7688, %v8039
      %v8061 = vmul.f32 %v7689, %v8039
      %v8062 = vmul.f32 %v7690, %v8039
      %v8063 = vmul.f32 %v7691, %v8039
      %v8064 = vmul.f32 %v7692, %v8039
      %v8065 = vmul.f32 %v7693, %v8039
      %v8066 = vmul.f32 %v7694, %v8039
      %v8067 = vmul.f32 %v7695, %v8039
      %v8068 = vmul.f32 %v7696, %v8039
      %v8069 = vmul.f32 %v7697, %v8039
      %v8070 = vmul.f32 %v7698, %v8039
      %v8071 = vmul.f32 %v7699, %v8039
      %v8072 = vlaneseq
      %v8073 = vshrl.u32 %v8072, 7
      %v8074 = vsub.s32 0, %v8073
      %v8075 = vrot.slane %v8035, %v8074
      %v8076 = vadd.f32 %v8040, %v8075
      %v8077 = vadd.f32 %v8041, %v8075
      %v8078 = vadd.f32 %v8042, %v8075
      %v8079 = vadd.f32 %v8043, %v8075
      %v8080 = vadd.f32 %v8044, %v8075
      %v8081 = vadd.f32 %v8045, %v8075
      %v8082 = vadd.f32 %v8046, %v8075
      %v8083 = vadd.f32 %v8047, %v8075
      %v8084 = vadd.f32 %v8048, %v8075
      %v8085 = vadd.f32 %v8049, %v8075
      %v8086 = vadd.f32 %v8050, %v8075
      %v8087 = vadd.f32 %v8051, %v8075
      %v8088 = vadd.f32 %v8052, %v8075
      %v8089 = vadd.f32 %v8053, %v8075
      %v8090 = vadd.f32 %v8054, %v8075
      %v8091 = vadd.f32 %v8055, %v8075
      %v8092 = vadd.f32 %v8056, %v8075
      %v8093 = vadd.f32 %v8057, %v8075
      %v8094 = vadd.f32 %v8058, %v8075
      %v8095 = vadd.f32 %v8059, %v8075
      %v8096 = vadd.f32 %v8060, %v8075
      %v8097 = vadd.f32 %v8061, %v8075
      %v8098 = vadd.f32 %v8062, %v8075
      %v8099 = vadd.f32 %v8063, %v8075
      %v8100 = vadd.f32 %v8064, %v8075
      %v8101 = vadd.f32 %v8065, %v8075
      %v8102 = vadd.f32 %v8066, %v8075
      %v8103 = vadd.f32 %v8067, %v8075
      %v8104 = vadd.f32 %v8068, %v8075
      %v8105 = vadd.f32 %v8069, %v8075
      %v8106 = vadd.f32 %v8070, %v8075
      %v8107 = vadd.f32 %v8071, %v8075
      %v8108 = vmax.f32 %v8076, 0.0
      %v8109 = vmax.f32 %v8077, 0.0
      %v8110 = vmax.f32 %v8078, 0.0
      %v8111 = vmax.f32 %v8079, 0.0
      %v8112 = vmax.f32 %v8080, 0.0
      %v8113 = vmax.f32 %v8081, 0.0
      %v8114 = vmax.f32 %v8082, 0.0
      %v8115 = vmax.f32 %v8083, 0.0
      %v8116 = vmax.f32 %v8084, 0.0
      %v8117 = vmax.f32 %v8085, 0.0
      %v8118 = vmax.f32 %v8086, 0.0
      %v8119 = vmax.f32 %v8087, 0.0
      %v8120 = vmax.f32 %v8088, 0.0
      %v8121 = vmax.f32 %v8089, 0.0
      %v8122 = vmax.f32 %v8090, 0.0
      %v8123 = vmax.f32 %v8091, 0.0
      %v8124 = vmax.f32 %v8092, 0.0
      %v8125 = vmax.f32 %v8093, 0.0
      %v8126 = vmax.f32 %v8094, 0.0
      %v8127 = vmax.f32 %v8095, 0.0
      %v8128 = vmax.f32 %v8096, 0.0
      %v8129 = vmax.f32 %v8097, 0.0
      %v8130 = vmax.f32 %v8098, 0.0
      %v8131 = vmax.f32 %v8099, 0.0
      %v8132 = vmax.f32 %v8100, 0.0
      %v8133 = vmax.f32 %v8101, 0.0
      %v8134 = vmax.f32 %v8102, 0.0
      %v8135 = vmax.f32 %v8103, 0.0
      %v8136 = vmax.f32 %v8104, 0.0
      %v8137 = vmax.f32 %v8105, 0.0
      %v8138 = vmax.f32 %v8106, 0.0
      %v8139 = vmax.f32 %v8107, 0.0
      %v8140 = vadd.f32 %v336, %v8108
      %v8141 = vadd.f32 %v337, %v8109
      %v8142 = vadd.f32 %v338, %v8110
      %v8143 = vadd.f32 %v339, %v8111
      %v8144 = vadd.f32 %v340, %v8112
      %v8145 = vadd.f32 %v341, %v8113
      %v8146 = vadd.f32 %v342, %v8114
      %v8147 = vadd.f32 %v343, %v8115
      %v8148 = vadd.f32 %v344, %v8116
      %v8149 = vadd.f32 %v345, %v8117
      %v8150 = vadd.f32 %v346, %v8118
      %v8151 = vadd.f32 %v347, %v8119
      %v8152 = vadd.f32 %v348, %v8120
      %v8153 = vadd.f32 %v349, %v8121
      %v8154 = vadd.f32 %v350, %v8122
      %v8155 = vadd.f32 %v351, %v8123
      %v8156 = vadd.f32 %v352, %v8124
      %v8157 = vadd.f32 %v353, %v8125
      %v8158 = vadd.f32 %v354, %v8126
      %v8159 = vadd.f32 %v355, %v8127
      %v8160 = vadd.f32 %v356, %v8128
      %v8161 = vadd.f32 %v357, %v8129
      %v8162 = vadd.f32 %v358, %v8130
      %v8163 = vadd.f32 %v359, %v8131
      %v8164 = vadd.f32 %v360, %v8132
      %v8165 = vadd.f32 %v361, %v8133
      %v8166 = vadd.f32 %v362, %v8134
      %v8167 = vadd.f32 %v363, %v8135
      %v8168 = vadd.f32 %v364, %v8136
      %v8169 = vadd.f32 %v365, %v8137
      %v8170 = vadd.f32 %v366, %v8138
      %v8171 = vadd.f32 %v367, %v8139
      %v8172 = vmax.f32 %v8140, 0.0
      %v8173 = vmax.f32 %v8141, 0.0
      %v8174 = vmax.f32 %v8142, 0.0
      %v8175 = vmax.f32 %v8143, 0.0
      %v8176 = vmax.f32 %v8144, 0.0
      %v8177 = vmax.f32 %v8145, 0.0
      %v8178 = vmax.f32 %v8146, 0.0
      %v8179 = vmax.f32 %v8147, 0.0
      %v8180 = vmax.f32 %v8148, 0.0
      %v8181 = vmax.f32 %v8149, 0.0
      %v8182 = vmax.f32 %v8150, 0.0
      %v8183 = vmax.f32 %v8151, 0.0
      %v8184 = vmax.f32 %v8152, 0.0
      %v8185 = vmax.f32 %v8153, 0.0
      %v8186 = vmax.f32 %v8154, 0.0
      %v8187 = vmax.f32 %v8155, 0.0
      %v8188 = vmax.f32 %v8156, 0.0
      %v8189 = vmax.f32 %v8157, 0.0
      %v8190 = vmax.f32 %v8158, 0.0
      %v8191 = vmax.f32 %v8159, 0.0
      %v8192 = vmax.f32 %v8160, 0.0
      %v8193 = vmax.f32 %v8161, 0.0
      %v8194 = vmax.f32 %v8162, 0.0
      %v8195 = vmax.f32 %v8163, 0.0
      %v8196 = vmax.f32 %v8164, 0.0
      %v8197 = vmax.f32 %v8165, 0.0
      %v8198 = vmax.f32 %v8166, 0.0
      %v8199 = vmax.f32 %v8167, 0.0
      %v8200 = vmax.f32 %v8168, 0.0
      %v8201 = vmax.f32 %v8169, 0.0
      %v8202 = vmax.f32 %v8170, 0.0
      %v8203 = vmax.f32 %v8171, 0.0
      %8204 = vst.msk [vmem:[%s224] sm:$0xff] %vm225, %v8172
      %8205 = vst.msk [vmem:[%s224 + $0x8] sm:$0xff] %vm225, %v8173
      %8206 = vst.msk [vmem:[%s224 + $0x10] sm:$0xff] %vm225, %v8174
      %8207 = vst.msk [vmem:[%s224 + $0x18] sm:$0xff] %vm225, %v8175
      %8208 = vst.msk [vmem:[%s224 + $0x20] sm:$0xff] %vm225, %v8176
      %8209 = vst.msk [vmem:[%s224 + $0x28] sm:$0xff] %vm225, %v8177
      %8210 = vst.msk [vmem:[%s224 + $0x30] sm:$0xff] %vm225, %v8178
      %8211 = vst.msk [vmem:[%s224 + $0x38] sm:$0xff] %vm225, %v8179
      %8212 = vst.msk [vmem:[%s224 + $0x40] sm:$0xff] %vm225, %v8180
      %8213 = vst.msk [vmem:[%s224 + $0x48] sm:$0xff] %vm225, %v8181
      %8214 = vst.msk [vmem:[%s224 + $0x50] sm:$0xff] %vm225, %v8182
      %8215 = vst.msk [vmem:[%s224 + $0x58] sm:$0xff] %vm225, %v8183
      %8216 = vst.msk [vmem:[%s224 + $0x60] sm:$0xff] %vm225, %v8184
      %8217 = vst.msk [vmem:[%s224 + $0x68] sm:$0xff] %vm225, %v8185
      %8218 = vst.msk [vmem:[%s224 + $0x70] sm:$0xff] %vm225, %v8186
      %8219 = vst.msk [vmem:[%s224 + $0x78] sm:$0xff] %vm225, %v8187
      %8220 = vst.msk [vmem:[%s224 + $0x80] sm:$0xff] %vm225, %v8188
      %8221 = vst.msk [vmem:[%s224 + $0x88] sm:$0xff] %vm225, %v8189
      %8222 = vst.msk [vmem:[%s224 + $0x90] sm:$0xff] %vm225, %v8190
      %8223 = vst.msk [vmem:[%s224 + $0x98] sm:$0xff] %vm225, %v8191
      %8224 = vst.msk [vmem:[%s224 + $0xa0] sm:$0xff] %vm225, %v8192
      %8225 = vst.msk [vmem:[%s224 + $0xa8] sm:$0xff] %vm225, %v8193
      %8226 = vst.msk [vmem:[%s224 + $0xb0] sm:$0xff] %vm225, %v8194
      %8227 = vst.msk [vmem:[%s224 + $0xb8] sm:$0xff] %vm225, %v8195
      %8228 = vst.msk [vmem:[%s224 + $0xc0] sm:$0xff] %vm225, %v8196
      %8229 = vst.msk [vmem:[%s224 + $0xc8] sm:$0xff] %vm225, %v8197
      %8230 = vst.msk [vmem:[%s224 + $0xd0] sm:$0xff] %vm225, %v8198
      %8231 = vst.msk [vmem:[%s224 + $0xd8] sm:$0xff] %vm225, %v8199
      %8232 = vst.msk [vmem:[%s224 + $0xe0] sm:$0xff] %vm225, %v8200
      %8233 = vst.msk [vmem:[%s224 + $0xe8] sm:$0xff] %vm225, %v8201
      %8234 = vst.msk [vmem:[%s224 + $0xf0] sm:$0xff] %vm225, %v8202
      %8235 = vst.msk [vmem:[%s224 + $0xf8] sm:$0xff] %vm225, %v8203
      %p8236 = scmp.lt.s32.totalorder %s16, 1
      %s8237 = scalar_select %p8236, %s16, 1
      %s8238 = smul.addr %s8237, 32
      %s8239 = smul.addr %s8238, 8
      %s8240 = scalar_lea.vmem %s5, %s8239
      // Predicated region
      $region41: #{tpu_custom_call.1} parent=39 // pred_check
        %p8241 = pneg %p144
      $region42: #{tpu_custom_call.1} parent=39 // pred_check_branch
        %8243 = sbr.rel (%p8241) target = $region44
      $region43: #{tpu_custom_call.1} parent=39 // pred_region
        _
      $region44: #{tpu_custom_call.1} parent=39 // pred_fallthru
        _
    $region40: #{tpu_custom_call.1} parent=5 // pred_fallthru
      _
    %p8244 = scmp.le.s32.totalorder 2, %s11
    // Predicated region
    $region45: #{tpu_custom_call.1} parent=5 // pred_check
      %p8245 = pneg %p8244
    $region46: #{tpu_custom_call.1} parent=5 // pred_check_branch
      %8247 = sbr.rel (%p8245) target = $region48
    $region47: #{tpu_custom_call.1} parent=5 // pred_region
      %s8248 = ssub.s32 %s11, 2
      // Predicated region
      $region49: #{tpu_custom_call.1} parent=47 // pred_check
        %p8249 = pneg %p150
      $region50: #{tpu_custom_call.1} parent=47 // pred_check_branch
        %8251 = sbr.rel (%p8249) target = $region52
      $region51: #{tpu_custom_call.1} parent=47 // pred_region
        %p8252 = scmp.lt.s32.totalorder %s17, 1
        %s8253 = scalar_select %p8252, %s17, 1
        %s8254 = smul.addr %s8253, 32
        %s8255 = smul.addr %s8254, 8
        %s8256 = scalar_lea.vmem %s5, %s8255
      $region52: #{tpu_custom_call.1} parent=47 // pred_fallthru
        _
    $region48: #{tpu_custom_call.1} parent=5 // pred_fallthru
      _
  $region6: #{tpu_custom_call.1} parent=0 // loop_footer
    %s15 = sadd.s32 1, %s11
  $region7: #{tpu_custom_call.1} parent=0 // loop_footer_branch
    %10 = sbr.rel target = $region3
  $region8: #{tpu_custom_call.1} parent=0 // loop_exit
    _

</llo_original>
